<compile_context>
chip_gen: v7x
topology: tpu7x:2x2x1
jax: 0.10.0
libtpu: 0.0.40
codegen_flags: <defaults>
</compile_context>

<pallas_src>
import functools

import jax
import jax.numpy as jnp
import numpy as np
from jax.experimental import pallas as pl
from jax.experimental.pallas import tpu as pltpu

NEG_INF = -1e30


def _round_up(x, m):
    return (x + m - 1) // m * m


# --------------------------------------------------------------------------
# Pallas kernel
# --------------------------------------------------------------------------
def _cac_kernel(featT_ref, bank_ref, meta_ref,
                lbl_ov_ref, pos_ref, plog_self_ref, plog_other_ref,
                lossn_ref, pmask_ref,
                *, inv_temp, pos_thresh, eps):
    """Fused CAC contrastive loss.  grid = (m_tiles,), bank fully resident."""
    # neg[b, m] = <bank_b, feat_m> / temp   -> (Npad, TM), f32 MXU accumulation.
    neg = jax.lax.dot_general(
        bank_ref[...], featT_ref[...],
        dimension_numbers=(((1,), (0,)), ((), ())),
        preferred_element_type=jnp.float32) * inv_temp

    meta = meta_ref[...]                       # (Npad, 8) f32
    lbl_bank = meta[:, 0:1]                    # bank pseudo-labels (as f32)
    valid_bias = meta[:, 1:2]                  # 0 valid row / -1e30 padded row
    chunk0_bias = meta[:, 2:3]                 # 0 for rows in chunk 0 / -1e30 else

    pos = pos_ref[...]                         # (1, TM)
    lbl_ov = lbl_ov_ref[...]                   # (1, TM)

    # torch: neg_max = max over cat([pos, neg_chunk0], 1)   (no label mask)
    nm = jnp.maximum(pos, jnp.max(neg + chunk0_bias, axis=0, keepdims=True))

    # label mask + bank-row padding folded into the exp argument
    # (one add + one select, no post-exp multiply, no iota/compare)
    arg = jnp.where(lbl_bank != lbl_ov, neg + valid_bias, NEG_INF) - nm
    epos = jnp.exp(pos - nm)                   # prepended pos column (mask == 1)
    down = epos + jnp.sum(jnp.exp(arg), axis=0, keepdims=True)

    logit = epos / (down + eps)
    pmask = jnp.logical_and(plog_other_ref[...] > pos_thresh,
                            plog_self_ref[...] < plog_other_ref[...]
                            ).astype(jnp.float32)
    lossn_ref[...] = -jnp.log(logit + eps) * pmask
    pmask_ref[...] = pmask


# --------------------------------------------------------------------------
# Wrapper: both loss sides in one pallas_call
# --------------------------------------------------------------------------
def _cac_losses(feat1, feat2, ul_all, lbl_all,
                lbl1_ov, lbl2_ov, plog1_ov, plog2_ov,
                *, temp, b_chunk, pos_thresh, eps=1e-8,
                matmul_dtype=jnp.bfloat16, tm_max=512):
    """Returns (loss1, loss2) of the CAC loss, computed in a single kernel."""
    M, C = feat1.shape
    N = ul_all.shape[0]

    # pos = <feat1, feat2>/temp : identical forward value for both sides (f32).
    pos = jnp.sum(feat1.astype(jnp.float32) * feat2.astype(jnp.float32),
                  axis=-1) / temp                                       # (M,)

    # ---- fuse side-1 and side-2 along the row axis ----
    feat = jnp.concatenate([feat1, feat2], axis=0)                      # (2M, C)
    lbl_ov = jnp.concatenate([lbl1_ov, lbl2_ov], axis=0).astype(jnp.float32)
    plog_self = jnp.concatenate([plog1_ov, plog2_ov], axis=0).astype(jnp.float32)
    plog_other = jnp.concatenate([plog2_ov, plog1_ov], axis=0).astype(jnp.float32)
    pos2 = jnp.concatenate([pos, pos], axis=0)

    # ---- row tiling: lane-dense (1, TM) layout; >=2 tiles when possible (v7x) ----
    m2 = 2 * M
    mp_min = _round_up(m2, 128)
    if mp_min >= 256:
        tm = max(128, min(tm_max, _round_up(mp_min // 2, 128)))
    else:
        tm = 128
    mp = _round_up(m2, tm)
    n_m = mp // tm
    pad_m = mp - m2

    # overlap features, pre-transposed to (C, mp): lane-dense MXU RHS blocks
    featT = jnp.pad(jnp.transpose(feat), ((0, 0), (0, pad_m)))
    featT_x = featT.astype(matmul_dtype)

    lbl_ov_l = jnp.pad(lbl_ov, (0, pad_m), constant_values=-1.0).reshape(1, mp)
    pos_l = jnp.pad(pos2, (0, pad_m)).reshape(1, mp)
    plog_s_l = jnp.pad(plog_self, (0, pad_m), constant_values=1.0).reshape(1, mp)
    plog_o_l = jnp.pad(plog_other, (0, pad_m), constant_values=0.0).reshape(1, mp)

    # ---- bank: fully resident (DMA'd once thanks to the constant index_map) ----
    n_pad = _round_up(N, 8)
    bank = jnp.pad(ul_all, ((0, n_pad - N), (0, 0))).astype(matmul_dtype)  # (Npad, C)

    chunk0 = min(int(b_chunk), int(N))
    rows = jnp.arange(n_pad)
    lbl_col = jnp.pad(lbl_all.astype(jnp.float32), (0, n_pad - N),
                      constant_values=-2.0)
    valid_bias = jnp.where(rows < N, 0.0, NEG_INF).astype(jnp.float32)
    chunk0_bias = jnp.where(rows < chunk0, 0.0, NEG_INF).astype(jnp.float32)
    meta = jnp.concatenate(
        [lbl_col[:, None], valid_bias[:, None], chunk0_bias[:, None],
         jnp.zeros((n_pad, 5), jnp.float32)], axis=1)                    # (Npad, 8)

    kernel = functools.partial(
        _cac_kernel, inv_temp=float(1.0 / temp),
        pos_thresh=float(pos_thresh), eps=float(eps))

    itm = jnp.dtype(matmul_dtype).itemsize
    cost = pl.CostEstimate(
        flops=2 * mp * n_pad * C,
        transcendentals=mp * (n_pad + 3),
        bytes_accessed=int(mp * C * itm          # overlap features (once)
                           + n_pad * C * itm     # bank (once, resident)
                           + n_pad * 8 * 4       # bank metadata (once)
                           + 6 * mp * 4))        # per-row inputs + outputs

    row_spec = pl.BlockSpec((1, tm), lambda i: (0, i))
    lossn, pmask = pl.pallas_call(
        kernel,
        out_shape=(jax.ShapeDtypeStruct((1, mp), jnp.float32),
                   jax.ShapeDtypeStruct((1, mp), jnp.float32)),
        grid_spec=pltpu.PrefetchScalarGridSpec(
            num_scalar_prefetch=0,
            grid=(n_m,),
            in_specs=[
                pl.BlockSpec((C, tm), lambda i: (0, i)),     # featT block (bf16)
                pl.BlockSpec((n_pad, C), lambda i: (0, 0)),  # bank (resident)
                pl.BlockSpec((n_pad, 8), lambda i: (0, 0)),  # labels + biases
                row_spec,                                     # overlap labels
                row_spec,                                     # pos
                row_spec,                                     # pseudo_logits self
                row_spec,                                     # pseudo_logits other
            ],
            out_specs=[row_spec, row_spec]),
        compiler_params=pltpu.CompilerParams(
            dimension_semantics=("parallel",)),
        cost_estimate=cost,
    )(featT_x, bank, meta, lbl_ov_l, pos_l, plog_s_l, plog_o_l)

    lossn = lossn.reshape(-1)[:m2]
    pmask = pmask.reshape(-1)[:m2]
    loss1 = jnp.sum(lossn[:M]) / (jnp.sum(pmask[:M]) + 1e-12)
    loss2 = jnp.sum(lossn[M:]) / (jnp.sum(pmask[M:]) + 1e-12)
    return loss1, loss2


# --------------------------------------------------------------------------
# JAX glue: pseudo labels, overlap crops, bank selection
# --------------------------------------------------------------------------
def _prepare_inputs(output_ul1, output_ul2, logits1, logits2,
                    ul1, br1, ul2, br2, select_key, *, stride, selected_num):
    B, C, D, H, W = output_ul1.shape
    S = D * H * W

    pseudo_logits_1 = jnp.max(jax.nn.softmax(logits1, axis=1), axis=1)   # (B,D,H,W)
    pseudo_logits_2 = jnp.max(jax.nn.softmax(logits2, axis=1), axis=1)
    pseudo_label1 = jnp.argmax(logits1, axis=1).astype(jnp.int32)
    pseudo_label2 = jnp.argmax(logits2, axis=1).astype(jnp.int32)

    def crop(feat, lbl, plog, ul, br):
        z0, y0, x0 = ul[0] // stride, ul[1] // stride, ul[2] // stride
        z1, y1, x1 = br[0] // stride, br[1] // stride, br[2] // stride
        f = feat[:, :, z0:z1, y0:y1, x0:x1]
        f = jnp.transpose(f, (0, 2, 3, 4, 1)).reshape(-1, C)
        l = lbl[:, z0:z1, y0:y1, x0:x1].reshape(-1)
        p = plog[:, z0:z1, y0:y1, x0:x1].reshape(-1)
        return f, l, p

    feat1, lbl1_ov, plog1_ov = crop(output_ul1, pseudo_label1, pseudo_logits_1, ul1, br1)
    feat2, lbl2_ov, plog2_ov = crop(output_ul2, pseudo_label2, pseudo_logits_2, ul2, br2)
    assert feat1.shape[0] == feat2.shape[0]

    # random bank selection (deterministic jax.random instead of np.random.choice).
    # Gather the selected rows directly from the channel-first tensors instead of
    # materializing full channels-last copies (saves 2x full-tensor transposes).
    total = B * S
    k1, k2 = jax.random.split(select_key)
    idx1 = jax.random.choice(k1, total, (selected_num,), replace=False)
    idx2 = jax.random.choice(k2, total, (selected_num,), replace=False)
    b1, s1 = idx1 // S, idx1 % S
    b2, s2 = idx2 // S, idx2 % S
    sel1 = output_ul1.reshape(B, C, S)[b1, :, s1]          # (selected_num, C)
    sel2 = output_ul2.reshape(B, C, S)[b2, :, s2]
    ul_all = jnp.concatenate([sel1, sel2], axis=0)
    lbl_all = jnp.concatenate([pseudo_label1.reshape(-1)[idx1],
                               pseudo_label2.reshape(-1)[idx2]], axis=0)
    # TODO(synk): persistent cross-step feature_bank / pseudo_label_bank state is
    # emulated as step 0 (bank == current selection), as in the first call.
    return feat1, feat2, ul_all, lbl_all, lbl1_ov, lbl2_ov, plog1_ov, plog2_ov


def cac_forward(output_ul1, output_ul2, logits1, logits2,
                ul1, br1, ul2, br2, select_key,
                *, stride=16, selected_num=400, b_chunk=500, temp=0.1,
                pos_thresh_value=0.1, weight=0.1, matmul_dtype=jnp.bfloat16):
    """Forward pass of CAC (single training step, empty prior feature bank)."""
    parts = _prepare_inputs(output_ul1, output_ul2, logits1, logits2,
                            ul1, br1, ul2, br2, select_key,
                            stride=stride, selected_num=selected_num)
    loss1, loss2 = _cac_losses(*parts, temp=temp, b_chunk=b_chunk,
                               pos_thresh=pos_thresh_value,
                               matmul_dtype=matmul_dtype)
    return weight * (loss1 + loss2)


# --------------------------------------------------------------------------
# Pure-JAX reference (same bf16 matmul operands) for a self-check
# --------------------------------------------------------------------------
def _reference_losses(feat1, feat2, ul_all, lbl_all,
                      lbl1_ov, lbl2_ov, plog1_ov, plog2_ov,
                      *, temp, b_chunk, pos_thresh, eps=1e-8,
                      matmul_dtype=jnp.bfloat16):
    N = ul_all.shape[0]
    chunk0 = min(int(b_chunk), int(N))       # chunk-0 extent for neg_max
    pos = jnp.sum(feat1 * feat2, axis=-1, keepdims=True) / temp

    def side(feat, lbl_ov, plog_self, plog_other):
        neg = jax.lax.dot_general(
            feat.astype(matmul_dtype), ul_all.astype(matmul_dtype),
            dimension_numbers=(((1,), (1,)), ((), ())),
            preferred_element_type=jnp.float32) / temp
        mask = lbl_all[None, :] != lbl_ov[:, None]
        nm = jnp.maximum(pos, jnp.max(neg[:, :chunk0], axis=-1, keepdims=True))
        down = jnp.exp(pos - nm)[:, 0] + jnp.sum(
            jnp.exp(jnp.where(mask, neg, NEG_INF) - nm), axis=-1)
        logit = jnp.exp(pos - nm)[:, 0] / (down + eps)
        pmask = jnp.logical_and(plog_other > pos_thresh,
                                plog_self < plog_other).astype(jnp.float32)
        lossn = -jnp.log(logit + eps) * pmask
        return jnp.sum(lossn) / (jnp.sum(pmask) + 1e-12)

    return (side(feat1, lbl1_ov, plog1_ov, plog2_ov),
            side(feat2, lbl2_ov, plog2_ov, plog1_ov))


if __name__ == "__main__":
    key = jax.random.PRNGKey(0)
    kf1, kf2, kl1, kl2, ksel = jax.random.split(key, 5)

    B, C, D, H, W = 2, 32, 8, 16, 16
    NUM_CLASSES = 4
    STRIDE = 16
    SELECTED = 400          # bank = 2*400 = 800 rows, fully resident in VMEM

    def _unit(x):           # channel-normalized features (typical projector output)
        return x / (jnp.linalg.norm(x, axis=1, keepdims=True) + 1e-6)

    output_ul1 = _unit(jax.random.normal(kf1, (B, C, D, H, W), jnp.float32))
    output_ul2 = _unit(jax.random.normal(kf2, (B, C, D, H, W), jnp.float32))
    logits1 = jax.random.normal(kl1, (B, NUM_CLASSES, D, H, W), jnp.float32)
    logits2 = jax.random.normal(kl2, (B, NUM_CLASSES, D, H, W), jnp.float32)

    # overlap crop corners in original (pre-stride) coordinates, as in PyTorch
    ul1, br1 = (0, 0, 128), (64, 128, 256)    # -> voxels [0:4, 0:8, 8:16]
    ul2, br2 = (64, 0, 0), (128, 128, 128)    # -> voxels [4:8, 0:8, 0:8]

    loss = cac_forward(output_ul1, output_ul2, logits1, logits2,
                       ul1, br1, ul2, br2, ksel,
                       stride=STRIDE, selected_num=SELECTED, b_chunk=500,
                       temp=0.1, pos_thresh_value=0.1, weight=0.1)
    loss = jax.block_until_ready(loss)
    assert bool(jnp.isfinite(loss))

    # correctness self-check vs pure-JAX reference on identical prepared inputs
    parts = _prepare_inputs(output_ul1, output_ul2, logits1, logits2,
                            ul1, br1, ul2, br2, ksel,
                            stride=STRIDE, selected_num=SELECTED)
    parts = jax.block_until_ready(parts)
    lp1, lp2 = _cac_losses(*parts, temp=0.1, b_chunk=500, pos_thresh=0.1)
    lr1, lr2 = _reference_losses(*parts, temp=0.1, b_chunk=500, pos_thresh=0.1)
    np.testing.assert_allclose(np.asarray([lp1, lp2]), np.asarray([lr1, lr2]),
                               rtol=5e-3, atol=1e-5)
    print("KERNEL_OK")
</pallas_src>

<mosaic_0001>
module attributes {stable_mosaic.version = 11 : i64} {
  func.func @_cac_kernel(%arg0: i32, %arg1: memref<32x512xbf16, #tpu.memory_space<vmem>>, %arg2: memref<800x32xbf16, #tpu.memory_space<vmem>>, %arg3: memref<800x8xf32, #tpu.memory_space<vmem>>, %arg4: memref<1x512xf32, #tpu.memory_space<vmem>>, %arg5: memref<1x512xf32, #tpu.memory_space<vmem>>, %arg6: memref<1x512xf32, #tpu.memory_space<vmem>>, %arg7: memref<1x512xf32, #tpu.memory_space<vmem>>, %arg8: memref<1x512xf32, #tpu.memory_space<vmem>>, %arg9: memref<1x512xf32, #tpu.memory_space<vmem>>) attributes {dimension_semantics = [#tpu.dimension_semantics<parallel>], iteration_bounds = array<i64: 2>, scalar_prefetch = 0 : i64, scratch_operands = 0 : i64, tpu.core_type = #tpu.core_type<tc>, window_params = [{transform_indices = @transform_0, window_bounds = array<i64: 32, 512>}, {pipeline_mode = #tpu.pipeline_mode<synchronous>, transform_indices = @transform_1, window_bounds = array<i64: 800, 32>}, {pipeline_mode = #tpu.pipeline_mode<synchronous>, transform_indices = @transform_2, window_bounds = array<i64: 800, 8>}, {transform_indices = @transform_3, window_bounds = array<i64: 1, 512>}, {transform_indices = @transform_4, window_bounds = array<i64: 1, 512>}, {transform_indices = @transform_5, window_bounds = array<i64: 1, 512>}, {transform_indices = @transform_6, window_bounds = array<i64: 1, 512>}, {transform_indices = @transform_7, window_bounds = array<i64: 1, 512>}, {transform_indices = @transform_8, window_bounds = array<i64: 1, 512>}]} {
    %c0 = arith.constant 0 : index
    %c0_0 = arith.constant 0 : index
    %0 = vector.load %arg2[%c0, %c0_0] : memref<800x32xbf16, #tpu.memory_space<vmem>>, vector<800x32xbf16>
    %c0_1 = arith.constant 0 : index
    %c0_2 = arith.constant 0 : index
    %1 = vector.load %arg1[%c0_1, %c0_2] : memref<32x512xbf16, #tpu.memory_space<vmem>>, vector<32x512xbf16>
    %cst = arith.constant dense<0.000000e+00> : vector<800x512xf32>
    %2 = tpu.matmul %0, %1, %cst {dimension_numbers = #tpu.dot_dimension_numbers<[1], [0], [0], [1], [0, 0, 1, 1], [], []>} : vector<800x32xbf16>, vector<32x512xbf16>, vector<800x512xf32> -> vector<800x512xf32>
    %cst_3 = arith.constant 1.000000e+01 : f32
    %3 = vector.broadcast %cst_3 : f32 to vector<800x512xf32>
    %4 = arith.mulf %2, %3 : vector<800x512xf32>
    %c0_4 = arith.constant 0 : index
    %c0_5 = arith.constant 0 : index
    %5 = vector.load %arg3[%c0_4, %c0_5] : memref<800x8xf32, #tpu.memory_space<vmem>>, vector<800x8xf32>
    %6 = vector.extract_strided_slice %5 {offsets = [0, 0], sizes = [800, 1], strides = [1, 1]} : vector<800x8xf32> to vector<800x1xf32>
    %7 = vector.extract_strided_slice %5 {offsets = [0, 1], sizes = [800, 1], strides = [1, 1]} : vector<800x8xf32> to vector<800x1xf32>
    %8 = vector.extract_strided_slice %5 {offsets = [0, 2], sizes = [800, 1], strides = [1, 1]} : vector<800x8xf32> to vector<800x1xf32>
    %c0_6 = arith.constant 0 : index
    %c0_7 = arith.constant 0 : index
    %9 = vector.load %arg5[%c0_6, %c0_7] : memref<1x512xf32, #tpu.memory_space<vmem>>, vector<1x512xf32>
    %c0_8 = arith.constant 0 : index
    %c0_9 = arith.constant 0 : index
    %10 = vector.load %arg4[%c0_8, %c0_9] : memref<1x512xf32, #tpu.memory_space<vmem>>, vector<1x512xf32>
    %11 = vector.broadcast %8 : vector<800x1xf32> to vector<800x512xf32>
    %12 = arith.addf %4, %11 : vector<800x512xf32>
    %cst_10 = arith.constant dense<0xFF800000> : vector<512xf32>
    %13 = vector.multi_reduction <maximumf>, %12, %cst_10 [0] : vector<800x512xf32> to vector<512xf32>
    %14 = vector.shape_cast %13 : vector<512xf32> to vector<1x512xf32>
    %15 = arith.maximumf %9, %14 : vector<1x512xf32>
    %16 = vector.broadcast %6 : vector<800x1xf32> to vector<800x512xf32>
    %17 = vector.broadcast %10 : vector<1x512xf32> to vector<800x512xf32>
    %18 = arith.cmpf one, %16, %17 : vector<800x512xf32>
    %19 = vector.broadcast %7 : vector<800x1xf32> to vector<800x512xf32>
    %20 = arith.addf %4, %19 : vector<800x512xf32>
    %cst_11 = arith.constant -1.000000e+30 : f32
    %21 = vector.broadcast %cst_11 : f32 to vector<800x512xf32>
    %22 = arith.select %18, %20, %21 : vector<800x512xi1>, vector<800x512xf32>
    %23 = vector.broadcast %15 : vector<1x512xf32> to vector<800x512xf32>
    %24 = arith.subf %22, %23 : vector<800x512xf32>
    %25 = arith.subf %9, %15 : vector<1x512xf32>
    %26 = math.exp %25 : vector<1x512xf32>
    %27 = math.exp %24 : vector<800x512xf32>
    %cst_12 = arith.constant dense<0.000000e+00> : vector<512xf32>
    %28 = vector.multi_reduction <add>, %27, %cst_12 [0] : vector<800x512xf32> to vector<512xf32>
    %29 = vector.shape_cast %28 : vector<512xf32> to vector<1x512xf32>
    %30 = arith.addf %26, %29 : vector<1x512xf32>
    %cst_13 = arith.constant 9.99999993E-9 : f32
    %31 = vector.broadcast %cst_13 : f32 to vector<1x512xf32>
    %32 = arith.addf %30, %31 : vector<1x512xf32>
    %33 = arith.divf %26, %32 : vector<1x512xf32>
    %c0_14 = arith.constant 0 : index
    %c0_15 = arith.constant 0 : index
    %34 = vector.load %arg7[%c0_14, %c0_15] : memref<1x512xf32, #tpu.memory_space<vmem>>, vector<1x512xf32>
    %cst_16 = arith.constant 1.000000e-01 : f32
    %35 = vector.broadcast %cst_16 : f32 to vector<1x512xf32>
    %36 = arith.cmpf ogt, %34, %35 : vector<1x512xf32>
    %c0_17 = arith.constant 0 : index
    %c0_18 = arith.constant 0 : index
    %37 = vector.load %arg6[%c0_17, %c0_18] : memref<1x512xf32, #tpu.memory_space<vmem>>, vector<1x512xf32>
    %c0_19 = arith.constant 0 : index
    %c0_20 = arith.constant 0 : index
    %38 = vector.load %arg7[%c0_19, %c0_20] : memref<1x512xf32, #tpu.memory_space<vmem>>, vector<1x512xf32>
    %39 = arith.cmpf olt, %37, %38 : vector<1x512xf32>
    %40 = arith.andi %36, %39 : vector<1x512xi1>
    %41 = arith.extui %40 : vector<1x512xi1> to vector<1x512xi32>
    %42 = arith.sitofp %41 : vector<1x512xi32> to vector<1x512xf32>
    %cst_21 = arith.constant 9.99999993E-9 : f32
    %43 = vector.broadcast %cst_21 : f32 to vector<1x512xf32>
    %44 = arith.addf %33, %43 : vector<1x512xf32>
    %45 = math.log %44 : vector<1x512xf32>
    %cst_22 = arith.constant 0.000000e+00 : f32
    %46 = vector.broadcast %cst_22 : f32 to vector<1x512xf32>
    %47 = arith.subf %46, %45 : vector<1x512xf32>
    %48 = arith.mulf %47, %42 : vector<1x512xf32>
    %c0_23 = arith.constant 0 : index
    %c0_24 = arith.constant 0 : index
    %49 = vector.load %arg8[%c0_23, %c0_24] : memref<1x512xf32, #tpu.memory_space<vmem>>, vector<1x512xf32>
    tpu.vector_store %arg8[%c0_23, %c0_24], %48 {strides = array<i32>} : memref<1x512xf32, #tpu.memory_space<vmem>>, vector<1x512xf32>,
    %c0_25 = arith.constant 0 : index
    %c0_26 = arith.constant 0 : index
    %50 = vector.load %arg9[%c0_25, %c0_26] : memref<1x512xf32, #tpu.memory_space<vmem>>, vector<1x512xf32>
    tpu.vector_store %arg9[%c0_25, %c0_26], %42 {strides = array<i32>} : memref<1x512xf32, #tpu.memory_space<vmem>>, vector<1x512xf32>,
    return
  }
  func.func @transform_0(%arg0: i32) -> (i32, i32) {
    %c0_i32 = arith.constant 0 : i32
    %c0_i32_0 = arith.constant 0 : i32
    return %c0_i32, %arg0 : i32, i32
  }
  func.func @transform_1(%arg0: i32) -> (i32, i32) {
    %c0_i32 = arith.constant 0 : i32
    %c0_i32_0 = arith.constant 0 : i32
    %c0_i32_1 = arith.constant 0 : i32
    return %c0_i32, %c0_i32_0 : i32, i32
  }
  func.func @transform_2(%arg0: i32) -> (i32, i32) {
    %c0_i32 = arith.constant 0 : i32
    %c0_i32_0 = arith.constant 0 : i32
    %c0_i32_1 = arith.constant 0 : i32
    return %c0_i32, %c0_i32_0 : i32, i32
  }
  func.func @transform_3(%arg0: i32) -> (i32, i32) {
    %c0_i32 = arith.constant 0 : i32
    %c0_i32_0 = arith.constant 0 : i32
    return %c0_i32, %arg0 : i32, i32
  }
  func.func @transform_4(%arg0: i32) -> (i32, i32) {
    %c0_i32 = arith.constant 0 : i32
    %c0_i32_0 = arith.constant 0 : i32
    return %c0_i32, %arg0 : i32, i32
  }
  func.func @transform_5(%arg0: i32) -> (i32, i32) {
    %c0_i32 = arith.constant 0 : i32
    %c0_i32_0 = arith.constant 0 : i32
    return %c0_i32, %arg0 : i32, i32
  }
  func.func @transform_6(%arg0: i32) -> (i32, i32) {
    %c0_i32 = arith.constant 0 : i32
    %c0_i32_0 = arith.constant 0 : i32
    return %c0_i32, %arg0 : i32, i32
  }
  func.func @transform_7(%arg0: i32) -> (i32, i32) {
    %c0_i32 = arith.constant 0 : i32
    %c0_i32_0 = arith.constant 0 : i32
    return %c0_i32, %arg0 : i32, i32
  }
  func.func @transform_8(%arg0: i32) -> (i32, i32) {
    %c0_i32 = arith.constant 0 : i32
    %c0_i32_0 = arith.constant 0 : i32
    return %c0_i32, %arg0 : i32, i32
  }
}

</mosaic_0001>

<llo_original>
// kernel: tpu_custom_call.1
$region0: #{tpu_custom_call.1}
  #allocation0 [shape = 'u32[]', space=smem, size = 0x4, offset = 0x4, fixed_abs, tag = 'smem constant byte address 0x4 - core index']
  #allocation1 [shape = 'u32[144,128]{1,0:T(1,128)}', space=vmem, size = 0x12000, scoped, tag = 'internal scratch']
  %s0 = inlined_call_operand.vmem [shape: bf16[32,1024], index: 0, kind: input, shape index: {}]
  %s1 = inlined_call_operand.vmem [shape: bf16[800,32], index: 1, kind: input, shape index: {}]
  %s2 = inlined_call_operand.vmem [shape: f32[800,8], index: 2, kind: input, shape index: {}]
  %s3 = inlined_call_operand.vmem [shape: f32[1,1024], index: 3, kind: input, shape index: {}]
  %s4 = inlined_call_operand.vmem [shape: f32[1,1024], index: 4, kind: input, shape index: {}]
  %s5 = inlined_call_operand.vmem [shape: f32[1,1024], index: 5, kind: input, shape index: {}]
  %s6 = inlined_call_operand.vmem [shape: f32[1,1024], index: 6, kind: input, shape index: {}]
  %s7 = inlined_call_operand.hbm [shape: f32[1,1024], index: 7, kind: output, shape index: {0}]
  %s8 = inlined_call_operand.hbm [shape: f32[1,1024], index: 8, kind: output, shape index: {1}]
  %9 = xla_tuple %s7, %s8
  %s10 = sld [smem:[#allocation0]]
  $region92: #{tpu_custom_call.1} parent=0
    _
  %s12 = ssub.s32 1, %s10
  %s13 = scalar_select 0, %s12, %s10
  $region1: #{tpu_custom_call.1} parent=0
    #allocation2 [shape = 'u8[65536]{0}', space=vmem, size = 0x10000, scoped, tag = 'input window, operand 0']
    #allocation3 [shape = 'u8[4096]{0}', space=vmem, size = 0x1000, scoped, tag = 'output window, operand 0']
    #allocation4 [shape = 's32[2]{0}', space=sflag, size = 0x8, scoped, tag = 'scoped memory for tpu_custom_call.1']
    #allocation5 [shape = 'u8[4096]{0}', space=vmem, size = 0x1000, scoped, tag = 'output window, operand 1']
    #allocation6 [shape = 's32[2]{0}', space=sflag, size = 0x8, scoped, tag = 'scoped memory for tpu_custom_call.1']
    %14 = vsyncpa [#allocation4], 0
    %s15 = scalar_lea.sflag [#allocation4], 1
    %16 = vsyncpa %s15, 0
    %17 = vsyncpa [#allocation6], 0
    %s18 = scalar_lea.sflag [#allocation6], 1
    %19 = vsyncpa %s18, 0
    loop: start=0, step=1, limit=4
    $region2: #{tpu_custom_call.1} parent=1 // loop_pre_header
      _
    $region3: #{tpu_custom_call.1} parent=1 // loop_header
      %s21 = sphi 0, %s25
      %p22 = scmp.ge.s32.totalorder %s21, 4
      %s31 = sphi 0, %s33
      %s34 = sphi 0, %s31
      %s35 = sphi 0, %s34
      %s51 = sphi 0, %s35
      %s55 = sphi 0, %s55
      %s57 = sphi 0, %s55
      %s58 = sphi 0, %s57
      %s72 = sphi 0, %s58
      %s76 = sphi 0, %s76
      %s78 = sphi 0, %s76
      %s79 = sphi 0, %s78
      %s93 = sphi 0, %s79
      %s99 = sphi 0, %s101
      %s102 = sphi 0, %s99
      %s103 = sphi 0, %s102
      %s119 = sphi 0, %s103
      %s125 = sphi 0, %s127
      %s128 = sphi 0, %s125
      %s129 = sphi 0, %s128
      %s145 = sphi 0, %s129
      %s151 = sphi 0, %s153
      %s154 = sphi 0, %s151
      %s155 = sphi 0, %s154
      %s171 = sphi 0, %s155
      %s177 = sphi 0, %s179
      %s180 = sphi 0, %s177
      %s181 = sphi 0, %s180
      %s197 = sphi 0, %s181
      %s203 = sphi 0, %s205
      %s206 = sphi 0, %s203
      %s207 = sphi 0, %s206
      %s223 = sphi 0, %s207
      %s229 = sphi 0, %s231
      %s232 = sphi 0, %s229
      %s233 = sphi 0, %s232
      %s249 = sphi 0, %s233
    $region4: #{tpu_custom_call.1} parent=1 // loop_header_branch
      %24 = sbr.rel (%p22) target = $region8
    $region5: #{tpu_custom_call.1} parent=1 // loop_body
      %s26 = ssub.s32 %s21, 1
      %s27 = ssub.s32 %s21, 2
      %s28 = sadd.s32 %s21, 1
      %s29 = ssub.s32 %s21, %s28
      %p30 = scmp.eq.s32.totalorder %s29, 0
      %s32 = sadd.s32 %s31, 1
      %s33 = scalar_select %p30, %s31, %s32
      %p36 = pneg %p30
      %p37 = scmp.eq.s32.totalorder %s21, 1
      %p38 = por %p36, %p37
      %p39 = scmp.ne.s32.totalorder %s31, %s34
      %p40 = scmp.eq.s32.totalorder %s21, 0
      %p41 = por %p39, %p40
      %p42 = scmp.ne.s32.totalorder %s31, %s34
      %p43 = scmp.eq.s32.totalorder %s26, 1
      %p44 = por %p42, %p43
      %p45 = scmp.ne.s32.totalorder %s34, %s35
      %p46 = scmp.eq.s32.totalorder %s26, 0
      %p47 = por %p45, %p46
      %p48 = scmp.ne.s32.totalorder %s34, %s35
      %p49 = scmp.eq.s32.totalorder %s27, 1
      %p50 = por %p48, %p49
      %p52 = scmp.ne.s32.totalorder %s35, %s51
      %p53 = scmp.eq.s32.totalorder %s27, 0
      %p54 = por %p52, %p53
      %s56 = sadd.s32 %s55, 1
      %p59 = scmp.eq.s32.totalorder %s21, 1
      %p60 = scmp.ne.s32.totalorder %s55, %s57
      %p61 = scmp.eq.s32.totalorder %s21, 0
      %p62 = por %p60, %p61
      %p63 = scmp.ne.s32.totalorder %s55, %s57
      %p64 = scmp.eq.s32.totalorder %s26, 1
      %p65 = por %p63, %p64
      %p66 = scmp.ne.s32.totalorder %s57, %s58
      %p67 = scmp.eq.s32.totalorder %s26, 0
      %p68 = por %p66, %p67
      %p69 = scmp.ne.s32.totalorder %s57, %s58
      %p70 = scmp.eq.s32.totalorder %s27, 1
      %p71 = por %p69, %p70
      %p73 = scmp.ne.s32.totalorder %s58, %s72
      %p74 = scmp.eq.s32.totalorder %s27, 0
      %p75 = por %p73, %p74
      %s77 = sadd.s32 %s76, 1
      %p80 = scmp.eq.s32.totalorder %s21, 1
      %p81 = scmp.ne.s32.totalorder %s76, %s78
      %p82 = scmp.eq.s32.totalorder %s21, 0
      %p83 = por %p81, %p82
      %p84 = scmp.ne.s32.totalorder %s76, %s78
      %p85 = scmp.eq.s32.totalorder %s26, 1
      %p86 = por %p84, %p85
      %p87 = scmp.ne.s32.totalorder %s78, %s79
      %p88 = scmp.eq.s32.totalorder %s26, 0
      %p89 = por %p87, %p88
      %p90 = scmp.ne.s32.totalorder %s78, %s79
      %p91 = scmp.eq.s32.totalorder %s27, 1
      %p92 = por %p90, %p91
      %p94 = scmp.ne.s32.totalorder %s79, %s93
      %p95 = scmp.eq.s32.totalorder %s27, 0
      %p96 = por %p94, %p95
      %s97 = ssub.s32 %s21, %s28
      %p98 = scmp.eq.s32.totalorder %s97, 0
      %s100 = sadd.s32 %s99, 1
      %s101 = scalar_select %p98, %s99, %s100
      %p104 = pneg %p98
      %p105 = scmp.eq.s32.totalorder %s21, 1
      %p106 = por %p104, %p105
      %p107 = scmp.ne.s32.totalorder %s99, %s102
      %p108 = scmp.eq.s32.totalorder %s21, 0
      %p109 = por %p107, %p108
      %p110 = scmp.ne.s32.totalorder %s99, %s102
      %p111 = scmp.eq.s32.totalorder %s26, 1
      %p112 = por %p110, %p111
      %p113 = scmp.ne.s32.totalorder %s102, %s103
      %p114 = scmp.eq.s32.totalorder %s26, 0
      %p115 = por %p113, %p114
      %p116 = scmp.ne.s32.totalorder %s102, %s103
      %p117 = scmp.eq.s32.totalorder %s27, 1
      %p118 = por %p116, %p117
      %p120 = scmp.ne.s32.totalorder %s103, %s119
      %p121 = scmp.eq.s32.totalorder %s27, 0
      %p122 = por %p120, %p121
      %s123 = ssub.s32 %s21, %s28
      %p124 = scmp.eq.s32.totalorder %s123, 0
      %s126 = sadd.s32 %s125, 1
      %s127 = scalar_select %p124, %s125, %s126
      %p130 = pneg %p124
      %p131 = scmp.eq.s32.totalorder %s21, 1
      %p132 = por %p130, %p131
      %p133 = scmp.ne.s32.totalorder %s125, %s128
      %p134 = scmp.eq.s32.totalorder %s21, 0
      %p135 = por %p133, %p134
      %p136 = scmp.ne.s32.totalorder %s125, %s128
      %p137 = scmp.eq.s32.totalorder %s26, 1
      %p138 = por %p136, %p137
      %p139 = scmp.ne.s32.totalorder %s128, %s129
      %p140 = scmp.eq.s32.totalorder %s26, 0
      %p141 = por %p139, %p140
      %p142 = scmp.ne.s32.totalorder %s128, %s129
      %p143 = scmp.eq.s32.totalorder %s27, 1
      %p144 = por %p142, %p143
      %p146 = scmp.ne.s32.totalorder %s129, %s145
      %p147 = scmp.eq.s32.totalorder %s27, 0
      %p148 = por %p146, %p147
      %s149 = ssub.s32 %s21, %s28
      %p150 = scmp.eq.s32.totalorder %s149, 0
      %s152 = sadd.s32 %s151, 1
      %s153 = scalar_select %p150, %s151, %s152
      %p156 = pneg %p150
      %p157 = scmp.eq.s32.totalorder %s21, 1
      %p158 = por %p156, %p157
      %p159 = scmp.ne.s32.totalorder %s151, %s154
      %p160 = scmp.eq.s32.totalorder %s21, 0
      %p161 = por %p159, %p160
      %p162 = scmp.ne.s32.totalorder %s151, %s154
      %p163 = scmp.eq.s32.totalorder %s26, 1
      %p164 = por %p162, %p163
      %p165 = scmp.ne.s32.totalorder %s154, %s155
      %p166 = scmp.eq.s32.totalorder %s26, 0
      %p167 = por %p165, %p166
      %p168 = scmp.ne.s32.totalorder %s154, %s155
      %p169 = scmp.eq.s32.totalorder %s27, 1
      %p170 = por %p168, %p169
      %p172 = scmp.ne.s32.totalorder %s155, %s171
      %p173 = scmp.eq.s32.totalorder %s27, 0
      %p174 = por %p172, %p173
      %s175 = ssub.s32 %s21, %s28
      %p176 = scmp.eq.s32.totalorder %s175, 0
      %s178 = sadd.s32 %s177, 1
      %s179 = scalar_select %p176, %s177, %s178
      %p182 = pneg %p176
      %p183 = scmp.eq.s32.totalorder %s21, 1
      %p184 = por %p182, %p183
      %p185 = scmp.ne.s32.totalorder %s177, %s180
      %p186 = scmp.eq.s32.totalorder %s21, 0
      %p187 = por %p185, %p186
      %p188 = scmp.ne.s32.totalorder %s177, %s180
      %p189 = scmp.eq.s32.totalorder %s26, 1
      %p190 = por %p188, %p189
      %p191 = scmp.ne.s32.totalorder %s180, %s181
      %p192 = scmp.eq.s32.totalorder %s26, 0
      %p193 = por %p191, %p192
      %p194 = scmp.ne.s32.totalorder %s180, %s181
      %p195 = scmp.eq.s32.totalorder %s27, 1
      %p196 = por %p194, %p195
      %p198 = scmp.ne.s32.totalorder %s181, %s197
      %p199 = scmp.eq.s32.totalorder %s27, 0
      %p200 = por %p198, %p199
      %s201 = ssub.s32 %s21, %s28
      %p202 = scmp.eq.s32.totalorder %s201, 0
      %s204 = sadd.s32 %s203, 1
      %s205 = scalar_select %p202, %s203, %s204
      %p208 = pneg %p202
      %p209 = scmp.eq.s32.totalorder %s21, 1
      %p210 = por %p208, %p209
      %p211 = scmp.ne.s32.totalorder %s203, %s206
      %p212 = scmp.eq.s32.totalorder %s21, 0
      %p213 = por %p211, %p212
      %p214 = scmp.ne.s32.totalorder %s203, %s206
      %p215 = scmp.eq.s32.totalorder %s26, 1
      %p216 = por %p214, %p215
      %p217 = scmp.ne.s32.totalorder %s206, %s207
      %p218 = scmp.eq.s32.totalorder %s26, 0
      %p219 = por %p217, %p218
      %p220 = scmp.ne.s32.totalorder %s206, %s207
      %p221 = scmp.eq.s32.totalorder %s27, 1
      %p222 = por %p220, %p221
      %p224 = scmp.ne.s32.totalorder %s207, %s223
      %p225 = scmp.eq.s32.totalorder %s27, 0
      %p226 = por %p224, %p225
      %s227 = ssub.s32 %s21, %s28
      %p228 = scmp.eq.s32.totalorder %s227, 0
      %s230 = sadd.s32 %s229, 1
      %s231 = scalar_select %p228, %s229, %s230
      %p234 = pneg %p228
      %p235 = scmp.eq.s32.totalorder %s21, 1
      %p236 = por %p234, %p235
      %p237 = scmp.ne.s32.totalorder %s229, %s232
      %p238 = scmp.eq.s32.totalorder %s21, 0
      %p239 = por %p237, %p238
      %p240 = scmp.ne.s32.totalorder %s229, %s232
      %p241 = scmp.eq.s32.totalorder %s26, 1
      %p242 = por %p240, %p241
      %p243 = scmp.ne.s32.totalorder %s232, %s233
      %p244 = scmp.eq.s32.totalorder %s26, 0
      %p245 = por %p243, %p244
      %p246 = scmp.ne.s32.totalorder %s232, %s233
      %p247 = scmp.eq.s32.totalorder %s27, 1
      %p248 = por %p246, %p247
      %p250 = scmp.ne.s32.totalorder %s233, %s249
      %p251 = scmp.eq.s32.totalorder %s27, 0
      %p252 = por %p250, %p251
      %p253 = scmp.le.s32.totalorder 1, %s21
      %p254 = scmp.lt.s32.totalorder %s21, 3
      %p255 = pnand %p253, %p254
      %p256 = pneg %p255
      // Predicated region
      $region9: #{tpu_custom_call.1} parent=5 // pred_check
        _
      $region10: #{tpu_custom_call.1} parent=5 // pred_check_branch
        %258 = sbr.rel (%p255) target = $region12
      $region11: #{tpu_custom_call.1} parent=5 // pred_region
        %s259 = ssub.s32 %s21, 1
        // Predicated region
        $region13: #{tpu_custom_call.1} parent=11 // pred_check
          %p260 = pneg %p68
        $region14: #{tpu_custom_call.1} parent=11 // pred_check_branch
          %262 = sbr.rel (%p260) target = $region16
        $region15: #{tpu_custom_call.1} parent=11 // pred_region
          _
        $region16: #{tpu_custom_call.1} parent=11 // pred_fallthru
          _
        // Predicated region
        $region17: #{tpu_custom_call.1} parent=11 // pred_check
          %p263 = pneg %p89
        $region18: #{tpu_custom_call.1} parent=11 // pred_check_branch
          %265 = sbr.rel (%p263) target = $region20
        $region19: #{tpu_custom_call.1} parent=11 // pred_region
          _
        $region20: #{tpu_custom_call.1} parent=11 // pred_fallthru
          _
      $region12: #{tpu_custom_call.1} parent=5 // pred_fallthru
        _
      %p266 = scmp.lt.s32.totalorder %s21, 2
      // Predicated region
      $region21: #{tpu_custom_call.1} parent=5 // pred_check
        %p267 = pneg %p266
      $region22: #{tpu_custom_call.1} parent=5 // pred_check_branch
        %269 = sbr.rel (%p267) target = $region24
      $region23: #{tpu_custom_call.1} parent=5 // pred_region
        // Predicated region
        $region25: #{tpu_custom_call.1} parent=23 // pred_check
          %p270 = pneg %p41
        $region26: #{tpu_custom_call.1} parent=23 // pred_check_branch
          %272 = sbr.rel (%p270) target = $region28
        $region27: #{tpu_custom_call.1} parent=23 // pred_region
          %s273 = sand.u32 %s31, 1
          %s274 = sand.u32 %s31, 1
          %s275 = smul.addr %s274, 64
          %s276 = scalar_lea.vmem [#allocation2], %s275
          %s277 = smul.u32 4, %s21
          %s278 = smul.addr %s277, 4
          %s279 = scalar_lea.vmem %s0, %s278
          // Predicated region
          $region29: #{tpu_custom_call.1} parent=27 // pred_check
            _
          $region30: #{tpu_custom_call.1} parent=27 // pred_check_branch
            %281 = sbr.rel (0) target = $region32
          $region31: #{tpu_custom_call.1} parent=27 // pred_region
            // Predicated region
            $region33: #{tpu_custom_call.1} parent=31 // pred_check
              _
            $region34: #{tpu_custom_call.1} parent=31 // pred_check_branch
              %283 = sbr.rel (0) target = $region36
            $region35: #{tpu_custom_call.1} parent=31 // pred_region
              loop: start=0, step=1, limit=1
              $region37: #{tpu_custom_call.1} parent=35 // loop_pre_header
                _
              $region38: #{tpu_custom_call.1} parent=35 // loop_header
                %s285 = sphi 0, %s289
                %p286 = scmp.ge.s32.totalorder %s285, 1
                %s290 = sphi %s279, %s279
                %s291 = sphi %s276, %s276
              $region39: #{tpu_custom_call.1} parent=35 // loop_header_branch
                %288 = sbr.rel (%p286) target = $region43
              $region40: #{tpu_custom_call.1} parent=35 // loop_body
                %v292 = vld [vmem:[%s290] sm:$0xff]
                %293 = vst [vmem:[%s291] sm:$0xff] %v292
                %v294 = vld [vmem:[%s290 + $0x8] sm:$0xff]
                %295 = vst [vmem:[%s291 + $0x8] sm:$0xff] %v294
                %v296 = vld [vmem:[%s290 + $0x20] sm:$0xff]
                %297 = vst [vmem:[%s291 + $0x10] sm:$0xff] %v296
                %v298 = vld [vmem:[%s290 + $0x28] sm:$0xff]
                %299 = vst [vmem:[%s291 + $0x18] sm:$0xff] %v298
                %v300 = vld [vmem:[%s290 + $0x40] sm:$0xff]
                %301 = vst [vmem:[%s291 + $0x20] sm:$0xff] %v300
                %v302 = vld [vmem:[%s290 + $0x48] sm:$0xff]
                %303 = vst [vmem:[%s291 + $0x28] sm:$0xff] %v302
                %v304 = vld [vmem:[%s290 + $0x60] sm:$0xff]
                %305 = vst [vmem:[%s291 + $0x30] sm:$0xff] %v304
                %v306 = vld [vmem:[%s290 + $0x68] sm:$0xff]
                %307 = vst [vmem:[%s291 + $0x38] sm:$0xff] %v306
              $region41: #{tpu_custom_call.1} parent=35 // loop_footer
                %s289 = sadd.s32 1, %s285
              $region42: #{tpu_custom_call.1} parent=35 // loop_footer_branch
                %284 = sbr.rel target = $region38
              $region43: #{tpu_custom_call.1} parent=35 // loop_exit
                _
            $region36: #{tpu_custom_call.1} parent=31 // pred_fallthru
              _
            // Predicated region
            $region44: #{tpu_custom_call.1} parent=31 // pred_check
              _
            $region45: #{tpu_custom_call.1} parent=31 // pred_check_branch
              %309 = sbr.rel target = $region47
            $region46: #{tpu_custom_call.1} parent=31 // pred_region
              _
            $region47: #{tpu_custom_call.1} parent=31 // pred_fallthru
              _
          $region32: #{tpu_custom_call.1} parent=27 // pred_fallthru
            _
          %310 = vnop
        $region28: #{tpu_custom_call.1} parent=23 // pred_fallthru
          _
        // Predicated region
        $region48: #{tpu_custom_call.1} parent=23 // pred_check
          %p311 = pneg %p109
        $region49: #{tpu_custom_call.1} parent=23 // pred_check_branch
          %313 = sbr.rel (%p311) target = $region51
        $region50: #{tpu_custom_call.1} parent=23 // pred_region
          %s314 = smul.u32 4, %s21
          %p315 = scmp.lt.s32.totalorder %s314, 7
          %s316 = scalar_select %p315, %s314, 7
          %s317 = scalar_lea.vmem %s3, %s316
          %s318 = smul.u32 4, %s21
        $region51: #{tpu_custom_call.1} parent=23 // pred_fallthru
          _
        // Predicated region
        $region52: #{tpu_custom_call.1} parent=23 // pred_check
          %p319 = pneg %p135
        $region53: #{tpu_custom_call.1} parent=23 // pred_check_branch
          %321 = sbr.rel (%p319) target = $region55
        $region54: #{tpu_custom_call.1} parent=23 // pred_region
          %s322 = smul.u32 4, %s21
          %p323 = scmp.lt.s32.totalorder %s322, 7
          %s324 = scalar_select %p323, %s322, 7
          %s325 = scalar_lea.vmem %s4, %s324
          %s326 = smul.u32 4, %s21
        $region55: #{tpu_custom_call.1} parent=23 // pred_fallthru
          _
        // Predicated region
        $region56: #{tpu_custom_call.1} parent=23 // pred_check
          %p327 = pneg %p161
        $region57: #{tpu_custom_call.1} parent=23 // pred_check_branch
          %329 = sbr.rel (%p327) target = $region59
        $region58: #{tpu_custom_call.1} parent=23 // pred_region
          %s330 = smul.u32 4, %s21
          %p331 = scmp.lt.s32.totalorder %s330, 7
          %s332 = scalar_select %p331, %s330, 7
          %s333 = scalar_lea.vmem %s5, %s332
          %s334 = smul.u32 4, %s21
        $region59: #{tpu_custom_call.1} parent=23 // pred_fallthru
          _
        // Predicated region
        $region60: #{tpu_custom_call.1} parent=23 // pred_check
          %p335 = pneg %p187
        $region61: #{tpu_custom_call.1} parent=23 // pred_check_branch
          %337 = sbr.rel (%p335) target = $region63
        $region62: #{tpu_custom_call.1} parent=23 // pred_region
          %s338 = smul.u32 4, %s21
          %p339 = scmp.lt.s32.totalorder %s338, 7
          %s340 = scalar_select %p339, %s338, 7
          %s341 = scalar_lea.vmem %s6, %s340
          %s342 = smul.u32 4, %s21
        $region63: #{tpu_custom_call.1} parent=23 // pred_fallthru
          _
      $region24: #{tpu_custom_call.1} parent=5 // pred_fallthru
        _
      %p343 = scmp.le.s32.totalorder 1, %s21
      %p344 = scmp.lt.s32.totalorder %s21, 3
      %p345 = pnand %p343, %p344
      %p346 = pneg %p345
      // Predicated region
      $region64: #{tpu_custom_call.1} parent=5 // pred_check
        _
      $region65: #{tpu_custom_call.1} parent=5 // pred_check_branch
        %348 = sbr.rel (%p345) target = $region67
      $region66: #{tpu_custom_call.1} parent=5 // pred_region
        %s349 = ssub.s32 %s21, 1
        %s350 = sand.u32 %s34, 1
        %s351 = sand.u32 %s34, 1
        %s352 = smul.addr %s351, 64
        %s353 = scalar_lea.vmem [#allocation2], %s352
        // Predicated region
        $region68: #{tpu_custom_call.1} parent=66 // pred_check
          %p354 = pneg %p47
        $region69: #{tpu_custom_call.1} parent=66 // pred_check_branch
          %356 = sbr.rel (%p354) target = $region71
        $region70: #{tpu_custom_call.1} parent=66 // pred_region
          _
        $region71: #{tpu_custom_call.1} parent=66 // pred_fallthru
          _
        %s357 = sand.u32 %s34, 1
        %s358 = sand.u32 %s34, 1
        %s359 = smul.addr %s358, 64
        %s360 = scalar_lea.vmem [#allocation2], %s359
        %p361 = pneg %p47
        %p362 = pneg %p44
        %p363 = pneg %p68
        %p364 = pneg %p65
        %p365 = pneg %p89
        %p366 = pneg %p86
        %s367 = smul.u32 4, %s26
        %p368 = scmp.lt.s32.totalorder %s367, 7
        %s369 = scalar_select %p368, %s367, 7
        %s370 = scalar_lea.vmem %s3, %s369
        %p371 = pneg %p115
        %p372 = pneg %p112
        %s373 = smul.u32 4, %s26
        %p374 = scmp.lt.s32.totalorder %s373, 7
        %s375 = scalar_select %p374, %s373, 7
        %s376 = scalar_lea.vmem %s4, %s375
        %p377 = pneg %p141
        %p378 = pneg %p138
        %s379 = smul.u32 4, %s26
        %p380 = scmp.lt.s32.totalorder %s379, 7
        %s381 = scalar_select %p380, %s379, 7
        %s382 = scalar_lea.vmem %s5, %s381
        %p383 = pneg %p167
        %p384 = pneg %p164
        %s385 = smul.u32 4, %s26
        %p386 = scmp.lt.s32.totalorder %s385, 7
        %s387 = scalar_select %p386, %s385, 7
        %s388 = scalar_lea.vmem %s6, %s387
        %p389 = pneg %p193
        %p390 = pneg %p190
        %p391 = pneg %p219
        %p392 = pneg %p216
        %s393 = sand.u32 %s206, 1
        %s394 = scalar_lea.sflag [#allocation4], %s393
        %s395 = sand.u32 %s206, 1
        %s396 = smul.addr %s395, 4
        %s397 = scalar_lea.vmem [#allocation3], %s396
        %p398 = pneg %p245
        %p399 = pneg %p242
        %s400 = sand.u32 %s232, 1
        %s401 = scalar_lea.sflag [#allocation6], %s400
        %s402 = sand.u32 %s232, 1
        %s403 = smul.addr %s402, 4
        %s404 = scalar_lea.vmem [#allocation5], %s403
        %s405 = smul.u32 4, %s26
        %s406 = smul.u32 4, %s26
        %p407 = scmp.lt.s32.totalorder %s406, 7
        %s408 = scalar_select %p407, %s406, 7
        %s409 = scalar_lea.vmem %s3, %s408
        %s410 = smul.u32 4, %s26
        %s411 = smul.u32 4, %s26
        %p412 = scmp.lt.s32.totalorder %s411, 7
        %s413 = scalar_select %p412, %s411, 7
        %s414 = scalar_lea.vmem %s4, %s413
        %s415 = smul.u32 4, %s26
        %s416 = smul.u32 4, %s26
        %p417 = scmp.lt.s32.totalorder %s416, 7
        %s418 = scalar_select %p417, %s416, 7
        %s419 = scalar_lea.vmem %s5, %s418
        %s420 = smul.u32 4, %s26
        %s421 = smul.u32 4, %s26
        %p422 = scmp.lt.s32.totalorder %s421, 7
        %s423 = scalar_select %p422, %s421, 7
        %s424 = scalar_lea.vmem %s6, %s423
        %s425 = smul.u32 4, %s26
        %s426 = smul.u32 4, %s26
        %s427 = smul.u32 4, %s26
        %v429 = vld [vmem:[%s1] sm:$0xf]
        %v430 = vld [vmem:[%s1 + $0x4] sm:$0xf]
        %v431 = vld [vmem:[%s1 + $0x8] sm:$0xf]
        %v432 = vld [vmem:[%s1 + $0xc] sm:$0xf]
        %v433 = vld [vmem:[%s1 + $0x10] sm:$0xf]
        %v434 = vld [vmem:[%s1 + $0x14] sm:$0xf]
        %v435 = vld [vmem:[%s1 + $0x18] sm:$0xf]
        %v436 = vld [vmem:[%s1 + $0x1c] sm:$0xf]
        %v437 = vld [vmem:[%s1 + $0x20] sm:$0xf]
        %v438 = vld [vmem:[%s1 + $0x24] sm:$0xf]
        %v439 = vld [vmem:[%s1 + $0x28] sm:$0xf]
        %v440 = vld [vmem:[%s1 + $0x2c] sm:$0xf]
        %v441 = vld [vmem:[%s1 + $0x30] sm:$0xf]
        %v442 = vld [vmem:[%s1 + $0x34] sm:$0xf]
        %v443 = vld [vmem:[%s1 + $0x38] sm:$0xf]
        %v444 = vld [vmem:[%s1 + $0x3c] sm:$0xf]
        %v445 = vld [vmem:[%s1 + $0x40] sm:$0xf]
        %v446 = vld [vmem:[%s1 + $0x44] sm:$0xf]
        %v447 = vld [vmem:[%s1 + $0x48] sm:$0xf]
        %v448 = vld [vmem:[%s1 + $0x4c] sm:$0xf]
        %v449 = vld [vmem:[%s1 + $0x50] sm:$0xf]
        %v450 = vld [vmem:[%s1 + $0x54] sm:$0xf]
        %v451 = vld [vmem:[%s1 + $0x58] sm:$0xf]
        %v452 = vld [vmem:[%s1 + $0x5c] sm:$0xf]
        %v453 = vld [vmem:[%s1 + $0x60] sm:$0xf]
        %v454 = vld [vmem:[%s1 + $0x64] sm:$0xf]
        %v455 = vld [vmem:[%s1 + $0x68] sm:$0xf]
        %v456 = vld [vmem:[%s1 + $0x6c] sm:$0xf]
        %v457 = vld [vmem:[%s1 + $0x70] sm:$0xf]
        %v458 = vld [vmem:[%s1 + $0x74] sm:$0xf]
        %v459 = vld [vmem:[%s1 + $0x78] sm:$0xf]
        %v460 = vld [vmem:[%s1 + $0x7c] sm:$0xf]
        %v461 = vld [vmem:[%s1 + $0x80] sm:$0xf]
        %v462 = vld [vmem:[%s1 + $0x84] sm:$0xf]
        %v463 = vld [vmem:[%s1 + $0x88] sm:$0xf]
        %v464 = vld [vmem:[%s1 + $0x8c] sm:$0xf]
        %v465 = vld [vmem:[%s1 + $0x90] sm:$0xf]
        %v466 = vld [vmem:[%s1 + $0x94] sm:$0xf]
        %v467 = vld [vmem:[%s1 + $0x98] sm:$0xf]
        %v468 = vld [vmem:[%s1 + $0x9c] sm:$0xf]
        %v469 = vld [vmem:[%s1 + $0xa0] sm:$0xf]
        %v470 = vld [vmem:[%s1 + $0xa4] sm:$0xf]
        %v471 = vld [vmem:[%s1 + $0xa8] sm:$0xf]
        %v472 = vld [vmem:[%s1 + $0xac] sm:$0xf]
        %v473 = vld [vmem:[%s1 + $0xb0] sm:$0xf]
        %v474 = vld [vmem:[%s1 + $0xb4] sm:$0xf]
        %v475 = vld [vmem:[%s1 + $0xb8] sm:$0xf]
        %v476 = vld [vmem:[%s1 + $0xbc] sm:$0xf]
        %v477 = vld [vmem:[%s1 + $0xc0] sm:$0xf]
        %v478 = vld [vmem:[%s1 + $0xc4] sm:$0xf]
        %v479 = vld [vmem:[%s1 + $0xc8] sm:$0xf]
        %v480 = vld [vmem:[%s1 + $0xcc] sm:$0xf]
        %v481 = vld [vmem:[%s1 + $0xd0] sm:$0xf]
        %v482 = vld [vmem:[%s1 + $0xd4] sm:$0xf]
        %v483 = vld [vmem:[%s1 + $0xd8] sm:$0xf]
        %v484 = vld [vmem:[%s1 + $0xdc] sm:$0xf]
        %v485 = vld [vmem:[%s1 + $0xe0] sm:$0xf]
        %v486 = vld [vmem:[%s1 + $0xe4] sm:$0xf]
        %v487 = vld [vmem:[%s1 + $0xe8] sm:$0xf]
        %v488 = vld [vmem:[%s1 + $0xec] sm:$0xf]
        %v489 = vld [vmem:[%s1 + $0xf0] sm:$0xf]
        %v490 = vld [vmem:[%s1 + $0xf4] sm:$0xf]
        %v491 = vld [vmem:[%s1 + $0xf8] sm:$0xf]
        %v492 = vld [vmem:[%s1 + $0xfc] sm:$0xf]
        %v493 = vld [vmem:[%s1 + $0x100] sm:$0xf]
        %v494 = vld [vmem:[%s1 + $0x104] sm:$0xf]
        %v495 = vld [vmem:[%s1 + $0x108] sm:$0xf]
        %v496 = vld [vmem:[%s1 + $0x10c] sm:$0xf]
        %v497 = vld [vmem:[%s1 + $0x110] sm:$0xf]
        %v498 = vld [vmem:[%s1 + $0x114] sm:$0xf]
        %v499 = vld [vmem:[%s1 + $0x118] sm:$0xf]
        %v500 = vld [vmem:[%s1 + $0x11c] sm:$0xf]
        %v501 = vld [vmem:[%s1 + $0x120] sm:$0xf]
        %v502 = vld [vmem:[%s1 + $0x124] sm:$0xf]
        %v503 = vld [vmem:[%s1 + $0x128] sm:$0xf]
        %v504 = vld [vmem:[%s1 + $0x12c] sm:$0xf]
        %v505 = vld [vmem:[%s1 + $0x130] sm:$0xf]
        %v506 = vld [vmem:[%s1 + $0x134] sm:$0xf]
        %v507 = vld [vmem:[%s1 + $0x138] sm:$0xf]
        %v508 = vld [vmem:[%s1 + $0x13c] sm:$0xf]
        %v509 = vld [vmem:[%s1 + $0x140] sm:$0xf]
        %v510 = vld [vmem:[%s1 + $0x144] sm:$0xf]
        %v511 = vld [vmem:[%s1 + $0x148] sm:$0xf]
        %v512 = vld [vmem:[%s1 + $0x14c] sm:$0xf]
        %v513 = vld [vmem:[%s1 + $0x150] sm:$0xf]
        %v514 = vld [vmem:[%s1 + $0x154] sm:$0xf]
        %v515 = vld [vmem:[%s1 + $0x158] sm:$0xf]
        %v516 = vld [vmem:[%s1 + $0x15c] sm:$0xf]
        %v517 = vld [vmem:[%s1 + $0x160] sm:$0xf]
        %v518 = vld [vmem:[%s1 + $0x164] sm:$0xf]
        %v519 = vld [vmem:[%s1 + $0x168] sm:$0xf]
        %v520 = vld [vmem:[%s1 + $0x16c] sm:$0xf]
        %v521 = vld [vmem:[%s1 + $0x170] sm:$0xf]
        %v522 = vld [vmem:[%s1 + $0x174] sm:$0xf]
        %v523 = vld [vmem:[%s1 + $0x178] sm:$0xf]
        %v524 = vld [vmem:[%s1 + $0x17c] sm:$0xf]
        %v525 = vld [vmem:[%s1 + $0x180] sm:$0xf]
        %v526 = vld [vmem:[%s1 + $0x184] sm:$0xf]
        %v527 = vld [vmem:[%s1 + $0x188] sm:$0xf]
        %v528 = vld [vmem:[%s1 + $0x18c] sm:$0xf]
        %v529 = vld [vmem:[%s353] sm:$0xff]
        %v530 = vld [vmem:[%s353 + $0x8] sm:$0xff]
        %v531 = vld [vmem:[%s353 + $0x10] sm:$0xff]
        %v532 = vld [vmem:[%s353 + $0x18] sm:$0xff]
        %v533 = vld [vmem:[%s353 + $0x20] sm:$0xff]
        %v534 = vld [vmem:[%s353 + $0x28] sm:$0xff]
        %v535 = vld [vmem:[%s353 + $0x30] sm:$0xff]
        %v536 = vld [vmem:[%s353 + $0x38] sm:$0xff]
        %v637 = vunpack.c.l.b16 %v429
        %v638 = vunpack.c.l.b16 %v430
        %v639 = vunpack.c.l.b16 %v431
        %v640 = vunpack.c.l.b16 %v432
        %v641 = vunpack.c.l.b16 %v433
        %v642 = vunpack.c.l.b16 %v434
        %v643 = vunpack.c.l.b16 %v435
        %v644 = vunpack.c.l.b16 %v436
        %v645 = vunpack.c.l.b16 %v437
        %v646 = vunpack.c.l.b16 %v438
        %v647 = vunpack.c.l.b16 %v439
        %v648 = vunpack.c.l.b16 %v440
        %v649 = vunpack.c.l.b16 %v441
        %v650 = vunpack.c.l.b16 %v442
        %v651 = vunpack.c.l.b16 %v443
        %v652 = vunpack.c.l.b16 %v444
        %v653 = vunpack.c.l.b16 %v445
        %v654 = vunpack.c.l.b16 %v446
        %v655 = vunpack.c.l.b16 %v447
        %v656 = vunpack.c.l.b16 %v448
        %v657 = vunpack.c.l.b16 %v449
        %v658 = vunpack.c.l.b16 %v450
        %v659 = vunpack.c.l.b16 %v451
        %v660 = vunpack.c.l.b16 %v452
        %v661 = vunpack.c.l.b16 %v453
        %v662 = vunpack.c.l.b16 %v454
        %v663 = vunpack.c.l.b16 %v455
        %v664 = vunpack.c.l.b16 %v456
        %v665 = vunpack.c.l.b16 %v457
        %v666 = vunpack.c.l.b16 %v458
        %v667 = vunpack.c.l.b16 %v459
        %v668 = vunpack.c.l.b16 %v460
        %v669 = vunpack.c.l.b16 %v461
        %v670 = vunpack.c.l.b16 %v462
        %v671 = vunpack.c.l.b16 %v463
        %v672 = vunpack.c.l.b16 %v464
        %v673 = vunpack.c.l.b16 %v465
        %v674 = vunpack.c.l.b16 %v466
        %v675 = vunpack.c.l.b16 %v467
        %v676 = vunpack.c.l.b16 %v468
        %v677 = vunpack.c.l.b16 %v469
        %v678 = vunpack.c.l.b16 %v470
        %v679 = vunpack.c.l.b16 %v471
        %v680 = vunpack.c.l.b16 %v472
        %v681 = vunpack.c.l.b16 %v473
        %v682 = vunpack.c.l.b16 %v474
        %v683 = vunpack.c.l.b16 %v475
        %v684 = vunpack.c.l.b16 %v476
        %v685 = vunpack.c.l.b16 %v477
        %v686 = vunpack.c.l.b16 %v478
        %v687 = vunpack.c.l.b16 %v479
        %v688 = vunpack.c.l.b16 %v480
        %v689 = vunpack.c.l.b16 %v481
        %v690 = vunpack.c.l.b16 %v482
        %v691 = vunpack.c.l.b16 %v483
        %v692 = vunpack.c.l.b16 %v484
        %v693 = vunpack.c.l.b16 %v485
        %v694 = vunpack.c.l.b16 %v486
        %v695 = vunpack.c.l.b16 %v487
        %v696 = vunpack.c.l.b16 %v488
        %v697 = vunpack.c.l.b16 %v489
        %v698 = vunpack.c.l.b16 %v490
        %v699 = vunpack.c.l.b16 %v491
        %v700 = vunpack.c.l.b16 %v492
        %v701 = vunpack.c.l.b16 %v493
        %v702 = vunpack.c.l.b16 %v494
        %v703 = vunpack.c.l.b16 %v495
        %v704 = vunpack.c.l.b16 %v496
        %v705 = vunpack.c.l.b16 %v497
        %v706 = vunpack.c.l.b16 %v498
        %v707 = vunpack.c.l.b16 %v499
        %v708 = vunpack.c.l.b16 %v500
        %v709 = vunpack.c.l.b16 %v501
        %v710 = vunpack.c.l.b16 %v502
        %v711 = vunpack.c.l.b16 %v503
        %v712 = vunpack.c.l.b16 %v504
        %v713 = vunpack.c.l.b16 %v505
        %v714 = vunpack.c.l.b16 %v506
        %v715 = vunpack.c.l.b16 %v507
        %v716 = vunpack.c.l.b16 %v508
        %v717 = vunpack.c.l.b16 %v509
        %v718 = vunpack.c.l.b16 %v510
        %v719 = vunpack.c.l.b16 %v511
        %v720 = vunpack.c.l.b16 %v512
        %v721 = vunpack.c.l.b16 %v513
        %v722 = vunpack.c.l.b16 %v514
        %v723 = vunpack.c.l.b16 %v515
        %v724 = vunpack.c.l.b16 %v516
        %v725 = vunpack.c.l.b16 %v517
        %v726 = vunpack.c.l.b16 %v518
        %v727 = vunpack.c.l.b16 %v519
        %v728 = vunpack.c.l.b16 %v520
        %v729 = vunpack.c.l.b16 %v521
        %v730 = vunpack.c.l.b16 %v522
        %v731 = vunpack.c.l.b16 %v523
        %v732 = vunpack.c.l.b16 %v524
        %v733 = vunpack.c.l.b16 %v525
        %v734 = vunpack.c.l.b16 %v526
        %v735 = vunpack.c.l.b16 %v527
        %v736 = vunpack.c.l.b16 %v528
        %v737 = vpack.c.b16 %v638, %v637
        %v738 = vpack.c.b16 %v640, %v639
        %v739 = vpack.c.b16 %v642, %v641
        %v740 = vpack.c.b16 %v644, %v643
        %v741 = vpack.c.b16 %v646, %v645
        %v742 = vpack.c.b16 %v648, %v647
        %v743 = vpack.c.b16 %v650, %v649
        %v744 = vpack.c.b16 %v652, %v651
        %v745 = vpack.c.b16 %v654, %v653
        %v746 = vpack.c.b16 %v656, %v655
        %v747 = vpack.c.b16 %v658, %v657
        %v748 = vpack.c.b16 %v660, %v659
        %v749 = vpack.c.b16 %v662, %v661
        %v750 = vpack.c.b16 %v664, %v663
        %v751 = vpack.c.b16 %v666, %v665
        %v752 = vpack.c.b16 %v668, %v667
        %v753 = vpack.c.b16 %v670, %v669
        %v754 = vpack.c.b16 %v672, %v671
        %v755 = vpack.c.b16 %v674, %v673
        %v756 = vpack.c.b16 %v676, %v675
        %v757 = vpack.c.b16 %v678, %v677
        %v758 = vpack.c.b16 %v680, %v679
        %v759 = vpack.c.b16 %v682, %v681
        %v760 = vpack.c.b16 %v684, %v683
        %v761 = vpack.c.b16 %v686, %v685
        %v762 = vpack.c.b16 %v688, %v687
        %v763 = vpack.c.b16 %v690, %v689
        %v764 = vpack.c.b16 %v692, %v691
        %v765 = vpack.c.b16 %v694, %v693
        %v766 = vpack.c.b16 %v696, %v695
        %v767 = vpack.c.b16 %v698, %v697
        %v768 = vpack.c.b16 %v700, %v699
        %v769 = vpack.c.b16 %v702, %v701
        %v770 = vpack.c.b16 %v704, %v703
        %v771 = vpack.c.b16 %v706, %v705
        %v772 = vpack.c.b16 %v708, %v707
        %v773 = vpack.c.b16 %v710, %v709
        %v774 = vpack.c.b16 %v712, %v711
        %v775 = vpack.c.b16 %v714, %v713
        %v776 = vpack.c.b16 %v716, %v715
        %v777 = vpack.c.b16 %v718, %v717
        %v778 = vpack.c.b16 %v720, %v719
        %v779 = vpack.c.b16 %v722, %v721
        %v780 = vpack.c.b16 %v724, %v723
        %v781 = vpack.c.b16 %v726, %v725
        %v782 = vpack.c.b16 %v728, %v727
        %v783 = vpack.c.b16 %v730, %v729
        %v784 = vpack.c.b16 %v732, %v731
        %v785 = vpack.c.b16 %v734, %v733
        %v786 = vpack.c.b16 %v736, %v735
        %v795 = vunpack.c.l.b16 %v529
        %v796 = vunpack.c.h.b16 %v529
        %v797 = vunpack.c.l.b16 %v530
        %v798 = vunpack.c.h.b16 %v530
        %v799 = vunpack.c.l.b16 %v531
        %v800 = vunpack.c.h.b16 %v531
        %v801 = vunpack.c.l.b16 %v532
        %v802 = vunpack.c.h.b16 %v532
        %v803 = vunpack.c.l.b16 %v533
        %v804 = vunpack.c.h.b16 %v533
        %v805 = vunpack.c.l.b16 %v534
        %v806 = vunpack.c.h.b16 %v534
        %v807 = vunpack.c.l.b16 %v535
        %v808 = vunpack.c.h.b16 %v535
        %v809 = vunpack.c.l.b16 %v536
        %v810 = vunpack.c.h.b16 %v536
        %v811 = vpack.c.b16 %v799, %v795
        %v812 = vpack.c.b16 %v800, %v796
        %v813 = vpack.c.b16 %v801, %v797
        %v814 = vpack.c.b16 %v802, %v798
        %v815 = vpack.c.b16 %v807, %v803
        %v816 = vpack.c.b16 %v808, %v804
        %v817 = vpack.c.b16 %v809, %v805
        %v818 = vpack.c.b16 %v810, %v806
        %vm827 = vcmask 261120
        %v829 = vsel %vm827, %v737, 0
        %v832 = vsel %vm827, %v738, 0
        %v835 = vsel %vm827, %v739, 0
        %v838 = vsel %vm827, %v740, 0
        %v841 = vsel %vm827, %v741, 0
        %v844 = vsel %vm827, %v742, 0
        %v847 = vsel %vm827, %v743, 0
        %v850 = vsel %vm827, %v744, 0
        %v853 = vsel %vm827, %v745, 0
        %v856 = vsel %vm827, %v746, 0
        %v859 = vsel %vm827, %v747, 0
        %v862 = vsel %vm827, %v748, 0
        %v865 = vsel %vm827, %v749, 0
        %v868 = vsel %vm827, %v750, 0
        %v871 = vsel %vm827, %v751, 0
        %v874 = vsel %vm827, %v752, 0
        %v877 = vsel %vm827, %v753, 0
        %v880 = vsel %vm827, %v754, 0
        %v883 = vsel %vm827, %v755, 0
        %v886 = vsel %vm827, %v756, 0
        %v889 = vsel %vm827, %v757, 0
        %v892 = vsel %vm827, %v758, 0
        %v895 = vsel %vm827, %v759, 0
        %v898 = vsel %vm827, %v760, 0
        %v901 = vsel %vm827, %v761, 0
        %v904 = vsel %vm827, %v762, 0
        %v907 = vsel %vm827, %v763, 0
        %v910 = vsel %vm827, %v764, 0
        %v913 = vsel %vm827, %v765, 0
        %v916 = vsel %vm827, %v766, 0
        %v919 = vsel %vm827, %v767, 0
        %v922 = vsel %vm827, %v768, 0
        %v925 = vsel %vm827, %v769, 0
        %v928 = vsel %vm827, %v770, 0
        %v931 = vsel %vm827, %v771, 0
        %v934 = vsel %vm827, %v772, 0
        %v937 = vsel %vm827, %v773, 0
        %v940 = vsel %vm827, %v774, 0
        %v943 = vsel %vm827, %v775, 0
        %v946 = vsel %vm827, %v776, 0
        %v949 = vsel %vm827, %v777, 0
        %v952 = vsel %vm827, %v778, 0
        %v955 = vsel %vm827, %v779, 0
        %v958 = vsel %vm827, %v780, 0
        %v961 = vsel %vm827, %v781, 0
        %v964 = vsel %vm827, %v782, 0
        %v967 = vsel %vm827, %v783, 0
        %v970 = vsel %vm827, %v784, 0
        %v973 = vsel %vm827, %v785, 0
        %v976 = vsel %vm827, %v786, 0
        %978 = vmatprep.subr.bf16.mxu0 %v812
        %979 = vmatpush1.bf16.msra.mxu0 %v811
        %980 = vmatprep.subr.bf16.mxu0 %v816
        %981 = vmatpush1.bf16.msra.mxu0 %v815
        %982 = vmatprep.subr.bf16.mxu0 0
        %983 = vmatpush1.bf16.msra.mxu0 0
        %984 = vmatprep.subr.bf16.mxu0 0
        %985 = vmatpush1.bf16.msra.mxu0 0
        %986 = vmatprep.subr.bf16.mxu0 0
        %987 = vmatpush1.bf16.msra.mxu0 0
        %988 = vmatprep.subr.bf16.mxu0 0
        %989 = vmatpush1.bf16.msra.mxu0 0
        %990 = vmatprep.subr.bf16.mxu0 0
        %991 = vmatpush1.bf16.msra.mxu0 0
        %992 = vmatprep.subr.bf16.mxu0 0
        %993 = vmatpush1.bf16.msra.mxu0 0
        %994 = vmatprep.subr.bf16.mxu0 0
        %995 = vmatpush1.bf16.msra.mxu0 0
        %996 = vmatprep.subr.bf16.mxu0 0
        %997 = vmatpush1.bf16.msra.mxu0 0
        %998 = vmatprep.subr.bf16.mxu0 0
        %999 = vmatpush1.bf16.msra.mxu0 0
        %1000 = vmatprep.subr.bf16.mxu0 0
        %1001 = vmatpush1.bf16.msra.mxu0 0
        %1002 = vmatprep.subr.bf16.mxu0 0
        %1003 = vmatpush1.bf16.msra.mxu0 0
        %1004 = vmatprep.subr.bf16.mxu0 0
        %1005 = vmatpush1.bf16.msra.mxu0 0
        %1006 = vmatprep.subr.bf16.mxu0 0
        %1007 = vmatpush1.bf16.msra.mxu0 0
        %1008 = vmatprep.subr.bf16.mxu0 0
        %1009 = vmatpush1.bf16.msra.mxu0 0
        %1010 = vmatprep.mubr.bf16.mxu0 0
        %1011 = vmatmul.mubr.bf16.gmra.mrb[0].mxu0 %v829
        %v1012 = vpop.f32.mrb[0].mxu0
        %v1013 = vadd.f32 0.0, %v1012
        %v1014 = vpop.f32.mrb[0].mxu0
        %v1015 = vadd.f32 0.0, %v1014
        %v1016 = vpop.f32.mrb[0].mxu0
        %v1017 = vadd.f32 0.0, %v1016
        %v1018 = vpop.f32.mrb[0].mxu0
        %v1019 = vadd.f32 0.0, %v1018
        %1020 = vmatprep.mubr.bf16.mxu0 0
        %1021 = vmatmul.mubr.bf16.gmra.mrb[0].mxu0 %v832
        %v1022 = vpop.f32.mrb[0].mxu0
        %v1023 = vadd.f32 0.0, %v1022
        %v1024 = vpop.f32.mrb[0].mxu0
        %v1025 = vadd.f32 0.0, %v1024
        %v1026 = vpop.f32.mrb[0].mxu0
        %v1027 = vadd.f32 0.0, %v1026
        %v1028 = vpop.f32.mrb[0].mxu0
        %v1029 = vadd.f32 0.0, %v1028
        %1030 = vmatprep.mubr.bf16.mxu0 0
        %1031 = vmatmul.mubr.bf16.gmra.mrb[0].mxu0 %v835
        %v1032 = vpop.f32.mrb[0].mxu0
        %v1033 = vadd.f32 0.0, %v1032
        %v1034 = vpop.f32.mrb[0].mxu0
        %v1035 = vadd.f32 0.0, %v1034
        %v1036 = vpop.f32.mrb[0].mxu0
        %v1037 = vadd.f32 0.0, %v1036
        %v1038 = vpop.f32.mrb[0].mxu0
        %v1039 = vadd.f32 0.0, %v1038
        %1040 = vmatprep.mubr.bf16.mxu0 0
        %1041 = vmatmul.mubr.bf16.gmra.mrb[0].mxu0 %v838
        %v1042 = vpop.f32.mrb[0].mxu0
        %v1043 = vadd.f32 0.0, %v1042
        %v1044 = vpop.f32.mrb[0].mxu0
        %v1045 = vadd.f32 0.0, %v1044
        %v1046 = vpop.f32.mrb[0].mxu0
        %v1047 = vadd.f32 0.0, %v1046
        %v1048 = vpop.f32.mrb[0].mxu0
        %v1049 = vadd.f32 0.0, %v1048
        %1050 = vmatprep.mubr.bf16.mxu0 0
        %1051 = vmatmul.mubr.bf16.gmra.mrb[0].mxu0 %v841
        %v1052 = vpop.f32.mrb[0].mxu0
        %v1053 = vadd.f32 0.0, %v1052
        %v1054 = vpop.f32.mrb[0].mxu0
        %v1055 = vadd.f32 0.0, %v1054
        %v1056 = vpop.f32.mrb[0].mxu0
        %v1057 = vadd.f32 0.0, %v1056
        %v1058 = vpop.f32.mrb[0].mxu0
        %v1059 = vadd.f32 0.0, %v1058
        %1060 = vmatprep.mubr.bf16.mxu0 0
        %1061 = vmatmul.mubr.bf16.gmra.mrb[0].mxu0 %v844
        %v1062 = vpop.f32.mrb[0].mxu0
        %v1063 = vadd.f32 0.0, %v1062
        %v1064 = vpop.f32.mrb[0].mxu0
        %v1065 = vadd.f32 0.0, %v1064
        %v1066 = vpop.f32.mrb[0].mxu0
        %v1067 = vadd.f32 0.0, %v1066
        %v1068 = vpop.f32.mrb[0].mxu0
        %v1069 = vadd.f32 0.0, %v1068
        %1070 = vmatprep.mubr.bf16.mxu0 0
        %1071 = vmatmul.mubr.bf16.gmra.mrb[0].mxu0 %v847
        %v1072 = vpop.f32.mrb[0].mxu0
        %v1073 = vadd.f32 0.0, %v1072
        %v1074 = vpop.f32.mrb[0].mxu0
        %v1075 = vadd.f32 0.0, %v1074
        %v1076 = vpop.f32.mrb[0].mxu0
        %v1077 = vadd.f32 0.0, %v1076
        %v1078 = vpop.f32.mrb[0].mxu0
        %v1079 = vadd.f32 0.0, %v1078
        %1080 = vmatprep.mubr.bf16.mxu0 0
        %1081 = vmatmul.mubr.bf16.gmra.mrb[0].mxu0 %v850
        %v1082 = vpop.f32.mrb[0].mxu0
        %v1083 = vadd.f32 0.0, %v1082
        %v1084 = vpop.f32.mrb[0].mxu0
        %v1085 = vadd.f32 0.0, %v1084
        %v1086 = vpop.f32.mrb[0].mxu0
        %v1087 = vadd.f32 0.0, %v1086
        %v1088 = vpop.f32.mrb[0].mxu0
        %v1089 = vadd.f32 0.0, %v1088
        %1090 = vmatprep.mubr.bf16.mxu0 0
        %1091 = vmatmul.mubr.bf16.gmra.mrb[0].mxu0 %v853
        %v1092 = vpop.f32.mrb[0].mxu0
        %v1093 = vadd.f32 0.0, %v1092
        %v1094 = vpop.f32.mrb[0].mxu0
        %v1095 = vadd.f32 0.0, %v1094
        %v1096 = vpop.f32.mrb[0].mxu0
        %v1097 = vadd.f32 0.0, %v1096
        %v1098 = vpop.f32.mrb[0].mxu0
        %v1099 = vadd.f32 0.0, %v1098
        %1100 = vmatprep.mubr.bf16.mxu0 0
        %1101 = vmatmul.mubr.bf16.gmra.mrb[0].mxu0 %v856
        %v1102 = vpop.f32.mrb[0].mxu0
        %v1103 = vadd.f32 0.0, %v1102
        %v1104 = vpop.f32.mrb[0].mxu0
        %v1105 = vadd.f32 0.0, %v1104
        %v1106 = vpop.f32.mrb[0].mxu0
        %v1107 = vadd.f32 0.0, %v1106
        %v1108 = vpop.f32.mrb[0].mxu0
        %v1109 = vadd.f32 0.0, %v1108
        %1110 = vmatprep.mubr.bf16.mxu0 0
        %1111 = vmatmul.mubr.bf16.gmra.mrb[0].mxu0 %v859
        %v1112 = vpop.f32.mrb[0].mxu0
        %v1113 = vadd.f32 0.0, %v1112
        %v1114 = vpop.f32.mrb[0].mxu0
        %v1115 = vadd.f32 0.0, %v1114
        %v1116 = vpop.f32.mrb[0].mxu0
        %v1117 = vadd.f32 0.0, %v1116
        %v1118 = vpop.f32.mrb[0].mxu0
        %v1119 = vadd.f32 0.0, %v1118
        %1120 = vmatprep.mubr.bf16.mxu0 0
        %1121 = vmatmul.mubr.bf16.gmra.mrb[0].mxu0 %v862
        %v1122 = vpop.f32.mrb[0].mxu0
        %v1123 = vadd.f32 0.0, %v1122
        %v1124 = vpop.f32.mrb[0].mxu0
        %v1125 = vadd.f32 0.0, %v1124
        %v1126 = vpop.f32.mrb[0].mxu0
        %v1127 = vadd.f32 0.0, %v1126
        %v1128 = vpop.f32.mrb[0].mxu0
        %v1129 = vadd.f32 0.0, %v1128
        %1130 = vmatprep.mubr.bf16.mxu0 0
        %1131 = vmatmul.mubr.bf16.gmra.mrb[0].mxu0 %v865
        %v1132 = vpop.f32.mrb[0].mxu0
        %v1133 = vadd.f32 0.0, %v1132
        %v1134 = vpop.f32.mrb[0].mxu0
        %v1135 = vadd.f32 0.0, %v1134
        %v1136 = vpop.f32.mrb[0].mxu0
        %v1137 = vadd.f32 0.0, %v1136
        %v1138 = vpop.f32.mrb[0].mxu0
        %v1139 = vadd.f32 0.0, %v1138
        %1140 = vmatprep.mubr.bf16.mxu0 0
        %1141 = vmatmul.mubr.bf16.gmra.mrb[0].mxu0 %v868
        %v1142 = vpop.f32.mrb[0].mxu0
        %v1143 = vadd.f32 0.0, %v1142
        %v1144 = vpop.f32.mrb[0].mxu0
        %v1145 = vadd.f32 0.0, %v1144
        %v1146 = vpop.f32.mrb[0].mxu0
        %v1147 = vadd.f32 0.0, %v1146
        %v1148 = vpop.f32.mrb[0].mxu0
        %v1149 = vadd.f32 0.0, %v1148
        %1150 = vmatprep.mubr.bf16.mxu0 0
        %1151 = vmatmul.mubr.bf16.gmra.mrb[0].mxu0 %v871
        %v1152 = vpop.f32.mrb[0].mxu0
        %v1153 = vadd.f32 0.0, %v1152
        %v1154 = vpop.f32.mrb[0].mxu0
        %v1155 = vadd.f32 0.0, %v1154
        %v1156 = vpop.f32.mrb[0].mxu0
        %v1157 = vadd.f32 0.0, %v1156
        %v1158 = vpop.f32.mrb[0].mxu0
        %v1159 = vadd.f32 0.0, %v1158
        %1160 = vmatprep.mubr.bf16.mxu0 0
        %1161 = vmatmul.mubr.bf16.gmra.mrb[0].mxu0 %v874
        %v1162 = vpop.f32.mrb[0].mxu0
        %v1163 = vadd.f32 0.0, %v1162
        %v1164 = vpop.f32.mrb[0].mxu0
        %v1165 = vadd.f32 0.0, %v1164
        %v1166 = vpop.f32.mrb[0].mxu0
        %v1167 = vadd.f32 0.0, %v1166
        %v1168 = vpop.f32.mrb[0].mxu0
        %v1169 = vadd.f32 0.0, %v1168
        %1170 = vmatprep.mubr.bf16.mxu0 0
        %1171 = vmatmul.mubr.bf16.gmra.mrb[0].mxu0 %v877
        %v1172 = vpop.f32.mrb[0].mxu0
        %v1173 = vadd.f32 0.0, %v1172
        %v1174 = vpop.f32.mrb[0].mxu0
        %v1175 = vadd.f32 0.0, %v1174
        %v1176 = vpop.f32.mrb[0].mxu0
        %v1177 = vadd.f32 0.0, %v1176
        %v1178 = vpop.f32.mrb[0].mxu0
        %v1179 = vadd.f32 0.0, %v1178
        %1180 = vmatprep.mubr.bf16.mxu0 0
        %1181 = vmatmul.mubr.bf16.gmra.mrb[0].mxu0 %v880
        %v1182 = vpop.f32.mrb[0].mxu0
        %v1183 = vadd.f32 0.0, %v1182
        %v1184 = vpop.f32.mrb[0].mxu0
        %v1185 = vadd.f32 0.0, %v1184
        %v1186 = vpop.f32.mrb[0].mxu0
        %v1187 = vadd.f32 0.0, %v1186
        %v1188 = vpop.f32.mrb[0].mxu0
        %v1189 = vadd.f32 0.0, %v1188
        %1190 = vmatprep.mubr.bf16.mxu0 0
        %1191 = vmatmul.mubr.bf16.gmra.mrb[0].mxu0 %v883
        %v1192 = vpop.f32.mrb[0].mxu0
        %v1193 = vadd.f32 0.0, %v1192
        %v1194 = vpop.f32.mrb[0].mxu0
        %v1195 = vadd.f32 0.0, %v1194
        %v1196 = vpop.f32.mrb[0].mxu0
        %v1197 = vadd.f32 0.0, %v1196
        %v1198 = vpop.f32.mrb[0].mxu0
        %v1199 = vadd.f32 0.0, %v1198
        %1200 = vmatprep.mubr.bf16.mxu0 0
        %1201 = vmatmul.mubr.bf16.gmra.mrb[0].mxu0 %v886
        %v1202 = vpop.f32.mrb[0].mxu0
        %v1203 = vadd.f32 0.0, %v1202
        %v1204 = vpop.f32.mrb[0].mxu0
        %v1205 = vadd.f32 0.0, %v1204
        %v1206 = vpop.f32.mrb[0].mxu0
        %v1207 = vadd.f32 0.0, %v1206
        %v1208 = vpop.f32.mrb[0].mxu0
        %v1209 = vadd.f32 0.0, %v1208
        %1210 = vmatprep.mubr.bf16.mxu0 0
        %1211 = vmatmul.mubr.bf16.gmra.mrb[0].mxu0 %v889
        %v1212 = vpop.f32.mrb[0].mxu0
        %v1213 = vadd.f32 0.0, %v1212
        %v1214 = vpop.f32.mrb[0].mxu0
        %v1215 = vadd.f32 0.0, %v1214
        %v1216 = vpop.f32.mrb[0].mxu0
        %v1217 = vadd.f32 0.0, %v1216
        %v1218 = vpop.f32.mrb[0].mxu0
        %v1219 = vadd.f32 0.0, %v1218
        %1220 = vmatprep.mubr.bf16.mxu0 0
        %1221 = vmatmul.mubr.bf16.gmra.mrb[0].mxu0 %v892
        %v1222 = vpop.f32.mrb[0].mxu0
        %v1223 = vadd.f32 0.0, %v1222
        %v1224 = vpop.f32.mrb[0].mxu0
        %v1225 = vadd.f32 0.0, %v1224
        %v1226 = vpop.f32.mrb[0].mxu0
        %v1227 = vadd.f32 0.0, %v1226
        %v1228 = vpop.f32.mrb[0].mxu0
        %v1229 = vadd.f32 0.0, %v1228
        %1230 = vmatprep.mubr.bf16.mxu0 0
        %1231 = vmatmul.mubr.bf16.gmra.mrb[0].mxu0 %v895
        %v1232 = vpop.f32.mrb[0].mxu0
        %v1233 = vadd.f32 0.0, %v1232
        %v1234 = vpop.f32.mrb[0].mxu0
        %v1235 = vadd.f32 0.0, %v1234
        %v1236 = vpop.f32.mrb[0].mxu0
        %v1237 = vadd.f32 0.0, %v1236
        %v1238 = vpop.f32.mrb[0].mxu0
        %v1239 = vadd.f32 0.0, %v1238
        %1240 = vmatprep.mubr.bf16.mxu0 0
        %1241 = vmatmul.mubr.bf16.gmra.mrb[0].mxu0 %v898
        %v1242 = vpop.f32.mrb[0].mxu0
        %v1243 = vadd.f32 0.0, %v1242
        %v1244 = vpop.f32.mrb[0].mxu0
        %v1245 = vadd.f32 0.0, %v1244
        %v1246 = vpop.f32.mrb[0].mxu0
        %v1247 = vadd.f32 0.0, %v1246
        %v1248 = vpop.f32.mrb[0].mxu0
        %v1249 = vadd.f32 0.0, %v1248
        %1250 = vmatprep.mubr.bf16.mxu0 0
        %1251 = vmatmul.mubr.bf16.gmra.mrb[0].mxu0 %v901
        %v1252 = vpop.f32.mrb[0].mxu0
        %v1253 = vadd.f32 0.0, %v1252
        %v1254 = vpop.f32.mrb[0].mxu0
        %v1255 = vadd.f32 0.0, %v1254
        %v1256 = vpop.f32.mrb[0].mxu0
        %v1257 = vadd.f32 0.0, %v1256
        %v1258 = vpop.f32.mrb[0].mxu0
        %v1259 = vadd.f32 0.0, %v1258
        %1260 = vmatprep.mubr.bf16.mxu0 0
        %1261 = vmatmul.mubr.bf16.gmra.mrb[0].mxu0 %v904
        %v1262 = vpop.f32.mrb[0].mxu0
        %v1263 = vadd.f32 0.0, %v1262
        %v1264 = vpop.f32.mrb[0].mxu0
        %v1265 = vadd.f32 0.0, %v1264
        %v1266 = vpop.f32.mrb[0].mxu0
        %v1267 = vadd.f32 0.0, %v1266
        %v1268 = vpop.f32.mrb[0].mxu0
        %v1269 = vadd.f32 0.0, %v1268
        %1270 = vmatprep.mubr.bf16.mxu0 0
        %1271 = vmatmul.mubr.bf16.gmra.mrb[0].mxu0 %v907
        %v1272 = vpop.f32.mrb[0].mxu0
        %v1273 = vadd.f32 0.0, %v1272
        %v1274 = vpop.f32.mrb[0].mxu0
        %v1275 = vadd.f32 0.0, %v1274
        %v1276 = vpop.f32.mrb[0].mxu0
        %v1277 = vadd.f32 0.0, %v1276
        %v1278 = vpop.f32.mrb[0].mxu0
        %v1279 = vadd.f32 0.0, %v1278
        %1280 = vmatprep.mubr.bf16.mxu0 0
        %1281 = vmatmul.mubr.bf16.gmra.mrb[0].mxu0 %v910
        %v1282 = vpop.f32.mrb[0].mxu0
        %v1283 = vadd.f32 0.0, %v1282
        %v1284 = vpop.f32.mrb[0].mxu0
        %v1285 = vadd.f32 0.0, %v1284
        %v1286 = vpop.f32.mrb[0].mxu0
        %v1287 = vadd.f32 0.0, %v1286
        %v1288 = vpop.f32.mrb[0].mxu0
        %v1289 = vadd.f32 0.0, %v1288
        %1290 = vmatprep.mubr.bf16.mxu0 0
        %1291 = vmatmul.mubr.bf16.gmra.mrb[0].mxu0 %v913
        %v1292 = vpop.f32.mrb[0].mxu0
        %v1293 = vadd.f32 0.0, %v1292
        %v1294 = vpop.f32.mrb[0].mxu0
        %v1295 = vadd.f32 0.0, %v1294
        %v1296 = vpop.f32.mrb[0].mxu0
        %v1297 = vadd.f32 0.0, %v1296
        %v1298 = vpop.f32.mrb[0].mxu0
        %v1299 = vadd.f32 0.0, %v1298
        %1300 = vmatprep.mubr.bf16.mxu0 0
        %1301 = vmatmul.mubr.bf16.gmra.mrb[0].mxu0 %v916
        %v1302 = vpop.f32.mrb[0].mxu0
        %v1303 = vadd.f32 0.0, %v1302
        %v1304 = vpop.f32.mrb[0].mxu0
        %v1305 = vadd.f32 0.0, %v1304
        %v1306 = vpop.f32.mrb[0].mxu0
        %v1307 = vadd.f32 0.0, %v1306
        %v1308 = vpop.f32.mrb[0].mxu0
        %v1309 = vadd.f32 0.0, %v1308
        %1310 = vmatprep.mubr.bf16.mxu0 0
        %1311 = vmatmul.mubr.bf16.gmra.mrb[0].mxu0 %v919
        %v1312 = vpop.f32.mrb[0].mxu0
        %v1313 = vadd.f32 0.0, %v1312
        %v1314 = vpop.f32.mrb[0].mxu0
        %v1315 = vadd.f32 0.0, %v1314
        %v1316 = vpop.f32.mrb[0].mxu0
        %v1317 = vadd.f32 0.0, %v1316
        %v1318 = vpop.f32.mrb[0].mxu0
        %v1319 = vadd.f32 0.0, %v1318
        %1320 = vmatprep.mubr.bf16.mxu0 0
        %1321 = vmatmul.mubr.bf16.gmra.mrb[0].mxu0 %v922
        %v1322 = vpop.f32.mrb[0].mxu0
        %v1323 = vadd.f32 0.0, %v1322
        %v1324 = vpop.f32.mrb[0].mxu0
        %v1325 = vadd.f32 0.0, %v1324
        %v1326 = vpop.f32.mrb[0].mxu0
        %v1327 = vadd.f32 0.0, %v1326
        %v1328 = vpop.f32.mrb[0].mxu0
        %v1329 = vadd.f32 0.0, %v1328
        %1330 = vmatprep.mubr.bf16.mxu0 0
        %1331 = vmatmul.mubr.bf16.gmra.mrb[0].mxu0 %v925
        %v1332 = vpop.f32.mrb[0].mxu0
        %v1333 = vadd.f32 0.0, %v1332
        %v1334 = vpop.f32.mrb[0].mxu0
        %v1335 = vadd.f32 0.0, %v1334
        %v1336 = vpop.f32.mrb[0].mxu0
        %v1337 = vadd.f32 0.0, %v1336
        %v1338 = vpop.f32.mrb[0].mxu0
        %v1339 = vadd.f32 0.0, %v1338
        %1340 = vmatprep.mubr.bf16.mxu0 0
        %1341 = vmatmul.mubr.bf16.gmra.mrb[0].mxu0 %v928
        %v1342 = vpop.f32.mrb[0].mxu0
        %v1343 = vadd.f32 0.0, %v1342
        %v1344 = vpop.f32.mrb[0].mxu0
        %v1345 = vadd.f32 0.0, %v1344
        %v1346 = vpop.f32.mrb[0].mxu0
        %v1347 = vadd.f32 0.0, %v1346
        %v1348 = vpop.f32.mrb[0].mxu0
        %v1349 = vadd.f32 0.0, %v1348
        %1350 = vmatprep.mubr.bf16.mxu0 0
        %1351 = vmatmul.mubr.bf16.gmra.mrb[0].mxu0 %v931
        %v1352 = vpop.f32.mrb[0].mxu0
        %v1353 = vadd.f32 0.0, %v1352
        %v1354 = vpop.f32.mrb[0].mxu0
        %v1355 = vadd.f32 0.0, %v1354
        %v1356 = vpop.f32.mrb[0].mxu0
        %v1357 = vadd.f32 0.0, %v1356
        %v1358 = vpop.f32.mrb[0].mxu0
        %v1359 = vadd.f32 0.0, %v1358
        %1360 = vmatprep.mubr.bf16.mxu0 0
        %1361 = vmatmul.mubr.bf16.gmra.mrb[0].mxu0 %v934
        %v1362 = vpop.f32.mrb[0].mxu0
        %v1363 = vadd.f32 0.0, %v1362
        %v1364 = vpop.f32.mrb[0].mxu0
        %v1365 = vadd.f32 0.0, %v1364
        %v1366 = vpop.f32.mrb[0].mxu0
        %v1367 = vadd.f32 0.0, %v1366
        %v1368 = vpop.f32.mrb[0].mxu0
        %v1369 = vadd.f32 0.0, %v1368
        %1370 = vmatprep.mubr.bf16.mxu0 0
        %1371 = vmatmul.mubr.bf16.gmra.mrb[0].mxu0 %v937
        %v1372 = vpop.f32.mrb[0].mxu0
        %v1373 = vadd.f32 0.0, %v1372
        %v1374 = vpop.f32.mrb[0].mxu0
        %v1375 = vadd.f32 0.0, %v1374
        %v1376 = vpop.f32.mrb[0].mxu0
        %v1377 = vadd.f32 0.0, %v1376
        %v1378 = vpop.f32.mrb[0].mxu0
        %v1379 = vadd.f32 0.0, %v1378
        %1380 = vmatprep.mubr.bf16.mxu0 0
        %1381 = vmatmul.mubr.bf16.gmra.mrb[0].mxu0 %v940
        %v1382 = vpop.f32.mrb[0].mxu0
        %v1383 = vadd.f32 0.0, %v1382
        %v1384 = vpop.f32.mrb[0].mxu0
        %v1385 = vadd.f32 0.0, %v1384
        %v1386 = vpop.f32.mrb[0].mxu0
        %v1387 = vadd.f32 0.0, %v1386
        %v1388 = vpop.f32.mrb[0].mxu0
        %v1389 = vadd.f32 0.0, %v1388
        %1390 = vmatprep.mubr.bf16.mxu0 0
        %1391 = vmatmul.mubr.bf16.gmra.mrb[0].mxu0 %v943
        %v1392 = vpop.f32.mrb[0].mxu0
        %v1393 = vadd.f32 0.0, %v1392
        %v1394 = vpop.f32.mrb[0].mxu0
        %v1395 = vadd.f32 0.0, %v1394
        %v1396 = vpop.f32.mrb[0].mxu0
        %v1397 = vadd.f32 0.0, %v1396
        %v1398 = vpop.f32.mrb[0].mxu0
        %v1399 = vadd.f32 0.0, %v1398
        %1400 = vmatprep.mubr.bf16.mxu0 0
        %1401 = vmatmul.mubr.bf16.gmra.mrb[0].mxu0 %v946
        %v1402 = vpop.f32.mrb[0].mxu0
        %v1403 = vadd.f32 0.0, %v1402
        %v1404 = vpop.f32.mrb[0].mxu0
        %v1405 = vadd.f32 0.0, %v1404
        %v1406 = vpop.f32.mrb[0].mxu0
        %v1407 = vadd.f32 0.0, %v1406
        %v1408 = vpop.f32.mrb[0].mxu0
        %v1409 = vadd.f32 0.0, %v1408
        %1410 = vmatprep.mubr.bf16.mxu0 0
        %1411 = vmatmul.mubr.bf16.gmra.mrb[0].mxu0 %v949
        %v1412 = vpop.f32.mrb[0].mxu0
        %v1413 = vadd.f32 0.0, %v1412
        %v1414 = vpop.f32.mrb[0].mxu0
        %v1415 = vadd.f32 0.0, %v1414
        %v1416 = vpop.f32.mrb[0].mxu0
        %v1417 = vadd.f32 0.0, %v1416
        %v1418 = vpop.f32.mrb[0].mxu0
        %v1419 = vadd.f32 0.0, %v1418
        %1420 = vmatprep.mubr.bf16.mxu0 0
        %1421 = vmatmul.mubr.bf16.gmra.mrb[0].mxu0 %v952
        %v1422 = vpop.f32.mrb[0].mxu0
        %v1423 = vadd.f32 0.0, %v1422
        %v1424 = vpop.f32.mrb[0].mxu0
        %v1425 = vadd.f32 0.0, %v1424
        %v1426 = vpop.f32.mrb[0].mxu0
        %v1427 = vadd.f32 0.0, %v1426
        %v1428 = vpop.f32.mrb[0].mxu0
        %v1429 = vadd.f32 0.0, %v1428
        %1430 = vmatprep.mubr.bf16.mxu0 0
        %1431 = vmatmul.mubr.bf16.gmra.mrb[0].mxu0 %v955
        %v1432 = vpop.f32.mrb[0].mxu0
        %v1433 = vadd.f32 0.0, %v1432
        %v1434 = vpop.f32.mrb[0].mxu0
        %v1435 = vadd.f32 0.0, %v1434
        %v1436 = vpop.f32.mrb[0].mxu0
        %v1437 = vadd.f32 0.0, %v1436
        %v1438 = vpop.f32.mrb[0].mxu0
        %v1439 = vadd.f32 0.0, %v1438
        %1440 = vmatprep.mubr.bf16.mxu0 0
        %1441 = vmatmul.mubr.bf16.gmra.mrb[0].mxu0 %v958
        %v1442 = vpop.f32.mrb[0].mxu0
        %v1443 = vadd.f32 0.0, %v1442
        %v1444 = vpop.f32.mrb[0].mxu0
        %v1445 = vadd.f32 0.0, %v1444
        %v1446 = vpop.f32.mrb[0].mxu0
        %v1447 = vadd.f32 0.0, %v1446
        %v1448 = vpop.f32.mrb[0].mxu0
        %v1449 = vadd.f32 0.0, %v1448
        %1450 = vmatprep.mubr.bf16.mxu0 0
        %1451 = vmatmul.mubr.bf16.gmra.mrb[0].mxu0 %v961
        %v1452 = vpop.f32.mrb[0].mxu0
        %v1453 = vadd.f32 0.0, %v1452
        %v1454 = vpop.f32.mrb[0].mxu0
        %v1455 = vadd.f32 0.0, %v1454
        %v1456 = vpop.f32.mrb[0].mxu0
        %v1457 = vadd.f32 0.0, %v1456
        %v1458 = vpop.f32.mrb[0].mxu0
        %v1459 = vadd.f32 0.0, %v1458
        %1460 = vmatprep.mubr.bf16.mxu0 0
        %1461 = vmatmul.mubr.bf16.gmra.mrb[0].mxu0 %v964
        %v1462 = vpop.f32.mrb[0].mxu0
        %v1463 = vadd.f32 0.0, %v1462
        %v1464 = vpop.f32.mrb[0].mxu0
        %v1465 = vadd.f32 0.0, %v1464
        %v1466 = vpop.f32.mrb[0].mxu0
        %v1467 = vadd.f32 0.0, %v1466
        %v1468 = vpop.f32.mrb[0].mxu0
        %v1469 = vadd.f32 0.0, %v1468
        %1470 = vmatprep.mubr.bf16.mxu0 0
        %1471 = vmatmul.mubr.bf16.gmra.mrb[0].mxu0 %v967
        %v1472 = vpop.f32.mrb[0].mxu0
        %v1473 = vadd.f32 0.0, %v1472
        %v1474 = vpop.f32.mrb[0].mxu0
        %v1475 = vadd.f32 0.0, %v1474
        %v1476 = vpop.f32.mrb[0].mxu0
        %v1477 = vadd.f32 0.0, %v1476
        %v1478 = vpop.f32.mrb[0].mxu0
        %v1479 = vadd.f32 0.0, %v1478
        %1480 = vmatprep.mubr.bf16.mxu0 0
        %1481 = vmatmul.mubr.bf16.gmra.mrb[0].mxu0 %v970
        %v1482 = vpop.f32.mrb[0].mxu0
        %v1483 = vadd.f32 0.0, %v1482
        %v1484 = vpop.f32.mrb[0].mxu0
        %v1485 = vadd.f32 0.0, %v1484
        %v1486 = vpop.f32.mrb[0].mxu0
        %v1487 = vadd.f32 0.0, %v1486
        %v1488 = vpop.f32.mrb[0].mxu0
        %v1489 = vadd.f32 0.0, %v1488
        %1490 = vmatprep.mubr.bf16.mxu0 0
        %1491 = vmatmul.mubr.bf16.gmra.mrb[0].mxu0 %v973
        %v1492 = vpop.f32.mrb[0].mxu0
        %v1493 = vadd.f32 0.0, %v1492
        %v1494 = vpop.f32.mrb[0].mxu0
        %v1495 = vadd.f32 0.0, %v1494
        %v1496 = vpop.f32.mrb[0].mxu0
        %v1497 = vadd.f32 0.0, %v1496
        %v1498 = vpop.f32.mrb[0].mxu0
        %v1499 = vadd.f32 0.0, %v1498
        %1500 = vmatprep.mubr.bf16.mxu0 0
        %1501 = vmatmul.mubr.bf16.gmra.mrb[0].mxu0 %v976
        %v1502 = vpop.f32.mrb[0].mxu0
        %v1503 = vadd.f32 0.0, %v1502
        %v1504 = vpop.f32.mrb[0].mxu0
        %v1505 = vadd.f32 0.0, %v1504
        %v1506 = vpop.f32.mrb[0].mxu0
        %v1507 = vadd.f32 0.0, %v1506
        %v1508 = vpop.f32.mrb[0].mxu0
        %v1509 = vadd.f32 0.0, %v1508
        %1510 = vdwg.mxu0
        %1511 = vmatprep.subr.bf16.mxu0 %v814
        %1512 = vmatpush1.bf16.msra.mxu0 %v813
        %1513 = vmatprep.subr.bf16.mxu0 %v818
        %1514 = vmatpush1.bf16.msra.mxu0 %v817
        %1515 = vmatprep.subr.bf16.mxu0 0
        %1516 = vmatpush1.bf16.msra.mxu0 0
        %1517 = vmatprep.subr.bf16.mxu0 0
        %1518 = vmatpush1.bf16.msra.mxu0 0
        %1519 = vmatprep.subr.bf16.mxu0 0
        %1520 = vmatpush1.bf16.msra.mxu0 0
        %1521 = vmatprep.subr.bf16.mxu0 0
        %1522 = vmatpush1.bf16.msra.mxu0 0
        %1523 = vmatprep.subr.bf16.mxu0 0
        %1524 = vmatpush1.bf16.msra.mxu0 0
        %1525 = vmatprep.subr.bf16.mxu0 0
        %1526 = vmatpush1.bf16.msra.mxu0 0
        %1527 = vmatprep.subr.bf16.mxu0 0
        %1528 = vmatpush1.bf16.msra.mxu0 0
        %1529 = vmatprep.subr.bf16.mxu0 0
        %1530 = vmatpush1.bf16.msra.mxu0 0
        %1531 = vmatprep.subr.bf16.mxu0 0
        %1532 = vmatpush1.bf16.msra.mxu0 0
        %1533 = vmatprep.subr.bf16.mxu0 0
        %1534 = vmatpush1.bf16.msra.mxu0 0
        %1535 = vmatprep.subr.bf16.mxu0 0
        %1536 = vmatpush1.bf16.msra.mxu0 0
        %1537 = vmatprep.subr.bf16.mxu0 0
        %1538 = vmatpush1.bf16.msra.mxu0 0
        %1539 = vmatprep.subr.bf16.mxu0 0
        %1540 = vmatpush1.bf16.msra.mxu0 0
        %1541 = vmatprep.subr.bf16.mxu0 0
        %1542 = vmatpush1.bf16.msra.mxu0 0
        %1543 = vmatprep.mubr.bf16.mxu0 0
        %1544 = vmatmul.mubr.bf16.gmra.mrb[0].mxu0 %v829
        %v1545 = vpop.f32.mrb[0].mxu0
        %v1546 = vadd.f32 0.0, %v1545
        %v1547 = vpop.f32.mrb[0].mxu0
        %v1548 = vadd.f32 0.0, %v1547
        %v1549 = vpop.f32.mrb[0].mxu0
        %v1550 = vadd.f32 0.0, %v1549
        %v1551 = vpop.f32.mrb[0].mxu0
        %v1552 = vadd.f32 0.0, %v1551
        %1553 = vmatprep.mubr.bf16.mxu0 0
        %1554 = vmatmul.mubr.bf16.gmra.mrb[0].mxu0 %v832
        %v1555 = vpop.f32.mrb[0].mxu0
        %v1556 = vadd.f32 0.0, %v1555
        %v1557 = vpop.f32.mrb[0].mxu0
        %v1558 = vadd.f32 0.0, %v1557
        %v1559 = vpop.f32.mrb[0].mxu0
        %v1560 = vadd.f32 0.0, %v1559
        %v1561 = vpop.f32.mrb[0].mxu0
        %v1562 = vadd.f32 0.0, %v1561
        %1563 = vmatprep.mubr.bf16.mxu0 0
        %1564 = vmatmul.mubr.bf16.gmra.mrb[0].mxu0 %v835
        %v1565 = vpop.f32.mrb[0].mxu0
        %v1566 = vadd.f32 0.0, %v1565
        %v1567 = vpop.f32.mrb[0].mxu0
        %v1568 = vadd.f32 0.0, %v1567
        %v1569 = vpop.f32.mrb[0].mxu0
        %v1570 = vadd.f32 0.0, %v1569
        %v1571 = vpop.f32.mrb[0].mxu0
        %v1572 = vadd.f32 0.0, %v1571
        %1573 = vmatprep.mubr.bf16.mxu0 0
        %1574 = vmatmul.mubr.bf16.gmra.mrb[0].mxu0 %v838
        %v1575 = vpop.f32.mrb[0].mxu0
        %v1576 = vadd.f32 0.0, %v1575
        %v1577 = vpop.f32.mrb[0].mxu0
        %v1578 = vadd.f32 0.0, %v1577
        %v1579 = vpop.f32.mrb[0].mxu0
        %v1580 = vadd.f32 0.0, %v1579
        %v1581 = vpop.f32.mrb[0].mxu0
        %v1582 = vadd.f32 0.0, %v1581
        %1583 = vmatprep.mubr.bf16.mxu0 0
        %1584 = vmatmul.mubr.bf16.gmra.mrb[0].mxu0 %v841
        %v1585 = vpop.f32.mrb[0].mxu0
        %v1586 = vadd.f32 0.0, %v1585
        %v1587 = vpop.f32.mrb[0].mxu0
        %v1588 = vadd.f32 0.0, %v1587
        %v1589 = vpop.f32.mrb[0].mxu0
        %v1590 = vadd.f32 0.0, %v1589
        %v1591 = vpop.f32.mrb[0].mxu0
        %v1592 = vadd.f32 0.0, %v1591
        %1593 = vmatprep.mubr.bf16.mxu0 0
        %1594 = vmatmul.mubr.bf16.gmra.mrb[0].mxu0 %v844
        %v1595 = vpop.f32.mrb[0].mxu0
        %v1596 = vadd.f32 0.0, %v1595
        %v1597 = vpop.f32.mrb[0].mxu0
        %v1598 = vadd.f32 0.0, %v1597
        %v1599 = vpop.f32.mrb[0].mxu0
        %v1600 = vadd.f32 0.0, %v1599
        %v1601 = vpop.f32.mrb[0].mxu0
        %v1602 = vadd.f32 0.0, %v1601
        %1603 = vmatprep.mubr.bf16.mxu0 0
        %1604 = vmatmul.mubr.bf16.gmra.mrb[0].mxu0 %v847
        %v1605 = vpop.f32.mrb[0].mxu0
        %v1606 = vadd.f32 0.0, %v1605
        %v1607 = vpop.f32.mrb[0].mxu0
        %v1608 = vadd.f32 0.0, %v1607
        %v1609 = vpop.f32.mrb[0].mxu0
        %v1610 = vadd.f32 0.0, %v1609
        %v1611 = vpop.f32.mrb[0].mxu0
        %v1612 = vadd.f32 0.0, %v1611
        %1613 = vmatprep.mubr.bf16.mxu0 0
        %1614 = vmatmul.mubr.bf16.gmra.mrb[0].mxu0 %v850
        %v1615 = vpop.f32.mrb[0].mxu0
        %v1616 = vadd.f32 0.0, %v1615
        %v1617 = vpop.f32.mrb[0].mxu0
        %v1618 = vadd.f32 0.0, %v1617
        %v1619 = vpop.f32.mrb[0].mxu0
        %v1620 = vadd.f32 0.0, %v1619
        %v1621 = vpop.f32.mrb[0].mxu0
        %v1622 = vadd.f32 0.0, %v1621
        %1623 = vmatprep.mubr.bf16.mxu0 0
        %1624 = vmatmul.mubr.bf16.gmra.mrb[0].mxu0 %v853
        %v1625 = vpop.f32.mrb[0].mxu0
        %v1626 = vadd.f32 0.0, %v1625
        %v1627 = vpop.f32.mrb[0].mxu0
        %v1628 = vadd.f32 0.0, %v1627
        %v1629 = vpop.f32.mrb[0].mxu0
        %v1630 = vadd.f32 0.0, %v1629
        %v1631 = vpop.f32.mrb[0].mxu0
        %v1632 = vadd.f32 0.0, %v1631
        %1633 = vmatprep.mubr.bf16.mxu0 0
        %1634 = vmatmul.mubr.bf16.gmra.mrb[0].mxu0 %v856
        %v1635 = vpop.f32.mrb[0].mxu0
        %v1636 = vadd.f32 0.0, %v1635
        %v1637 = vpop.f32.mrb[0].mxu0
        %v1638 = vadd.f32 0.0, %v1637
        %v1639 = vpop.f32.mrb[0].mxu0
        %v1640 = vadd.f32 0.0, %v1639
        %v1641 = vpop.f32.mrb[0].mxu0
        %v1642 = vadd.f32 0.0, %v1641
        %1643 = vmatprep.mubr.bf16.mxu0 0
        %1644 = vmatmul.mubr.bf16.gmra.mrb[0].mxu0 %v859
        %v1645 = vpop.f32.mrb[0].mxu0
        %v1646 = vadd.f32 0.0, %v1645
        %v1647 = vpop.f32.mrb[0].mxu0
        %v1648 = vadd.f32 0.0, %v1647
        %v1649 = vpop.f32.mrb[0].mxu0
        %v1650 = vadd.f32 0.0, %v1649
        %v1651 = vpop.f32.mrb[0].mxu0
        %v1652 = vadd.f32 0.0, %v1651
        %1653 = vmatprep.mubr.bf16.mxu0 0
        %1654 = vmatmul.mubr.bf16.gmra.mrb[0].mxu0 %v862
        %v1655 = vpop.f32.mrb[0].mxu0
        %v1656 = vadd.f32 0.0, %v1655
        %v1657 = vpop.f32.mrb[0].mxu0
        %v1658 = vadd.f32 0.0, %v1657
        %v1659 = vpop.f32.mrb[0].mxu0
        %v1660 = vadd.f32 0.0, %v1659
        %v1661 = vpop.f32.mrb[0].mxu0
        %v1662 = vadd.f32 0.0, %v1661
        %1663 = vmatprep.mubr.bf16.mxu0 0
        %1664 = vmatmul.mubr.bf16.gmra.mrb[0].mxu0 %v865
        %v1665 = vpop.f32.mrb[0].mxu0
        %v1666 = vadd.f32 0.0, %v1665
        %v1667 = vpop.f32.mrb[0].mxu0
        %v1668 = vadd.f32 0.0, %v1667
        %v1669 = vpop.f32.mrb[0].mxu0
        %v1670 = vadd.f32 0.0, %v1669
        %v1671 = vpop.f32.mrb[0].mxu0
        %v1672 = vadd.f32 0.0, %v1671
        %1673 = vmatprep.mubr.bf16.mxu0 0
        %1674 = vmatmul.mubr.bf16.gmra.mrb[0].mxu0 %v868
        %v1675 = vpop.f32.mrb[0].mxu0
        %v1676 = vadd.f32 0.0, %v1675
        %v1677 = vpop.f32.mrb[0].mxu0
        %v1678 = vadd.f32 0.0, %v1677
        %v1679 = vpop.f32.mrb[0].mxu0
        %v1680 = vadd.f32 0.0, %v1679
        %v1681 = vpop.f32.mrb[0].mxu0
        %v1682 = vadd.f32 0.0, %v1681
        %1683 = vmatprep.mubr.bf16.mxu0 0
        %1684 = vmatmul.mubr.bf16.gmra.mrb[0].mxu0 %v871
        %v1685 = vpop.f32.mrb[0].mxu0
        %v1686 = vadd.f32 0.0, %v1685
        %v1687 = vpop.f32.mrb[0].mxu0
        %v1688 = vadd.f32 0.0, %v1687
        %v1689 = vpop.f32.mrb[0].mxu0
        %v1690 = vadd.f32 0.0, %v1689
        %v1691 = vpop.f32.mrb[0].mxu0
        %v1692 = vadd.f32 0.0, %v1691
        %1693 = vmatprep.mubr.bf16.mxu0 0
        %1694 = vmatmul.mubr.bf16.gmra.mrb[0].mxu0 %v874
        %v1695 = vpop.f32.mrb[0].mxu0
        %v1696 = vadd.f32 0.0, %v1695
        %v1697 = vpop.f32.mrb[0].mxu0
        %v1698 = vadd.f32 0.0, %v1697
        %v1699 = vpop.f32.mrb[0].mxu0
        %v1700 = vadd.f32 0.0, %v1699
        %v1701 = vpop.f32.mrb[0].mxu0
        %v1702 = vadd.f32 0.0, %v1701
        %1703 = vmatprep.mubr.bf16.mxu0 0
        %1704 = vmatmul.mubr.bf16.gmra.mrb[0].mxu0 %v877
        %v1705 = vpop.f32.mrb[0].mxu0
        %v1706 = vadd.f32 0.0, %v1705
        %v1707 = vpop.f32.mrb[0].mxu0
        %v1708 = vadd.f32 0.0, %v1707
        %v1709 = vpop.f32.mrb[0].mxu0
        %v1710 = vadd.f32 0.0, %v1709
        %v1711 = vpop.f32.mrb[0].mxu0
        %v1712 = vadd.f32 0.0, %v1711
        %1713 = vmatprep.mubr.bf16.mxu0 0
        %1714 = vmatmul.mubr.bf16.gmra.mrb[0].mxu0 %v880
        %v1715 = vpop.f32.mrb[0].mxu0
        %v1716 = vadd.f32 0.0, %v1715
        %v1717 = vpop.f32.mrb[0].mxu0
        %v1718 = vadd.f32 0.0, %v1717
        %v1719 = vpop.f32.mrb[0].mxu0
        %v1720 = vadd.f32 0.0, %v1719
        %v1721 = vpop.f32.mrb[0].mxu0
        %v1722 = vadd.f32 0.0, %v1721
        %1723 = vmatprep.mubr.bf16.mxu0 0
        %1724 = vmatmul.mubr.bf16.gmra.mrb[0].mxu0 %v883
        %v1725 = vpop.f32.mrb[0].mxu0
        %v1726 = vadd.f32 0.0, %v1725
        %v1727 = vpop.f32.mrb[0].mxu0
        %v1728 = vadd.f32 0.0, %v1727
        %v1729 = vpop.f32.mrb[0].mxu0
        %v1730 = vadd.f32 0.0, %v1729
        %v1731 = vpop.f32.mrb[0].mxu0
        %v1732 = vadd.f32 0.0, %v1731
        %1733 = vmatprep.mubr.bf16.mxu0 0
        %1734 = vmatmul.mubr.bf16.gmra.mrb[0].mxu0 %v886
        %v1735 = vpop.f32.mrb[0].mxu0
        %v1736 = vadd.f32 0.0, %v1735
        %v1737 = vpop.f32.mrb[0].mxu0
        %v1738 = vadd.f32 0.0, %v1737
        %v1739 = vpop.f32.mrb[0].mxu0
        %v1740 = vadd.f32 0.0, %v1739
        %v1741 = vpop.f32.mrb[0].mxu0
        %v1742 = vadd.f32 0.0, %v1741
        %1743 = vmatprep.mubr.bf16.mxu0 0
        %1744 = vmatmul.mubr.bf16.gmra.mrb[0].mxu0 %v889
        %v1745 = vpop.f32.mrb[0].mxu0
        %v1746 = vadd.f32 0.0, %v1745
        %v1747 = vpop.f32.mrb[0].mxu0
        %v1748 = vadd.f32 0.0, %v1747
        %v1749 = vpop.f32.mrb[0].mxu0
        %v1750 = vadd.f32 0.0, %v1749
        %v1751 = vpop.f32.mrb[0].mxu0
        %v1752 = vadd.f32 0.0, %v1751
        %1753 = vmatprep.mubr.bf16.mxu0 0
        %1754 = vmatmul.mubr.bf16.gmra.mrb[0].mxu0 %v892
        %v1755 = vpop.f32.mrb[0].mxu0
        %v1756 = vadd.f32 0.0, %v1755
        %v1757 = vpop.f32.mrb[0].mxu0
        %v1758 = vadd.f32 0.0, %v1757
        %v1759 = vpop.f32.mrb[0].mxu0
        %v1760 = vadd.f32 0.0, %v1759
        %v1761 = vpop.f32.mrb[0].mxu0
        %v1762 = vadd.f32 0.0, %v1761
        %1763 = vmatprep.mubr.bf16.mxu0 0
        %1764 = vmatmul.mubr.bf16.gmra.mrb[0].mxu0 %v895
        %v1765 = vpop.f32.mrb[0].mxu0
        %v1766 = vadd.f32 0.0, %v1765
        %v1767 = vpop.f32.mrb[0].mxu0
        %v1768 = vadd.f32 0.0, %v1767
        %v1769 = vpop.f32.mrb[0].mxu0
        %v1770 = vadd.f32 0.0, %v1769
        %v1771 = vpop.f32.mrb[0].mxu0
        %v1772 = vadd.f32 0.0, %v1771
        %1773 = vmatprep.mubr.bf16.mxu0 0
        %1774 = vmatmul.mubr.bf16.gmra.mrb[0].mxu0 %v898
        %v1775 = vpop.f32.mrb[0].mxu0
        %v1776 = vadd.f32 0.0, %v1775
        %v1777 = vpop.f32.mrb[0].mxu0
        %v1778 = vadd.f32 0.0, %v1777
        %v1779 = vpop.f32.mrb[0].mxu0
        %v1780 = vadd.f32 0.0, %v1779
        %v1781 = vpop.f32.mrb[0].mxu0
        %v1782 = vadd.f32 0.0, %v1781
        %1783 = vmatprep.mubr.bf16.mxu0 0
        %1784 = vmatmul.mubr.bf16.gmra.mrb[0].mxu0 %v901
        %v1785 = vpop.f32.mrb[0].mxu0
        %v1786 = vadd.f32 0.0, %v1785
        %v1787 = vpop.f32.mrb[0].mxu0
        %v1788 = vadd.f32 0.0, %v1787
        %v1789 = vpop.f32.mrb[0].mxu0
        %v1790 = vadd.f32 0.0, %v1789
        %v1791 = vpop.f32.mrb[0].mxu0
        %v1792 = vadd.f32 0.0, %v1791
        %1793 = vmatprep.mubr.bf16.mxu0 0
        %1794 = vmatmul.mubr.bf16.gmra.mrb[0].mxu0 %v904
        %v1795 = vpop.f32.mrb[0].mxu0
        %v1796 = vadd.f32 0.0, %v1795
        %v1797 = vpop.f32.mrb[0].mxu0
        %v1798 = vadd.f32 0.0, %v1797
        %v1799 = vpop.f32.mrb[0].mxu0
        %v1800 = vadd.f32 0.0, %v1799
        %v1801 = vpop.f32.mrb[0].mxu0
        %v1802 = vadd.f32 0.0, %v1801
        %1803 = vmatprep.mubr.bf16.mxu0 0
        %1804 = vmatmul.mubr.bf16.gmra.mrb[0].mxu0 %v907
        %v1805 = vpop.f32.mrb[0].mxu0
        %v1806 = vadd.f32 0.0, %v1805
        %v1807 = vpop.f32.mrb[0].mxu0
        %v1808 = vadd.f32 0.0, %v1807
        %v1809 = vpop.f32.mrb[0].mxu0
        %v1810 = vadd.f32 0.0, %v1809
        %v1811 = vpop.f32.mrb[0].mxu0
        %v1812 = vadd.f32 0.0, %v1811
        %1813 = vmatprep.mubr.bf16.mxu0 0
        %1814 = vmatmul.mubr.bf16.gmra.mrb[0].mxu0 %v910
        %v1815 = vpop.f32.mrb[0].mxu0
        %v1816 = vadd.f32 0.0, %v1815
        %v1817 = vpop.f32.mrb[0].mxu0
        %v1818 = vadd.f32 0.0, %v1817
        %v1819 = vpop.f32.mrb[0].mxu0
        %v1820 = vadd.f32 0.0, %v1819
        %v1821 = vpop.f32.mrb[0].mxu0
        %v1822 = vadd.f32 0.0, %v1821
        %1823 = vmatprep.mubr.bf16.mxu0 0
        %1824 = vmatmul.mubr.bf16.gmra.mrb[0].mxu0 %v913
        %v1825 = vpop.f32.mrb[0].mxu0
        %v1826 = vadd.f32 0.0, %v1825
        %v1827 = vpop.f32.mrb[0].mxu0
        %v1828 = vadd.f32 0.0, %v1827
        %v1829 = vpop.f32.mrb[0].mxu0
        %v1830 = vadd.f32 0.0, %v1829
        %v1831 = vpop.f32.mrb[0].mxu0
        %v1832 = vadd.f32 0.0, %v1831
        %1833 = vmatprep.mubr.bf16.mxu0 0
        %1834 = vmatmul.mubr.bf16.gmra.mrb[0].mxu0 %v916
        %v1835 = vpop.f32.mrb[0].mxu0
        %v1836 = vadd.f32 0.0, %v1835
        %v1837 = vpop.f32.mrb[0].mxu0
        %v1838 = vadd.f32 0.0, %v1837
        %v1839 = vpop.f32.mrb[0].mxu0
        %v1840 = vadd.f32 0.0, %v1839
        %v1841 = vpop.f32.mrb[0].mxu0
        %v1842 = vadd.f32 0.0, %v1841
        %1843 = vmatprep.mubr.bf16.mxu0 0
        %1844 = vmatmul.mubr.bf16.gmra.mrb[0].mxu0 %v919
        %v1845 = vpop.f32.mrb[0].mxu0
        %v1846 = vadd.f32 0.0, %v1845
        %v1847 = vpop.f32.mrb[0].mxu0
        %v1848 = vadd.f32 0.0, %v1847
        %v1849 = vpop.f32.mrb[0].mxu0
        %v1850 = vadd.f32 0.0, %v1849
        %v1851 = vpop.f32.mrb[0].mxu0
        %v1852 = vadd.f32 0.0, %v1851
        %1853 = vmatprep.mubr.bf16.mxu0 0
        %1854 = vmatmul.mubr.bf16.gmra.mrb[0].mxu0 %v922
        %v1855 = vpop.f32.mrb[0].mxu0
        %v1856 = vadd.f32 0.0, %v1855
        %v1857 = vpop.f32.mrb[0].mxu0
        %v1858 = vadd.f32 0.0, %v1857
        %v1859 = vpop.f32.mrb[0].mxu0
        %v1860 = vadd.f32 0.0, %v1859
        %v1861 = vpop.f32.mrb[0].mxu0
        %v1862 = vadd.f32 0.0, %v1861
        %1863 = vmatprep.mubr.bf16.mxu0 0
        %1864 = vmatmul.mubr.bf16.gmra.mrb[0].mxu0 %v925
        %v1865 = vpop.f32.mrb[0].mxu0
        %v1866 = vadd.f32 0.0, %v1865
        %v1867 = vpop.f32.mrb[0].mxu0
        %v1868 = vadd.f32 0.0, %v1867
        %v1869 = vpop.f32.mrb[0].mxu0
        %v1870 = vadd.f32 0.0, %v1869
        %v1871 = vpop.f32.mrb[0].mxu0
        %v1872 = vadd.f32 0.0, %v1871
        %1873 = vmatprep.mubr.bf16.mxu0 0
        %1874 = vmatmul.mubr.bf16.gmra.mrb[0].mxu0 %v928
        %v1875 = vpop.f32.mrb[0].mxu0
        %v1876 = vadd.f32 0.0, %v1875
        %v1877 = vpop.f32.mrb[0].mxu0
        %v1878 = vadd.f32 0.0, %v1877
        %v1879 = vpop.f32.mrb[0].mxu0
        %v1880 = vadd.f32 0.0, %v1879
        %v1881 = vpop.f32.mrb[0].mxu0
        %v1882 = vadd.f32 0.0, %v1881
        %1883 = vmatprep.mubr.bf16.mxu0 0
        %1884 = vmatmul.mubr.bf16.gmra.mrb[0].mxu0 %v931
        %v1885 = vpop.f32.mrb[0].mxu0
        %v1886 = vadd.f32 0.0, %v1885
        %v1887 = vpop.f32.mrb[0].mxu0
        %v1888 = vadd.f32 0.0, %v1887
        %v1889 = vpop.f32.mrb[0].mxu0
        %v1890 = vadd.f32 0.0, %v1889
        %v1891 = vpop.f32.mrb[0].mxu0
        %v1892 = vadd.f32 0.0, %v1891
        %1893 = vmatprep.mubr.bf16.mxu0 0
        %1894 = vmatmul.mubr.bf16.gmra.mrb[0].mxu0 %v934
        %v1895 = vpop.f32.mrb[0].mxu0
        %v1896 = vadd.f32 0.0, %v1895
        %v1897 = vpop.f32.mrb[0].mxu0
        %v1898 = vadd.f32 0.0, %v1897
        %v1899 = vpop.f32.mrb[0].mxu0
        %v1900 = vadd.f32 0.0, %v1899
        %v1901 = vpop.f32.mrb[0].mxu0
        %v1902 = vadd.f32 0.0, %v1901
        %1903 = vmatprep.mubr.bf16.mxu0 0
        %1904 = vmatmul.mubr.bf16.gmra.mrb[0].mxu0 %v937
        %v1905 = vpop.f32.mrb[0].mxu0
        %v1906 = vadd.f32 0.0, %v1905
        %v1907 = vpop.f32.mrb[0].mxu0
        %v1908 = vadd.f32 0.0, %v1907
        %v1909 = vpop.f32.mrb[0].mxu0
        %v1910 = vadd.f32 0.0, %v1909
        %v1911 = vpop.f32.mrb[0].mxu0
        %v1912 = vadd.f32 0.0, %v1911
        %1913 = vmatprep.mubr.bf16.mxu0 0
        %1914 = vmatmul.mubr.bf16.gmra.mrb[0].mxu0 %v940
        %v1915 = vpop.f32.mrb[0].mxu0
        %v1916 = vadd.f32 0.0, %v1915
        %v1917 = vpop.f32.mrb[0].mxu0
        %v1918 = vadd.f32 0.0, %v1917
        %v1919 = vpop.f32.mrb[0].mxu0
        %v1920 = vadd.f32 0.0, %v1919
        %v1921 = vpop.f32.mrb[0].mxu0
        %v1922 = vadd.f32 0.0, %v1921
        %1923 = vmatprep.mubr.bf16.mxu0 0
        %1924 = vmatmul.mubr.bf16.gmra.mrb[0].mxu0 %v943
        %v1925 = vpop.f32.mrb[0].mxu0
        %v1926 = vadd.f32 0.0, %v1925
        %v1927 = vpop.f32.mrb[0].mxu0
        %v1928 = vadd.f32 0.0, %v1927
        %v1929 = vpop.f32.mrb[0].mxu0
        %v1930 = vadd.f32 0.0, %v1929
        %v1931 = vpop.f32.mrb[0].mxu0
        %v1932 = vadd.f32 0.0, %v1931
        %1933 = vmatprep.mubr.bf16.mxu0 0
        %1934 = vmatmul.mubr.bf16.gmra.mrb[0].mxu0 %v946
        %v1935 = vpop.f32.mrb[0].mxu0
        %v1936 = vadd.f32 0.0, %v1935
        %v1937 = vpop.f32.mrb[0].mxu0
        %v1938 = vadd.f32 0.0, %v1937
        %v1939 = vpop.f32.mrb[0].mxu0
        %v1940 = vadd.f32 0.0, %v1939
        %v1941 = vpop.f32.mrb[0].mxu0
        %v1942 = vadd.f32 0.0, %v1941
        %1943 = vmatprep.mubr.bf16.mxu0 0
        %1944 = vmatmul.mubr.bf16.gmra.mrb[0].mxu0 %v949
        %v1945 = vpop.f32.mrb[0].mxu0
        %v1946 = vadd.f32 0.0, %v1945
        %v1947 = vpop.f32.mrb[0].mxu0
        %v1948 = vadd.f32 0.0, %v1947
        %v1949 = vpop.f32.mrb[0].mxu0
        %v1950 = vadd.f32 0.0, %v1949
        %v1951 = vpop.f32.mrb[0].mxu0
        %v1952 = vadd.f32 0.0, %v1951
        %1953 = vmatprep.mubr.bf16.mxu0 0
        %1954 = vmatmul.mubr.bf16.gmra.mrb[0].mxu0 %v952
        %v1955 = vpop.f32.mrb[0].mxu0
        %v1956 = vadd.f32 0.0, %v1955
        %v1957 = vpop.f32.mrb[0].mxu0
        %v1958 = vadd.f32 0.0, %v1957
        %v1959 = vpop.f32.mrb[0].mxu0
        %v1960 = vadd.f32 0.0, %v1959
        %v1961 = vpop.f32.mrb[0].mxu0
        %v1962 = vadd.f32 0.0, %v1961
        %1963 = vmatprep.mubr.bf16.mxu0 0
        %1964 = vmatmul.mubr.bf16.gmra.mrb[0].mxu0 %v955
        %v1965 = vpop.f32.mrb[0].mxu0
        %v1966 = vadd.f32 0.0, %v1965
        %v1967 = vpop.f32.mrb[0].mxu0
        %v1968 = vadd.f32 0.0, %v1967
        %v1969 = vpop.f32.mrb[0].mxu0
        %v1970 = vadd.f32 0.0, %v1969
        %v1971 = vpop.f32.mrb[0].mxu0
        %v1972 = vadd.f32 0.0, %v1971
        %1973 = vmatprep.mubr.bf16.mxu0 0
        %1974 = vmatmul.mubr.bf16.gmra.mrb[0].mxu0 %v958
        %v1975 = vpop.f32.mrb[0].mxu0
        %v1976 = vadd.f32 0.0, %v1975
        %v1977 = vpop.f32.mrb[0].mxu0
        %v1978 = vadd.f32 0.0, %v1977
        %v1979 = vpop.f32.mrb[0].mxu0
        %v1980 = vadd.f32 0.0, %v1979
        %v1981 = vpop.f32.mrb[0].mxu0
        %v1982 = vadd.f32 0.0, %v1981
        %1983 = vmatprep.mubr.bf16.mxu0 0
        %1984 = vmatmul.mubr.bf16.gmra.mrb[0].mxu0 %v961
        %v1985 = vpop.f32.mrb[0].mxu0
        %v1986 = vadd.f32 0.0, %v1985
        %v1987 = vpop.f32.mrb[0].mxu0
        %v1988 = vadd.f32 0.0, %v1987
        %v1989 = vpop.f32.mrb[0].mxu0
        %v1990 = vadd.f32 0.0, %v1989
        %v1991 = vpop.f32.mrb[0].mxu0
        %v1992 = vadd.f32 0.0, %v1991
        %1993 = vmatprep.mubr.bf16.mxu0 0
        %1994 = vmatmul.mubr.bf16.gmra.mrb[0].mxu0 %v964
        %v1995 = vpop.f32.mrb[0].mxu0
        %v1996 = vadd.f32 0.0, %v1995
        %v1997 = vpop.f32.mrb[0].mxu0
        %v1998 = vadd.f32 0.0, %v1997
        %v1999 = vpop.f32.mrb[0].mxu0
        %v2000 = vadd.f32 0.0, %v1999
        %v2001 = vpop.f32.mrb[0].mxu0
        %v2002 = vadd.f32 0.0, %v2001
        %2003 = vmatprep.mubr.bf16.mxu0 0
        %2004 = vmatmul.mubr.bf16.gmra.mrb[0].mxu0 %v967
        %v2005 = vpop.f32.mrb[0].mxu0
        %v2006 = vadd.f32 0.0, %v2005
        %v2007 = vpop.f32.mrb[0].mxu0
        %v2008 = vadd.f32 0.0, %v2007
        %v2009 = vpop.f32.mrb[0].mxu0
        %v2010 = vadd.f32 0.0, %v2009
        %v2011 = vpop.f32.mrb[0].mxu0
        %v2012 = vadd.f32 0.0, %v2011
        %2013 = vmatprep.mubr.bf16.mxu0 0
        %2014 = vmatmul.mubr.bf16.gmra.mrb[0].mxu0 %v970
        %v2015 = vpop.f32.mrb[0].mxu0
        %v2016 = vadd.f32 0.0, %v2015
        %v2017 = vpop.f32.mrb[0].mxu0
        %v2018 = vadd.f32 0.0, %v2017
        %v2019 = vpop.f32.mrb[0].mxu0
        %v2020 = vadd.f32 0.0, %v2019
        %v2021 = vpop.f32.mrb[0].mxu0
        %v2022 = vadd.f32 0.0, %v2021
        %2023 = vmatprep.mubr.bf16.mxu0 0
        %2024 = vmatmul.mubr.bf16.gmra.mrb[0].mxu0 %v973
        %v2025 = vpop.f32.mrb[0].mxu0
        %v2026 = vadd.f32 0.0, %v2025
        %v2027 = vpop.f32.mrb[0].mxu0
        %v2028 = vadd.f32 0.0, %v2027
        %v2029 = vpop.f32.mrb[0].mxu0
        %v2030 = vadd.f32 0.0, %v2029
        %v2031 = vpop.f32.mrb[0].mxu0
        %v2032 = vadd.f32 0.0, %v2031
        %2033 = vmatprep.mubr.bf16.mxu0 0
        %2034 = vmatmul.mubr.bf16.gmra.mrb[0].mxu0 %v976
        %v2035 = vpop.f32.mrb[0].mxu0
        %v2036 = vadd.f32 0.0, %v2035
        %v2037 = vpop.f32.mrb[0].mxu0
        %v2038 = vadd.f32 0.0, %v2037
        %v2039 = vpop.f32.mrb[0].mxu0
        %v2040 = vadd.f32 0.0, %v2039
        %v2041 = vpop.f32.mrb[0].mxu0
        %v2042 = vadd.f32 0.0, %v2041
        %2043 = vdwg.mxu0
        %v2044 = vmul.f32 %v1013, 10.0
        %v2045 = vmul.f32 %v1015, 10.0
        %v2046 = vmul.f32 %v1546, 10.0
        %v2047 = vmul.f32 %v1548, 10.0
        %v2048 = vmul.f32 %v1017, 10.0
        %v2049 = vmul.f32 %v1019, 10.0
        %v2050 = vmul.f32 %v1550, 10.0
        %v2051 = vmul.f32 %v1552, 10.0
        %v2052 = vmul.f32 %v1023, 10.0
        %v2053 = vmul.f32 %v1025, 10.0
        %v2054 = vmul.f32 %v1556, 10.0
        %v2055 = vmul.f32 %v1558, 10.0
        %v2056 = vmul.f32 %v1027, 10.0
        %v2057 = vmul.f32 %v1029, 10.0
        %v2058 = vmul.f32 %v1560, 10.0
        %v2059 = vmul.f32 %v1562, 10.0
        %v2060 = vmul.f32 %v1033, 10.0
        %v2061 = vmul.f32 %v1035, 10.0
        %v2062 = vmul.f32 %v1566, 10.0
        %v2063 = vmul.f32 %v1568, 10.0
        %v2064 = vmul.f32 %v1037, 10.0
        %v2065 = vmul.f32 %v1039, 10.0
        %v2066 = vmul.f32 %v1570, 10.0
        %v2067 = vmul.f32 %v1572, 10.0
        %v2068 = vmul.f32 %v1043, 10.0
        %v2069 = vmul.f32 %v1045, 10.0
        %v2070 = vmul.f32 %v1576, 10.0
        %v2071 = vmul.f32 %v1578, 10.0
        %v2072 = vmul.f32 %v1047, 10.0
        %v2073 = vmul.f32 %v1049, 10.0
        %v2074 = vmul.f32 %v1580, 10.0
        %v2075 = vmul.f32 %v1582, 10.0
        %v2076 = vmul.f32 %v1053, 10.0
        %v2077 = vmul.f32 %v1055, 10.0
        %v2078 = vmul.f32 %v1586, 10.0
        %v2079 = vmul.f32 %v1588, 10.0
        %v2080 = vmul.f32 %v1057, 10.0
        %v2081 = vmul.f32 %v1059, 10.0
        %v2082 = vmul.f32 %v1590, 10.0
        %v2083 = vmul.f32 %v1592, 10.0
        %v2084 = vmul.f32 %v1063, 10.0
        %v2085 = vmul.f32 %v1065, 10.0
        %v2086 = vmul.f32 %v1596, 10.0
        %v2087 = vmul.f32 %v1598, 10.0
        %v2088 = vmul.f32 %v1067, 10.0
        %v2089 = vmul.f32 %v1069, 10.0
        %v2090 = vmul.f32 %v1600, 10.0
        %v2091 = vmul.f32 %v1602, 10.0
        %v2092 = vmul.f32 %v1073, 10.0
        %v2093 = vmul.f32 %v1075, 10.0
        %v2094 = vmul.f32 %v1606, 10.0
        %v2095 = vmul.f32 %v1608, 10.0
        %v2096 = vmul.f32 %v1077, 10.0
        %v2097 = vmul.f32 %v1079, 10.0
        %v2098 = vmul.f32 %v1610, 10.0
        %v2099 = vmul.f32 %v1612, 10.0
        %v2100 = vmul.f32 %v1083, 10.0
        %v2101 = vmul.f32 %v1085, 10.0
        %v2102 = vmul.f32 %v1616, 10.0
        %v2103 = vmul.f32 %v1618, 10.0
        %v2104 = vmul.f32 %v1087, 10.0
        %v2105 = vmul.f32 %v1089, 10.0
        %v2106 = vmul.f32 %v1620, 10.0
        %v2107 = vmul.f32 %v1622, 10.0
        %v2108 = vmul.f32 %v1093, 10.0
        %v2109 = vmul.f32 %v1095, 10.0
        %v2110 = vmul.f32 %v1626, 10.0
        %v2111 = vmul.f32 %v1628, 10.0
        %v2112 = vmul.f32 %v1097, 10.0
        %v2113 = vmul.f32 %v1099, 10.0
        %v2114 = vmul.f32 %v1630, 10.0
        %v2115 = vmul.f32 %v1632, 10.0
        %v2116 = vmul.f32 %v1103, 10.0
        %v2117 = vmul.f32 %v1105, 10.0
        %v2118 = vmul.f32 %v1636, 10.0
        %v2119 = vmul.f32 %v1638, 10.0
        %v2120 = vmul.f32 %v1107, 10.0
        %v2121 = vmul.f32 %v1109, 10.0
        %v2122 = vmul.f32 %v1640, 10.0
        %v2123 = vmul.f32 %v1642, 10.0
        %v2124 = vmul.f32 %v1113, 10.0
        %v2125 = vmul.f32 %v1115, 10.0
        %v2126 = vmul.f32 %v1646, 10.0
        %v2127 = vmul.f32 %v1648, 10.0
        %v2128 = vmul.f32 %v1117, 10.0
        %v2129 = vmul.f32 %v1119, 10.0
        %v2130 = vmul.f32 %v1650, 10.0
        %v2131 = vmul.f32 %v1652, 10.0
        %v2132 = vmul.f32 %v1123, 10.0
        %v2133 = vmul.f32 %v1125, 10.0
        %v2134 = vmul.f32 %v1656, 10.0
        %v2135 = vmul.f32 %v1658, 10.0
        %v2136 = vmul.f32 %v1127, 10.0
        %v2137 = vmul.f32 %v1129, 10.0
        %v2138 = vmul.f32 %v1660, 10.0
        %v2139 = vmul.f32 %v1662, 10.0
        %v2140 = vmul.f32 %v1133, 10.0
        %v2141 = vmul.f32 %v1135, 10.0
        %v2142 = vmul.f32 %v1666, 10.0
        %v2143 = vmul.f32 %v1668, 10.0
        %v2144 = vmul.f32 %v1137, 10.0
        %v2145 = vmul.f32 %v1139, 10.0
        %v2146 = vmul.f32 %v1670, 10.0
        %v2147 = vmul.f32 %v1672, 10.0
        %v2148 = vmul.f32 %v1143, 10.0
        %v2149 = vmul.f32 %v1145, 10.0
        %v2150 = vmul.f32 %v1676, 10.0
        %v2151 = vmul.f32 %v1678, 10.0
        %v2152 = vmul.f32 %v1147, 10.0
        %v2153 = vmul.f32 %v1149, 10.0
        %v2154 = vmul.f32 %v1680, 10.0
        %v2155 = vmul.f32 %v1682, 10.0
        %v2156 = vmul.f32 %v1153, 10.0
        %v2157 = vmul.f32 %v1155, 10.0
        %v2158 = vmul.f32 %v1686, 10.0
        %v2159 = vmul.f32 %v1688, 10.0
        %v2160 = vmul.f32 %v1157, 10.0
        %v2161 = vmul.f32 %v1159, 10.0
        %v2162 = vmul.f32 %v1690, 10.0
        %v2163 = vmul.f32 %v1692, 10.0
        %v2164 = vmul.f32 %v1163, 10.0
        %v2165 = vmul.f32 %v1165, 10.0
        %v2166 = vmul.f32 %v1696, 10.0
        %v2167 = vmul.f32 %v1698, 10.0
        %v2168 = vmul.f32 %v1167, 10.0
        %v2169 = vmul.f32 %v1169, 10.0
        %v2170 = vmul.f32 %v1700, 10.0
        %v2171 = vmul.f32 %v1702, 10.0
        %v2172 = vmul.f32 %v1173, 10.0
        %v2173 = vmul.f32 %v1175, 10.0
        %v2174 = vmul.f32 %v1706, 10.0
        %v2175 = vmul.f32 %v1708, 10.0
        %v2176 = vmul.f32 %v1177, 10.0
        %v2177 = vmul.f32 %v1179, 10.0
        %v2178 = vmul.f32 %v1710, 10.0
        %v2179 = vmul.f32 %v1712, 10.0
        %v2180 = vmul.f32 %v1183, 10.0
        %v2181 = vmul.f32 %v1185, 10.0
        %v2182 = vmul.f32 %v1716, 10.0
        %v2183 = vmul.f32 %v1718, 10.0
        %v2184 = vmul.f32 %v1187, 10.0
        %v2185 = vmul.f32 %v1189, 10.0
        %v2186 = vmul.f32 %v1720, 10.0
        %v2187 = vmul.f32 %v1722, 10.0
        %v2188 = vmul.f32 %v1193, 10.0
        %v2189 = vmul.f32 %v1195, 10.0
        %v2190 = vmul.f32 %v1726, 10.0
        %v2191 = vmul.f32 %v1728, 10.0
        %v2192 = vmul.f32 %v1197, 10.0
        %v2193 = vmul.f32 %v1199, 10.0
        %v2194 = vmul.f32 %v1730, 10.0
        %v2195 = vmul.f32 %v1732, 10.0
        %v2196 = vmul.f32 %v1203, 10.0
        %v2197 = vmul.f32 %v1205, 10.0
        %v2198 = vmul.f32 %v1736, 10.0
        %v2199 = vmul.f32 %v1738, 10.0
        %v2200 = vmul.f32 %v1207, 10.0
        %v2201 = vmul.f32 %v1209, 10.0
        %v2202 = vmul.f32 %v1740, 10.0
        %v2203 = vmul.f32 %v1742, 10.0
        %v2204 = vmul.f32 %v1213, 10.0
        %v2205 = vmul.f32 %v1215, 10.0
        %v2206 = vmul.f32 %v1746, 10.0
        %v2207 = vmul.f32 %v1748, 10.0
        %v2208 = vmul.f32 %v1217, 10.0
        %v2209 = vmul.f32 %v1219, 10.0
        %v2210 = vmul.f32 %v1750, 10.0
        %v2211 = vmul.f32 %v1752, 10.0
        %v2212 = vmul.f32 %v1223, 10.0
        %v2213 = vmul.f32 %v1225, 10.0
        %v2214 = vmul.f32 %v1756, 10.0
        %v2215 = vmul.f32 %v1758, 10.0
        %v2216 = vmul.f32 %v1227, 10.0
        %v2217 = vmul.f32 %v1229, 10.0
        %v2218 = vmul.f32 %v1760, 10.0
        %v2219 = vmul.f32 %v1762, 10.0
        %v2220 = vmul.f32 %v1233, 10.0
        %v2221 = vmul.f32 %v1235, 10.0
        %v2222 = vmul.f32 %v1766, 10.0
        %v2223 = vmul.f32 %v1768, 10.0
        %v2224 = vmul.f32 %v1237, 10.0
        %v2225 = vmul.f32 %v1239, 10.0
        %v2226 = vmul.f32 %v1770, 10.0
        %v2227 = vmul.f32 %v1772, 10.0
        %v2228 = vmul.f32 %v1243, 10.0
        %v2229 = vmul.f32 %v1245, 10.0
        %v2230 = vmul.f32 %v1776, 10.0
        %v2231 = vmul.f32 %v1778, 10.0
        %v2232 = vmul.f32 %v1247, 10.0
        %v2233 = vmul.f32 %v1249, 10.0
        %v2234 = vmul.f32 %v1780, 10.0
        %v2235 = vmul.f32 %v1782, 10.0
        %v2236 = vmul.f32 %v1253, 10.0
        %v2237 = vmul.f32 %v1255, 10.0
        %v2238 = vmul.f32 %v1786, 10.0
        %v2239 = vmul.f32 %v1788, 10.0
        %v2240 = vmul.f32 %v1257, 10.0
        %v2241 = vmul.f32 %v1259, 10.0
        %v2242 = vmul.f32 %v1790, 10.0
        %v2243 = vmul.f32 %v1792, 10.0
        %v2244 = vmul.f32 %v1263, 10.0
        %v2245 = vmul.f32 %v1265, 10.0
        %v2246 = vmul.f32 %v1796, 10.0
        %v2247 = vmul.f32 %v1798, 10.0
        %v2248 = vmul.f32 %v1267, 10.0
        %v2249 = vmul.f32 %v1269, 10.0
        %v2250 = vmul.f32 %v1800, 10.0
        %v2251 = vmul.f32 %v1802, 10.0
        %v2252 = vmul.f32 %v1273, 10.0
        %v2253 = vmul.f32 %v1275, 10.0
        %v2254 = vmul.f32 %v1806, 10.0
        %v2255 = vmul.f32 %v1808, 10.0
        %v2256 = vmul.f32 %v1277, 10.0
        %v2257 = vmul.f32 %v1279, 10.0
        %v2258 = vmul.f32 %v1810, 10.0
        %v2259 = vmul.f32 %v1812, 10.0
        %v2260 = vmul.f32 %v1283, 10.0
        %v2261 = vmul.f32 %v1285, 10.0
        %v2262 = vmul.f32 %v1816, 10.0
        %v2263 = vmul.f32 %v1818, 10.0
        %v2264 = vmul.f32 %v1287, 10.0
        %v2265 = vmul.f32 %v1289, 10.0
        %v2266 = vmul.f32 %v1820, 10.0
        %v2267 = vmul.f32 %v1822, 10.0
        %v2268 = vmul.f32 %v1293, 10.0
        %v2269 = vmul.f32 %v1295, 10.0
        %v2270 = vmul.f32 %v1826, 10.0
        %v2271 = vmul.f32 %v1828, 10.0
        %v2272 = vmul.f32 %v1297, 10.0
        %v2273 = vmul.f32 %v1299, 10.0
        %v2274 = vmul.f32 %v1830, 10.0
        %v2275 = vmul.f32 %v1832, 10.0
        %v2276 = vmul.f32 %v1303, 10.0
        %v2277 = vmul.f32 %v1305, 10.0
        %v2278 = vmul.f32 %v1836, 10.0
        %v2279 = vmul.f32 %v1838, 10.0
        %v2280 = vmul.f32 %v1307, 10.0
        %v2281 = vmul.f32 %v1309, 10.0
        %v2282 = vmul.f32 %v1840, 10.0
        %v2283 = vmul.f32 %v1842, 10.0
        %v2284 = vmul.f32 %v1313, 10.0
        %v2285 = vmul.f32 %v1315, 10.0
        %v2286 = vmul.f32 %v1846, 10.0
        %v2287 = vmul.f32 %v1848, 10.0
        %v2288 = vmul.f32 %v1317, 10.0
        %v2289 = vmul.f32 %v1319, 10.0
        %v2290 = vmul.f32 %v1850, 10.0
        %v2291 = vmul.f32 %v1852, 10.0
        %v2292 = vmul.f32 %v1323, 10.0
        %v2293 = vmul.f32 %v1325, 10.0
        %v2294 = vmul.f32 %v1856, 10.0
        %v2295 = vmul.f32 %v1858, 10.0
        %v2296 = vmul.f32 %v1327, 10.0
        %v2297 = vmul.f32 %v1329, 10.0
        %v2298 = vmul.f32 %v1860, 10.0
        %v2299 = vmul.f32 %v1862, 10.0
        %v2300 = vmul.f32 %v1333, 10.0
        %v2301 = vmul.f32 %v1335, 10.0
        %v2302 = vmul.f32 %v1866, 10.0
        %v2303 = vmul.f32 %v1868, 10.0
        %v2304 = vmul.f32 %v1337, 10.0
        %v2305 = vmul.f32 %v1339, 10.0
        %v2306 = vmul.f32 %v1870, 10.0
        %v2307 = vmul.f32 %v1872, 10.0
        %v2308 = vmul.f32 %v1343, 10.0
        %v2309 = vmul.f32 %v1345, 10.0
        %v2310 = vmul.f32 %v1876, 10.0
        %v2311 = vmul.f32 %v1878, 10.0
        %v2312 = vmul.f32 %v1347, 10.0
        %v2313 = vmul.f32 %v1349, 10.0
        %v2314 = vmul.f32 %v1880, 10.0
        %v2315 = vmul.f32 %v1882, 10.0
        %v2316 = vmul.f32 %v1353, 10.0
        %v2317 = vmul.f32 %v1355, 10.0
        %v2318 = vmul.f32 %v1886, 10.0
        %v2319 = vmul.f32 %v1888, 10.0
        %v2320 = vmul.f32 %v1357, 10.0
        %v2321 = vmul.f32 %v1359, 10.0
        %v2322 = vmul.f32 %v1890, 10.0
        %v2323 = vmul.f32 %v1892, 10.0
        %v2324 = vmul.f32 %v1363, 10.0
        %v2325 = vmul.f32 %v1365, 10.0
        %v2326 = vmul.f32 %v1896, 10.0
        %v2327 = vmul.f32 %v1898, 10.0
        %v2328 = vmul.f32 %v1367, 10.0
        %v2329 = vmul.f32 %v1369, 10.0
        %v2330 = vmul.f32 %v1900, 10.0
        %v2331 = vmul.f32 %v1902, 10.0
        %v2332 = vmul.f32 %v1373, 10.0
        %v2333 = vmul.f32 %v1375, 10.0
        %v2334 = vmul.f32 %v1906, 10.0
        %v2335 = vmul.f32 %v1908, 10.0
        %v2336 = vmul.f32 %v1377, 10.0
        %v2337 = vmul.f32 %v1379, 10.0
        %v2338 = vmul.f32 %v1910, 10.0
        %v2339 = vmul.f32 %v1912, 10.0
        %v2340 = vmul.f32 %v1383, 10.0
        %v2341 = vmul.f32 %v1385, 10.0
        %v2342 = vmul.f32 %v1916, 10.0
        %v2343 = vmul.f32 %v1918, 10.0
        %v2344 = vmul.f32 %v1387, 10.0
        %v2345 = vmul.f32 %v1389, 10.0
        %v2346 = vmul.f32 %v1920, 10.0
        %v2347 = vmul.f32 %v1922, 10.0
        %v2348 = vmul.f32 %v1393, 10.0
        %v2349 = vmul.f32 %v1395, 10.0
        %v2350 = vmul.f32 %v1926, 10.0
        %v2351 = vmul.f32 %v1928, 10.0
        %v2352 = vmul.f32 %v1397, 10.0
        %v2353 = vmul.f32 %v1399, 10.0
        %v2354 = vmul.f32 %v1930, 10.0
        %v2355 = vmul.f32 %v1932, 10.0
        %v2356 = vmul.f32 %v1403, 10.0
        %v2357 = vmul.f32 %v1405, 10.0
        %v2358 = vmul.f32 %v1936, 10.0
        %v2359 = vmul.f32 %v1938, 10.0
        %v2360 = vmul.f32 %v1407, 10.0
        %v2361 = vmul.f32 %v1409, 10.0
        %v2362 = vmul.f32 %v1940, 10.0
        %v2363 = vmul.f32 %v1942, 10.0
        %v2364 = vmul.f32 %v1413, 10.0
        %v2365 = vmul.f32 %v1415, 10.0
        %v2366 = vmul.f32 %v1946, 10.0
        %v2367 = vmul.f32 %v1948, 10.0
        %v2368 = vmul.f32 %v1417, 10.0
        %v2369 = vmul.f32 %v1419, 10.0
        %v2370 = vmul.f32 %v1950, 10.0
        %v2371 = vmul.f32 %v1952, 10.0
        %v2372 = vmul.f32 %v1423, 10.0
        %v2373 = vmul.f32 %v1425, 10.0
        %v2374 = vmul.f32 %v1956, 10.0
        %v2375 = vmul.f32 %v1958, 10.0
        %v2376 = vmul.f32 %v1427, 10.0
        %v2377 = vmul.f32 %v1429, 10.0
        %v2378 = vmul.f32 %v1960, 10.0
        %v2379 = vmul.f32 %v1962, 10.0
        %v2380 = vmul.f32 %v1433, 10.0
        %v2381 = vmul.f32 %v1435, 10.0
        %v2382 = vmul.f32 %v1966, 10.0
        %v2383 = vmul.f32 %v1968, 10.0
        %v2384 = vmul.f32 %v1437, 10.0
        %v2385 = vmul.f32 %v1439, 10.0
        %v2386 = vmul.f32 %v1970, 10.0
        %v2387 = vmul.f32 %v1972, 10.0
        %v2388 = vmul.f32 %v1443, 10.0
        %v2389 = vmul.f32 %v1445, 10.0
        %v2390 = vmul.f32 %v1976, 10.0
        %v2391 = vmul.f32 %v1978, 10.0
        %v2392 = vmul.f32 %v1447, 10.0
        %v2393 = vmul.f32 %v1449, 10.0
        %v2394 = vmul.f32 %v1980, 10.0
        %v2395 = vmul.f32 %v1982, 10.0
        %v2396 = vmul.f32 %v1453, 10.0
        %v2397 = vmul.f32 %v1455, 10.0
        %v2398 = vmul.f32 %v1986, 10.0
        %v2399 = vmul.f32 %v1988, 10.0
        %v2400 = vmul.f32 %v1457, 10.0
        %v2401 = vmul.f32 %v1459, 10.0
        %v2402 = vmul.f32 %v1990, 10.0
        %v2403 = vmul.f32 %v1992, 10.0
        %v2404 = vmul.f32 %v1463, 10.0
        %v2405 = vmul.f32 %v1465, 10.0
        %v2406 = vmul.f32 %v1996, 10.0
        %v2407 = vmul.f32 %v1998, 10.0
        %v2408 = vmul.f32 %v1467, 10.0
        %v2409 = vmul.f32 %v1469, 10.0
        %v2410 = vmul.f32 %v2000, 10.0
        %v2411 = vmul.f32 %v2002, 10.0
        %v2412 = vmul.f32 %v1473, 10.0
        %v2413 = vmul.f32 %v1475, 10.0
        %v2414 = vmul.f32 %v2006, 10.0
        %v2415 = vmul.f32 %v2008, 10.0
        %v2416 = vmul.f32 %v1477, 10.0
        %v2417 = vmul.f32 %v1479, 10.0
        %v2418 = vmul.f32 %v2010, 10.0
        %v2419 = vmul.f32 %v2012, 10.0
        %v2420 = vmul.f32 %v1483, 10.0
        %v2421 = vmul.f32 %v1485, 10.0
        %v2422 = vmul.f32 %v2016, 10.0
        %v2423 = vmul.f32 %v2018, 10.0
        %v2424 = vmul.f32 %v1487, 10.0
        %v2425 = vmul.f32 %v1489, 10.0
        %v2426 = vmul.f32 %v2020, 10.0
        %v2427 = vmul.f32 %v2022, 10.0
        %v2428 = vmul.f32 %v1493, 10.0
        %v2429 = vmul.f32 %v1495, 10.0
        %v2430 = vmul.f32 %v2026, 10.0
        %v2431 = vmul.f32 %v2028, 10.0
        %v2432 = vmul.f32 %v1497, 10.0
        %v2433 = vmul.f32 %v1499, 10.0
        %v2434 = vmul.f32 %v2030, 10.0
        %v2435 = vmul.f32 %v2032, 10.0
        %v2436 = vmul.f32 %v1503, 10.0
        %v2437 = vmul.f32 %v1505, 10.0
        %v2438 = vmul.f32 %v2036, 10.0
        %v2439 = vmul.f32 %v2038, 10.0
        %v2440 = vmul.f32 %v1507, 10.0
        %v2441 = vmul.f32 %v1509, 10.0
        %v2442 = vmul.f32 %v2040, 10.0
        %v2443 = vmul.f32 %v2042, 10.0
        %v2444 = vld [vmem:[%s2] sm:$0xff]
        %v2445 = vld [vmem:[%s2 + $0x8] sm:$0xff]
        %v2446 = vld [vmem:[%s2 + $0x10] sm:$0xff]
        %v2447 = vld [vmem:[%s2 + $0x18] sm:$0xff]
        %v2448 = vld [vmem:[%s2 + $0x20] sm:$0xff]
        %v2449 = vld [vmem:[%s2 + $0x28] sm:$0xff]
        %v2450 = vld [vmem:[%s2 + $0x30] sm:$0xff]
        %v2451 = vld [vmem:[%s2 + $0x38] sm:$0xff]
        %v2452 = vld [vmem:[%s2 + $0x40] sm:$0xff]
        %v2453 = vld [vmem:[%s2 + $0x48] sm:$0xff]
        %v2454 = vld [vmem:[%s2 + $0x50] sm:$0xff]
        %v2455 = vld [vmem:[%s2 + $0x58] sm:$0xff]
        %v2456 = vld [vmem:[%s2 + $0x60] sm:$0xff]
        %v2457 = vld [vmem:[%s2 + $0x68] sm:$0xff]
        %v2458 = vld [vmem:[%s2 + $0x70] sm:$0xff]
        %v2459 = vld [vmem:[%s2 + $0x78] sm:$0xff]
        %v2460 = vld [vmem:[%s2 + $0x80] sm:$0xff]
        %v2461 = vld [vmem:[%s2 + $0x88] sm:$0xff]
        %v2462 = vld [vmem:[%s2 + $0x90] sm:$0xff]
        %v2463 = vld [vmem:[%s2 + $0x98] sm:$0xff]
        %v2464 = vld [vmem:[%s2 + $0xa0] sm:$0xff]
        %v2465 = vld [vmem:[%s2 + $0xa8] sm:$0xff]
        %v2466 = vld [vmem:[%s2 + $0xb0] sm:$0xff]
        %v2467 = vld [vmem:[%s2 + $0xb8] sm:$0xff]
        %v2468 = vld [vmem:[%s2 + $0xc0] sm:$0xff]
        %v2469 = vld [vmem:[%s2 + $0xc8] sm:$0xff]
        %v2470 = vld [vmem:[%s2 + $0xd0] sm:$0xff]
        %v2471 = vld [vmem:[%s2 + $0xd8] sm:$0xff]
        %v2472 = vld [vmem:[%s2 + $0xe0] sm:$0xff]
        %v2473 = vld [vmem:[%s2 + $0xe8] sm:$0xff]
        %v2474 = vld [vmem:[%s2 + $0xf0] sm:$0xff]
        %v2475 = vld [vmem:[%s2 + $0xf8] sm:$0xff]
        %v2476 = vld [vmem:[%s2 + $0x100] sm:$0xff]
        %v2477 = vld [vmem:[%s2 + $0x108] sm:$0xff]
        %v2478 = vld [vmem:[%s2 + $0x110] sm:$0xff]
        %v2479 = vld [vmem:[%s2 + $0x118] sm:$0xff]
        %v2480 = vld [vmem:[%s2 + $0x120] sm:$0xff]
        %v2481 = vld [vmem:[%s2 + $0x128] sm:$0xff]
        %v2482 = vld [vmem:[%s2 + $0x130] sm:$0xff]
        %v2483 = vld [vmem:[%s2 + $0x138] sm:$0xff]
        %v2484 = vld [vmem:[%s2 + $0x140] sm:$0xff]
        %v2485 = vld [vmem:[%s2 + $0x148] sm:$0xff]
        %v2486 = vld [vmem:[%s2 + $0x150] sm:$0xff]
        %v2487 = vld [vmem:[%s2 + $0x158] sm:$0xff]
        %v2488 = vld [vmem:[%s2 + $0x160] sm:$0xff]
        %v2489 = vld [vmem:[%s2 + $0x168] sm:$0xff]
        %v2490 = vld [vmem:[%s2 + $0x170] sm:$0xff]
        %v2491 = vld [vmem:[%s2 + $0x178] sm:$0xff]
        %v2492 = vld [vmem:[%s2 + $0x180] sm:$0xff]
        %v2493 = vld [vmem:[%s2 + $0x188] sm:$0xff]
        %v2494 = vld [vmem:[%s2 + $0x190] sm:$0xff]
        %v2495 = vld [vmem:[%s2 + $0x198] sm:$0xff]
        %v2496 = vld [vmem:[%s2 + $0x1a0] sm:$0xff]
        %v2497 = vld [vmem:[%s2 + $0x1a8] sm:$0xff]
        %v2498 = vld [vmem:[%s2 + $0x1b0] sm:$0xff]
        %v2499 = vld [vmem:[%s2 + $0x1b8] sm:$0xff]
        %v2500 = vld [vmem:[%s2 + $0x1c0] sm:$0xff]
        %v2501 = vld [vmem:[%s2 + $0x1c8] sm:$0xff]
        %v2502 = vld [vmem:[%s2 + $0x1d0] sm:$0xff]
        %v2503 = vld [vmem:[%s2 + $0x1d8] sm:$0xff]
        %v2504 = vld [vmem:[%s2 + $0x1e0] sm:$0xff]
        %v2505 = vld [vmem:[%s2 + $0x1e8] sm:$0xff]
        %v2506 = vld [vmem:[%s2 + $0x1f0] sm:$0xff]
        %v2507 = vld [vmem:[%s2 + $0x1f8] sm:$0xff]
        %v2508 = vld [vmem:[%s2 + $0x200] sm:$0xff]
        %v2509 = vld [vmem:[%s2 + $0x208] sm:$0xff]
        %v2510 = vld [vmem:[%s2 + $0x210] sm:$0xff]
        %v2511 = vld [vmem:[%s2 + $0x218] sm:$0xff]
        %v2512 = vld [vmem:[%s2 + $0x220] sm:$0xff]
        %v2513 = vld [vmem:[%s2 + $0x228] sm:$0xff]
        %v2514 = vld [vmem:[%s2 + $0x230] sm:$0xff]
        %v2515 = vld [vmem:[%s2 + $0x238] sm:$0xff]
        %v2516 = vld [vmem:[%s2 + $0x240] sm:$0xff]
        %v2517 = vld [vmem:[%s2 + $0x248] sm:$0xff]
        %v2518 = vld [vmem:[%s2 + $0x250] sm:$0xff]
        %v2519 = vld [vmem:[%s2 + $0x258] sm:$0xff]
        %v2520 = vld [vmem:[%s2 + $0x260] sm:$0xff]
        %v2521 = vld [vmem:[%s2 + $0x268] sm:$0xff]
        %v2522 = vld [vmem:[%s2 + $0x270] sm:$0xff]
        %v2523 = vld [vmem:[%s2 + $0x278] sm:$0xff]
        %v2524 = vld [vmem:[%s2 + $0x280] sm:$0xff]
        %v2525 = vld [vmem:[%s2 + $0x288] sm:$0xff]
        %v2526 = vld [vmem:[%s2 + $0x290] sm:$0xff]
        %v2527 = vld [vmem:[%s2 + $0x298] sm:$0xff]
        %v2528 = vld [vmem:[%s2 + $0x2a0] sm:$0xff]
        %v2529 = vld [vmem:[%s2 + $0x2a8] sm:$0xff]
        %v2530 = vld [vmem:[%s2 + $0x2b0] sm:$0xff]
        %v2531 = vld [vmem:[%s2 + $0x2b8] sm:$0xff]
        %v2532 = vld [vmem:[%s2 + $0x2c0] sm:$0xff]
        %v2533 = vld [vmem:[%s2 + $0x2c8] sm:$0xff]
        %v2534 = vld [vmem:[%s2 + $0x2d0] sm:$0xff]
        %v2535 = vld [vmem:[%s2 + $0x2d8] sm:$0xff]
        %v2536 = vld [vmem:[%s2 + $0x2e0] sm:$0xff]
        %v2537 = vld [vmem:[%s2 + $0x2e8] sm:$0xff]
        %v2538 = vld [vmem:[%s2 + $0x2f0] sm:$0xff]
        %v2539 = vld [vmem:[%s2 + $0x2f8] sm:$0xff]
        %v2540 = vld [vmem:[%s2 + $0x300] sm:$0xff]
        %v2541 = vld [vmem:[%s2 + $0x308] sm:$0xff]
        %v2542 = vld [vmem:[%s2 + $0x310] sm:$0xff]
        %v2543 = vld [vmem:[%s2 + $0x318] sm:$0xff]
        %v2544 = vld [vmem:[%s414] sm:$0xf]
        %v2545 = vld [vmem:[%s409] sm:$0xf]
        %2547 = vset.pattern.permute.xlu0 2
        %2548 = vperm.xlu0 %2547, %v2444
        %v2549 = vpop.permute.xlu0 %2548
        %2552 = vset.pattern.permute.xlu0 2
        %2553 = vperm.xlu0 %2552, %v2445
        %v2554 = vpop.permute.xlu0 %2553
        %2557 = vset.pattern.permute.xlu0 2
        %2558 = vperm.xlu0 %2557, %v2446
        %v2559 = vpop.permute.xlu0 %2558
        %2562 = vset.pattern.permute.xlu0 2
        %2563 = vperm.xlu0 %2562, %v2447
        %v2564 = vpop.permute.xlu0 %2563
        %2567 = vset.pattern.permute.xlu0 2
        %2568 = vperm.xlu0 %2567, %v2448
        %v2569 = vpop.permute.xlu0 %2568
        %2572 = vset.pattern.permute.xlu0 2
        %2573 = vperm.xlu0 %2572, %v2449
        %v2574 = vpop.permute.xlu0 %2573
        %2577 = vset.pattern.permute.xlu0 2
        %2578 = vperm.xlu0 %2577, %v2450
        %v2579 = vpop.permute.xlu0 %2578
        %2582 = vset.pattern.permute.xlu0 2
        %2583 = vperm.xlu0 %2582, %v2451
        %v2584 = vpop.permute.xlu0 %2583
        %2587 = vset.pattern.permute.xlu0 2
        %2588 = vperm.xlu0 %2587, %v2452
        %v2589 = vpop.permute.xlu0 %2588
        %2592 = vset.pattern.permute.xlu0 2
        %2593 = vperm.xlu0 %2592, %v2453
        %v2594 = vpop.permute.xlu0 %2593
        %2597 = vset.pattern.permute.xlu0 2
        %2598 = vperm.xlu0 %2597, %v2454
        %v2599 = vpop.permute.xlu0 %2598
        %2602 = vset.pattern.permute.xlu0 2
        %2603 = vperm.xlu0 %2602, %v2455
        %v2604 = vpop.permute.xlu0 %2603
        %2607 = vset.pattern.permute.xlu0 2
        %2608 = vperm.xlu0 %2607, %v2456
        %v2609 = vpop.permute.xlu0 %2608
        %2612 = vset.pattern.permute.xlu0 2
        %2613 = vperm.xlu0 %2612, %v2457
        %v2614 = vpop.permute.xlu0 %2613
        %2617 = vset.pattern.permute.xlu0 2
        %2618 = vperm.xlu0 %2617, %v2458
        %v2619 = vpop.permute.xlu0 %2618
        %2622 = vset.pattern.permute.xlu0 2
        %2623 = vperm.xlu0 %2622, %v2459
        %v2624 = vpop.permute.xlu0 %2623
        %2627 = vset.pattern.permute.xlu0 2
        %2628 = vperm.xlu0 %2627, %v2460
        %v2629 = vpop.permute.xlu0 %2628
        %2632 = vset.pattern.permute.xlu0 2
        %2633 = vperm.xlu0 %2632, %v2461
        %v2634 = vpop.permute.xlu0 %2633
        %2637 = vset.pattern.permute.xlu0 2
        %2638 = vperm.xlu0 %2637, %v2462
        %v2639 = vpop.permute.xlu0 %2638
        %2642 = vset.pattern.permute.xlu0 2
        %2643 = vperm.xlu0 %2642, %v2463
        %v2644 = vpop.permute.xlu0 %2643
        %2647 = vset.pattern.permute.xlu0 2
        %2648 = vperm.xlu0 %2647, %v2464
        %v2649 = vpop.permute.xlu0 %2648
        %2652 = vset.pattern.permute.xlu0 2
        %2653 = vperm.xlu0 %2652, %v2465
        %v2654 = vpop.permute.xlu0 %2653
        %2657 = vset.pattern.permute.xlu0 2
        %2658 = vperm.xlu0 %2657, %v2466
        %v2659 = vpop.permute.xlu0 %2658
        %2662 = vset.pattern.permute.xlu0 2
        %2663 = vperm.xlu0 %2662, %v2467
        %v2664 = vpop.permute.xlu0 %2663
        %2667 = vset.pattern.permute.xlu0 2
        %2668 = vperm.xlu0 %2667, %v2468
        %v2669 = vpop.permute.xlu0 %2668
        %2672 = vset.pattern.permute.xlu0 2
        %2673 = vperm.xlu0 %2672, %v2469
        %v2674 = vpop.permute.xlu0 %2673
        %2677 = vset.pattern.permute.xlu0 2
        %2678 = vperm.xlu0 %2677, %v2470
        %v2679 = vpop.permute.xlu0 %2678
        %2682 = vset.pattern.permute.xlu0 2
        %2683 = vperm.xlu0 %2682, %v2471
        %v2684 = vpop.permute.xlu0 %2683
        %2687 = vset.pattern.permute.xlu0 2
        %2688 = vperm.xlu0 %2687, %v2472
        %v2689 = vpop.permute.xlu0 %2688
        %2692 = vset.pattern.permute.xlu0 2
        %2693 = vperm.xlu0 %2692, %v2473
        %v2694 = vpop.permute.xlu0 %2693
        %2697 = vset.pattern.permute.xlu0 2
        %2698 = vperm.xlu0 %2697, %v2474
        %v2699 = vpop.permute.xlu0 %2698
        %2702 = vset.pattern.permute.xlu0 2
        %2703 = vperm.xlu0 %2702, %v2475
        %v2704 = vpop.permute.xlu0 %2703
        %2707 = vset.pattern.permute.xlu0 2
        %2708 = vperm.xlu0 %2707, %v2476
        %v2709 = vpop.permute.xlu0 %2708
        %2712 = vset.pattern.permute.xlu0 2
        %2713 = vperm.xlu0 %2712, %v2477
        %v2714 = vpop.permute.xlu0 %2713
        %2717 = vset.pattern.permute.xlu0 2
        %2718 = vperm.xlu0 %2717, %v2478
        %v2719 = vpop.permute.xlu0 %2718
        %2722 = vset.pattern.permute.xlu0 2
        %2723 = vperm.xlu0 %2722, %v2479
        %v2724 = vpop.permute.xlu0 %2723
        %2727 = vset.pattern.permute.xlu0 2
        %2728 = vperm.xlu0 %2727, %v2480
        %v2729 = vpop.permute.xlu0 %2728
        %2732 = vset.pattern.permute.xlu0 2
        %2733 = vperm.xlu0 %2732, %v2481
        %v2734 = vpop.permute.xlu0 %2733
        %2737 = vset.pattern.permute.xlu0 2
        %2738 = vperm.xlu0 %2737, %v2482
        %v2739 = vpop.permute.xlu0 %2738
        %2742 = vset.pattern.permute.xlu0 2
        %2743 = vperm.xlu0 %2742, %v2483
        %v2744 = vpop.permute.xlu0 %2743
        %2747 = vset.pattern.permute.xlu0 2
        %2748 = vperm.xlu0 %2747, %v2484
        %v2749 = vpop.permute.xlu0 %2748
        %2752 = vset.pattern.permute.xlu0 2
        %2753 = vperm.xlu0 %2752, %v2485
        %v2754 = vpop.permute.xlu0 %2753
        %2757 = vset.pattern.permute.xlu0 2
        %2758 = vperm.xlu0 %2757, %v2486
        %v2759 = vpop.permute.xlu0 %2758
        %2762 = vset.pattern.permute.xlu0 2
        %2763 = vperm.xlu0 %2762, %v2487
        %v2764 = vpop.permute.xlu0 %2763
        %2767 = vset.pattern.permute.xlu0 2
        %2768 = vperm.xlu0 %2767, %v2488
        %v2769 = vpop.permute.xlu0 %2768
        %2772 = vset.pattern.permute.xlu0 2
        %2773 = vperm.xlu0 %2772, %v2489
        %v2774 = vpop.permute.xlu0 %2773
        %2777 = vset.pattern.permute.xlu0 2
        %2778 = vperm.xlu0 %2777, %v2490
        %v2779 = vpop.permute.xlu0 %2778
        %2782 = vset.pattern.permute.xlu0 2
        %2783 = vperm.xlu0 %2782, %v2491
        %v2784 = vpop.permute.xlu0 %2783
        %2787 = vset.pattern.permute.xlu0 2
        %2788 = vperm.xlu0 %2787, %v2492
        %v2789 = vpop.permute.xlu0 %2788
        %2792 = vset.pattern.permute.xlu0 2
        %2793 = vperm.xlu0 %2792, %v2493
        %v2794 = vpop.permute.xlu0 %2793
        %2797 = vset.pattern.permute.xlu0 2
        %2798 = vperm.xlu0 %2797, %v2494
        %v2799 = vpop.permute.xlu0 %2798
        %2802 = vset.pattern.permute.xlu0 2
        %2803 = vperm.xlu0 %2802, %v2495
        %v2804 = vpop.permute.xlu0 %2803
        %2807 = vset.pattern.permute.xlu0 2
        %2808 = vperm.xlu0 %2807, %v2496
        %v2809 = vpop.permute.xlu0 %2808
        %2812 = vset.pattern.permute.xlu0 2
        %2813 = vperm.xlu0 %2812, %v2497
        %v2814 = vpop.permute.xlu0 %2813
        %2817 = vset.pattern.permute.xlu0 2
        %2818 = vperm.xlu0 %2817, %v2498
        %v2819 = vpop.permute.xlu0 %2818
        %2822 = vset.pattern.permute.xlu0 2
        %2823 = vperm.xlu0 %2822, %v2499
        %v2824 = vpop.permute.xlu0 %2823
        %2827 = vset.pattern.permute.xlu0 2
        %2828 = vperm.xlu0 %2827, %v2500
        %v2829 = vpop.permute.xlu0 %2828
        %2832 = vset.pattern.permute.xlu0 2
        %2833 = vperm.xlu0 %2832, %v2501
        %v2834 = vpop.permute.xlu0 %2833
        %2837 = vset.pattern.permute.xlu0 2
        %2838 = vperm.xlu0 %2837, %v2502
        %v2839 = vpop.permute.xlu0 %2838
        %2842 = vset.pattern.permute.xlu0 2
        %2843 = vperm.xlu0 %2842, %v2503
        %v2844 = vpop.permute.xlu0 %2843
        %2847 = vset.pattern.permute.xlu0 2
        %2848 = vperm.xlu0 %2847, %v2504
        %v2849 = vpop.permute.xlu0 %2848
        %2852 = vset.pattern.permute.xlu0 2
        %2853 = vperm.xlu0 %2852, %v2505
        %v2854 = vpop.permute.xlu0 %2853
        %2857 = vset.pattern.permute.xlu0 2
        %2858 = vperm.xlu0 %2857, %v2506
        %v2859 = vpop.permute.xlu0 %2858
        %2862 = vset.pattern.permute.xlu0 2
        %2863 = vperm.xlu0 %2862, %v2507
        %v2864 = vpop.permute.xlu0 %2863
        %2867 = vset.pattern.permute.xlu0 2
        %2868 = vperm.xlu0 %2867, %v2508
        %v2869 = vpop.permute.xlu0 %2868
        %2872 = vset.pattern.permute.xlu0 2
        %2873 = vperm.xlu0 %2872, %v2509
        %v2874 = vpop.permute.xlu0 %2873
        %2877 = vset.pattern.permute.xlu0 2
        %2878 = vperm.xlu0 %2877, %v2510
        %v2879 = vpop.permute.xlu0 %2878
        %2882 = vset.pattern.permute.xlu0 2
        %2883 = vperm.xlu0 %2882, %v2511
        %v2884 = vpop.permute.xlu0 %2883
        %2887 = vset.pattern.permute.xlu0 2
        %2888 = vperm.xlu0 %2887, %v2512
        %v2889 = vpop.permute.xlu0 %2888
        %2892 = vset.pattern.permute.xlu0 2
        %2893 = vperm.xlu0 %2892, %v2513
        %v2894 = vpop.permute.xlu0 %2893
        %2897 = vset.pattern.permute.xlu0 2
        %2898 = vperm.xlu0 %2897, %v2514
        %v2899 = vpop.permute.xlu0 %2898
        %2902 = vset.pattern.permute.xlu0 2
        %2903 = vperm.xlu0 %2902, %v2515
        %v2904 = vpop.permute.xlu0 %2903
        %2907 = vset.pattern.permute.xlu0 2
        %2908 = vperm.xlu0 %2907, %v2516
        %v2909 = vpop.permute.xlu0 %2908
        %2912 = vset.pattern.permute.xlu0 2
        %2913 = vperm.xlu0 %2912, %v2517
        %v2914 = vpop.permute.xlu0 %2913
        %2917 = vset.pattern.permute.xlu0 2
        %2918 = vperm.xlu0 %2917, %v2518
        %v2919 = vpop.permute.xlu0 %2918
        %2922 = vset.pattern.permute.xlu0 2
        %2923 = vperm.xlu0 %2922, %v2519
        %v2924 = vpop.permute.xlu0 %2923
        %2927 = vset.pattern.permute.xlu0 2
        %2928 = vperm.xlu0 %2927, %v2520
        %v2929 = vpop.permute.xlu0 %2928
        %2932 = vset.pattern.permute.xlu0 2
        %2933 = vperm.xlu0 %2932, %v2521
        %v2934 = vpop.permute.xlu0 %2933
        %2937 = vset.pattern.permute.xlu0 2
        %2938 = vperm.xlu0 %2937, %v2522
        %v2939 = vpop.permute.xlu0 %2938
        %2942 = vset.pattern.permute.xlu0 2
        %2943 = vperm.xlu0 %2942, %v2523
        %v2944 = vpop.permute.xlu0 %2943
        %2947 = vset.pattern.permute.xlu0 2
        %2948 = vperm.xlu0 %2947, %v2524
        %v2949 = vpop.permute.xlu0 %2948
        %2952 = vset.pattern.permute.xlu0 2
        %2953 = vperm.xlu0 %2952, %v2525
        %v2954 = vpop.permute.xlu0 %2953
        %2957 = vset.pattern.permute.xlu0 2
        %2958 = vperm.xlu0 %2957, %v2526
        %v2959 = vpop.permute.xlu0 %2958
        %2962 = vset.pattern.permute.xlu0 2
        %2963 = vperm.xlu0 %2962, %v2527
        %v2964 = vpop.permute.xlu0 %2963
        %2967 = vset.pattern.permute.xlu0 2
        %2968 = vperm.xlu0 %2967, %v2528
        %v2969 = vpop.permute.xlu0 %2968
        %2972 = vset.pattern.permute.xlu0 2
        %2973 = vperm.xlu0 %2972, %v2529
        %v2974 = vpop.permute.xlu0 %2973
        %2977 = vset.pattern.permute.xlu0 2
        %2978 = vperm.xlu0 %2977, %v2530
        %v2979 = vpop.permute.xlu0 %2978
        %2982 = vset.pattern.permute.xlu0 2
        %2983 = vperm.xlu0 %2982, %v2531
        %v2984 = vpop.permute.xlu0 %2983
        %2987 = vset.pattern.permute.xlu0 2
        %2988 = vperm.xlu0 %2987, %v2532
        %v2989 = vpop.permute.xlu0 %2988
        %2992 = vset.pattern.permute.xlu0 2
        %2993 = vperm.xlu0 %2992, %v2533
        %v2994 = vpop.permute.xlu0 %2993
        %2997 = vset.pattern.permute.xlu0 2
        %2998 = vperm.xlu0 %2997, %v2534
        %v2999 = vpop.permute.xlu0 %2998
        %3002 = vset.pattern.permute.xlu0 2
        %3003 = vperm.xlu0 %3002, %v2535
        %v3004 = vpop.permute.xlu0 %3003
        %3007 = vset.pattern.permute.xlu0 2
        %3008 = vperm.xlu0 %3007, %v2536
        %v3009 = vpop.permute.xlu0 %3008
        %3012 = vset.pattern.permute.xlu0 2
        %3013 = vperm.xlu0 %3012, %v2537
        %v3014 = vpop.permute.xlu0 %3013
        %3017 = vset.pattern.permute.xlu0 2
        %3018 = vperm.xlu0 %3017, %v2538
        %v3019 = vpop.permute.xlu0 %3018
        %3022 = vset.pattern.permute.xlu0 2
        %3023 = vperm.xlu0 %3022, %v2539
        %v3024 = vpop.permute.xlu0 %3023
        %3027 = vset.pattern.permute.xlu0 2
        %3028 = vperm.xlu0 %3027, %v2540
        %v3029 = vpop.permute.xlu0 %3028
        %3032 = vset.pattern.permute.xlu0 2
        %3033 = vperm.xlu0 %3032, %v2541
        %v3034 = vpop.permute.xlu0 %3033
        %3037 = vset.pattern.permute.xlu0 2
        %3038 = vperm.xlu0 %3037, %v2542
        %v3039 = vpop.permute.xlu0 %3038
        %3042 = vset.pattern.permute.xlu0 2
        %3043 = vperm.xlu0 %3042, %v2543
        %v3044 = vpop.permute.xlu0 %3043
        %v3046 = vadd.f32 %v2044, %v2549
        %v3047 = vadd.f32 %v2045, %v2549
        %v3048 = vadd.f32 %v2046, %v2549
        %v3049 = vadd.f32 %v2047, %v2549
        %v3050 = vadd.f32 %v2048, %v2554
        %v3051 = vadd.f32 %v2049, %v2554
        %v3052 = vadd.f32 %v2050, %v2554
        %v3053 = vadd.f32 %v2051, %v2554
        %v3054 = vadd.f32 %v2052, %v2559
        %v3055 = vadd.f32 %v2053, %v2559
        %v3056 = vadd.f32 %v2054, %v2559
        %v3057 = vadd.f32 %v2055, %v2559
        %v3058 = vadd.f32 %v2056, %v2564
        %v3059 = vadd.f32 %v2057, %v2564
        %v3060 = vadd.f32 %v2058, %v2564
        %v3061 = vadd.f32 %v2059, %v2564
        %v3062 = vadd.f32 %v2060, %v2569
        %v3063 = vadd.f32 %v2061, %v2569
        %v3064 = vadd.f32 %v2062, %v2569
        %v3065 = vadd.f32 %v2063, %v2569
        %v3066 = vadd.f32 %v2064, %v2574
        %v3067 = vadd.f32 %v2065, %v2574
        %v3068 = vadd.f32 %v2066, %v2574
        %v3069 = vadd.f32 %v2067, %v2574
        %v3070 = vadd.f32 %v2068, %v2579
        %v3071 = vadd.f32 %v2069, %v2579
        %v3072 = vadd.f32 %v2070, %v2579
        %v3073 = vadd.f32 %v2071, %v2579
        %v3074 = vadd.f32 %v2072, %v2584
        %v3075 = vadd.f32 %v2073, %v2584
        %v3076 = vadd.f32 %v2074, %v2584
        %v3077 = vadd.f32 %v2075, %v2584
        %v3078 = vadd.f32 %v2076, %v2589
        %v3079 = vadd.f32 %v2077, %v2589
        %v3080 = vadd.f32 %v2078, %v2589
        %v3081 = vadd.f32 %v2079, %v2589
        %v3082 = vadd.f32 %v2080, %v2594
        %v3083 = vadd.f32 %v2081, %v2594
        %v3084 = vadd.f32 %v2082, %v2594
        %v3085 = vadd.f32 %v2083, %v2594
        %v3086 = vadd.f32 %v2084, %v2599
        %v3087 = vadd.f32 %v2085, %v2599
        %v3088 = vadd.f32 %v2086, %v2599
        %v3089 = vadd.f32 %v2087, %v2599
        %v3090 = vadd.f32 %v2088, %v2604
        %v3091 = vadd.f32 %v2089, %v2604
        %v3092 = vadd.f32 %v2090, %v2604
        %v3093 = vadd.f32 %v2091, %v2604
        %v3094 = vadd.f32 %v2092, %v2609
        %v3095 = vadd.f32 %v2093, %v2609
        %v3096 = vadd.f32 %v2094, %v2609
        %v3097 = vadd.f32 %v2095, %v2609
        %v3098 = vadd.f32 %v2096, %v2614
        %v3099 = vadd.f32 %v2097, %v2614
        %v3100 = vadd.f32 %v2098, %v2614
        %v3101 = vadd.f32 %v2099, %v2614
        %v3102 = vadd.f32 %v2100, %v2619
        %v3103 = vadd.f32 %v2101, %v2619
        %v3104 = vadd.f32 %v2102, %v2619
        %v3105 = vadd.f32 %v2103, %v2619
        %v3106 = vadd.f32 %v2104, %v2624
        %v3107 = vadd.f32 %v2105, %v2624
        %v3108 = vadd.f32 %v2106, %v2624
        %v3109 = vadd.f32 %v2107, %v2624
        %v3110 = vadd.f32 %v2108, %v2629
        %v3111 = vadd.f32 %v2109, %v2629
        %v3112 = vadd.f32 %v2110, %v2629
        %v3113 = vadd.f32 %v2111, %v2629
        %v3114 = vadd.f32 %v2112, %v2634
        %v3115 = vadd.f32 %v2113, %v2634
        %v3116 = vadd.f32 %v2114, %v2634
        %v3117 = vadd.f32 %v2115, %v2634
        %v3118 = vadd.f32 %v2116, %v2639
        %v3119 = vadd.f32 %v2117, %v2639
        %v3120 = vadd.f32 %v2118, %v2639
        %v3121 = vadd.f32 %v2119, %v2639
        %v3122 = vadd.f32 %v2120, %v2644
        %v3123 = vadd.f32 %v2121, %v2644
        %v3124 = vadd.f32 %v2122, %v2644
        %v3125 = vadd.f32 %v2123, %v2644
        %v3126 = vadd.f32 %v2124, %v2649
        %v3127 = vadd.f32 %v2125, %v2649
        %v3128 = vadd.f32 %v2126, %v2649
        %v3129 = vadd.f32 %v2127, %v2649
        %v3130 = vadd.f32 %v2128, %v2654
        %v3131 = vadd.f32 %v2129, %v2654
        %v3132 = vadd.f32 %v2130, %v2654
        %v3133 = vadd.f32 %v2131, %v2654
        %v3134 = vadd.f32 %v2132, %v2659
        %v3135 = vadd.f32 %v2133, %v2659
        %v3136 = vadd.f32 %v2134, %v2659
        %v3137 = vadd.f32 %v2135, %v2659
        %v3138 = vadd.f32 %v2136, %v2664
        %v3139 = vadd.f32 %v2137, %v2664
        %v3140 = vadd.f32 %v2138, %v2664
        %v3141 = vadd.f32 %v2139, %v2664
        %v3142 = vadd.f32 %v2140, %v2669
        %v3143 = vadd.f32 %v2141, %v2669
        %v3144 = vadd.f32 %v2142, %v2669
        %v3145 = vadd.f32 %v2143, %v2669
        %v3146 = vadd.f32 %v2144, %v2674
        %v3147 = vadd.f32 %v2145, %v2674
        %v3148 = vadd.f32 %v2146, %v2674
        %v3149 = vadd.f32 %v2147, %v2674
        %v3150 = vadd.f32 %v2148, %v2679
        %v3151 = vadd.f32 %v2149, %v2679
        %v3152 = vadd.f32 %v2150, %v2679
        %v3153 = vadd.f32 %v2151, %v2679
        %v3154 = vadd.f32 %v2152, %v2684
        %v3155 = vadd.f32 %v2153, %v2684
        %v3156 = vadd.f32 %v2154, %v2684
        %v3157 = vadd.f32 %v2155, %v2684
        %v3158 = vadd.f32 %v2156, %v2689
        %v3159 = vadd.f32 %v2157, %v2689
        %v3160 = vadd.f32 %v2158, %v2689
        %v3161 = vadd.f32 %v2159, %v2689
        %v3162 = vadd.f32 %v2160, %v2694
        %v3163 = vadd.f32 %v2161, %v2694
        %v3164 = vadd.f32 %v2162, %v2694
        %v3165 = vadd.f32 %v2163, %v2694
        %v3166 = vadd.f32 %v2164, %v2699
        %v3167 = vadd.f32 %v2165, %v2699
        %v3168 = vadd.f32 %v2166, %v2699
        %v3169 = vadd.f32 %v2167, %v2699
        %v3170 = vadd.f32 %v2168, %v2704
        %v3171 = vadd.f32 %v2169, %v2704
        %v3172 = vadd.f32 %v2170, %v2704
        %v3173 = vadd.f32 %v2171, %v2704
        %v3174 = vadd.f32 %v2172, %v2709
        %v3175 = vadd.f32 %v2173, %v2709
        %v3176 = vadd.f32 %v2174, %v2709
        %v3177 = vadd.f32 %v2175, %v2709
        %v3178 = vadd.f32 %v2176, %v2714
        %v3179 = vadd.f32 %v2177, %v2714
        %v3180 = vadd.f32 %v2178, %v2714
        %v3181 = vadd.f32 %v2179, %v2714
        %v3182 = vadd.f32 %v2180, %v2719
        %v3183 = vadd.f32 %v2181, %v2719
        %v3184 = vadd.f32 %v2182, %v2719
        %v3185 = vadd.f32 %v2183, %v2719
        %v3186 = vadd.f32 %v2184, %v2724
        %v3187 = vadd.f32 %v2185, %v2724
        %v3188 = vadd.f32 %v2186, %v2724
        %v3189 = vadd.f32 %v2187, %v2724
        %v3190 = vadd.f32 %v2188, %v2729
        %v3191 = vadd.f32 %v2189, %v2729
        %v3192 = vadd.f32 %v2190, %v2729
        %v3193 = vadd.f32 %v2191, %v2729
        %v3194 = vadd.f32 %v2192, %v2734
        %v3195 = vadd.f32 %v2193, %v2734
        %v3196 = vadd.f32 %v2194, %v2734
        %v3197 = vadd.f32 %v2195, %v2734
        %v3198 = vadd.f32 %v2196, %v2739
        %v3199 = vadd.f32 %v2197, %v2739
        %v3200 = vadd.f32 %v2198, %v2739
        %v3201 = vadd.f32 %v2199, %v2739
        %v3202 = vadd.f32 %v2200, %v2744
        %v3203 = vadd.f32 %v2201, %v2744
        %v3204 = vadd.f32 %v2202, %v2744
        %v3205 = vadd.f32 %v2203, %v2744
        %v3206 = vadd.f32 %v2204, %v2749
        %v3207 = vadd.f32 %v2205, %v2749
        %v3208 = vadd.f32 %v2206, %v2749
        %v3209 = vadd.f32 %v2207, %v2749
        %v3210 = vadd.f32 %v2208, %v2754
        %v3211 = vadd.f32 %v2209, %v2754
        %v3212 = vadd.f32 %v2210, %v2754
        %v3213 = vadd.f32 %v2211, %v2754
        %v3214 = vadd.f32 %v2212, %v2759
        %v3215 = vadd.f32 %v2213, %v2759
        %v3216 = vadd.f32 %v2214, %v2759
        %v3217 = vadd.f32 %v2215, %v2759
        %v3218 = vadd.f32 %v2216, %v2764
        %v3219 = vadd.f32 %v2217, %v2764
        %v3220 = vadd.f32 %v2218, %v2764
        %v3221 = vadd.f32 %v2219, %v2764
        %v3222 = vadd.f32 %v2220, %v2769
        %v3223 = vadd.f32 %v2221, %v2769
        %v3224 = vadd.f32 %v2222, %v2769
        %v3225 = vadd.f32 %v2223, %v2769
        %v3226 = vadd.f32 %v2224, %v2774
        %v3227 = vadd.f32 %v2225, %v2774
        %v3228 = vadd.f32 %v2226, %v2774
        %v3229 = vadd.f32 %v2227, %v2774
        %v3230 = vadd.f32 %v2228, %v2779
        %v3231 = vadd.f32 %v2229, %v2779
        %v3232 = vadd.f32 %v2230, %v2779
        %v3233 = vadd.f32 %v2231, %v2779
        %v3234 = vadd.f32 %v2232, %v2784
        %v3235 = vadd.f32 %v2233, %v2784
        %v3236 = vadd.f32 %v2234, %v2784
        %v3237 = vadd.f32 %v2235, %v2784
        %v3238 = vadd.f32 %v2236, %v2789
        %v3239 = vadd.f32 %v2237, %v2789
        %v3240 = vadd.f32 %v2238, %v2789
        %v3241 = vadd.f32 %v2239, %v2789
        %v3242 = vadd.f32 %v2240, %v2794
        %v3243 = vadd.f32 %v2241, %v2794
        %v3244 = vadd.f32 %v2242, %v2794
        %v3245 = vadd.f32 %v2243, %v2794
        %v3246 = vadd.f32 %v2244, %v2799
        %v3247 = vadd.f32 %v2245, %v2799
        %v3248 = vadd.f32 %v2246, %v2799
        %v3249 = vadd.f32 %v2247, %v2799
        %v3250 = vadd.f32 %v2248, %v2804
        %v3251 = vadd.f32 %v2249, %v2804
        %v3252 = vadd.f32 %v2250, %v2804
        %v3253 = vadd.f32 %v2251, %v2804
        %v3254 = vadd.f32 %v2252, %v2809
        %v3255 = vadd.f32 %v2253, %v2809
        %v3256 = vadd.f32 %v2254, %v2809
        %v3257 = vadd.f32 %v2255, %v2809
        %v3258 = vadd.f32 %v2256, %v2814
        %v3259 = vadd.f32 %v2257, %v2814
        %v3260 = vadd.f32 %v2258, %v2814
        %v3261 = vadd.f32 %v2259, %v2814
        %v3262 = vadd.f32 %v2260, %v2819
        %v3263 = vadd.f32 %v2261, %v2819
        %v3264 = vadd.f32 %v2262, %v2819
        %v3265 = vadd.f32 %v2263, %v2819
        %v3266 = vadd.f32 %v2264, %v2824
        %v3267 = vadd.f32 %v2265, %v2824
        %v3268 = vadd.f32 %v2266, %v2824
        %v3269 = vadd.f32 %v2267, %v2824
        %v3270 = vadd.f32 %v2268, %v2829
        %v3271 = vadd.f32 %v2269, %v2829
        %v3272 = vadd.f32 %v2270, %v2829
        %v3273 = vadd.f32 %v2271, %v2829
        %v3274 = vadd.f32 %v2272, %v2834
        %v3275 = vadd.f32 %v2273, %v2834
        %v3276 = vadd.f32 %v2274, %v2834
        %v3277 = vadd.f32 %v2275, %v2834
        %v3278 = vadd.f32 %v2276, %v2839
        %v3279 = vadd.f32 %v2277, %v2839
        %v3280 = vadd.f32 %v2278, %v2839
        %v3281 = vadd.f32 %v2279, %v2839
        %v3282 = vadd.f32 %v2280, %v2844
        %v3283 = vadd.f32 %v2281, %v2844
        %v3284 = vadd.f32 %v2282, %v2844
        %v3285 = vadd.f32 %v2283, %v2844
        %v3286 = vadd.f32 %v2284, %v2849
        %v3287 = vadd.f32 %v2285, %v2849
        %v3288 = vadd.f32 %v2286, %v2849
        %v3289 = vadd.f32 %v2287, %v2849
        %v3290 = vadd.f32 %v2288, %v2854
        %v3291 = vadd.f32 %v2289, %v2854
        %v3292 = vadd.f32 %v2290, %v2854
        %v3293 = vadd.f32 %v2291, %v2854
        %v3294 = vadd.f32 %v2292, %v2859
        %v3295 = vadd.f32 %v2293, %v2859
        %v3296 = vadd.f32 %v2294, %v2859
        %v3297 = vadd.f32 %v2295, %v2859
        %v3298 = vadd.f32 %v2296, %v2864
        %v3299 = vadd.f32 %v2297, %v2864
        %v3300 = vadd.f32 %v2298, %v2864
        %v3301 = vadd.f32 %v2299, %v2864
        %v3302 = vadd.f32 %v2300, %v2869
        %v3303 = vadd.f32 %v2301, %v2869
        %v3304 = vadd.f32 %v2302, %v2869
        %v3305 = vadd.f32 %v2303, %v2869
        %v3306 = vadd.f32 %v2304, %v2874
        %v3307 = vadd.f32 %v2305, %v2874
        %v3308 = vadd.f32 %v2306, %v2874
        %v3309 = vadd.f32 %v2307, %v2874
        %v3310 = vadd.f32 %v2308, %v2879
        %v3311 = vadd.f32 %v2309, %v2879
        %v3312 = vadd.f32 %v2310, %v2879
        %v3313 = vadd.f32 %v2311, %v2879
        %v3314 = vadd.f32 %v2312, %v2884
        %v3315 = vadd.f32 %v2313, %v2884
        %v3316 = vadd.f32 %v2314, %v2884
        %v3317 = vadd.f32 %v2315, %v2884
        %v3318 = vadd.f32 %v2316, %v2889
        %v3319 = vadd.f32 %v2317, %v2889
        %v3320 = vadd.f32 %v2318, %v2889
        %v3321 = vadd.f32 %v2319, %v2889
        %v3322 = vadd.f32 %v2320, %v2894
        %v3323 = vadd.f32 %v2321, %v2894
        %v3324 = vadd.f32 %v2322, %v2894
        %v3325 = vadd.f32 %v2323, %v2894
        %v3326 = vadd.f32 %v2324, %v2899
        %v3327 = vadd.f32 %v2325, %v2899
        %v3328 = vadd.f32 %v2326, %v2899
        %v3329 = vadd.f32 %v2327, %v2899
        %v3330 = vadd.f32 %v2328, %v2904
        %v3331 = vadd.f32 %v2329, %v2904
        %v3332 = vadd.f32 %v2330, %v2904
        %v3333 = vadd.f32 %v2331, %v2904
        %v3334 = vadd.f32 %v2332, %v2909
        %v3335 = vadd.f32 %v2333, %v2909
        %v3336 = vadd.f32 %v2334, %v2909
        %v3337 = vadd.f32 %v2335, %v2909
        %v3338 = vadd.f32 %v2336, %v2914
        %v3339 = vadd.f32 %v2337, %v2914
        %v3340 = vadd.f32 %v2338, %v2914
        %v3341 = vadd.f32 %v2339, %v2914
        %v3342 = vadd.f32 %v2340, %v2919
        %v3343 = vadd.f32 %v2341, %v2919
        %v3344 = vadd.f32 %v2342, %v2919
        %v3345 = vadd.f32 %v2343, %v2919
        %v3346 = vadd.f32 %v2344, %v2924
        %v3347 = vadd.f32 %v2345, %v2924
        %v3348 = vadd.f32 %v2346, %v2924
        %v3349 = vadd.f32 %v2347, %v2924
        %v3350 = vadd.f32 %v2348, %v2929
        %v3351 = vadd.f32 %v2349, %v2929
        %v3352 = vadd.f32 %v2350, %v2929
        %v3353 = vadd.f32 %v2351, %v2929
        %v3354 = vadd.f32 %v2352, %v2934
        %v3355 = vadd.f32 %v2353, %v2934
        %v3356 = vadd.f32 %v2354, %v2934
        %v3357 = vadd.f32 %v2355, %v2934
        %v3358 = vadd.f32 %v2356, %v2939
        %v3359 = vadd.f32 %v2357, %v2939
        %v3360 = vadd.f32 %v2358, %v2939
        %v3361 = vadd.f32 %v2359, %v2939
        %v3362 = vadd.f32 %v2360, %v2944
        %v3363 = vadd.f32 %v2361, %v2944
        %v3364 = vadd.f32 %v2362, %v2944
        %v3365 = vadd.f32 %v2363, %v2944
        %v3366 = vadd.f32 %v2364, %v2949
        %v3367 = vadd.f32 %v2365, %v2949
        %v3368 = vadd.f32 %v2366, %v2949
        %v3369 = vadd.f32 %v2367, %v2949
        %v3370 = vadd.f32 %v2368, %v2954
        %v3371 = vadd.f32 %v2369, %v2954
        %v3372 = vadd.f32 %v2370, %v2954
        %v3373 = vadd.f32 %v2371, %v2954
        %v3374 = vadd.f32 %v2372, %v2959
        %v3375 = vadd.f32 %v2373, %v2959
        %v3376 = vadd.f32 %v2374, %v2959
        %v3377 = vadd.f32 %v2375, %v2959
        %v3378 = vadd.f32 %v2376, %v2964
        %v3379 = vadd.f32 %v2377, %v2964
        %v3380 = vadd.f32 %v2378, %v2964
        %v3381 = vadd.f32 %v2379, %v2964
        %v3382 = vadd.f32 %v2380, %v2969
        %v3383 = vadd.f32 %v2381, %v2969
        %v3384 = vadd.f32 %v2382, %v2969
        %v3385 = vadd.f32 %v2383, %v2969
        %v3386 = vadd.f32 %v2384, %v2974
        %v3387 = vadd.f32 %v2385, %v2974
        %v3388 = vadd.f32 %v2386, %v2974
        %v3389 = vadd.f32 %v2387, %v2974
        %v3390 = vadd.f32 %v2388, %v2979
        %v3391 = vadd.f32 %v2389, %v2979
        %v3392 = vadd.f32 %v2390, %v2979
        %v3393 = vadd.f32 %v2391, %v2979
        %v3394 = vadd.f32 %v2392, %v2984
        %v3395 = vadd.f32 %v2393, %v2984
        %v3396 = vadd.f32 %v2394, %v2984
        %v3397 = vadd.f32 %v2395, %v2984
        %v3398 = vadd.f32 %v2396, %v2989
        %v3399 = vadd.f32 %v2397, %v2989
        %v3400 = vadd.f32 %v2398, %v2989
        %v3401 = vadd.f32 %v2399, %v2989
        %v3402 = vadd.f32 %v2400, %v2994
        %v3403 = vadd.f32 %v2401, %v2994
        %v3404 = vadd.f32 %v2402, %v2994
        %v3405 = vadd.f32 %v2403, %v2994
        %v3406 = vadd.f32 %v2404, %v2999
        %v3407 = vadd.f32 %v2405, %v2999
        %v3408 = vadd.f32 %v2406, %v2999
        %v3409 = vadd.f32 %v2407, %v2999
        %v3410 = vadd.f32 %v2408, %v3004
        %v3411 = vadd.f32 %v2409, %v3004
        %v3412 = vadd.f32 %v2410, %v3004
        %v3413 = vadd.f32 %v2411, %v3004
        %v3414 = vadd.f32 %v2412, %v3009
        %v3415 = vadd.f32 %v2413, %v3009
        %v3416 = vadd.f32 %v2414, %v3009
        %v3417 = vadd.f32 %v2415, %v3009
        %v3418 = vadd.f32 %v2416, %v3014
        %v3419 = vadd.f32 %v2417, %v3014
        %v3420 = vadd.f32 %v2418, %v3014
        %v3421 = vadd.f32 %v2419, %v3014
        %v3422 = vadd.f32 %v2420, %v3019
        %v3423 = vadd.f32 %v2421, %v3019
        %v3424 = vadd.f32 %v2422, %v3019
        %v3425 = vadd.f32 %v2423, %v3019
        %v3426 = vadd.f32 %v2424, %v3024
        %v3427 = vadd.f32 %v2425, %v3024
        %v3428 = vadd.f32 %v2426, %v3024
        %v3429 = vadd.f32 %v2427, %v3024
        %v3430 = vadd.f32 %v2428, %v3029
        %v3431 = vadd.f32 %v2429, %v3029
        %v3432 = vadd.f32 %v2430, %v3029
        %v3433 = vadd.f32 %v2431, %v3029
        %v3434 = vadd.f32 %v2432, %v3034
        %v3435 = vadd.f32 %v2433, %v3034
        %v3436 = vadd.f32 %v2434, %v3034
        %v3437 = vadd.f32 %v2435, %v3034
        %v3438 = vadd.f32 %v2436, %v3039
        %v3439 = vadd.f32 %v2437, %v3039
        %v3440 = vadd.f32 %v2438, %v3039
        %v3441 = vadd.f32 %v2439, %v3039
        %v3442 = vadd.f32 %v2440, %v3044
        %v3443 = vadd.f32 %v2441, %v3044
        %v3444 = vadd.f32 %v2442, %v3044
        %v3445 = vadd.f32 %v2443, %v3044
        %v3446 = vmax.f32 %v3046, %v3050
        %v3447 = vmax.f32 %v3446, %v3054
        %v3448 = vmax.f32 %v3447, %v3058
        %v3449 = vmax.f32 %v3448, %v3062
        %v3450 = vmax.f32 %v3449, %v3066
        %v3451 = vmax.f32 %v3450, %v3070
        %v3452 = vmax.f32 %v3451, %v3074
        %v3453 = vmax.f32 %v3452, %v3078
        %v3454 = vmax.f32 %v3453, %v3082
        %v3455 = vmax.f32 %v3454, %v3086
        %v3456 = vmax.f32 %v3455, %v3090
        %v3457 = vmax.f32 %v3456, %v3094
        %v3458 = vmax.f32 %v3457, %v3098
        %v3459 = vmax.f32 %v3458, %v3102
        %v3460 = vmax.f32 %v3459, %v3106
        %v3461 = vmax.f32 %v3460, %v3110
        %v3462 = vmax.f32 %v3461, %v3114
        %v3463 = vmax.f32 %v3462, %v3118
        %v3464 = vmax.f32 %v3463, %v3122
        %v3465 = vmax.f32 %v3464, %v3126
        %v3466 = vmax.f32 %v3465, %v3130
        %v3467 = vmax.f32 %v3466, %v3134
        %v3468 = vmax.f32 %v3467, %v3138
        %v3469 = vmax.f32 %v3468, %v3142
        %v3470 = vmax.f32 %v3469, %v3146
        %v3471 = vmax.f32 %v3470, %v3150
        %v3472 = vmax.f32 %v3471, %v3154
        %v3473 = vmax.f32 %v3472, %v3158
        %v3474 = vmax.f32 %v3473, %v3162
        %v3475 = vmax.f32 %v3474, %v3166
        %v3476 = vmax.f32 %v3475, %v3170
        %v3477 = vmax.f32 %v3476, %v3174
        %v3478 = vmax.f32 %v3477, %v3178
        %v3479 = vmax.f32 %v3478, %v3182
        %v3480 = vmax.f32 %v3479, %v3186
        %v3481 = vmax.f32 %v3480, %v3190
        %v3482 = vmax.f32 %v3481, %v3194
        %v3483 = vmax.f32 %v3482, %v3198
        %v3484 = vmax.f32 %v3483, %v3202
        %v3485 = vmax.f32 %v3484, %v3206
        %v3486 = vmax.f32 %v3485, %v3210
        %v3487 = vmax.f32 %v3486, %v3214
        %v3488 = vmax.f32 %v3487, %v3218
        %v3489 = vmax.f32 %v3488, %v3222
        %v3490 = vmax.f32 %v3489, %v3226
        %v3491 = vmax.f32 %v3490, %v3230
        %v3492 = vmax.f32 %v3491, %v3234
        %v3493 = vmax.f32 %v3492, %v3238
        %v3494 = vmax.f32 %v3493, %v3242
        %v3495 = vmax.f32 %v3494, %v3246
        %v3496 = vmax.f32 %v3495, %v3250
        %v3497 = vmax.f32 %v3496, %v3254
        %v3498 = vmax.f32 %v3497, %v3258
        %v3499 = vmax.f32 %v3498, %v3262
        %v3500 = vmax.f32 %v3499, %v3266
        %v3501 = vmax.f32 %v3500, %v3270
        %v3502 = vmax.f32 %v3501, %v3274
        %v3503 = vmax.f32 %v3502, %v3278
        %v3504 = vmax.f32 %v3503, %v3282
        %v3505 = vmax.f32 %v3504, %v3286
        %v3506 = vmax.f32 %v3505, %v3290
        %v3507 = vmax.f32 %v3506, %v3294
        %v3508 = vmax.f32 %v3507, %v3298
        %v3509 = vmax.f32 %v3508, %v3302
        %v3510 = vmax.f32 %v3509, %v3306
        %v3511 = vmax.f32 %v3510, %v3310
        %v3512 = vmax.f32 %v3511, %v3314
        %v3513 = vmax.f32 %v3512, %v3318
        %v3514 = vmax.f32 %v3513, %v3322
        %v3515 = vmax.f32 %v3514, %v3326
        %v3516 = vmax.f32 %v3515, %v3330
        %v3517 = vmax.f32 %v3516, %v3334
        %v3518 = vmax.f32 %v3517, %v3338
        %v3519 = vmax.f32 %v3518, %v3342
        %v3520 = vmax.f32 %v3519, %v3346
        %v3521 = vmax.f32 %v3520, %v3350
        %v3522 = vmax.f32 %v3521, %v3354
        %v3523 = vmax.f32 %v3522, %v3358
        %v3524 = vmax.f32 %v3523, %v3362
        %v3525 = vmax.f32 %v3524, %v3366
        %v3526 = vmax.f32 %v3525, %v3370
        %v3527 = vmax.f32 %v3526, %v3374
        %v3528 = vmax.f32 %v3527, %v3378
        %v3529 = vmax.f32 %v3528, %v3382
        %v3530 = vmax.f32 %v3529, %v3386
        %v3531 = vmax.f32 %v3530, %v3390
        %v3532 = vmax.f32 %v3531, %v3394
        %v3533 = vmax.f32 %v3532, %v3398
        %v3534 = vmax.f32 %v3533, %v3402
        %v3535 = vmax.f32 %v3534, %v3406
        %v3536 = vmax.f32 %v3535, %v3410
        %v3537 = vmax.f32 %v3536, %v3414
        %v3538 = vmax.f32 %v3537, %v3418
        %v3539 = vmax.f32 %v3538, %v3422
        %v3540 = vmax.f32 %v3539, %v3426
        %v3541 = vmax.f32 %v3540, %v3430
        %v3542 = vmax.f32 %v3541, %v3434
        %v3543 = vmax.f32 %v3542, %v3438
        %v3544 = vmax.f32 %v3543, %v3442
        %v3545 = vrot.slane %v3544, 4
        %v3546 = vmax.f32 %v3544, %v3545
        %v3547 = vrot.slane %v3546, 2
        %v3548 = vmax.f32 %v3546, %v3547
        %v3549 = vrot.slane %v3548, 1
        %v3550 = vmax.f32 %v3548, %v3549
        %v3551 = vmax.f32 %v3047, %v3051
        %v3552 = vmax.f32 %v3551, %v3055
        %v3553 = vmax.f32 %v3552, %v3059
        %v3554 = vmax.f32 %v3553, %v3063
        %v3555 = vmax.f32 %v3554, %v3067
        %v3556 = vmax.f32 %v3555, %v3071
        %v3557 = vmax.f32 %v3556, %v3075
        %v3558 = vmax.f32 %v3557, %v3079
        %v3559 = vmax.f32 %v3558, %v3083
        %v3560 = vmax.f32 %v3559, %v3087
        %v3561 = vmax.f32 %v3560, %v3091
        %v3562 = vmax.f32 %v3561, %v3095
        %v3563 = vmax.f32 %v3562, %v3099
        %v3564 = vmax.f32 %v3563, %v3103
        %v3565 = vmax.f32 %v3564, %v3107
        %v3566 = vmax.f32 %v3565, %v3111
        %v3567 = vmax.f32 %v3566, %v3115
        %v3568 = vmax.f32 %v3567, %v3119
        %v3569 = vmax.f32 %v3568, %v3123
        %v3570 = vmax.f32 %v3569, %v3127
        %v3571 = vmax.f32 %v3570, %v3131
        %v3572 = vmax.f32 %v3571, %v3135
        %v3573 = vmax.f32 %v3572, %v3139
        %v3574 = vmax.f32 %v3573, %v3143
        %v3575 = vmax.f32 %v3574, %v3147
        %v3576 = vmax.f32 %v3575, %v3151
        %v3577 = vmax.f32 %v3576, %v3155
        %v3578 = vmax.f32 %v3577, %v3159
        %v3579 = vmax.f32 %v3578, %v3163
        %v3580 = vmax.f32 %v3579, %v3167
        %v3581 = vmax.f32 %v3580, %v3171
        %v3582 = vmax.f32 %v3581, %v3175
        %v3583 = vmax.f32 %v3582, %v3179
        %v3584 = vmax.f32 %v3583, %v3183
        %v3585 = vmax.f32 %v3584, %v3187
        %v3586 = vmax.f32 %v3585, %v3191
        %v3587 = vmax.f32 %v3586, %v3195
        %v3588 = vmax.f32 %v3587, %v3199
        %v3589 = vmax.f32 %v3588, %v3203
        %v3590 = vmax.f32 %v3589, %v3207
        %v3591 = vmax.f32 %v3590, %v3211
        %v3592 = vmax.f32 %v3591, %v3215
        %v3593 = vmax.f32 %v3592, %v3219
        %v3594 = vmax.f32 %v3593, %v3223
        %v3595 = vmax.f32 %v3594, %v3227
        %v3596 = vmax.f32 %v3595, %v3231
        %v3597 = vmax.f32 %v3596, %v3235
        %v3598 = vmax.f32 %v3597, %v3239
        %v3599 = vmax.f32 %v3598, %v3243
        %v3600 = vmax.f32 %v3599, %v3247
        %v3601 = vmax.f32 %v3600, %v3251
        %v3602 = vmax.f32 %v3601, %v3255
        %v3603 = vmax.f32 %v3602, %v3259
        %v3604 = vmax.f32 %v3603, %v3263
        %v3605 = vmax.f32 %v3604, %v3267
        %v3606 = vmax.f32 %v3605, %v3271
        %v3607 = vmax.f32 %v3606, %v3275
        %v3608 = vmax.f32 %v3607, %v3279
        %v3609 = vmax.f32 %v3608, %v3283
        %v3610 = vmax.f32 %v3609, %v3287
        %v3611 = vmax.f32 %v3610, %v3291
        %v3612 = vmax.f32 %v3611, %v3295
        %v3613 = vmax.f32 %v3612, %v3299
        %v3614 = vmax.f32 %v3613, %v3303
        %v3615 = vmax.f32 %v3614, %v3307
        %v3616 = vmax.f32 %v3615, %v3311
        %v3617 = vmax.f32 %v3616, %v3315
        %v3618 = vmax.f32 %v3617, %v3319
        %v3619 = vmax.f32 %v3618, %v3323
        %v3620 = vmax.f32 %v3619, %v3327
        %v3621 = vmax.f32 %v3620, %v3331
        %v3622 = vmax.f32 %v3621, %v3335
        %v3623 = vmax.f32 %v3622, %v3339
        %v3624 = vmax.f32 %v3623, %v3343
        %v3625 = vmax.f32 %v3624, %v3347
        %v3626 = vmax.f32 %v3625, %v3351
        %v3627 = vmax.f32 %v3626, %v3355
        %v3628 = vmax.f32 %v3627, %v3359
        %v3629 = vmax.f32 %v3628, %v3363
        %v3630 = vmax.f32 %v3629, %v3367
        %v3631 = vmax.f32 %v3630, %v3371
        %v3632 = vmax.f32 %v3631, %v3375
        %v3633 = vmax.f32 %v3632, %v3379
        %v3634 = vmax.f32 %v3633, %v3383
        %v3635 = vmax.f32 %v3634, %v3387
        %v3636 = vmax.f32 %v3635, %v3391
        %v3637 = vmax.f32 %v3636, %v3395
        %v3638 = vmax.f32 %v3637, %v3399
        %v3639 = vmax.f32 %v3638, %v3403
        %v3640 = vmax.f32 %v3639, %v3407
        %v3641 = vmax.f32 %v3640, %v3411
        %v3642 = vmax.f32 %v3641, %v3415
        %v3643 = vmax.f32 %v3642, %v3419
        %v3644 = vmax.f32 %v3643, %v3423
        %v3645 = vmax.f32 %v3644, %v3427
        %v3646 = vmax.f32 %v3645, %v3431
        %v3647 = vmax.f32 %v3646, %v3435
        %v3648 = vmax.f32 %v3647, %v3439
        %v3649 = vmax.f32 %v3648, %v3443
        %v3650 = vrot.slane %v3649, 4
        %v3651 = vmax.f32 %v3649, %v3650
        %v3652 = vrot.slane %v3651, 2
        %v3653 = vmax.f32 %v3651, %v3652
        %v3654 = vrot.slane %v3653, 1
        %v3655 = vmax.f32 %v3653, %v3654
        %v3656 = vmax.f32 %v3048, %v3052
        %v3657 = vmax.f32 %v3656, %v3056
        %v3658 = vmax.f32 %v3657, %v3060
        %v3659 = vmax.f32 %v3658, %v3064
        %v3660 = vmax.f32 %v3659, %v3068
        %v3661 = vmax.f32 %v3660, %v3072
        %v3662 = vmax.f32 %v3661, %v3076
        %v3663 = vmax.f32 %v3662, %v3080
        %v3664 = vmax.f32 %v3663, %v3084
        %v3665 = vmax.f32 %v3664, %v3088
        %v3666 = vmax.f32 %v3665, %v3092
        %v3667 = vmax.f32 %v3666, %v3096
        %v3668 = vmax.f32 %v3667, %v3100
        %v3669 = vmax.f32 %v3668, %v3104
        %v3670 = vmax.f32 %v3669, %v3108
        %v3671 = vmax.f32 %v3670, %v3112
        %v3672 = vmax.f32 %v3671, %v3116
        %v3673 = vmax.f32 %v3672, %v3120
        %v3674 = vmax.f32 %v3673, %v3124
        %v3675 = vmax.f32 %v3674, %v3128
        %v3676 = vmax.f32 %v3675, %v3132
        %v3677 = vmax.f32 %v3676, %v3136
        %v3678 = vmax.f32 %v3677, %v3140
        %v3679 = vmax.f32 %v3678, %v3144
        %v3680 = vmax.f32 %v3679, %v3148
        %v3681 = vmax.f32 %v3680, %v3152
        %v3682 = vmax.f32 %v3681, %v3156
        %v3683 = vmax.f32 %v3682, %v3160
        %v3684 = vmax.f32 %v3683, %v3164
        %v3685 = vmax.f32 %v3684, %v3168
        %v3686 = vmax.f32 %v3685, %v3172
        %v3687 = vmax.f32 %v3686, %v3176
        %v3688 = vmax.f32 %v3687, %v3180
        %v3689 = vmax.f32 %v3688, %v3184
        %v3690 = vmax.f32 %v3689, %v3188
        %v3691 = vmax.f32 %v3690, %v3192
        %v3692 = vmax.f32 %v3691, %v3196
        %v3693 = vmax.f32 %v3692, %v3200
        %v3694 = vmax.f32 %v3693, %v3204
        %v3695 = vmax.f32 %v3694, %v3208
        %v3696 = vmax.f32 %v3695, %v3212
        %v3697 = vmax.f32 %v3696, %v3216
        %v3698 = vmax.f32 %v3697, %v3220
        %v3699 = vmax.f32 %v3698, %v3224
        %v3700 = vmax.f32 %v3699, %v3228
        %v3701 = vmax.f32 %v3700, %v3232
        %v3702 = vmax.f32 %v3701, %v3236
        %v3703 = vmax.f32 %v3702, %v3240
        %v3704 = vmax.f32 %v3703, %v3244
        %v3705 = vmax.f32 %v3704, %v3248
        %v3706 = vmax.f32 %v3705, %v3252
        %v3707 = vmax.f32 %v3706, %v3256
        %v3708 = vmax.f32 %v3707, %v3260
        %v3709 = vmax.f32 %v3708, %v3264
        %v3710 = vmax.f32 %v3709, %v3268
        %v3711 = vmax.f32 %v3710, %v3272
        %v3712 = vmax.f32 %v3711, %v3276
        %v3713 = vmax.f32 %v3712, %v3280
        %v3714 = vmax.f32 %v3713, %v3284
        %v3715 = vmax.f32 %v3714, %v3288
        %v3716 = vmax.f32 %v3715, %v3292
        %v3717 = vmax.f32 %v3716, %v3296
        %v3718 = vmax.f32 %v3717, %v3300
        %v3719 = vmax.f32 %v3718, %v3304
        %v3720 = vmax.f32 %v3719, %v3308
        %v3721 = vmax.f32 %v3720, %v3312
        %v3722 = vmax.f32 %v3721, %v3316
        %v3723 = vmax.f32 %v3722, %v3320
        %v3724 = vmax.f32 %v3723, %v3324
        %v3725 = vmax.f32 %v3724, %v3328
        %v3726 = vmax.f32 %v3725, %v3332
        %v3727 = vmax.f32 %v3726, %v3336
        %v3728 = vmax.f32 %v3727, %v3340
        %v3729 = vmax.f32 %v3728, %v3344
        %v3730 = vmax.f32 %v3729, %v3348
        %v3731 = vmax.f32 %v3730, %v3352
        %v3732 = vmax.f32 %v3731, %v3356
        %v3733 = vmax.f32 %v3732, %v3360
        %v3734 = vmax.f32 %v3733, %v3364
        %v3735 = vmax.f32 %v3734, %v3368
        %v3736 = vmax.f32 %v3735, %v3372
        %v3737 = vmax.f32 %v3736, %v3376
        %v3738 = vmax.f32 %v3737, %v3380
        %v3739 = vmax.f32 %v3738, %v3384
        %v3740 = vmax.f32 %v3739, %v3388
        %v3741 = vmax.f32 %v3740, %v3392
        %v3742 = vmax.f32 %v3741, %v3396
        %v3743 = vmax.f32 %v3742, %v3400
        %v3744 = vmax.f32 %v3743, %v3404
        %v3745 = vmax.f32 %v3744, %v3408
        %v3746 = vmax.f32 %v3745, %v3412
        %v3747 = vmax.f32 %v3746, %v3416
        %v3748 = vmax.f32 %v3747, %v3420
        %v3749 = vmax.f32 %v3748, %v3424
        %v3750 = vmax.f32 %v3749, %v3428
        %v3751 = vmax.f32 %v3750, %v3432
        %v3752 = vmax.f32 %v3751, %v3436
        %v3753 = vmax.f32 %v3752, %v3440
        %v3754 = vmax.f32 %v3753, %v3444
        %v3755 = vrot.slane %v3754, 4
        %v3756 = vmax.f32 %v3754, %v3755
        %v3757 = vrot.slane %v3756, 2
        %v3758 = vmax.f32 %v3756, %v3757
        %v3759 = vrot.slane %v3758, 1
        %v3760 = vmax.f32 %v3758, %v3759
        %v3761 = vmax.f32 %v3049, %v3053
        %v3762 = vmax.f32 %v3761, %v3057
        %v3763 = vmax.f32 %v3762, %v3061
        %v3764 = vmax.f32 %v3763, %v3065
        %v3765 = vmax.f32 %v3764, %v3069
        %v3766 = vmax.f32 %v3765, %v3073
        %v3767 = vmax.f32 %v3766, %v3077
        %v3768 = vmax.f32 %v3767, %v3081
        %v3769 = vmax.f32 %v3768, %v3085
        %v3770 = vmax.f32 %v3769, %v3089
        %v3771 = vmax.f32 %v3770, %v3093
        %v3772 = vmax.f32 %v3771, %v3097
        %v3773 = vmax.f32 %v3772, %v3101
        %v3774 = vmax.f32 %v3773, %v3105
        %v3775 = vmax.f32 %v3774, %v3109
        %v3776 = vmax.f32 %v3775, %v3113
        %v3777 = vmax.f32 %v3776, %v3117
        %v3778 = vmax.f32 %v3777, %v3121
        %v3779 = vmax.f32 %v3778, %v3125
        %v3780 = vmax.f32 %v3779, %v3129
        %v3781 = vmax.f32 %v3780, %v3133
        %v3782 = vmax.f32 %v3781, %v3137
        %v3783 = vmax.f32 %v3782, %v3141
        %v3784 = vmax.f32 %v3783, %v3145
        %v3785 = vmax.f32 %v3784, %v3149
        %v3786 = vmax.f32 %v3785, %v3153
        %v3787 = vmax.f32 %v3786, %v3157
        %v3788 = vmax.f32 %v3787, %v3161
        %v3789 = vmax.f32 %v3788, %v3165
        %v3790 = vmax.f32 %v3789, %v3169
        %v3791 = vmax.f32 %v3790, %v3173
        %v3792 = vmax.f32 %v3791, %v3177
        %v3793 = vmax.f32 %v3792, %v3181
        %v3794 = vmax.f32 %v3793, %v3185
        %v3795 = vmax.f32 %v3794, %v3189
        %v3796 = vmax.f32 %v3795, %v3193
        %v3797 = vmax.f32 %v3796, %v3197
        %v3798 = vmax.f32 %v3797, %v3201
        %v3799 = vmax.f32 %v3798, %v3205
        %v3800 = vmax.f32 %v3799, %v3209
        %v3801 = vmax.f32 %v3800, %v3213
        %v3802 = vmax.f32 %v3801, %v3217
        %v3803 = vmax.f32 %v3802, %v3221
        %v3804 = vmax.f32 %v3803, %v3225
        %v3805 = vmax.f32 %v3804, %v3229
        %v3806 = vmax.f32 %v3805, %v3233
        %v3807 = vmax.f32 %v3806, %v3237
        %v3808 = vmax.f32 %v3807, %v3241
        %v3809 = vmax.f32 %v3808, %v3245
        %v3810 = vmax.f32 %v3809, %v3249
        %v3811 = vmax.f32 %v3810, %v3253
        %v3812 = vmax.f32 %v3811, %v3257
        %v3813 = vmax.f32 %v3812, %v3261
        %v3814 = vmax.f32 %v3813, %v3265
        %v3815 = vmax.f32 %v3814, %v3269
        %v3816 = vmax.f32 %v3815, %v3273
        %v3817 = vmax.f32 %v3816, %v3277
        %v3818 = vmax.f32 %v3817, %v3281
        %v3819 = vmax.f32 %v3818, %v3285
        %v3820 = vmax.f32 %v3819, %v3289
        %v3821 = vmax.f32 %v3820, %v3293
        %v3822 = vmax.f32 %v3821, %v3297
        %v3823 = vmax.f32 %v3822, %v3301
        %v3824 = vmax.f32 %v3823, %v3305
        %v3825 = vmax.f32 %v3824, %v3309
        %v3826 = vmax.f32 %v3825, %v3313
        %v3827 = vmax.f32 %v3826, %v3317
        %v3828 = vmax.f32 %v3827, %v3321
        %v3829 = vmax.f32 %v3828, %v3325
        %v3830 = vmax.f32 %v3829, %v3329
        %v3831 = vmax.f32 %v3830, %v3333
        %v3832 = vmax.f32 %v3831, %v3337
        %v3833 = vmax.f32 %v3832, %v3341
        %v3834 = vmax.f32 %v3833, %v3345
        %v3835 = vmax.f32 %v3834, %v3349
        %v3836 = vmax.f32 %v3835, %v3353
        %v3837 = vmax.f32 %v3836, %v3357
        %v3838 = vmax.f32 %v3837, %v3361
        %v3839 = vmax.f32 %v3838, %v3365
        %v3840 = vmax.f32 %v3839, %v3369
        %v3841 = vmax.f32 %v3840, %v3373
        %v3842 = vmax.f32 %v3841, %v3377
        %v3843 = vmax.f32 %v3842, %v3381
        %v3844 = vmax.f32 %v3843, %v3385
        %v3845 = vmax.f32 %v3844, %v3389
        %v3846 = vmax.f32 %v3845, %v3393
        %v3847 = vmax.f32 %v3846, %v3397
        %v3848 = vmax.f32 %v3847, %v3401
        %v3849 = vmax.f32 %v3848, %v3405
        %v3850 = vmax.f32 %v3849, %v3409
        %v3851 = vmax.f32 %v3850, %v3413
        %v3852 = vmax.f32 %v3851, %v3417
        %v3853 = vmax.f32 %v3852, %v3421
        %v3854 = vmax.f32 %v3853, %v3425
        %v3855 = vmax.f32 %v3854, %v3429
        %v3856 = vmax.f32 %v3855, %v3433
        %v3857 = vmax.f32 %v3856, %v3437
        %v3858 = vmax.f32 %v3857, %v3441
        %v3859 = vmax.f32 %v3858, %v3445
        %v3860 = vrot.slane %v3859, 4
        %v3861 = vmax.f32 %v3859, %v3860
        %v3862 = vrot.slane %v3861, 2
        %v3863 = vmax.f32 %v3861, %v3862
        %v3864 = vrot.slane %v3863, 1
        %v3865 = vmax.f32 %v3863, %v3864
        %v3870 = vcombine.low %v3550, %v3655
        %v3871 = vcombine.low %v3760, %v3865
        %v3873 = vunpack.c.l.s4 1966171168
        %v3874 = vunpack.c.0.s8 %v3873
        %v3875 = vlaneseq
        %v3876 = vshrl.u32 %v3875, 7
        %v3877 = vsub.s32 %v3874, %v3876
        %v3878 = vrot.slane %v3870, %v3877
        %v3880 = vunpack.c.l.s4 1966171168
        %v3881 = vunpack.c.0.s8 %v3880
        %v3882 = vlaneseq
        %v3883 = vshrl.u32 %v3882, 7
        %v3884 = vsub.s32 %v3881, %v3883
        %v3885 = vrot.slane %v3871, %v3884
        %v3886 = vcombine.low %v3878, %v3885
        %v3888 = vunpack.c.l.s4 1966171168
        %v3889 = vunpack.c.0.s8 %v3888
        %v3890 = vlaneseq
        %v3891 = vshrl.u32 %v3890, 7
        %v3892 = vsub.s32 %v3889, %v3891
        %v3893 = vrot.slane %v3886, %v3892
        %v3895 = vmax.f32 %v2544, %v3893
        %3896 = vset.pattern.permute.xlu0 0
        %3897 = vperm.xlu0 %3896, %v2444
        %v3898 = vpop.permute.xlu0 %3897
        %3900 = vset.pattern.permute.xlu0 0
        %3901 = vperm.xlu0 %3900, %v2445
        %v3902 = vpop.permute.xlu0 %3901
        %3904 = vset.pattern.permute.xlu0 0
        %3905 = vperm.xlu0 %3904, %v2446
        %v3906 = vpop.permute.xlu0 %3905
        %3908 = vset.pattern.permute.xlu0 0
        %3909 = vperm.xlu0 %3908, %v2447
        %v3910 = vpop.permute.xlu0 %3909
        %3912 = vset.pattern.permute.xlu0 0
        %3913 = vperm.xlu0 %3912, %v2448
        %v3914 = vpop.permute.xlu0 %3913
        %3916 = vset.pattern.permute.xlu0 0
        %3917 = vperm.xlu0 %3916, %v2449
        %v3918 = vpop.permute.xlu0 %3917
        %3920 = vset.pattern.permute.xlu0 0
        %3921 = vperm.xlu0 %3920, %v2450
        %v3922 = vpop.permute.xlu0 %3921
        %3924 = vset.pattern.permute.xlu0 0
        %3925 = vperm.xlu0 %3924, %v2451
        %v3926 = vpop.permute.xlu0 %3925
        %3928 = vset.pattern.permute.xlu0 0
        %3929 = vperm.xlu0 %3928, %v2452
        %v3930 = vpop.permute.xlu0 %3929
        %3932 = vset.pattern.permute.xlu0 0
        %3933 = vperm.xlu0 %3932, %v2453
        %v3934 = vpop.permute.xlu0 %3933
        %3936 = vset.pattern.permute.xlu0 0
        %3937 = vperm.xlu0 %3936, %v2454
        %v3938 = vpop.permute.xlu0 %3937
        %3940 = vset.pattern.permute.xlu0 0
        %3941 = vperm.xlu0 %3940, %v2455
        %v3942 = vpop.permute.xlu0 %3941
        %3944 = vset.pattern.permute.xlu0 0
        %3945 = vperm.xlu0 %3944, %v2456
        %v3946 = vpop.permute.xlu0 %3945
        %3948 = vset.pattern.permute.xlu0 0
        %3949 = vperm.xlu0 %3948, %v2457
        %v3950 = vpop.permute.xlu0 %3949
        %3952 = vset.pattern.permute.xlu0 0
        %3953 = vperm.xlu0 %3952, %v2458
        %v3954 = vpop.permute.xlu0 %3953
        %3956 = vset.pattern.permute.xlu0 0
        %3957 = vperm.xlu0 %3956, %v2459
        %v3958 = vpop.permute.xlu0 %3957
        %3960 = vset.pattern.permute.xlu0 0
        %3961 = vperm.xlu0 %3960, %v2460
        %v3962 = vpop.permute.xlu0 %3961
        %3964 = vset.pattern.permute.xlu0 0
        %3965 = vperm.xlu0 %3964, %v2461
        %v3966 = vpop.permute.xlu0 %3965
        %3968 = vset.pattern.permute.xlu0 0
        %3969 = vperm.xlu0 %3968, %v2462
        %v3970 = vpop.permute.xlu0 %3969
        %3972 = vset.pattern.permute.xlu0 0
        %3973 = vperm.xlu0 %3972, %v2463
        %v3974 = vpop.permute.xlu0 %3973
        %3976 = vset.pattern.permute.xlu0 0
        %3977 = vperm.xlu0 %3976, %v2464
        %v3978 = vpop.permute.xlu0 %3977
        %3980 = vset.pattern.permute.xlu0 0
        %3981 = vperm.xlu0 %3980, %v2465
        %v3982 = vpop.permute.xlu0 %3981
        %3984 = vset.pattern.permute.xlu0 0
        %3985 = vperm.xlu0 %3984, %v2466
        %v3986 = vpop.permute.xlu0 %3985
        %3988 = vset.pattern.permute.xlu0 0
        %3989 = vperm.xlu0 %3988, %v2467
        %v3990 = vpop.permute.xlu0 %3989
        %3992 = vset.pattern.permute.xlu0 0
        %3993 = vperm.xlu0 %3992, %v2468
        %v3994 = vpop.permute.xlu0 %3993
        %3996 = vset.pattern.permute.xlu0 0
        %3997 = vperm.xlu0 %3996, %v2469
        %v3998 = vpop.permute.xlu0 %3997
        %4000 = vset.pattern.permute.xlu0 0
        %4001 = vperm.xlu0 %4000, %v2470
        %v4002 = vpop.permute.xlu0 %4001
        %4004 = vset.pattern.permute.xlu0 0
        %4005 = vperm.xlu0 %4004, %v2471
        %v4006 = vpop.permute.xlu0 %4005
        %4008 = vset.pattern.permute.xlu0 0
        %4009 = vperm.xlu0 %4008, %v2472
        %v4010 = vpop.permute.xlu0 %4009
        %4012 = vset.pattern.permute.xlu0 0
        %4013 = vperm.xlu0 %4012, %v2473
        %v4014 = vpop.permute.xlu0 %4013
        %4016 = vset.pattern.permute.xlu0 0
        %4017 = vperm.xlu0 %4016, %v2474
        %v4018 = vpop.permute.xlu0 %4017
        %4020 = vset.pattern.permute.xlu0 0
        %4021 = vperm.xlu0 %4020, %v2475
        %v4022 = vpop.permute.xlu0 %4021
        %4024 = vset.pattern.permute.xlu0 0
        %4025 = vperm.xlu0 %4024, %v2476
        %v4026 = vpop.permute.xlu0 %4025
        %4028 = vset.pattern.permute.xlu0 0
        %4029 = vperm.xlu0 %4028, %v2477
        %v4030 = vpop.permute.xlu0 %4029
        %4032 = vset.pattern.permute.xlu0 0
        %4033 = vperm.xlu0 %4032, %v2478
        %v4034 = vpop.permute.xlu0 %4033
        %4036 = vset.pattern.permute.xlu0 0
        %4037 = vperm.xlu0 %4036, %v2479
        %v4038 = vpop.permute.xlu0 %4037
        %4040 = vset.pattern.permute.xlu0 0
        %4041 = vperm.xlu0 %4040, %v2480
        %v4042 = vpop.permute.xlu0 %4041
        %4044 = vset.pattern.permute.xlu0 0
        %4045 = vperm.xlu0 %4044, %v2481
        %v4046 = vpop.permute.xlu0 %4045
        %4048 = vset.pattern.permute.xlu0 0
        %4049 = vperm.xlu0 %4048, %v2482
        %v4050 = vpop.permute.xlu0 %4049
        %4052 = vset.pattern.permute.xlu0 0
        %4053 = vperm.xlu0 %4052, %v2483
        %v4054 = vpop.permute.xlu0 %4053
        %4056 = vset.pattern.permute.xlu0 0
        %4057 = vperm.xlu0 %4056, %v2484
        %v4058 = vpop.permute.xlu0 %4057
        %4060 = vset.pattern.permute.xlu0 0
        %4061 = vperm.xlu0 %4060, %v2485
        %v4062 = vpop.permute.xlu0 %4061
        %4064 = vset.pattern.permute.xlu0 0
        %4065 = vperm.xlu0 %4064, %v2486
        %v4066 = vpop.permute.xlu0 %4065
        %4068 = vset.pattern.permute.xlu0 0
        %4069 = vperm.xlu0 %4068, %v2487
        %v4070 = vpop.permute.xlu0 %4069
        %4072 = vset.pattern.permute.xlu0 0
        %4073 = vperm.xlu0 %4072, %v2488
        %v4074 = vpop.permute.xlu0 %4073
        %4076 = vset.pattern.permute.xlu0 0
        %4077 = vperm.xlu0 %4076, %v2489
        %v4078 = vpop.permute.xlu0 %4077
        %4080 = vset.pattern.permute.xlu0 0
        %4081 = vperm.xlu0 %4080, %v2490
        %v4082 = vpop.permute.xlu0 %4081
        %4084 = vset.pattern.permute.xlu0 0
        %4085 = vperm.xlu0 %4084, %v2491
        %v4086 = vpop.permute.xlu0 %4085
        %4088 = vset.pattern.permute.xlu0 0
        %4089 = vperm.xlu0 %4088, %v2492
        %v4090 = vpop.permute.xlu0 %4089
        %4092 = vset.pattern.permute.xlu0 0
        %4093 = vperm.xlu0 %4092, %v2493
        %v4094 = vpop.permute.xlu0 %4093
        %4096 = vset.pattern.permute.xlu0 0
        %4097 = vperm.xlu0 %4096, %v2494
        %v4098 = vpop.permute.xlu0 %4097
        %4100 = vset.pattern.permute.xlu0 0
        %4101 = vperm.xlu0 %4100, %v2495
        %v4102 = vpop.permute.xlu0 %4101
        %4104 = vset.pattern.permute.xlu0 0
        %4105 = vperm.xlu0 %4104, %v2496
        %v4106 = vpop.permute.xlu0 %4105
        %4108 = vset.pattern.permute.xlu0 0
        %4109 = vperm.xlu0 %4108, %v2497
        %v4110 = vpop.permute.xlu0 %4109
        %4112 = vset.pattern.permute.xlu0 0
        %4113 = vperm.xlu0 %4112, %v2498
        %v4114 = vpop.permute.xlu0 %4113
        %4116 = vset.pattern.permute.xlu0 0
        %4117 = vperm.xlu0 %4116, %v2499
        %v4118 = vpop.permute.xlu0 %4117
        %4120 = vset.pattern.permute.xlu0 0
        %4121 = vperm.xlu0 %4120, %v2500
        %v4122 = vpop.permute.xlu0 %4121
        %4124 = vset.pattern.permute.xlu0 0
        %4125 = vperm.xlu0 %4124, %v2501
        %v4126 = vpop.permute.xlu0 %4125
        %4128 = vset.pattern.permute.xlu0 0
        %4129 = vperm.xlu0 %4128, %v2502
        %v4130 = vpop.permute.xlu0 %4129
        %4132 = vset.pattern.permute.xlu0 0
        %4133 = vperm.xlu0 %4132, %v2503
        %v4134 = vpop.permute.xlu0 %4133
        %4136 = vset.pattern.permute.xlu0 0
        %4137 = vperm.xlu0 %4136, %v2504
        %v4138 = vpop.permute.xlu0 %4137
        %4140 = vset.pattern.permute.xlu0 0
        %4141 = vperm.xlu0 %4140, %v2505
        %v4142 = vpop.permute.xlu0 %4141
        %4144 = vset.pattern.permute.xlu0 0
        %4145 = vperm.xlu0 %4144, %v2506
        %v4146 = vpop.permute.xlu0 %4145
        %4148 = vset.pattern.permute.xlu0 0
        %4149 = vperm.xlu0 %4148, %v2507
        %v4150 = vpop.permute.xlu0 %4149
        %4152 = vset.pattern.permute.xlu0 0
        %4153 = vperm.xlu0 %4152, %v2508
        %v4154 = vpop.permute.xlu0 %4153
        %4156 = vset.pattern.permute.xlu0 0
        %4157 = vperm.xlu0 %4156, %v2509
        %v4158 = vpop.permute.xlu0 %4157
        %4160 = vset.pattern.permute.xlu0 0
        %4161 = vperm.xlu0 %4160, %v2510
        %v4162 = vpop.permute.xlu0 %4161
        %4164 = vset.pattern.permute.xlu0 0
        %4165 = vperm.xlu0 %4164, %v2511
        %v4166 = vpop.permute.xlu0 %4165
        %4168 = vset.pattern.permute.xlu0 0
        %4169 = vperm.xlu0 %4168, %v2512
        %v4170 = vpop.permute.xlu0 %4169
        %4172 = vset.pattern.permute.xlu0 0
        %4173 = vperm.xlu0 %4172, %v2513
        %v4174 = vpop.permute.xlu0 %4173
        %4176 = vset.pattern.permute.xlu0 0
        %4177 = vperm.xlu0 %4176, %v2514
        %v4178 = vpop.permute.xlu0 %4177
        %4180 = vset.pattern.permute.xlu0 0
        %4181 = vperm.xlu0 %4180, %v2515
        %v4182 = vpop.permute.xlu0 %4181
        %4184 = vset.pattern.permute.xlu0 0
        %4185 = vperm.xlu0 %4184, %v2516
        %v4186 = vpop.permute.xlu0 %4185
        %4188 = vset.pattern.permute.xlu0 0
        %4189 = vperm.xlu0 %4188, %v2517
        %v4190 = vpop.permute.xlu0 %4189
        %4192 = vset.pattern.permute.xlu0 0
        %4193 = vperm.xlu0 %4192, %v2518
        %v4194 = vpop.permute.xlu0 %4193
        %4196 = vset.pattern.permute.xlu0 0
        %4197 = vperm.xlu0 %4196, %v2519
        %v4198 = vpop.permute.xlu0 %4197
        %4200 = vset.pattern.permute.xlu0 0
        %4201 = vperm.xlu0 %4200, %v2520
        %v4202 = vpop.permute.xlu0 %4201
        %4204 = vset.pattern.permute.xlu0 0
        %4205 = vperm.xlu0 %4204, %v2521
        %v4206 = vpop.permute.xlu0 %4205
        %4208 = vset.pattern.permute.xlu0 0
        %4209 = vperm.xlu0 %4208, %v2522
        %v4210 = vpop.permute.xlu0 %4209
        %4212 = vset.pattern.permute.xlu0 0
        %4213 = vperm.xlu0 %4212, %v2523
        %v4214 = vpop.permute.xlu0 %4213
        %4216 = vset.pattern.permute.xlu0 0
        %4217 = vperm.xlu0 %4216, %v2524
        %v4218 = vpop.permute.xlu0 %4217
        %4220 = vset.pattern.permute.xlu0 0
        %4221 = vperm.xlu0 %4220, %v2525
        %v4222 = vpop.permute.xlu0 %4221
        %4224 = vset.pattern.permute.xlu0 0
        %4225 = vperm.xlu0 %4224, %v2526
        %v4226 = vpop.permute.xlu0 %4225
        %4228 = vset.pattern.permute.xlu0 0
        %4229 = vperm.xlu0 %4228, %v2527
        %v4230 = vpop.permute.xlu0 %4229
        %4232 = vset.pattern.permute.xlu0 0
        %4233 = vperm.xlu0 %4232, %v2528
        %v4234 = vpop.permute.xlu0 %4233
        %4236 = vset.pattern.permute.xlu0 0
        %4237 = vperm.xlu0 %4236, %v2529
        %v4238 = vpop.permute.xlu0 %4237
        %4240 = vset.pattern.permute.xlu0 0
        %4241 = vperm.xlu0 %4240, %v2530
        %v4242 = vpop.permute.xlu0 %4241
        %4244 = vset.pattern.permute.xlu0 0
        %4245 = vperm.xlu0 %4244, %v2531
        %v4246 = vpop.permute.xlu0 %4245
        %4248 = vset.pattern.permute.xlu0 0
        %4249 = vperm.xlu0 %4248, %v2532
        %v4250 = vpop.permute.xlu0 %4249
        %4252 = vset.pattern.permute.xlu0 0
        %4253 = vperm.xlu0 %4252, %v2533
        %v4254 = vpop.permute.xlu0 %4253
        %4256 = vset.pattern.permute.xlu0 0
        %4257 = vperm.xlu0 %4256, %v2534
        %v4258 = vpop.permute.xlu0 %4257
        %4260 = vset.pattern.permute.xlu0 0
        %4261 = vperm.xlu0 %4260, %v2535
        %v4262 = vpop.permute.xlu0 %4261
        %4264 = vset.pattern.permute.xlu0 0
        %4265 = vperm.xlu0 %4264, %v2536
        %v4266 = vpop.permute.xlu0 %4265
        %4268 = vset.pattern.permute.xlu0 0
        %4269 = vperm.xlu0 %4268, %v2537
        %v4270 = vpop.permute.xlu0 %4269
        %4272 = vset.pattern.permute.xlu0 0
        %4273 = vperm.xlu0 %4272, %v2538
        %v4274 = vpop.permute.xlu0 %4273
        %4276 = vset.pattern.permute.xlu0 0
        %4277 = vperm.xlu0 %4276, %v2539
        %v4278 = vpop.permute.xlu0 %4277
        %4280 = vset.pattern.permute.xlu0 0
        %4281 = vperm.xlu0 %4280, %v2540
        %v4282 = vpop.permute.xlu0 %4281
        %4284 = vset.pattern.permute.xlu0 0
        %4285 = vperm.xlu0 %4284, %v2541
        %v4286 = vpop.permute.xlu0 %4285
        %4288 = vset.pattern.permute.xlu0 0
        %4289 = vperm.xlu0 %4288, %v2542
        %v4290 = vpop.permute.xlu0 %4289
        %4292 = vset.pattern.permute.xlu0 0
        %4293 = vperm.xlu0 %4292, %v2543
        %v4294 = vpop.permute.xlu0 %4293
        %v4297 = vlaneseq
        %v4298 = vshrl.u32 %v4297, 7
        %v4299 = vsub.s32 0, %v4298
        %v4300 = vrot.slane %v2545, %v4299
        %v4301 = vlaneseq
        %v4302 = vshrl.u32 %v4301, 7
        %v4303 = vsub.s32 1, %v4302
        %v4304 = vrot.slane %v2545, %v4303
        %v4305 = vlaneseq
        %v4306 = vshrl.u32 %v4305, 7
        %v4307 = vsub.s32 2, %v4306
        %v4308 = vrot.slane %v2545, %v4307
        %v4309 = vlaneseq
        %v4310 = vshrl.u32 %v4309, 7
        %v4311 = vsub.s32 3, %v4310
        %v4312 = vrot.slane %v2545, %v4311
        %vm4317 = vcmp.ne.f32.partialorder %v3898, %v4300
        %vm4318 = vcmp.ne.f32.partialorder %v3898, %v4304
        %vm4319 = vcmp.ne.f32.partialorder %v3898, %v4308
        %vm4320 = vcmp.ne.f32.partialorder %v3898, %v4312
        %vm4321 = vcmp.ne.f32.partialorder %v3902, %v4300
        %vm4322 = vcmp.ne.f32.partialorder %v3902, %v4304
        %vm4323 = vcmp.ne.f32.partialorder %v3902, %v4308
        %vm4324 = vcmp.ne.f32.partialorder %v3902, %v4312
        %vm4325 = vcmp.ne.f32.partialorder %v3906, %v4300
        %vm4326 = vcmp.ne.f32.partialorder %v3906, %v4304
        %vm4327 = vcmp.ne.f32.partialorder %v3906, %v4308
        %vm4328 = vcmp.ne.f32.partialorder %v3906, %v4312
        %vm4329 = vcmp.ne.f32.partialorder %v3910, %v4300
        %vm4330 = vcmp.ne.f32.partialorder %v3910, %v4304
        %vm4331 = vcmp.ne.f32.partialorder %v3910, %v4308
        %vm4332 = vcmp.ne.f32.partialorder %v3910, %v4312
        %vm4333 = vcmp.ne.f32.partialorder %v3914, %v4300
        %vm4334 = vcmp.ne.f32.partialorder %v3914, %v4304
        %vm4335 = vcmp.ne.f32.partialorder %v3914, %v4308
        %vm4336 = vcmp.ne.f32.partialorder %v3914, %v4312
        %vm4337 = vcmp.ne.f32.partialorder %v3918, %v4300
        %vm4338 = vcmp.ne.f32.partialorder %v3918, %v4304
        %vm4339 = vcmp.ne.f32.partialorder %v3918, %v4308
        %vm4340 = vcmp.ne.f32.partialorder %v3918, %v4312
        %vm4341 = vcmp.ne.f32.partialorder %v3922, %v4300
        %vm4342 = vcmp.ne.f32.partialorder %v3922, %v4304
        %vm4343 = vcmp.ne.f32.partialorder %v3922, %v4308
        %vm4344 = vcmp.ne.f32.partialorder %v3922, %v4312
        %vm4345 = vcmp.ne.f32.partialorder %v3926, %v4300
        %vm4346 = vcmp.ne.f32.partialorder %v3926, %v4304
        %vm4347 = vcmp.ne.f32.partialorder %v3926, %v4308
        %vm4348 = vcmp.ne.f32.partialorder %v3926, %v4312
        %vm4349 = vcmp.ne.f32.partialorder %v3930, %v4300
        %vm4350 = vcmp.ne.f32.partialorder %v3930, %v4304
        %vm4351 = vcmp.ne.f32.partialorder %v3930, %v4308
        %vm4352 = vcmp.ne.f32.partialorder %v3930, %v4312
        %vm4353 = vcmp.ne.f32.partialorder %v3934, %v4300
        %vm4354 = vcmp.ne.f32.partialorder %v3934, %v4304
        %vm4355 = vcmp.ne.f32.partialorder %v3934, %v4308
        %vm4356 = vcmp.ne.f32.partialorder %v3934, %v4312
        %vm4357 = vcmp.ne.f32.partialorder %v3938, %v4300
        %vm4358 = vcmp.ne.f32.partialorder %v3938, %v4304
        %vm4359 = vcmp.ne.f32.partialorder %v3938, %v4308
        %vm4360 = vcmp.ne.f32.partialorder %v3938, %v4312
        %vm4361 = vcmp.ne.f32.partialorder %v3942, %v4300
        %vm4362 = vcmp.ne.f32.partialorder %v3942, %v4304
        %vm4363 = vcmp.ne.f32.partialorder %v3942, %v4308
        %vm4364 = vcmp.ne.f32.partialorder %v3942, %v4312
        %vm4365 = vcmp.ne.f32.partialorder %v3946, %v4300
        %vm4366 = vcmp.ne.f32.partialorder %v3946, %v4304
        %vm4367 = vcmp.ne.f32.partialorder %v3946, %v4308
        %vm4368 = vcmp.ne.f32.partialorder %v3946, %v4312
        %vm4369 = vcmp.ne.f32.partialorder %v3950, %v4300
        %vm4370 = vcmp.ne.f32.partialorder %v3950, %v4304
        %vm4371 = vcmp.ne.f32.partialorder %v3950, %v4308
        %vm4372 = vcmp.ne.f32.partialorder %v3950, %v4312
        %vm4373 = vcmp.ne.f32.partialorder %v3954, %v4300
        %vm4374 = vcmp.ne.f32.partialorder %v3954, %v4304
        %vm4375 = vcmp.ne.f32.partialorder %v3954, %v4308
        %vm4376 = vcmp.ne.f32.partialorder %v3954, %v4312
        %vm4377 = vcmp.ne.f32.partialorder %v3958, %v4300
        %vm4378 = vcmp.ne.f32.partialorder %v3958, %v4304
        %vm4379 = vcmp.ne.f32.partialorder %v3958, %v4308
        %vm4380 = vcmp.ne.f32.partialorder %v3958, %v4312
        %vm4381 = vcmp.ne.f32.partialorder %v3962, %v4300
        %vm4382 = vcmp.ne.f32.partialorder %v3962, %v4304
        %vm4383 = vcmp.ne.f32.partialorder %v3962, %v4308
        %vm4384 = vcmp.ne.f32.partialorder %v3962, %v4312
        %vm4385 = vcmp.ne.f32.partialorder %v3966, %v4300
        %vm4386 = vcmp.ne.f32.partialorder %v3966, %v4304
        %vm4387 = vcmp.ne.f32.partialorder %v3966, %v4308
        %vm4388 = vcmp.ne.f32.partialorder %v3966, %v4312
        %vm4389 = vcmp.ne.f32.partialorder %v3970, %v4300
        %vm4390 = vcmp.ne.f32.partialorder %v3970, %v4304
        %vm4391 = vcmp.ne.f32.partialorder %v3970, %v4308
        %vm4392 = vcmp.ne.f32.partialorder %v3970, %v4312
        %vm4393 = vcmp.ne.f32.partialorder %v3974, %v4300
        %vm4394 = vcmp.ne.f32.partialorder %v3974, %v4304
        %vm4395 = vcmp.ne.f32.partialorder %v3974, %v4308
        %vm4396 = vcmp.ne.f32.partialorder %v3974, %v4312
        %vm4397 = vcmp.ne.f32.partialorder %v3978, %v4300
        %vm4398 = vcmp.ne.f32.partialorder %v3978, %v4304
        %vm4399 = vcmp.ne.f32.partialorder %v3978, %v4308
        %vm4400 = vcmp.ne.f32.partialorder %v3978, %v4312
        %vm4401 = vcmp.ne.f32.partialorder %v3982, %v4300
        %vm4402 = vcmp.ne.f32.partialorder %v3982, %v4304
        %vm4403 = vcmp.ne.f32.partialorder %v3982, %v4308
        %vm4404 = vcmp.ne.f32.partialorder %v3982, %v4312
        %vm4405 = vcmp.ne.f32.partialorder %v3986, %v4300
        %vm4406 = vcmp.ne.f32.partialorder %v3986, %v4304
        %vm4407 = vcmp.ne.f32.partialorder %v3986, %v4308
        %vm4408 = vcmp.ne.f32.partialorder %v3986, %v4312
        %vm4409 = vcmp.ne.f32.partialorder %v3990, %v4300
        %vm4410 = vcmp.ne.f32.partialorder %v3990, %v4304
        %vm4411 = vcmp.ne.f32.partialorder %v3990, %v4308
        %vm4412 = vcmp.ne.f32.partialorder %v3990, %v4312
        %vm4413 = vcmp.ne.f32.partialorder %v3994, %v4300
        %vm4414 = vcmp.ne.f32.partialorder %v3994, %v4304
        %vm4415 = vcmp.ne.f32.partialorder %v3994, %v4308
        %vm4416 = vcmp.ne.f32.partialorder %v3994, %v4312
        %vm4417 = vcmp.ne.f32.partialorder %v3998, %v4300
        %vm4418 = vcmp.ne.f32.partialorder %v3998, %v4304
        %vm4419 = vcmp.ne.f32.partialorder %v3998, %v4308
        %vm4420 = vcmp.ne.f32.partialorder %v3998, %v4312
        %vm4421 = vcmp.ne.f32.partialorder %v4002, %v4300
        %vm4422 = vcmp.ne.f32.partialorder %v4002, %v4304
        %vm4423 = vcmp.ne.f32.partialorder %v4002, %v4308
        %vm4424 = vcmp.ne.f32.partialorder %v4002, %v4312
        %vm4425 = vcmp.ne.f32.partialorder %v4006, %v4300
        %vm4426 = vcmp.ne.f32.partialorder %v4006, %v4304
        %vm4427 = vcmp.ne.f32.partialorder %v4006, %v4308
        %vm4428 = vcmp.ne.f32.partialorder %v4006, %v4312
        %vm4429 = vcmp.ne.f32.partialorder %v4010, %v4300
        %vm4430 = vcmp.ne.f32.partialorder %v4010, %v4304
        %vm4431 = vcmp.ne.f32.partialorder %v4010, %v4308
        %vm4432 = vcmp.ne.f32.partialorder %v4010, %v4312
        %vm4433 = vcmp.ne.f32.partialorder %v4014, %v4300
        %vm4434 = vcmp.ne.f32.partialorder %v4014, %v4304
        %vm4435 = vcmp.ne.f32.partialorder %v4014, %v4308
        %vm4436 = vcmp.ne.f32.partialorder %v4014, %v4312
        %vm4437 = vcmp.ne.f32.partialorder %v4018, %v4300
        %vm4438 = vcmp.ne.f32.partialorder %v4018, %v4304
        %vm4439 = vcmp.ne.f32.partialorder %v4018, %v4308
        %vm4440 = vcmp.ne.f32.partialorder %v4018, %v4312
        %vm4441 = vcmp.ne.f32.partialorder %v4022, %v4300
        %vm4442 = vcmp.ne.f32.partialorder %v4022, %v4304
        %vm4443 = vcmp.ne.f32.partialorder %v4022, %v4308
        %vm4444 = vcmp.ne.f32.partialorder %v4022, %v4312
        %vm4445 = vcmp.ne.f32.partialorder %v4026, %v4300
        %vm4446 = vcmp.ne.f32.partialorder %v4026, %v4304
        %vm4447 = vcmp.ne.f32.partialorder %v4026, %v4308
        %vm4448 = vcmp.ne.f32.partialorder %v4026, %v4312
        %vm4449 = vcmp.ne.f32.partialorder %v4030, %v4300
        %vm4450 = vcmp.ne.f32.partialorder %v4030, %v4304
        %vm4451 = vcmp.ne.f32.partialorder %v4030, %v4308
        %vm4452 = vcmp.ne.f32.partialorder %v4030, %v4312
        %vm4453 = vcmp.ne.f32.partialorder %v4034, %v4300
        %vm4454 = vcmp.ne.f32.partialorder %v4034, %v4304
        %vm4455 = vcmp.ne.f32.partialorder %v4034, %v4308
        %vm4456 = vcmp.ne.f32.partialorder %v4034, %v4312
        %vm4457 = vcmp.ne.f32.partialorder %v4038, %v4300
        %vm4458 = vcmp.ne.f32.partialorder %v4038, %v4304
        %vm4459 = vcmp.ne.f32.partialorder %v4038, %v4308
        %vm4460 = vcmp.ne.f32.partialorder %v4038, %v4312
        %vm4461 = vcmp.ne.f32.partialorder %v4042, %v4300
        %vm4462 = vcmp.ne.f32.partialorder %v4042, %v4304
        %vm4463 = vcmp.ne.f32.partialorder %v4042, %v4308
        %vm4464 = vcmp.ne.f32.partialorder %v4042, %v4312
        %vm4465 = vcmp.ne.f32.partialorder %v4046, %v4300
        %vm4466 = vcmp.ne.f32.partialorder %v4046, %v4304
        %vm4467 = vcmp.ne.f32.partialorder %v4046, %v4308
        %vm4468 = vcmp.ne.f32.partialorder %v4046, %v4312
        %vm4469 = vcmp.ne.f32.partialorder %v4050, %v4300
        %vm4470 = vcmp.ne.f32.partialorder %v4050, %v4304
        %vm4471 = vcmp.ne.f32.partialorder %v4050, %v4308
        %vm4472 = vcmp.ne.f32.partialorder %v4050, %v4312
        %vm4473 = vcmp.ne.f32.partialorder %v4054, %v4300
        %vm4474 = vcmp.ne.f32.partialorder %v4054, %v4304
        %vm4475 = vcmp.ne.f32.partialorder %v4054, %v4308
        %vm4476 = vcmp.ne.f32.partialorder %v4054, %v4312
        %vm4477 = vcmp.ne.f32.partialorder %v4058, %v4300
        %vm4478 = vcmp.ne.f32.partialorder %v4058, %v4304
        %vm4479 = vcmp.ne.f32.partialorder %v4058, %v4308
        %vm4480 = vcmp.ne.f32.partialorder %v4058, %v4312
        %vm4481 = vcmp.ne.f32.partialorder %v4062, %v4300
        %vm4482 = vcmp.ne.f32.partialorder %v4062, %v4304
        %vm4483 = vcmp.ne.f32.partialorder %v4062, %v4308
        %vm4484 = vcmp.ne.f32.partialorder %v4062, %v4312
        %vm4485 = vcmp.ne.f32.partialorder %v4066, %v4300
        %vm4486 = vcmp.ne.f32.partialorder %v4066, %v4304
        %vm4487 = vcmp.ne.f32.partialorder %v4066, %v4308
        %vm4488 = vcmp.ne.f32.partialorder %v4066, %v4312
        %vm4489 = vcmp.ne.f32.partialorder %v4070, %v4300
        %vm4490 = vcmp.ne.f32.partialorder %v4070, %v4304
        %vm4491 = vcmp.ne.f32.partialorder %v4070, %v4308
        %vm4492 = vcmp.ne.f32.partialorder %v4070, %v4312
        %vm4493 = vcmp.ne.f32.partialorder %v4074, %v4300
        %vm4494 = vcmp.ne.f32.partialorder %v4074, %v4304
        %vm4495 = vcmp.ne.f32.partialorder %v4074, %v4308
        %vm4496 = vcmp.ne.f32.partialorder %v4074, %v4312
        %vm4497 = vcmp.ne.f32.partialorder %v4078, %v4300
        %vm4498 = vcmp.ne.f32.partialorder %v4078, %v4304
        %vm4499 = vcmp.ne.f32.partialorder %v4078, %v4308
        %vm4500 = vcmp.ne.f32.partialorder %v4078, %v4312
        %vm4501 = vcmp.ne.f32.partialorder %v4082, %v4300
        %vm4502 = vcmp.ne.f32.partialorder %v4082, %v4304
        %vm4503 = vcmp.ne.f32.partialorder %v4082, %v4308
        %vm4504 = vcmp.ne.f32.partialorder %v4082, %v4312
        %vm4505 = vcmp.ne.f32.partialorder %v4086, %v4300
        %vm4506 = vcmp.ne.f32.partialorder %v4086, %v4304
        %vm4507 = vcmp.ne.f32.partialorder %v4086, %v4308
        %vm4508 = vcmp.ne.f32.partialorder %v4086, %v4312
        %vm4509 = vcmp.ne.f32.partialorder %v4090, %v4300
        %vm4510 = vcmp.ne.f32.partialorder %v4090, %v4304
        %vm4511 = vcmp.ne.f32.partialorder %v4090, %v4308
        %vm4512 = vcmp.ne.f32.partialorder %v4090, %v4312
        %vm4513 = vcmp.ne.f32.partialorder %v4094, %v4300
        %vm4514 = vcmp.ne.f32.partialorder %v4094, %v4304
        %vm4515 = vcmp.ne.f32.partialorder %v4094, %v4308
        %vm4516 = vcmp.ne.f32.partialorder %v4094, %v4312
        %vm4517 = vcmp.ne.f32.partialorder %v4098, %v4300
        %vm4518 = vcmp.ne.f32.partialorder %v4098, %v4304
        %vm4519 = vcmp.ne.f32.partialorder %v4098, %v4308
        %vm4520 = vcmp.ne.f32.partialorder %v4098, %v4312
        %vm4521 = vcmp.ne.f32.partialorder %v4102, %v4300
        %vm4522 = vcmp.ne.f32.partialorder %v4102, %v4304
        %vm4523 = vcmp.ne.f32.partialorder %v4102, %v4308
        %vm4524 = vcmp.ne.f32.partialorder %v4102, %v4312
        %vm4525 = vcmp.ne.f32.partialorder %v4106, %v4300
        %vm4526 = vcmp.ne.f32.partialorder %v4106, %v4304
        %vm4527 = vcmp.ne.f32.partialorder %v4106, %v4308
        %vm4528 = vcmp.ne.f32.partialorder %v4106, %v4312
        %vm4529 = vcmp.ne.f32.partialorder %v4110, %v4300
        %vm4530 = vcmp.ne.f32.partialorder %v4110, %v4304
        %vm4531 = vcmp.ne.f32.partialorder %v4110, %v4308
        %vm4532 = vcmp.ne.f32.partialorder %v4110, %v4312
        %vm4533 = vcmp.ne.f32.partialorder %v4114, %v4300
        %vm4534 = vcmp.ne.f32.partialorder %v4114, %v4304
        %vm4535 = vcmp.ne.f32.partialorder %v4114, %v4308
        %vm4536 = vcmp.ne.f32.partialorder %v4114, %v4312
        %vm4537 = vcmp.ne.f32.partialorder %v4118, %v4300
        %vm4538 = vcmp.ne.f32.partialorder %v4118, %v4304
        %vm4539 = vcmp.ne.f32.partialorder %v4118, %v4308
        %vm4540 = vcmp.ne.f32.partialorder %v4118, %v4312
        %vm4541 = vcmp.ne.f32.partialorder %v4122, %v4300
        %vm4542 = vcmp.ne.f32.partialorder %v4122, %v4304
        %vm4543 = vcmp.ne.f32.partialorder %v4122, %v4308
        %vm4544 = vcmp.ne.f32.partialorder %v4122, %v4312
        %vm4545 = vcmp.ne.f32.partialorder %v4126, %v4300
        %vm4546 = vcmp.ne.f32.partialorder %v4126, %v4304
        %vm4547 = vcmp.ne.f32.partialorder %v4126, %v4308
        %vm4548 = vcmp.ne.f32.partialorder %v4126, %v4312
        %vm4549 = vcmp.ne.f32.partialorder %v4130, %v4300
        %vm4550 = vcmp.ne.f32.partialorder %v4130, %v4304
        %vm4551 = vcmp.ne.f32.partialorder %v4130, %v4308
        %vm4552 = vcmp.ne.f32.partialorder %v4130, %v4312
        %vm4553 = vcmp.ne.f32.partialorder %v4134, %v4300
        %vm4554 = vcmp.ne.f32.partialorder %v4134, %v4304
        %vm4555 = vcmp.ne.f32.partialorder %v4134, %v4308
        %vm4556 = vcmp.ne.f32.partialorder %v4134, %v4312
        %vm4557 = vcmp.ne.f32.partialorder %v4138, %v4300
        %vm4558 = vcmp.ne.f32.partialorder %v4138, %v4304
        %vm4559 = vcmp.ne.f32.partialorder %v4138, %v4308
        %vm4560 = vcmp.ne.f32.partialorder %v4138, %v4312
        %vm4561 = vcmp.ne.f32.partialorder %v4142, %v4300
        %vm4562 = vcmp.ne.f32.partialorder %v4142, %v4304
        %vm4563 = vcmp.ne.f32.partialorder %v4142, %v4308
        %vm4564 = vcmp.ne.f32.partialorder %v4142, %v4312
        %vm4565 = vcmp.ne.f32.partialorder %v4146, %v4300
        %vm4566 = vcmp.ne.f32.partialorder %v4146, %v4304
        %vm4567 = vcmp.ne.f32.partialorder %v4146, %v4308
        %vm4568 = vcmp.ne.f32.partialorder %v4146, %v4312
        %vm4569 = vcmp.ne.f32.partialorder %v4150, %v4300
        %vm4570 = vcmp.ne.f32.partialorder %v4150, %v4304
        %vm4571 = vcmp.ne.f32.partialorder %v4150, %v4308
        %vm4572 = vcmp.ne.f32.partialorder %v4150, %v4312
        %vm4573 = vcmp.ne.f32.partialorder %v4154, %v4300
        %vm4574 = vcmp.ne.f32.partialorder %v4154, %v4304
        %vm4575 = vcmp.ne.f32.partialorder %v4154, %v4308
        %vm4576 = vcmp.ne.f32.partialorder %v4154, %v4312
        %vm4577 = vcmp.ne.f32.partialorder %v4158, %v4300
        %vm4578 = vcmp.ne.f32.partialorder %v4158, %v4304
        %vm4579 = vcmp.ne.f32.partialorder %v4158, %v4308
        %vm4580 = vcmp.ne.f32.partialorder %v4158, %v4312
        %vm4581 = vcmp.ne.f32.partialorder %v4162, %v4300
        %vm4582 = vcmp.ne.f32.partialorder %v4162, %v4304
        %vm4583 = vcmp.ne.f32.partialorder %v4162, %v4308
        %vm4584 = vcmp.ne.f32.partialorder %v4162, %v4312
        %vm4585 = vcmp.ne.f32.partialorder %v4166, %v4300
        %vm4586 = vcmp.ne.f32.partialorder %v4166, %v4304
        %vm4587 = vcmp.ne.f32.partialorder %v4166, %v4308
        %vm4588 = vcmp.ne.f32.partialorder %v4166, %v4312
        %vm4589 = vcmp.ne.f32.partialorder %v4170, %v4300
        %vm4590 = vcmp.ne.f32.partialorder %v4170, %v4304
        %vm4591 = vcmp.ne.f32.partialorder %v4170, %v4308
        %vm4592 = vcmp.ne.f32.partialorder %v4170, %v4312
        %vm4593 = vcmp.ne.f32.partialorder %v4174, %v4300
        %vm4594 = vcmp.ne.f32.partialorder %v4174, %v4304
        %vm4595 = vcmp.ne.f32.partialorder %v4174, %v4308
        %vm4596 = vcmp.ne.f32.partialorder %v4174, %v4312
        %vm4597 = vcmp.ne.f32.partialorder %v4178, %v4300
        %vm4598 = vcmp.ne.f32.partialorder %v4178, %v4304
        %vm4599 = vcmp.ne.f32.partialorder %v4178, %v4308
        %vm4600 = vcmp.ne.f32.partialorder %v4178, %v4312
        %vm4601 = vcmp.ne.f32.partialorder %v4182, %v4300
        %vm4602 = vcmp.ne.f32.partialorder %v4182, %v4304
        %vm4603 = vcmp.ne.f32.partialorder %v4182, %v4308
        %vm4604 = vcmp.ne.f32.partialorder %v4182, %v4312
        %vm4605 = vcmp.ne.f32.partialorder %v4186, %v4300
        %vm4606 = vcmp.ne.f32.partialorder %v4186, %v4304
        %vm4607 = vcmp.ne.f32.partialorder %v4186, %v4308
        %vm4608 = vcmp.ne.f32.partialorder %v4186, %v4312
        %vm4609 = vcmp.ne.f32.partialorder %v4190, %v4300
        %vm4610 = vcmp.ne.f32.partialorder %v4190, %v4304
        %vm4611 = vcmp.ne.f32.partialorder %v4190, %v4308
        %vm4612 = vcmp.ne.f32.partialorder %v4190, %v4312
        %vm4613 = vcmp.ne.f32.partialorder %v4194, %v4300
        %vm4614 = vcmp.ne.f32.partialorder %v4194, %v4304
        %vm4615 = vcmp.ne.f32.partialorder %v4194, %v4308
        %vm4616 = vcmp.ne.f32.partialorder %v4194, %v4312
        %vm4617 = vcmp.ne.f32.partialorder %v4198, %v4300
        %vm4618 = vcmp.ne.f32.partialorder %v4198, %v4304
        %vm4619 = vcmp.ne.f32.partialorder %v4198, %v4308
        %vm4620 = vcmp.ne.f32.partialorder %v4198, %v4312
        %vm4621 = vcmp.ne.f32.partialorder %v4202, %v4300
        %vm4622 = vcmp.ne.f32.partialorder %v4202, %v4304
        %vm4623 = vcmp.ne.f32.partialorder %v4202, %v4308
        %vm4624 = vcmp.ne.f32.partialorder %v4202, %v4312
        %vm4625 = vcmp.ne.f32.partialorder %v4206, %v4300
        %vm4626 = vcmp.ne.f32.partialorder %v4206, %v4304
        %vm4627 = vcmp.ne.f32.partialorder %v4206, %v4308
        %vm4628 = vcmp.ne.f32.partialorder %v4206, %v4312
        %vm4629 = vcmp.ne.f32.partialorder %v4210, %v4300
        %vm4630 = vcmp.ne.f32.partialorder %v4210, %v4304
        %vm4631 = vcmp.ne.f32.partialorder %v4210, %v4308
        %vm4632 = vcmp.ne.f32.partialorder %v4210, %v4312
        %vm4633 = vcmp.ne.f32.partialorder %v4214, %v4300
        %vm4634 = vcmp.ne.f32.partialorder %v4214, %v4304
        %vm4635 = vcmp.ne.f32.partialorder %v4214, %v4308
        %vm4636 = vcmp.ne.f32.partialorder %v4214, %v4312
        %vm4637 = vcmp.ne.f32.partialorder %v4218, %v4300
        %vm4638 = vcmp.ne.f32.partialorder %v4218, %v4304
        %vm4639 = vcmp.ne.f32.partialorder %v4218, %v4308
        %vm4640 = vcmp.ne.f32.partialorder %v4218, %v4312
        %vm4641 = vcmp.ne.f32.partialorder %v4222, %v4300
        %vm4642 = vcmp.ne.f32.partialorder %v4222, %v4304
        %vm4643 = vcmp.ne.f32.partialorder %v4222, %v4308
        %vm4644 = vcmp.ne.f32.partialorder %v4222, %v4312
        %vm4645 = vcmp.ne.f32.partialorder %v4226, %v4300
        %vm4646 = vcmp.ne.f32.partialorder %v4226, %v4304
        %vm4647 = vcmp.ne.f32.partialorder %v4226, %v4308
        %vm4648 = vcmp.ne.f32.partialorder %v4226, %v4312
        %vm4649 = vcmp.ne.f32.partialorder %v4230, %v4300
        %vm4650 = vcmp.ne.f32.partialorder %v4230, %v4304
        %vm4651 = vcmp.ne.f32.partialorder %v4230, %v4308
        %vm4652 = vcmp.ne.f32.partialorder %v4230, %v4312
        %vm4653 = vcmp.ne.f32.partialorder %v4234, %v4300
        %vm4654 = vcmp.ne.f32.partialorder %v4234, %v4304
        %vm4655 = vcmp.ne.f32.partialorder %v4234, %v4308
        %vm4656 = vcmp.ne.f32.partialorder %v4234, %v4312
        %vm4657 = vcmp.ne.f32.partialorder %v4238, %v4300
        %vm4658 = vcmp.ne.f32.partialorder %v4238, %v4304
        %vm4659 = vcmp.ne.f32.partialorder %v4238, %v4308
        %vm4660 = vcmp.ne.f32.partialorder %v4238, %v4312
        %vm4661 = vcmp.ne.f32.partialorder %v4242, %v4300
        %vm4662 = vcmp.ne.f32.partialorder %v4242, %v4304
        %vm4663 = vcmp.ne.f32.partialorder %v4242, %v4308
        %vm4664 = vcmp.ne.f32.partialorder %v4242, %v4312
        %vm4665 = vcmp.ne.f32.partialorder %v4246, %v4300
        %vm4666 = vcmp.ne.f32.partialorder %v4246, %v4304
        %vm4667 = vcmp.ne.f32.partialorder %v4246, %v4308
        %vm4668 = vcmp.ne.f32.partialorder %v4246, %v4312
        %vm4669 = vcmp.ne.f32.partialorder %v4250, %v4300
        %vm4670 = vcmp.ne.f32.partialorder %v4250, %v4304
        %vm4671 = vcmp.ne.f32.partialorder %v4250, %v4308
        %vm4672 = vcmp.ne.f32.partialorder %v4250, %v4312
        %vm4673 = vcmp.ne.f32.partialorder %v4254, %v4300
        %vm4674 = vcmp.ne.f32.partialorder %v4254, %v4304
        %vm4675 = vcmp.ne.f32.partialorder %v4254, %v4308
        %vm4676 = vcmp.ne.f32.partialorder %v4254, %v4312
        %vm4677 = vcmp.ne.f32.partialorder %v4258, %v4300
        %vm4678 = vcmp.ne.f32.partialorder %v4258, %v4304
        %vm4679 = vcmp.ne.f32.partialorder %v4258, %v4308
        %vm4680 = vcmp.ne.f32.partialorder %v4258, %v4312
        %vm4681 = vcmp.ne.f32.partialorder %v4262, %v4300
        %vm4682 = vcmp.ne.f32.partialorder %v4262, %v4304
        %vm4683 = vcmp.ne.f32.partialorder %v4262, %v4308
        %vm4684 = vcmp.ne.f32.partialorder %v4262, %v4312
        %vm4685 = vcmp.ne.f32.partialorder %v4266, %v4300
        %vm4686 = vcmp.ne.f32.partialorder %v4266, %v4304
        %vm4687 = vcmp.ne.f32.partialorder %v4266, %v4308
        %vm4688 = vcmp.ne.f32.partialorder %v4266, %v4312
        %vm4689 = vcmp.ne.f32.partialorder %v4270, %v4300
        %vm4690 = vcmp.ne.f32.partialorder %v4270, %v4304
        %vm4691 = vcmp.ne.f32.partialorder %v4270, %v4308
        %vm4692 = vcmp.ne.f32.partialorder %v4270, %v4312
        %vm4693 = vcmp.ne.f32.partialorder %v4274, %v4300
        %vm4694 = vcmp.ne.f32.partialorder %v4274, %v4304
        %vm4695 = vcmp.ne.f32.partialorder %v4274, %v4308
        %vm4696 = vcmp.ne.f32.partialorder %v4274, %v4312
        %vm4697 = vcmp.ne.f32.partialorder %v4278, %v4300
        %vm4698 = vcmp.ne.f32.partialorder %v4278, %v4304
        %vm4699 = vcmp.ne.f32.partialorder %v4278, %v4308
        %vm4700 = vcmp.ne.f32.partialorder %v4278, %v4312
        %vm4701 = vcmp.ne.f32.partialorder %v4282, %v4300
        %vm4702 = vcmp.ne.f32.partialorder %v4282, %v4304
        %vm4703 = vcmp.ne.f32.partialorder %v4282, %v4308
        %vm4704 = vcmp.ne.f32.partialorder %v4282, %v4312
        %vm4705 = vcmp.ne.f32.partialorder %v4286, %v4300
        %vm4706 = vcmp.ne.f32.partialorder %v4286, %v4304
        %vm4707 = vcmp.ne.f32.partialorder %v4286, %v4308
        %vm4708 = vcmp.ne.f32.partialorder %v4286, %v4312
        %vm4709 = vcmp.ne.f32.partialorder %v4290, %v4300
        %vm4710 = vcmp.ne.f32.partialorder %v4290, %v4304
        %vm4711 = vcmp.ne.f32.partialorder %v4290, %v4308
        %vm4712 = vcmp.ne.f32.partialorder %v4290, %v4312
        %vm4713 = vcmp.ne.f32.partialorder %v4294, %v4300
        %vm4714 = vcmp.ne.f32.partialorder %v4294, %v4304
        %vm4715 = vcmp.ne.f32.partialorder %v4294, %v4308
        %vm4716 = vcmp.ne.f32.partialorder %v4294, %v4312
        %4717 = vset.pattern.permute.xlu0 1
        %4718 = vperm.xlu0 %4717, %v2444
        %v4719 = vpop.permute.xlu0 %4718
        %4721 = vset.pattern.permute.xlu0 1
        %4722 = vperm.xlu0 %4721, %v2445
        %v4723 = vpop.permute.xlu0 %4722
        %4725 = vset.pattern.permute.xlu0 1
        %4726 = vperm.xlu0 %4725, %v2446
        %v4727 = vpop.permute.xlu0 %4726
        %4729 = vset.pattern.permute.xlu0 1
        %4730 = vperm.xlu0 %4729, %v2447
        %v4731 = vpop.permute.xlu0 %4730
        %4733 = vset.pattern.permute.xlu0 1
        %4734 = vperm.xlu0 %4733, %v2448
        %v4735 = vpop.permute.xlu0 %4734
        %4737 = vset.pattern.permute.xlu0 1
        %4738 = vperm.xlu0 %4737, %v2449
        %v4739 = vpop.permute.xlu0 %4738
        %4741 = vset.pattern.permute.xlu0 1
        %4742 = vperm.xlu0 %4741, %v2450
        %v4743 = vpop.permute.xlu0 %4742
        %4745 = vset.pattern.permute.xlu0 1
        %4746 = vperm.xlu0 %4745, %v2451
        %v4747 = vpop.permute.xlu0 %4746
        %4749 = vset.pattern.permute.xlu0 1
        %4750 = vperm.xlu0 %4749, %v2452
        %v4751 = vpop.permute.xlu0 %4750
        %4753 = vset.pattern.permute.xlu0 1
        %4754 = vperm.xlu0 %4753, %v2453
        %v4755 = vpop.permute.xlu0 %4754
        %4757 = vset.pattern.permute.xlu0 1
        %4758 = vperm.xlu0 %4757, %v2454
        %v4759 = vpop.permute.xlu0 %4758
        %4761 = vset.pattern.permute.xlu0 1
        %4762 = vperm.xlu0 %4761, %v2455
        %v4763 = vpop.permute.xlu0 %4762
        %4765 = vset.pattern.permute.xlu0 1
        %4766 = vperm.xlu0 %4765, %v2456
        %v4767 = vpop.permute.xlu0 %4766
        %4769 = vset.pattern.permute.xlu0 1
        %4770 = vperm.xlu0 %4769, %v2457
        %v4771 = vpop.permute.xlu0 %4770
        %4773 = vset.pattern.permute.xlu0 1
        %4774 = vperm.xlu0 %4773, %v2458
        %v4775 = vpop.permute.xlu0 %4774
        %4777 = vset.pattern.permute.xlu0 1
        %4778 = vperm.xlu0 %4777, %v2459
        %v4779 = vpop.permute.xlu0 %4778
        %4781 = vset.pattern.permute.xlu0 1
        %4782 = vperm.xlu0 %4781, %v2460
        %v4783 = vpop.permute.xlu0 %4782
        %4785 = vset.pattern.permute.xlu0 1
        %4786 = vperm.xlu0 %4785, %v2461
        %v4787 = vpop.permute.xlu0 %4786
        %4789 = vset.pattern.permute.xlu0 1
        %4790 = vperm.xlu0 %4789, %v2462
        %v4791 = vpop.permute.xlu0 %4790
        %4793 = vset.pattern.permute.xlu0 1
        %4794 = vperm.xlu0 %4793, %v2463
        %v4795 = vpop.permute.xlu0 %4794
        %4797 = vset.pattern.permute.xlu0 1
        %4798 = vperm.xlu0 %4797, %v2464
        %v4799 = vpop.permute.xlu0 %4798
        %4801 = vset.pattern.permute.xlu0 1
        %4802 = vperm.xlu0 %4801, %v2465
        %v4803 = vpop.permute.xlu0 %4802
        %4805 = vset.pattern.permute.xlu0 1
        %4806 = vperm.xlu0 %4805, %v2466
        %v4807 = vpop.permute.xlu0 %4806
        %4809 = vset.pattern.permute.xlu0 1
        %4810 = vperm.xlu0 %4809, %v2467
        %v4811 = vpop.permute.xlu0 %4810
        %4813 = vset.pattern.permute.xlu0 1
        %4814 = vperm.xlu0 %4813, %v2468
        %v4815 = vpop.permute.xlu0 %4814
        %4817 = vset.pattern.permute.xlu0 1
        %4818 = vperm.xlu0 %4817, %v2469
        %v4819 = vpop.permute.xlu0 %4818
        %4821 = vset.pattern.permute.xlu0 1
        %4822 = vperm.xlu0 %4821, %v2470
        %v4823 = vpop.permute.xlu0 %4822
        %4825 = vset.pattern.permute.xlu0 1
        %4826 = vperm.xlu0 %4825, %v2471
        %v4827 = vpop.permute.xlu0 %4826
        %4829 = vset.pattern.permute.xlu0 1
        %4830 = vperm.xlu0 %4829, %v2472
        %v4831 = vpop.permute.xlu0 %4830
        %4833 = vset.pattern.permute.xlu0 1
        %4834 = vperm.xlu0 %4833, %v2473
        %v4835 = vpop.permute.xlu0 %4834
        %4837 = vset.pattern.permute.xlu0 1
        %4838 = vperm.xlu0 %4837, %v2474
        %v4839 = vpop.permute.xlu0 %4838
        %4841 = vset.pattern.permute.xlu0 1
        %4842 = vperm.xlu0 %4841, %v2475
        %v4843 = vpop.permute.xlu0 %4842
        %4845 = vset.pattern.permute.xlu0 1
        %4846 = vperm.xlu0 %4845, %v2476
        %v4847 = vpop.permute.xlu0 %4846
        %4849 = vset.pattern.permute.xlu0 1
        %4850 = vperm.xlu0 %4849, %v2477
        %v4851 = vpop.permute.xlu0 %4850
        %4853 = vset.pattern.permute.xlu0 1
        %4854 = vperm.xlu0 %4853, %v2478
        %v4855 = vpop.permute.xlu0 %4854
        %4857 = vset.pattern.permute.xlu0 1
        %4858 = vperm.xlu0 %4857, %v2479
        %v4859 = vpop.permute.xlu0 %4858
        %4861 = vset.pattern.permute.xlu0 1
        %4862 = vperm.xlu0 %4861, %v2480
        %v4863 = vpop.permute.xlu0 %4862
        %4865 = vset.pattern.permute.xlu0 1
        %4866 = vperm.xlu0 %4865, %v2481
        %v4867 = vpop.permute.xlu0 %4866
        %4869 = vset.pattern.permute.xlu0 1
        %4870 = vperm.xlu0 %4869, %v2482
        %v4871 = vpop.permute.xlu0 %4870
        %4873 = vset.pattern.permute.xlu0 1
        %4874 = vperm.xlu0 %4873, %v2483
        %v4875 = vpop.permute.xlu0 %4874
        %4877 = vset.pattern.permute.xlu0 1
        %4878 = vperm.xlu0 %4877, %v2484
        %v4879 = vpop.permute.xlu0 %4878
        %4881 = vset.pattern.permute.xlu0 1
        %4882 = vperm.xlu0 %4881, %v2485
        %v4883 = vpop.permute.xlu0 %4882
        %4885 = vset.pattern.permute.xlu0 1
        %4886 = vperm.xlu0 %4885, %v2486
        %v4887 = vpop.permute.xlu0 %4886
        %4889 = vset.pattern.permute.xlu0 1
        %4890 = vperm.xlu0 %4889, %v2487
        %v4891 = vpop.permute.xlu0 %4890
        %4893 = vset.pattern.permute.xlu0 1
        %4894 = vperm.xlu0 %4893, %v2488
        %v4895 = vpop.permute.xlu0 %4894
        %4897 = vset.pattern.permute.xlu0 1
        %4898 = vperm.xlu0 %4897, %v2489
        %v4899 = vpop.permute.xlu0 %4898
        %4901 = vset.pattern.permute.xlu0 1
        %4902 = vperm.xlu0 %4901, %v2490
        %v4903 = vpop.permute.xlu0 %4902
        %4905 = vset.pattern.permute.xlu0 1
        %4906 = vperm.xlu0 %4905, %v2491
        %v4907 = vpop.permute.xlu0 %4906
        %4909 = vset.pattern.permute.xlu0 1
        %4910 = vperm.xlu0 %4909, %v2492
        %v4911 = vpop.permute.xlu0 %4910
        %4913 = vset.pattern.permute.xlu0 1
        %4914 = vperm.xlu0 %4913, %v2493
        %v4915 = vpop.permute.xlu0 %4914
        %4917 = vset.pattern.permute.xlu0 1
        %4918 = vperm.xlu0 %4917, %v2494
        %v4919 = vpop.permute.xlu0 %4918
        %4921 = vset.pattern.permute.xlu0 1
        %4922 = vperm.xlu0 %4921, %v2495
        %v4923 = vpop.permute.xlu0 %4922
        %4925 = vset.pattern.permute.xlu0 1
        %4926 = vperm.xlu0 %4925, %v2496
        %v4927 = vpop.permute.xlu0 %4926
        %4929 = vset.pattern.permute.xlu0 1
        %4930 = vperm.xlu0 %4929, %v2497
        %v4931 = vpop.permute.xlu0 %4930
        %4933 = vset.pattern.permute.xlu0 1
        %4934 = vperm.xlu0 %4933, %v2498
        %v4935 = vpop.permute.xlu0 %4934
        %4937 = vset.pattern.permute.xlu0 1
        %4938 = vperm.xlu0 %4937, %v2499
        %v4939 = vpop.permute.xlu0 %4938
        %4941 = vset.pattern.permute.xlu0 1
        %4942 = vperm.xlu0 %4941, %v2500
        %v4943 = vpop.permute.xlu0 %4942
        %4945 = vset.pattern.permute.xlu0 1
        %4946 = vperm.xlu0 %4945, %v2501
        %v4947 = vpop.permute.xlu0 %4946
        %4949 = vset.pattern.permute.xlu0 1
        %4950 = vperm.xlu0 %4949, %v2502
        %v4951 = vpop.permute.xlu0 %4950
        %4953 = vset.pattern.permute.xlu0 1
        %4954 = vperm.xlu0 %4953, %v2503
        %v4955 = vpop.permute.xlu0 %4954
        %4957 = vset.pattern.permute.xlu0 1
        %4958 = vperm.xlu0 %4957, %v2504
        %v4959 = vpop.permute.xlu0 %4958
        %4961 = vset.pattern.permute.xlu0 1
        %4962 = vperm.xlu0 %4961, %v2505
        %v4963 = vpop.permute.xlu0 %4962
        %4965 = vset.pattern.permute.xlu0 1
        %4966 = vperm.xlu0 %4965, %v2506
        %v4967 = vpop.permute.xlu0 %4966
        %4969 = vset.pattern.permute.xlu0 1
        %4970 = vperm.xlu0 %4969, %v2507
        %v4971 = vpop.permute.xlu0 %4970
        %4973 = vset.pattern.permute.xlu0 1
        %4974 = vperm.xlu0 %4973, %v2508
        %v4975 = vpop.permute.xlu0 %4974
        %4977 = vset.pattern.permute.xlu0 1
        %4978 = vperm.xlu0 %4977, %v2509
        %v4979 = vpop.permute.xlu0 %4978
        %4981 = vset.pattern.permute.xlu0 1
        %4982 = vperm.xlu0 %4981, %v2510
        %v4983 = vpop.permute.xlu0 %4982
        %4985 = vset.pattern.permute.xlu0 1
        %4986 = vperm.xlu0 %4985, %v2511
        %v4987 = vpop.permute.xlu0 %4986
        %4989 = vset.pattern.permute.xlu0 1
        %4990 = vperm.xlu0 %4989, %v2512
        %v4991 = vpop.permute.xlu0 %4990
        %4993 = vset.pattern.permute.xlu0 1
        %4994 = vperm.xlu0 %4993, %v2513
        %v4995 = vpop.permute.xlu0 %4994
        %4997 = vset.pattern.permute.xlu0 1
        %4998 = vperm.xlu0 %4997, %v2514
        %v4999 = vpop.permute.xlu0 %4998
        %5001 = vset.pattern.permute.xlu0 1
        %5002 = vperm.xlu0 %5001, %v2515
        %v5003 = vpop.permute.xlu0 %5002
        %5005 = vset.pattern.permute.xlu0 1
        %5006 = vperm.xlu0 %5005, %v2516
        %v5007 = vpop.permute.xlu0 %5006
        %5009 = vset.pattern.permute.xlu0 1
        %5010 = vperm.xlu0 %5009, %v2517
        %v5011 = vpop.permute.xlu0 %5010
        %5013 = vset.pattern.permute.xlu0 1
        %5014 = vperm.xlu0 %5013, %v2518
        %v5015 = vpop.permute.xlu0 %5014
        %5017 = vset.pattern.permute.xlu0 1
        %5018 = vperm.xlu0 %5017, %v2519
        %v5019 = vpop.permute.xlu0 %5018
        %5021 = vset.pattern.permute.xlu0 1
        %5022 = vperm.xlu0 %5021, %v2520
        %v5023 = vpop.permute.xlu0 %5022
        %5025 = vset.pattern.permute.xlu0 1
        %5026 = vperm.xlu0 %5025, %v2521
        %v5027 = vpop.permute.xlu0 %5026
        %5029 = vset.pattern.permute.xlu0 1
        %5030 = vperm.xlu0 %5029, %v2522
        %v5031 = vpop.permute.xlu0 %5030
        %5033 = vset.pattern.permute.xlu0 1
        %5034 = vperm.xlu0 %5033, %v2523
        %v5035 = vpop.permute.xlu0 %5034
        %5037 = vset.pattern.permute.xlu0 1
        %5038 = vperm.xlu0 %5037, %v2524
        %v5039 = vpop.permute.xlu0 %5038
        %5041 = vset.pattern.permute.xlu0 1
        %5042 = vperm.xlu0 %5041, %v2525
        %v5043 = vpop.permute.xlu0 %5042
        %5045 = vset.pattern.permute.xlu0 1
        %5046 = vperm.xlu0 %5045, %v2526
        %v5047 = vpop.permute.xlu0 %5046
        %5049 = vset.pattern.permute.xlu0 1
        %5050 = vperm.xlu0 %5049, %v2527
        %v5051 = vpop.permute.xlu0 %5050
        %5053 = vset.pattern.permute.xlu0 1
        %5054 = vperm.xlu0 %5053, %v2528
        %v5055 = vpop.permute.xlu0 %5054
        %5057 = vset.pattern.permute.xlu0 1
        %5058 = vperm.xlu0 %5057, %v2529
        %v5059 = vpop.permute.xlu0 %5058
        %5061 = vset.pattern.permute.xlu0 1
        %5062 = vperm.xlu0 %5061, %v2530
        %v5063 = vpop.permute.xlu0 %5062
        %5065 = vset.pattern.permute.xlu0 1
        %5066 = vperm.xlu0 %5065, %v2531
        %v5067 = vpop.permute.xlu0 %5066
        %5069 = vset.pattern.permute.xlu0 1
        %5070 = vperm.xlu0 %5069, %v2532
        %v5071 = vpop.permute.xlu0 %5070
        %5073 = vset.pattern.permute.xlu0 1
        %5074 = vperm.xlu0 %5073, %v2533
        %v5075 = vpop.permute.xlu0 %5074
        %5077 = vset.pattern.permute.xlu0 1
        %5078 = vperm.xlu0 %5077, %v2534
        %v5079 = vpop.permute.xlu0 %5078
        %5081 = vset.pattern.permute.xlu0 1
        %5082 = vperm.xlu0 %5081, %v2535
        %v5083 = vpop.permute.xlu0 %5082
        %5085 = vset.pattern.permute.xlu0 1
        %5086 = vperm.xlu0 %5085, %v2536
        %v5087 = vpop.permute.xlu0 %5086
        %5089 = vset.pattern.permute.xlu0 1
        %5090 = vperm.xlu0 %5089, %v2537
        %v5091 = vpop.permute.xlu0 %5090
        %5093 = vset.pattern.permute.xlu0 1
        %5094 = vperm.xlu0 %5093, %v2538
        %v5095 = vpop.permute.xlu0 %5094
        %5097 = vset.pattern.permute.xlu0 1
        %5098 = vperm.xlu0 %5097, %v2539
        %v5099 = vpop.permute.xlu0 %5098
        %5101 = vset.pattern.permute.xlu0 1
        %5102 = vperm.xlu0 %5101, %v2540
        %v5103 = vpop.permute.xlu0 %5102
        %5105 = vset.pattern.permute.xlu0 1
        %5106 = vperm.xlu0 %5105, %v2541
        %v5107 = vpop.permute.xlu0 %5106
        %5109 = vset.pattern.permute.xlu0 1
        %5110 = vperm.xlu0 %5109, %v2542
        %v5111 = vpop.permute.xlu0 %5110
        %5113 = vset.pattern.permute.xlu0 1
        %5114 = vperm.xlu0 %5113, %v2543
        %v5115 = vpop.permute.xlu0 %5114
        %v5117 = vadd.f32 %v2044, %v4719
        %v5118 = vadd.f32 %v2045, %v4719
        %v5119 = vadd.f32 %v2046, %v4719
        %v5120 = vadd.f32 %v2047, %v4719
        %v5121 = vadd.f32 %v2048, %v4723
        %v5122 = vadd.f32 %v2049, %v4723
        %v5123 = vadd.f32 %v2050, %v4723
        %v5124 = vadd.f32 %v2051, %v4723
        %v5125 = vadd.f32 %v2052, %v4727
        %v5126 = vadd.f32 %v2053, %v4727
        %v5127 = vadd.f32 %v2054, %v4727
        %v5128 = vadd.f32 %v2055, %v4727
        %v5129 = vadd.f32 %v2056, %v4731
        %v5130 = vadd.f32 %v2057, %v4731
        %v5131 = vadd.f32 %v2058, %v4731
        %v5132 = vadd.f32 %v2059, %v4731
        %v5133 = vadd.f32 %v2060, %v4735
        %v5134 = vadd.f32 %v2061, %v4735
        %v5135 = vadd.f32 %v2062, %v4735
        %v5136 = vadd.f32 %v2063, %v4735
        %v5137 = vadd.f32 %v2064, %v4739
        %v5138 = vadd.f32 %v2065, %v4739
        %v5139 = vadd.f32 %v2066, %v4739
        %v5140 = vadd.f32 %v2067, %v4739
        %v5141 = vadd.f32 %v2068, %v4743
        %v5142 = vadd.f32 %v2069, %v4743
        %v5143 = vadd.f32 %v2070, %v4743
        %v5144 = vadd.f32 %v2071, %v4743
        %v5145 = vadd.f32 %v2072, %v4747
        %v5146 = vadd.f32 %v2073, %v4747
        %v5147 = vadd.f32 %v2074, %v4747
        %v5148 = vadd.f32 %v2075, %v4747
        %v5149 = vadd.f32 %v2076, %v4751
        %v5150 = vadd.f32 %v2077, %v4751
        %v5151 = vadd.f32 %v2078, %v4751
        %v5152 = vadd.f32 %v2079, %v4751
        %v5153 = vadd.f32 %v2080, %v4755
        %v5154 = vadd.f32 %v2081, %v4755
        %v5155 = vadd.f32 %v2082, %v4755
        %v5156 = vadd.f32 %v2083, %v4755
        %v5157 = vadd.f32 %v2084, %v4759
        %v5158 = vadd.f32 %v2085, %v4759
        %v5159 = vadd.f32 %v2086, %v4759
        %v5160 = vadd.f32 %v2087, %v4759
        %v5161 = vadd.f32 %v2088, %v4763
        %v5162 = vadd.f32 %v2089, %v4763
        %v5163 = vadd.f32 %v2090, %v4763
        %v5164 = vadd.f32 %v2091, %v4763
        %v5165 = vadd.f32 %v2092, %v4767
        %v5166 = vadd.f32 %v2093, %v4767
        %v5167 = vadd.f32 %v2094, %v4767
        %v5168 = vadd.f32 %v2095, %v4767
        %v5169 = vadd.f32 %v2096, %v4771
        %v5170 = vadd.f32 %v2097, %v4771
        %v5171 = vadd.f32 %v2098, %v4771
        %v5172 = vadd.f32 %v2099, %v4771
        %v5173 = vadd.f32 %v2100, %v4775
        %v5174 = vadd.f32 %v2101, %v4775
        %v5175 = vadd.f32 %v2102, %v4775
        %v5176 = vadd.f32 %v2103, %v4775
        %v5177 = vadd.f32 %v2104, %v4779
        %v5178 = vadd.f32 %v2105, %v4779
        %v5179 = vadd.f32 %v2106, %v4779
        %v5180 = vadd.f32 %v2107, %v4779
        %v5181 = vadd.f32 %v2108, %v4783
        %v5182 = vadd.f32 %v2109, %v4783
        %v5183 = vadd.f32 %v2110, %v4783
        %v5184 = vadd.f32 %v2111, %v4783
        %v5185 = vadd.f32 %v2112, %v4787
        %v5186 = vadd.f32 %v2113, %v4787
        %v5187 = vadd.f32 %v2114, %v4787
        %v5188 = vadd.f32 %v2115, %v4787
        %v5189 = vadd.f32 %v2116, %v4791
        %v5190 = vadd.f32 %v2117, %v4791
        %v5191 = vadd.f32 %v2118, %v4791
        %v5192 = vadd.f32 %v2119, %v4791
        %v5193 = vadd.f32 %v2120, %v4795
        %v5194 = vadd.f32 %v2121, %v4795
        %v5195 = vadd.f32 %v2122, %v4795
        %v5196 = vadd.f32 %v2123, %v4795
        %v5197 = vadd.f32 %v2124, %v4799
        %v5198 = vadd.f32 %v2125, %v4799
        %v5199 = vadd.f32 %v2126, %v4799
        %v5200 = vadd.f32 %v2127, %v4799
        %v5201 = vadd.f32 %v2128, %v4803
        %v5202 = vadd.f32 %v2129, %v4803
        %v5203 = vadd.f32 %v2130, %v4803
        %v5204 = vadd.f32 %v2131, %v4803
        %v5205 = vadd.f32 %v2132, %v4807
        %v5206 = vadd.f32 %v2133, %v4807
        %v5207 = vadd.f32 %v2134, %v4807
        %v5208 = vadd.f32 %v2135, %v4807
        %v5209 = vadd.f32 %v2136, %v4811
        %v5210 = vadd.f32 %v2137, %v4811
        %v5211 = vadd.f32 %v2138, %v4811
        %v5212 = vadd.f32 %v2139, %v4811
        %v5213 = vadd.f32 %v2140, %v4815
        %v5214 = vadd.f32 %v2141, %v4815
        %v5215 = vadd.f32 %v2142, %v4815
        %v5216 = vadd.f32 %v2143, %v4815
        %v5217 = vadd.f32 %v2144, %v4819
        %v5218 = vadd.f32 %v2145, %v4819
        %v5219 = vadd.f32 %v2146, %v4819
        %v5220 = vadd.f32 %v2147, %v4819
        %v5221 = vadd.f32 %v2148, %v4823
        %v5222 = vadd.f32 %v2149, %v4823
        %v5223 = vadd.f32 %v2150, %v4823
        %v5224 = vadd.f32 %v2151, %v4823
        %v5225 = vadd.f32 %v2152, %v4827
        %v5226 = vadd.f32 %v2153, %v4827
        %v5227 = vadd.f32 %v2154, %v4827
        %v5228 = vadd.f32 %v2155, %v4827
        %v5229 = vadd.f32 %v2156, %v4831
        %v5230 = vadd.f32 %v2157, %v4831
        %v5231 = vadd.f32 %v2158, %v4831
        %v5232 = vadd.f32 %v2159, %v4831
        %v5233 = vadd.f32 %v2160, %v4835
        %v5234 = vadd.f32 %v2161, %v4835
        %v5235 = vadd.f32 %v2162, %v4835
        %v5236 = vadd.f32 %v2163, %v4835
        %v5237 = vadd.f32 %v2164, %v4839
        %v5238 = vadd.f32 %v2165, %v4839
        %v5239 = vadd.f32 %v2166, %v4839
        %v5240 = vadd.f32 %v2167, %v4839
        %v5241 = vadd.f32 %v2168, %v4843
        %v5242 = vadd.f32 %v2169, %v4843
        %v5243 = vadd.f32 %v2170, %v4843
        %v5244 = vadd.f32 %v2171, %v4843
        %v5245 = vadd.f32 %v2172, %v4847
        %v5246 = vadd.f32 %v2173, %v4847
        %v5247 = vadd.f32 %v2174, %v4847
        %v5248 = vadd.f32 %v2175, %v4847
        %v5249 = vadd.f32 %v2176, %v4851
        %v5250 = vadd.f32 %v2177, %v4851
        %v5251 = vadd.f32 %v2178, %v4851
        %v5252 = vadd.f32 %v2179, %v4851
        %v5253 = vadd.f32 %v2180, %v4855
        %v5254 = vadd.f32 %v2181, %v4855
        %v5255 = vadd.f32 %v2182, %v4855
        %v5256 = vadd.f32 %v2183, %v4855
        %v5257 = vadd.f32 %v2184, %v4859
        %v5258 = vadd.f32 %v2185, %v4859
        %v5259 = vadd.f32 %v2186, %v4859
        %v5260 = vadd.f32 %v2187, %v4859
        %v5261 = vadd.f32 %v2188, %v4863
        %v5262 = vadd.f32 %v2189, %v4863
        %v5263 = vadd.f32 %v2190, %v4863
        %v5264 = vadd.f32 %v2191, %v4863
        %v5265 = vadd.f32 %v2192, %v4867
        %v5266 = vadd.f32 %v2193, %v4867
        %v5267 = vadd.f32 %v2194, %v4867
        %v5268 = vadd.f32 %v2195, %v4867
        %v5269 = vadd.f32 %v2196, %v4871
        %v5270 = vadd.f32 %v2197, %v4871
        %v5271 = vadd.f32 %v2198, %v4871
        %v5272 = vadd.f32 %v2199, %v4871
        %v5273 = vadd.f32 %v2200, %v4875
        %v5274 = vadd.f32 %v2201, %v4875
        %v5275 = vadd.f32 %v2202, %v4875
        %v5276 = vadd.f32 %v2203, %v4875
        %v5277 = vadd.f32 %v2204, %v4879
        %v5278 = vadd.f32 %v2205, %v4879
        %v5279 = vadd.f32 %v2206, %v4879
        %v5280 = vadd.f32 %v2207, %v4879
        %v5281 = vadd.f32 %v2208, %v4883
        %v5282 = vadd.f32 %v2209, %v4883
        %v5283 = vadd.f32 %v2210, %v4883
        %v5284 = vadd.f32 %v2211, %v4883
        %v5285 = vadd.f32 %v2212, %v4887
        %v5286 = vadd.f32 %v2213, %v4887
        %v5287 = vadd.f32 %v2214, %v4887
        %v5288 = vadd.f32 %v2215, %v4887
        %v5289 = vadd.f32 %v2216, %v4891
        %v5290 = vadd.f32 %v2217, %v4891
        %v5291 = vadd.f32 %v2218, %v4891
        %v5292 = vadd.f32 %v2219, %v4891
        %v5293 = vadd.f32 %v2220, %v4895
        %v5294 = vadd.f32 %v2221, %v4895
        %v5295 = vadd.f32 %v2222, %v4895
        %v5296 = vadd.f32 %v2223, %v4895
        %v5297 = vadd.f32 %v2224, %v4899
        %v5298 = vadd.f32 %v2225, %v4899
        %v5299 = vadd.f32 %v2226, %v4899
        %v5300 = vadd.f32 %v2227, %v4899
        %v5301 = vadd.f32 %v2228, %v4903
        %v5302 = vadd.f32 %v2229, %v4903
        %v5303 = vadd.f32 %v2230, %v4903
        %v5304 = vadd.f32 %v2231, %v4903
        %v5305 = vadd.f32 %v2232, %v4907
        %v5306 = vadd.f32 %v2233, %v4907
        %v5307 = vadd.f32 %v2234, %v4907
        %v5308 = vadd.f32 %v2235, %v4907
        %v5309 = vadd.f32 %v2236, %v4911
        %v5310 = vadd.f32 %v2237, %v4911
        %v5311 = vadd.f32 %v2238, %v4911
        %v5312 = vadd.f32 %v2239, %v4911
        %v5313 = vadd.f32 %v2240, %v4915
        %v5314 = vadd.f32 %v2241, %v4915
        %v5315 = vadd.f32 %v2242, %v4915
        %v5316 = vadd.f32 %v2243, %v4915
        %v5317 = vadd.f32 %v2244, %v4919
        %v5318 = vadd.f32 %v2245, %v4919
        %v5319 = vadd.f32 %v2246, %v4919
        %v5320 = vadd.f32 %v2247, %v4919
        %v5321 = vadd.f32 %v2248, %v4923
        %v5322 = vadd.f32 %v2249, %v4923
        %v5323 = vadd.f32 %v2250, %v4923
        %v5324 = vadd.f32 %v2251, %v4923
        %v5325 = vadd.f32 %v2252, %v4927
        %v5326 = vadd.f32 %v2253, %v4927
        %v5327 = vadd.f32 %v2254, %v4927
        %v5328 = vadd.f32 %v2255, %v4927
        %v5329 = vadd.f32 %v2256, %v4931
        %v5330 = vadd.f32 %v2257, %v4931
        %v5331 = vadd.f32 %v2258, %v4931
        %v5332 = vadd.f32 %v2259, %v4931
        %v5333 = vadd.f32 %v2260, %v4935
        %v5334 = vadd.f32 %v2261, %v4935
        %v5335 = vadd.f32 %v2262, %v4935
        %v5336 = vadd.f32 %v2263, %v4935
        %v5337 = vadd.f32 %v2264, %v4939
        %v5338 = vadd.f32 %v2265, %v4939
        %v5339 = vadd.f32 %v2266, %v4939
        %v5340 = vadd.f32 %v2267, %v4939
        %v5341 = vadd.f32 %v2268, %v4943
        %v5342 = vadd.f32 %v2269, %v4943
        %v5343 = vadd.f32 %v2270, %v4943
        %v5344 = vadd.f32 %v2271, %v4943
        %v5345 = vadd.f32 %v2272, %v4947
        %v5346 = vadd.f32 %v2273, %v4947
        %v5347 = vadd.f32 %v2274, %v4947
        %v5348 = vadd.f32 %v2275, %v4947
        %v5349 = vadd.f32 %v2276, %v4951
        %v5350 = vadd.f32 %v2277, %v4951
        %v5351 = vadd.f32 %v2278, %v4951
        %v5352 = vadd.f32 %v2279, %v4951
        %v5353 = vadd.f32 %v2280, %v4955
        %v5354 = vadd.f32 %v2281, %v4955
        %v5355 = vadd.f32 %v2282, %v4955
        %v5356 = vadd.f32 %v2283, %v4955
        %v5357 = vadd.f32 %v2284, %v4959
        %v5358 = vadd.f32 %v2285, %v4959
        %v5359 = vadd.f32 %v2286, %v4959
        %v5360 = vadd.f32 %v2287, %v4959
        %v5361 = vadd.f32 %v2288, %v4963
        %v5362 = vadd.f32 %v2289, %v4963
        %v5363 = vadd.f32 %v2290, %v4963
        %v5364 = vadd.f32 %v2291, %v4963
        %v5365 = vadd.f32 %v2292, %v4967
        %v5366 = vadd.f32 %v2293, %v4967
        %v5367 = vadd.f32 %v2294, %v4967
        %v5368 = vadd.f32 %v2295, %v4967
        %v5369 = vadd.f32 %v2296, %v4971
        %v5370 = vadd.f32 %v2297, %v4971
        %v5371 = vadd.f32 %v2298, %v4971
        %v5372 = vadd.f32 %v2299, %v4971
        %v5373 = vadd.f32 %v2300, %v4975
        %v5374 = vadd.f32 %v2301, %v4975
        %v5375 = vadd.f32 %v2302, %v4975
        %v5376 = vadd.f32 %v2303, %v4975
        %v5377 = vadd.f32 %v2304, %v4979
        %v5378 = vadd.f32 %v2305, %v4979
        %v5379 = vadd.f32 %v2306, %v4979
        %v5380 = vadd.f32 %v2307, %v4979
        %v5381 = vadd.f32 %v2308, %v4983
        %v5382 = vadd.f32 %v2309, %v4983
        %v5383 = vadd.f32 %v2310, %v4983
        %v5384 = vadd.f32 %v2311, %v4983
        %v5385 = vadd.f32 %v2312, %v4987
        %v5386 = vadd.f32 %v2313, %v4987
        %v5387 = vadd.f32 %v2314, %v4987
        %v5388 = vadd.f32 %v2315, %v4987
        %v5389 = vadd.f32 %v2316, %v4991
        %v5390 = vadd.f32 %v2317, %v4991
        %v5391 = vadd.f32 %v2318, %v4991
        %v5392 = vadd.f32 %v2319, %v4991
        %v5393 = vadd.f32 %v2320, %v4995
        %v5394 = vadd.f32 %v2321, %v4995
        %v5395 = vadd.f32 %v2322, %v4995
        %v5396 = vadd.f32 %v2323, %v4995
        %v5397 = vadd.f32 %v2324, %v4999
        %v5398 = vadd.f32 %v2325, %v4999
        %v5399 = vadd.f32 %v2326, %v4999
        %v5400 = vadd.f32 %v2327, %v4999
        %v5401 = vadd.f32 %v2328, %v5003
        %v5402 = vadd.f32 %v2329, %v5003
        %v5403 = vadd.f32 %v2330, %v5003
        %v5404 = vadd.f32 %v2331, %v5003
        %v5405 = vadd.f32 %v2332, %v5007
        %v5406 = vadd.f32 %v2333, %v5007
        %v5407 = vadd.f32 %v2334, %v5007
        %v5408 = vadd.f32 %v2335, %v5007
        %v5409 = vadd.f32 %v2336, %v5011
        %v5410 = vadd.f32 %v2337, %v5011
        %v5411 = vadd.f32 %v2338, %v5011
        %v5412 = vadd.f32 %v2339, %v5011
        %v5413 = vadd.f32 %v2340, %v5015
        %v5414 = vadd.f32 %v2341, %v5015
        %v5415 = vadd.f32 %v2342, %v5015
        %v5416 = vadd.f32 %v2343, %v5015
        %v5417 = vadd.f32 %v2344, %v5019
        %v5418 = vadd.f32 %v2345, %v5019
        %v5419 = vadd.f32 %v2346, %v5019
        %v5420 = vadd.f32 %v2347, %v5019
        %v5421 = vadd.f32 %v2348, %v5023
        %v5422 = vadd.f32 %v2349, %v5023
        %v5423 = vadd.f32 %v2350, %v5023
        %v5424 = vadd.f32 %v2351, %v5023
        %v5425 = vadd.f32 %v2352, %v5027
        %v5426 = vadd.f32 %v2353, %v5027
        %v5427 = vadd.f32 %v2354, %v5027
        %v5428 = vadd.f32 %v2355, %v5027
        %v5429 = vadd.f32 %v2356, %v5031
        %v5430 = vadd.f32 %v2357, %v5031
        %v5431 = vadd.f32 %v2358, %v5031
        %v5432 = vadd.f32 %v2359, %v5031
        %v5433 = vadd.f32 %v2360, %v5035
        %v5434 = vadd.f32 %v2361, %v5035
        %v5435 = vadd.f32 %v2362, %v5035
        %v5436 = vadd.f32 %v2363, %v5035
        %v5437 = vadd.f32 %v2364, %v5039
        %v5438 = vadd.f32 %v2365, %v5039
        %v5439 = vadd.f32 %v2366, %v5039
        %v5440 = vadd.f32 %v2367, %v5039
        %v5441 = vadd.f32 %v2368, %v5043
        %v5442 = vadd.f32 %v2369, %v5043
        %v5443 = vadd.f32 %v2370, %v5043
        %v5444 = vadd.f32 %v2371, %v5043
        %v5445 = vadd.f32 %v2372, %v5047
        %v5446 = vadd.f32 %v2373, %v5047
        %v5447 = vadd.f32 %v2374, %v5047
        %v5448 = vadd.f32 %v2375, %v5047
        %v5449 = vadd.f32 %v2376, %v5051
        %v5450 = vadd.f32 %v2377, %v5051
        %v5451 = vadd.f32 %v2378, %v5051
        %v5452 = vadd.f32 %v2379, %v5051
        %v5453 = vadd.f32 %v2380, %v5055
        %v5454 = vadd.f32 %v2381, %v5055
        %v5455 = vadd.f32 %v2382, %v5055
        %v5456 = vadd.f32 %v2383, %v5055
        %v5457 = vadd.f32 %v2384, %v5059
        %v5458 = vadd.f32 %v2385, %v5059
        %v5459 = vadd.f32 %v2386, %v5059
        %v5460 = vadd.f32 %v2387, %v5059
        %v5461 = vadd.f32 %v2388, %v5063
        %v5462 = vadd.f32 %v2389, %v5063
        %v5463 = vadd.f32 %v2390, %v5063
        %v5464 = vadd.f32 %v2391, %v5063
        %v5465 = vadd.f32 %v2392, %v5067
        %v5466 = vadd.f32 %v2393, %v5067
        %v5467 = vadd.f32 %v2394, %v5067
        %v5468 = vadd.f32 %v2395, %v5067
        %v5469 = vadd.f32 %v2396, %v5071
        %v5470 = vadd.f32 %v2397, %v5071
        %v5471 = vadd.f32 %v2398, %v5071
        %v5472 = vadd.f32 %v2399, %v5071
        %v5473 = vadd.f32 %v2400, %v5075
        %v5474 = vadd.f32 %v2401, %v5075
        %v5475 = vadd.f32 %v2402, %v5075
        %v5476 = vadd.f32 %v2403, %v5075
        %v5477 = vadd.f32 %v2404, %v5079
        %v5478 = vadd.f32 %v2405, %v5079
        %v5479 = vadd.f32 %v2406, %v5079
        %v5480 = vadd.f32 %v2407, %v5079
        %v5481 = vadd.f32 %v2408, %v5083
        %v5482 = vadd.f32 %v2409, %v5083
        %v5483 = vadd.f32 %v2410, %v5083
        %v5484 = vadd.f32 %v2411, %v5083
        %v5485 = vadd.f32 %v2412, %v5087
        %v5486 = vadd.f32 %v2413, %v5087
        %v5487 = vadd.f32 %v2414, %v5087
        %v5488 = vadd.f32 %v2415, %v5087
        %v5489 = vadd.f32 %v2416, %v5091
        %v5490 = vadd.f32 %v2417, %v5091
        %v5491 = vadd.f32 %v2418, %v5091
        %v5492 = vadd.f32 %v2419, %v5091
        %v5493 = vadd.f32 %v2420, %v5095
        %v5494 = vadd.f32 %v2421, %v5095
        %v5495 = vadd.f32 %v2422, %v5095
        %v5496 = vadd.f32 %v2423, %v5095
        %v5497 = vadd.f32 %v2424, %v5099
        %v5498 = vadd.f32 %v2425, %v5099
        %v5499 = vadd.f32 %v2426, %v5099
        %v5500 = vadd.f32 %v2427, %v5099
        %v5501 = vadd.f32 %v2428, %v5103
        %v5502 = vadd.f32 %v2429, %v5103
        %v5503 = vadd.f32 %v2430, %v5103
        %v5504 = vadd.f32 %v2431, %v5103
        %v5505 = vadd.f32 %v2432, %v5107
        %v5506 = vadd.f32 %v2433, %v5107
        %v5507 = vadd.f32 %v2434, %v5107
        %v5508 = vadd.f32 %v2435, %v5107
        %v5509 = vadd.f32 %v2436, %v5111
        %v5510 = vadd.f32 %v2437, %v5111
        %v5511 = vadd.f32 %v2438, %v5111
        %v5512 = vadd.f32 %v2439, %v5111
        %v5513 = vadd.f32 %v2440, %v5115
        %v5514 = vadd.f32 %v2441, %v5115
        %v5515 = vadd.f32 %v2442, %v5115
        %v5516 = vadd.f32 %v2443, %v5115
        %v5517 = vsel %vm4317, %v5117, -1e+30
        %v5518 = vsel %vm4318, %v5118, -1e+30
        %v5519 = vsel %vm4319, %v5119, -1e+30
        %v5520 = vsel %vm4320, %v5120, -1e+30
        %v5521 = vsel %vm4321, %v5121, -1e+30
        %v5522 = vsel %vm4322, %v5122, -1e+30
        %v5523 = vsel %vm4323, %v5123, -1e+30
        %v5524 = vsel %vm4324, %v5124, -1e+30
        %v5525 = vsel %vm4325, %v5125, -1e+30
        %v5526 = vsel %vm4326, %v5126, -1e+30
        %v5527 = vsel %vm4327, %v5127, -1e+30
        %v5528 = vsel %vm4328, %v5128, -1e+30
        %v5529 = vsel %vm4329, %v5129, -1e+30
        %v5530 = vsel %vm4330, %v5130, -1e+30
        %v5531 = vsel %vm4331, %v5131, -1e+30
        %v5532 = vsel %vm4332, %v5132, -1e+30
        %v5533 = vsel %vm4333, %v5133, -1e+30
        %v5534 = vsel %vm4334, %v5134, -1e+30
        %v5535 = vsel %vm4335, %v5135, -1e+30
        %v5536 = vsel %vm4336, %v5136, -1e+30
        %v5537 = vsel %vm4337, %v5137, -1e+30
        %v5538 = vsel %vm4338, %v5138, -1e+30
        %v5539 = vsel %vm4339, %v5139, -1e+30
        %v5540 = vsel %vm4340, %v5140, -1e+30
        %v5541 = vsel %vm4341, %v5141, -1e+30
        %v5542 = vsel %vm4342, %v5142, -1e+30
        %v5543 = vsel %vm4343, %v5143, -1e+30
        %v5544 = vsel %vm4344, %v5144, -1e+30
        %v5545 = vsel %vm4345, %v5145, -1e+30
        %v5546 = vsel %vm4346, %v5146, -1e+30
        %v5547 = vsel %vm4347, %v5147, -1e+30
        %v5548 = vsel %vm4348, %v5148, -1e+30
        %v5549 = vsel %vm4349, %v5149, -1e+30
        %v5550 = vsel %vm4350, %v5150, -1e+30
        %v5551 = vsel %vm4351, %v5151, -1e+30
        %v5552 = vsel %vm4352, %v5152, -1e+30
        %v5553 = vsel %vm4353, %v5153, -1e+30
        %v5554 = vsel %vm4354, %v5154, -1e+30
        %v5555 = vsel %vm4355, %v5155, -1e+30
        %v5556 = vsel %vm4356, %v5156, -1e+30
        %v5557 = vsel %vm4357, %v5157, -1e+30
        %v5558 = vsel %vm4358, %v5158, -1e+30
        %v5559 = vsel %vm4359, %v5159, -1e+30
        %v5560 = vsel %vm4360, %v5160, -1e+30
        %v5561 = vsel %vm4361, %v5161, -1e+30
        %v5562 = vsel %vm4362, %v5162, -1e+30
        %v5563 = vsel %vm4363, %v5163, -1e+30
        %v5564 = vsel %vm4364, %v5164, -1e+30
        %v5565 = vsel %vm4365, %v5165, -1e+30
        %v5566 = vsel %vm4366, %v5166, -1e+30
        %v5567 = vsel %vm4367, %v5167, -1e+30
        %v5568 = vsel %vm4368, %v5168, -1e+30
        %v5569 = vsel %vm4369, %v5169, -1e+30
        %v5570 = vsel %vm4370, %v5170, -1e+30
        %v5571 = vsel %vm4371, %v5171, -1e+30
        %v5572 = vsel %vm4372, %v5172, -1e+30
        %v5573 = vsel %vm4373, %v5173, -1e+30
        %v5574 = vsel %vm4374, %v5174, -1e+30
        %v5575 = vsel %vm4375, %v5175, -1e+30
        %v5576 = vsel %vm4376, %v5176, -1e+30
        %v5577 = vsel %vm4377, %v5177, -1e+30
        %v5578 = vsel %vm4378, %v5178, -1e+30
        %v5579 = vsel %vm4379, %v5179, -1e+30
        %v5580 = vsel %vm4380, %v5180, -1e+30
        %v5581 = vsel %vm4381, %v5181, -1e+30
        %v5582 = vsel %vm4382, %v5182, -1e+30
        %v5583 = vsel %vm4383, %v5183, -1e+30
        %v5584 = vsel %vm4384, %v5184, -1e+30
        %v5585 = vsel %vm4385, %v5185, -1e+30
        %v5586 = vsel %vm4386, %v5186, -1e+30
        %v5587 = vsel %vm4387, %v5187, -1e+30
        %v5588 = vsel %vm4388, %v5188, -1e+30
        %v5589 = vsel %vm4389, %v5189, -1e+30
        %v5590 = vsel %vm4390, %v5190, -1e+30
        %v5591 = vsel %vm4391, %v5191, -1e+30
        %v5592 = vsel %vm4392, %v5192, -1e+30
        %v5593 = vsel %vm4393, %v5193, -1e+30
        %v5594 = vsel %vm4394, %v5194, -1e+30
        %v5595 = vsel %vm4395, %v5195, -1e+30
        %v5596 = vsel %vm4396, %v5196, -1e+30
        %v5597 = vsel %vm4397, %v5197, -1e+30
        %v5598 = vsel %vm4398, %v5198, -1e+30
        %v5599 = vsel %vm4399, %v5199, -1e+30
        %v5600 = vsel %vm4400, %v5200, -1e+30
        %v5601 = vsel %vm4401, %v5201, -1e+30
        %v5602 = vsel %vm4402, %v5202, -1e+30
        %v5603 = vsel %vm4403, %v5203, -1e+30
        %v5604 = vsel %vm4404, %v5204, -1e+30
        %v5605 = vsel %vm4405, %v5205, -1e+30
        %v5606 = vsel %vm4406, %v5206, -1e+30
        %v5607 = vsel %vm4407, %v5207, -1e+30
        %v5608 = vsel %vm4408, %v5208, -1e+30
        %v5609 = vsel %vm4409, %v5209, -1e+30
        %v5610 = vsel %vm4410, %v5210, -1e+30
        %v5611 = vsel %vm4411, %v5211, -1e+30
        %v5612 = vsel %vm4412, %v5212, -1e+30
        %v5613 = vsel %vm4413, %v5213, -1e+30
        %v5614 = vsel %vm4414, %v5214, -1e+30
        %v5615 = vsel %vm4415, %v5215, -1e+30
        %v5616 = vsel %vm4416, %v5216, -1e+30
        %v5617 = vsel %vm4417, %v5217, -1e+30
        %v5618 = vsel %vm4418, %v5218, -1e+30
        %v5619 = vsel %vm4419, %v5219, -1e+30
        %v5620 = vsel %vm4420, %v5220, -1e+30
        %v5621 = vsel %vm4421, %v5221, -1e+30
        %v5622 = vsel %vm4422, %v5222, -1e+30
        %v5623 = vsel %vm4423, %v5223, -1e+30
        %v5624 = vsel %vm4424, %v5224, -1e+30
        %v5625 = vsel %vm4425, %v5225, -1e+30
        %v5626 = vsel %vm4426, %v5226, -1e+30
        %v5627 = vsel %vm4427, %v5227, -1e+30
        %v5628 = vsel %vm4428, %v5228, -1e+30
        %v5629 = vsel %vm4429, %v5229, -1e+30
        %v5630 = vsel %vm4430, %v5230, -1e+30
        %v5631 = vsel %vm4431, %v5231, -1e+30
        %v5632 = vsel %vm4432, %v5232, -1e+30
        %v5633 = vsel %vm4433, %v5233, -1e+30
        %v5634 = vsel %vm4434, %v5234, -1e+30
        %v5635 = vsel %vm4435, %v5235, -1e+30
        %v5636 = vsel %vm4436, %v5236, -1e+30
        %v5637 = vsel %vm4437, %v5237, -1e+30
        %v5638 = vsel %vm4438, %v5238, -1e+30
        %v5639 = vsel %vm4439, %v5239, -1e+30
        %v5640 = vsel %vm4440, %v5240, -1e+30
        %v5641 = vsel %vm4441, %v5241, -1e+30
        %v5642 = vsel %vm4442, %v5242, -1e+30
        %v5643 = vsel %vm4443, %v5243, -1e+30
        %v5644 = vsel %vm4444, %v5244, -1e+30
        %v5645 = vsel %vm4445, %v5245, -1e+30
        %v5646 = vsel %vm4446, %v5246, -1e+30
        %v5647 = vsel %vm4447, %v5247, -1e+30
        %v5648 = vsel %vm4448, %v5248, -1e+30
        %v5649 = vsel %vm4449, %v5249, -1e+30
        %v5650 = vsel %vm4450, %v5250, -1e+30
        %v5651 = vsel %vm4451, %v5251, -1e+30
        %v5652 = vsel %vm4452, %v5252, -1e+30
        %v5653 = vsel %vm4453, %v5253, -1e+30
        %v5654 = vsel %vm4454, %v5254, -1e+30
        %v5655 = vsel %vm4455, %v5255, -1e+30
        %v5656 = vsel %vm4456, %v5256, -1e+30
        %v5657 = vsel %vm4457, %v5257, -1e+30
        %v5658 = vsel %vm4458, %v5258, -1e+30
        %v5659 = vsel %vm4459, %v5259, -1e+30
        %v5660 = vsel %vm4460, %v5260, -1e+30
        %v5661 = vsel %vm4461, %v5261, -1e+30
        %v5662 = vsel %vm4462, %v5262, -1e+30
        %v5663 = vsel %vm4463, %v5263, -1e+30
        %v5664 = vsel %vm4464, %v5264, -1e+30
        %v5665 = vsel %vm4465, %v5265, -1e+30
        %v5666 = vsel %vm4466, %v5266, -1e+30
        %v5667 = vsel %vm4467, %v5267, -1e+30
        %v5668 = vsel %vm4468, %v5268, -1e+30
        %v5669 = vsel %vm4469, %v5269, -1e+30
        %v5670 = vsel %vm4470, %v5270, -1e+30
        %v5671 = vsel %vm4471, %v5271, -1e+30
        %v5672 = vsel %vm4472, %v5272, -1e+30
        %v5673 = vsel %vm4473, %v5273, -1e+30
        %v5674 = vsel %vm4474, %v5274, -1e+30
        %v5675 = vsel %vm4475, %v5275, -1e+30
        %v5676 = vsel %vm4476, %v5276, -1e+30
        %v5677 = vsel %vm4477, %v5277, -1e+30
        %v5678 = vsel %vm4478, %v5278, -1e+30
        %v5679 = vsel %vm4479, %v5279, -1e+30
        %v5680 = vsel %vm4480, %v5280, -1e+30
        %v5681 = vsel %vm4481, %v5281, -1e+30
        %v5682 = vsel %vm4482, %v5282, -1e+30
        %v5683 = vsel %vm4483, %v5283, -1e+30
        %v5684 = vsel %vm4484, %v5284, -1e+30
        %v5685 = vsel %vm4485, %v5285, -1e+30
        %v5686 = vsel %vm4486, %v5286, -1e+30
        %v5687 = vsel %vm4487, %v5287, -1e+30
        %v5688 = vsel %vm4488, %v5288, -1e+30
        %v5689 = vsel %vm4489, %v5289, -1e+30
        %v5690 = vsel %vm4490, %v5290, -1e+30
        %v5691 = vsel %vm4491, %v5291, -1e+30
        %v5692 = vsel %vm4492, %v5292, -1e+30
        %v5693 = vsel %vm4493, %v5293, -1e+30
        %v5694 = vsel %vm4494, %v5294, -1e+30
        %v5695 = vsel %vm4495, %v5295, -1e+30
        %v5696 = vsel %vm4496, %v5296, -1e+30
        %v5697 = vsel %vm4497, %v5297, -1e+30
        %v5698 = vsel %vm4498, %v5298, -1e+30
        %v5699 = vsel %vm4499, %v5299, -1e+30
        %v5700 = vsel %vm4500, %v5300, -1e+30
        %v5701 = vsel %vm4501, %v5301, -1e+30
        %v5702 = vsel %vm4502, %v5302, -1e+30
        %v5703 = vsel %vm4503, %v5303, -1e+30
        %v5704 = vsel %vm4504, %v5304, -1e+30
        %v5705 = vsel %vm4505, %v5305, -1e+30
        %v5706 = vsel %vm4506, %v5306, -1e+30
        %v5707 = vsel %vm4507, %v5307, -1e+30
        %v5708 = vsel %vm4508, %v5308, -1e+30
        %v5709 = vsel %vm4509, %v5309, -1e+30
        %v5710 = vsel %vm4510, %v5310, -1e+30
        %v5711 = vsel %vm4511, %v5311, -1e+30
        %v5712 = vsel %vm4512, %v5312, -1e+30
        %v5713 = vsel %vm4513, %v5313, -1e+30
        %v5714 = vsel %vm4514, %v5314, -1e+30
        %v5715 = vsel %vm4515, %v5315, -1e+30
        %v5716 = vsel %vm4516, %v5316, -1e+30
        %v5717 = vsel %vm4517, %v5317, -1e+30
        %v5718 = vsel %vm4518, %v5318, -1e+30
        %v5719 = vsel %vm4519, %v5319, -1e+30
        %v5720 = vsel %vm4520, %v5320, -1e+30
        %v5721 = vsel %vm4521, %v5321, -1e+30
        %v5722 = vsel %vm4522, %v5322, -1e+30
        %v5723 = vsel %vm4523, %v5323, -1e+30
        %v5724 = vsel %vm4524, %v5324, -1e+30
        %v5725 = vsel %vm4525, %v5325, -1e+30
        %v5726 = vsel %vm4526, %v5326, -1e+30
        %v5727 = vsel %vm4527, %v5327, -1e+30
        %v5728 = vsel %vm4528, %v5328, -1e+30
        %v5729 = vsel %vm4529, %v5329, -1e+30
        %v5730 = vsel %vm4530, %v5330, -1e+30
        %v5731 = vsel %vm4531, %v5331, -1e+30
        %v5732 = vsel %vm4532, %v5332, -1e+30
        %v5733 = vsel %vm4533, %v5333, -1e+30
        %v5734 = vsel %vm4534, %v5334, -1e+30
        %v5735 = vsel %vm4535, %v5335, -1e+30
        %v5736 = vsel %vm4536, %v5336, -1e+30
        %v5737 = vsel %vm4537, %v5337, -1e+30
        %v5738 = vsel %vm4538, %v5338, -1e+30
        %v5739 = vsel %vm4539, %v5339, -1e+30
        %v5740 = vsel %vm4540, %v5340, -1e+30
        %v5741 = vsel %vm4541, %v5341, -1e+30
        %v5742 = vsel %vm4542, %v5342, -1e+30
        %v5743 = vsel %vm4543, %v5343, -1e+30
        %v5744 = vsel %vm4544, %v5344, -1e+30
        %v5745 = vsel %vm4545, %v5345, -1e+30
        %v5746 = vsel %vm4546, %v5346, -1e+30
        %v5747 = vsel %vm4547, %v5347, -1e+30
        %v5748 = vsel %vm4548, %v5348, -1e+30
        %v5749 = vsel %vm4549, %v5349, -1e+30
        %v5750 = vsel %vm4550, %v5350, -1e+30
        %v5751 = vsel %vm4551, %v5351, -1e+30
        %v5752 = vsel %vm4552, %v5352, -1e+30
        %v5753 = vsel %vm4553, %v5353, -1e+30
        %v5754 = vsel %vm4554, %v5354, -1e+30
        %v5755 = vsel %vm4555, %v5355, -1e+30
        %v5756 = vsel %vm4556, %v5356, -1e+30
        %v5757 = vsel %vm4557, %v5357, -1e+30
        %v5758 = vsel %vm4558, %v5358, -1e+30
        %v5759 = vsel %vm4559, %v5359, -1e+30
        %v5760 = vsel %vm4560, %v5360, -1e+30
        %v5761 = vsel %vm4561, %v5361, -1e+30
        %v5762 = vsel %vm4562, %v5362, -1e+30
        %v5763 = vsel %vm4563, %v5363, -1e+30
        %v5764 = vsel %vm4564, %v5364, -1e+30
        %v5765 = vsel %vm4565, %v5365, -1e+30
        %v5766 = vsel %vm4566, %v5366, -1e+30
        %v5767 = vsel %vm4567, %v5367, -1e+30
        %v5768 = vsel %vm4568, %v5368, -1e+30
        %v5769 = vsel %vm4569, %v5369, -1e+30
        %v5770 = vsel %vm4570, %v5370, -1e+30
        %v5771 = vsel %vm4571, %v5371, -1e+30
        %v5772 = vsel %vm4572, %v5372, -1e+30
        %v5773 = vsel %vm4573, %v5373, -1e+30
        %v5774 = vsel %vm4574, %v5374, -1e+30
        %v5775 = vsel %vm4575, %v5375, -1e+30
        %v5776 = vsel %vm4576, %v5376, -1e+30
        %v5777 = vsel %vm4577, %v5377, -1e+30
        %v5778 = vsel %vm4578, %v5378, -1e+30
        %v5779 = vsel %vm4579, %v5379, -1e+30
        %v5780 = vsel %vm4580, %v5380, -1e+30
        %v5781 = vsel %vm4581, %v5381, -1e+30
        %v5782 = vsel %vm4582, %v5382, -1e+30
        %v5783 = vsel %vm4583, %v5383, -1e+30
        %v5784 = vsel %vm4584, %v5384, -1e+30
        %v5785 = vsel %vm4585, %v5385, -1e+30
        %v5786 = vsel %vm4586, %v5386, -1e+30
        %v5787 = vsel %vm4587, %v5387, -1e+30
        %v5788 = vsel %vm4588, %v5388, -1e+30
        %v5789 = vsel %vm4589, %v5389, -1e+30
        %v5790 = vsel %vm4590, %v5390, -1e+30
        %v5791 = vsel %vm4591, %v5391, -1e+30
        %v5792 = vsel %vm4592, %v5392, -1e+30
        %v5793 = vsel %vm4593, %v5393, -1e+30
        %v5794 = vsel %vm4594, %v5394, -1e+30
        %v5795 = vsel %vm4595, %v5395, -1e+30
        %v5796 = vsel %vm4596, %v5396, -1e+30
        %v5797 = vsel %vm4597, %v5397, -1e+30
        %v5798 = vsel %vm4598, %v5398, -1e+30
        %v5799 = vsel %vm4599, %v5399, -1e+30
        %v5800 = vsel %vm4600, %v5400, -1e+30
        %v5801 = vsel %vm4601, %v5401, -1e+30
        %v5802 = vsel %vm4602, %v5402, -1e+30
        %v5803 = vsel %vm4603, %v5403, -1e+30
        %v5804 = vsel %vm4604, %v5404, -1e+30
        %v5805 = vsel %vm4605, %v5405, -1e+30
        %v5806 = vsel %vm4606, %v5406, -1e+30
        %v5807 = vsel %vm4607, %v5407, -1e+30
        %v5808 = vsel %vm4608, %v5408, -1e+30
        %v5809 = vsel %vm4609, %v5409, -1e+30
        %v5810 = vsel %vm4610, %v5410, -1e+30
        %v5811 = vsel %vm4611, %v5411, -1e+30
        %v5812 = vsel %vm4612, %v5412, -1e+30
        %v5813 = vsel %vm4613, %v5413, -1e+30
        %v5814 = vsel %vm4614, %v5414, -1e+30
        %v5815 = vsel %vm4615, %v5415, -1e+30
        %v5816 = vsel %vm4616, %v5416, -1e+30
        %v5817 = vsel %vm4617, %v5417, -1e+30
        %v5818 = vsel %vm4618, %v5418, -1e+30
        %v5819 = vsel %vm4619, %v5419, -1e+30
        %v5820 = vsel %vm4620, %v5420, -1e+30
        %v5821 = vsel %vm4621, %v5421, -1e+30
        %v5822 = vsel %vm4622, %v5422, -1e+30
        %v5823 = vsel %vm4623, %v5423, -1e+30
        %v5824 = vsel %vm4624, %v5424, -1e+30
        %v5825 = vsel %vm4625, %v5425, -1e+30
        %v5826 = vsel %vm4626, %v5426, -1e+30
        %v5827 = vsel %vm4627, %v5427, -1e+30
        %v5828 = vsel %vm4628, %v5428, -1e+30
        %v5829 = vsel %vm4629, %v5429, -1e+30
        %v5830 = vsel %vm4630, %v5430, -1e+30
        %v5831 = vsel %vm4631, %v5431, -1e+30
        %v5832 = vsel %vm4632, %v5432, -1e+30
        %v5833 = vsel %vm4633, %v5433, -1e+30
        %v5834 = vsel %vm4634, %v5434, -1e+30
        %v5835 = vsel %vm4635, %v5435, -1e+30
        %v5836 = vsel %vm4636, %v5436, -1e+30
        %v5837 = vsel %vm4637, %v5437, -1e+30
        %v5838 = vsel %vm4638, %v5438, -1e+30
        %v5839 = vsel %vm4639, %v5439, -1e+30
        %v5840 = vsel %vm4640, %v5440, -1e+30
        %v5841 = vsel %vm4641, %v5441, -1e+30
        %v5842 = vsel %vm4642, %v5442, -1e+30
        %v5843 = vsel %vm4643, %v5443, -1e+30
        %v5844 = vsel %vm4644, %v5444, -1e+30
        %v5845 = vsel %vm4645, %v5445, -1e+30
        %v5846 = vsel %vm4646, %v5446, -1e+30
        %v5847 = vsel %vm4647, %v5447, -1e+30
        %v5848 = vsel %vm4648, %v5448, -1e+30
        %v5849 = vsel %vm4649, %v5449, -1e+30
        %v5850 = vsel %vm4650, %v5450, -1e+30
        %v5851 = vsel %vm4651, %v5451, -1e+30
        %v5852 = vsel %vm4652, %v5452, -1e+30
        %v5853 = vsel %vm4653, %v5453, -1e+30
        %v5854 = vsel %vm4654, %v5454, -1e+30
        %v5855 = vsel %vm4655, %v5455, -1e+30
        %v5856 = vsel %vm4656, %v5456, -1e+30
        %v5857 = vsel %vm4657, %v5457, -1e+30
        %v5858 = vsel %vm4658, %v5458, -1e+30
        %v5859 = vsel %vm4659, %v5459, -1e+30
        %v5860 = vsel %vm4660, %v5460, -1e+30
        %v5861 = vsel %vm4661, %v5461, -1e+30
        %v5862 = vsel %vm4662, %v5462, -1e+30
        %v5863 = vsel %vm4663, %v5463, -1e+30
        %v5864 = vsel %vm4664, %v5464, -1e+30
        %v5865 = vsel %vm4665, %v5465, -1e+30
        %v5866 = vsel %vm4666, %v5466, -1e+30
        %v5867 = vsel %vm4667, %v5467, -1e+30
        %v5868 = vsel %vm4668, %v5468, -1e+30
        %v5869 = vsel %vm4669, %v5469, -1e+30
        %v5870 = vsel %vm4670, %v5470, -1e+30
        %v5871 = vsel %vm4671, %v5471, -1e+30
        %v5872 = vsel %vm4672, %v5472, -1e+30
        %v5873 = vsel %vm4673, %v5473, -1e+30
        %v5874 = vsel %vm4674, %v5474, -1e+30
        %v5875 = vsel %vm4675, %v5475, -1e+30
        %v5876 = vsel %vm4676, %v5476, -1e+30
        %v5877 = vsel %vm4677, %v5477, -1e+30
        %v5878 = vsel %vm4678, %v5478, -1e+30
        %v5879 = vsel %vm4679, %v5479, -1e+30
        %v5880 = vsel %vm4680, %v5480, -1e+30
        %v5881 = vsel %vm4681, %v5481, -1e+30
        %v5882 = vsel %vm4682, %v5482, -1e+30
        %v5883 = vsel %vm4683, %v5483, -1e+30
        %v5884 = vsel %vm4684, %v5484, -1e+30
        %v5885 = vsel %vm4685, %v5485, -1e+30
        %v5886 = vsel %vm4686, %v5486, -1e+30
        %v5887 = vsel %vm4687, %v5487, -1e+30
        %v5888 = vsel %vm4688, %v5488, -1e+30
        %v5889 = vsel %vm4689, %v5489, -1e+30
        %v5890 = vsel %vm4690, %v5490, -1e+30
        %v5891 = vsel %vm4691, %v5491, -1e+30
        %v5892 = vsel %vm4692, %v5492, -1e+30
        %v5893 = vsel %vm4693, %v5493, -1e+30
        %v5894 = vsel %vm4694, %v5494, -1e+30
        %v5895 = vsel %vm4695, %v5495, -1e+30
        %v5896 = vsel %vm4696, %v5496, -1e+30
        %v5897 = vsel %vm4697, %v5497, -1e+30
        %v5898 = vsel %vm4698, %v5498, -1e+30
        %v5899 = vsel %vm4699, %v5499, -1e+30
        %v5900 = vsel %vm4700, %v5500, -1e+30
        %v5901 = vsel %vm4701, %v5501, -1e+30
        %v5902 = vsel %vm4702, %v5502, -1e+30
        %v5903 = vsel %vm4703, %v5503, -1e+30
        %v5904 = vsel %vm4704, %v5504, -1e+30
        %v5905 = vsel %vm4705, %v5505, -1e+30
        %v5906 = vsel %vm4706, %v5506, -1e+30
        %v5907 = vsel %vm4707, %v5507, -1e+30
        %v5908 = vsel %vm4708, %v5508, -1e+30
        %v5909 = vsel %vm4709, %v5509, -1e+30
        %v5910 = vsel %vm4710, %v5510, -1e+30
        %v5911 = vsel %vm4711, %v5511, -1e+30
        %v5912 = vsel %vm4712, %v5512, -1e+30
        %v5913 = vsel %vm4713, %v5513, -1e+30
        %v5914 = vsel %vm4714, %v5514, -1e+30
        %v5915 = vsel %vm4715, %v5515, -1e+30
        %v5916 = vsel %vm4716, %v5516, -1e+30
        %v5918 = vlaneseq
        %v5919 = vshrl.u32 %v5918, 7
        %v5920 = vsub.s32 0, %v5919
        %v5921 = vrot.slane %v3895, %v5920
        %v5922 = vlaneseq
        %v5923 = vshrl.u32 %v5922, 7
        %v5924 = vsub.s32 1, %v5923
        %v5925 = vrot.slane %v3895, %v5924
        %v5926 = vlaneseq
        %v5927 = vshrl.u32 %v5926, 7
        %v5928 = vsub.s32 2, %v5927
        %v5929 = vrot.slane %v3895, %v5928
        %v5930 = vlaneseq
        %v5931 = vshrl.u32 %v5930, 7
        %v5932 = vsub.s32 3, %v5931
        %v5933 = vrot.slane %v3895, %v5932
        %v5938 = vsub.f32 %v5517, %v5921
        %v5939 = vsub.f32 %v5518, %v5925
        %v5940 = vsub.f32 %v5519, %v5929
        %v5941 = vsub.f32 %v5520, %v5933
        %v5942 = vsub.f32 %v5521, %v5921
        %v5943 = vsub.f32 %v5522, %v5925
        %v5944 = vsub.f32 %v5523, %v5929
        %v5945 = vsub.f32 %v5524, %v5933
        %v5946 = vsub.f32 %v5525, %v5921
        %v5947 = vsub.f32 %v5526, %v5925
        %v5948 = vsub.f32 %v5527, %v5929
        %v5949 = vsub.f32 %v5528, %v5933
        %v5950 = vsub.f32 %v5529, %v5921
        %v5951 = vsub.f32 %v5530, %v5925
        %v5952 = vsub.f32 %v5531, %v5929
        %v5953 = vsub.f32 %v5532, %v5933
        %v5954 = vsub.f32 %v5533, %v5921
        %v5955 = vsub.f32 %v5534, %v5925
        %v5956 = vsub.f32 %v5535, %v5929
        %v5957 = vsub.f32 %v5536, %v5933
        %v5958 = vsub.f32 %v5537, %v5921
        %v5959 = vsub.f32 %v5538, %v5925
        %v5960 = vsub.f32 %v5539, %v5929
        %v5961 = vsub.f32 %v5540, %v5933
        %v5962 = vsub.f32 %v5541, %v5921
        %v5963 = vsub.f32 %v5542, %v5925
        %v5964 = vsub.f32 %v5543, %v5929
        %v5965 = vsub.f32 %v5544, %v5933
        %v5966 = vsub.f32 %v5545, %v5921
        %v5967 = vsub.f32 %v5546, %v5925
        %v5968 = vsub.f32 %v5547, %v5929
        %v5969 = vsub.f32 %v5548, %v5933
        %v5970 = vsub.f32 %v5549, %v5921
        %v5971 = vsub.f32 %v5550, %v5925
        %v5972 = vsub.f32 %v5551, %v5929
        %v5973 = vsub.f32 %v5552, %v5933
        %v5974 = vsub.f32 %v5553, %v5921
        %v5975 = vsub.f32 %v5554, %v5925
        %v5976 = vsub.f32 %v5555, %v5929
        %v5977 = vsub.f32 %v5556, %v5933
        %v5978 = vsub.f32 %v5557, %v5921
        %v5979 = vsub.f32 %v5558, %v5925
        %v5980 = vsub.f32 %v5559, %v5929
        %v5981 = vsub.f32 %v5560, %v5933
        %v5982 = vsub.f32 %v5561, %v5921
        %v5983 = vsub.f32 %v5562, %v5925
        %v5984 = vsub.f32 %v5563, %v5929
        %v5985 = vsub.f32 %v5564, %v5933
        %v5986 = vsub.f32 %v5565, %v5921
        %v5987 = vsub.f32 %v5566, %v5925
        %v5988 = vsub.f32 %v5567, %v5929
        %v5989 = vsub.f32 %v5568, %v5933
        %v5990 = vsub.f32 %v5569, %v5921
        %v5991 = vsub.f32 %v5570, %v5925
        %v5992 = vsub.f32 %v5571, %v5929
        %v5993 = vsub.f32 %v5572, %v5933
        %v5994 = vsub.f32 %v5573, %v5921
        %v5995 = vsub.f32 %v5574, %v5925
        %v5996 = vsub.f32 %v5575, %v5929
        %v5997 = vsub.f32 %v5576, %v5933
        %v5998 = vsub.f32 %v5577, %v5921
        %v5999 = vsub.f32 %v5578, %v5925
        %v6000 = vsub.f32 %v5579, %v5929
        %v6001 = vsub.f32 %v5580, %v5933
        %v6002 = vsub.f32 %v5581, %v5921
        %v6003 = vsub.f32 %v5582, %v5925
        %v6004 = vsub.f32 %v5583, %v5929
        %v6005 = vsub.f32 %v5584, %v5933
        %v6006 = vsub.f32 %v5585, %v5921
        %v6007 = vsub.f32 %v5586, %v5925
        %v6008 = vsub.f32 %v5587, %v5929
        %v6009 = vsub.f32 %v5588, %v5933
        %v6010 = vsub.f32 %v5589, %v5921
        %v6011 = vsub.f32 %v5590, %v5925
        %v6012 = vsub.f32 %v5591, %v5929
        %v6013 = vsub.f32 %v5592, %v5933
        %v6014 = vsub.f32 %v5593, %v5921
        %v6015 = vsub.f32 %v5594, %v5925
        %v6016 = vsub.f32 %v5595, %v5929
        %v6017 = vsub.f32 %v5596, %v5933
        %v6018 = vsub.f32 %v5597, %v5921
        %v6019 = vsub.f32 %v5598, %v5925
        %v6020 = vsub.f32 %v5599, %v5929
        %v6021 = vsub.f32 %v5600, %v5933
        %v6022 = vsub.f32 %v5601, %v5921
        %v6023 = vsub.f32 %v5602, %v5925
        %v6024 = vsub.f32 %v5603, %v5929
        %v6025 = vsub.f32 %v5604, %v5933
        %v6026 = vsub.f32 %v5605, %v5921
        %v6027 = vsub.f32 %v5606, %v5925
        %v6028 = vsub.f32 %v5607, %v5929
        %v6029 = vsub.f32 %v5608, %v5933
        %v6030 = vsub.f32 %v5609, %v5921
        %v6031 = vsub.f32 %v5610, %v5925
        %v6032 = vsub.f32 %v5611, %v5929
        %v6033 = vsub.f32 %v5612, %v5933
        %v6034 = vsub.f32 %v5613, %v5921
        %v6035 = vsub.f32 %v5614, %v5925
        %v6036 = vsub.f32 %v5615, %v5929
        %v6037 = vsub.f32 %v5616, %v5933
        %v6038 = vsub.f32 %v5617, %v5921
        %v6039 = vsub.f32 %v5618, %v5925
        %v6040 = vsub.f32 %v5619, %v5929
        %v6041 = vsub.f32 %v5620, %v5933
        %v6042 = vsub.f32 %v5621, %v5921
        %v6043 = vsub.f32 %v5622, %v5925
        %v6044 = vsub.f32 %v5623, %v5929
        %v6045 = vsub.f32 %v5624, %v5933
        %v6046 = vsub.f32 %v5625, %v5921
        %v6047 = vsub.f32 %v5626, %v5925
        %v6048 = vsub.f32 %v5627, %v5929
        %v6049 = vsub.f32 %v5628, %v5933
        %v6050 = vsub.f32 %v5629, %v5921
        %v6051 = vsub.f32 %v5630, %v5925
        %v6052 = vsub.f32 %v5631, %v5929
        %v6053 = vsub.f32 %v5632, %v5933
        %v6054 = vsub.f32 %v5633, %v5921
        %v6055 = vsub.f32 %v5634, %v5925
        %v6056 = vsub.f32 %v5635, %v5929
        %v6057 = vsub.f32 %v5636, %v5933
        %v6058 = vsub.f32 %v5637, %v5921
        %v6059 = vsub.f32 %v5638, %v5925
        %v6060 = vsub.f32 %v5639, %v5929
        %v6061 = vsub.f32 %v5640, %v5933
        %v6062 = vsub.f32 %v5641, %v5921
        %v6063 = vsub.f32 %v5642, %v5925
        %v6064 = vsub.f32 %v5643, %v5929
        %v6065 = vsub.f32 %v5644, %v5933
        %v6066 = vsub.f32 %v5645, %v5921
        %v6067 = vsub.f32 %v5646, %v5925
        %v6068 = vsub.f32 %v5647, %v5929
        %v6069 = vsub.f32 %v5648, %v5933
        %v6070 = vsub.f32 %v5649, %v5921
        %v6071 = vsub.f32 %v5650, %v5925
        %v6072 = vsub.f32 %v5651, %v5929
        %v6073 = vsub.f32 %v5652, %v5933
        %v6074 = vsub.f32 %v5653, %v5921
        %v6075 = vsub.f32 %v5654, %v5925
        %v6076 = vsub.f32 %v5655, %v5929
        %v6077 = vsub.f32 %v5656, %v5933
        %v6078 = vsub.f32 %v5657, %v5921
        %v6079 = vsub.f32 %v5658, %v5925
        %v6080 = vsub.f32 %v5659, %v5929
        %v6081 = vsub.f32 %v5660, %v5933
        %v6082 = vsub.f32 %v5661, %v5921
        %v6083 = vsub.f32 %v5662, %v5925
        %v6084 = vsub.f32 %v5663, %v5929
        %v6085 = vsub.f32 %v5664, %v5933
        %v6086 = vsub.f32 %v5665, %v5921
        %v6087 = vsub.f32 %v5666, %v5925
        %v6088 = vsub.f32 %v5667, %v5929
        %v6089 = vsub.f32 %v5668, %v5933
        %v6090 = vsub.f32 %v5669, %v5921
        %v6091 = vsub.f32 %v5670, %v5925
        %v6092 = vsub.f32 %v5671, %v5929
        %v6093 = vsub.f32 %v5672, %v5933
        %v6094 = vsub.f32 %v5673, %v5921
        %v6095 = vsub.f32 %v5674, %v5925
        %v6096 = vsub.f32 %v5675, %v5929
        %v6097 = vsub.f32 %v5676, %v5933
        %v6098 = vsub.f32 %v5677, %v5921
        %v6099 = vsub.f32 %v5678, %v5925
        %v6100 = vsub.f32 %v5679, %v5929
        %v6101 = vsub.f32 %v5680, %v5933
        %v6102 = vsub.f32 %v5681, %v5921
        %v6103 = vsub.f32 %v5682, %v5925
        %v6104 = vsub.f32 %v5683, %v5929
        %v6105 = vsub.f32 %v5684, %v5933
        %v6106 = vsub.f32 %v5685, %v5921
        %v6107 = vsub.f32 %v5686, %v5925
        %v6108 = vsub.f32 %v5687, %v5929
        %v6109 = vsub.f32 %v5688, %v5933
        %v6110 = vsub.f32 %v5689, %v5921
        %v6111 = vsub.f32 %v5690, %v5925
        %v6112 = vsub.f32 %v5691, %v5929
        %v6113 = vsub.f32 %v5692, %v5933
        %v6114 = vsub.f32 %v5693, %v5921
        %v6115 = vsub.f32 %v5694, %v5925
        %v6116 = vsub.f32 %v5695, %v5929
        %v6117 = vsub.f32 %v5696, %v5933
        %v6118 = vsub.f32 %v5697, %v5921
        %v6119 = vsub.f32 %v5698, %v5925
        %v6120 = vsub.f32 %v5699, %v5929
        %v6121 = vsub.f32 %v5700, %v5933
        %v6122 = vsub.f32 %v5701, %v5921
        %v6123 = vsub.f32 %v5702, %v5925
        %v6124 = vsub.f32 %v5703, %v5929
        %v6125 = vsub.f32 %v5704, %v5933
        %v6126 = vsub.f32 %v5705, %v5921
        %v6127 = vsub.f32 %v5706, %v5925
        %v6128 = vsub.f32 %v5707, %v5929
        %v6129 = vsub.f32 %v5708, %v5933
        %v6130 = vsub.f32 %v5709, %v5921
        %v6131 = vsub.f32 %v5710, %v5925
        %v6132 = vsub.f32 %v5711, %v5929
        %v6133 = vsub.f32 %v5712, %v5933
        %v6134 = vsub.f32 %v5713, %v5921
        %v6135 = vsub.f32 %v5714, %v5925
        %v6136 = vsub.f32 %v5715, %v5929
        %v6137 = vsub.f32 %v5716, %v5933
        %v6138 = vsub.f32 %v5717, %v5921
        %v6139 = vsub.f32 %v5718, %v5925
        %v6140 = vsub.f32 %v5719, %v5929
        %v6141 = vsub.f32 %v5720, %v5933
        %v6142 = vsub.f32 %v5721, %v5921
        %v6143 = vsub.f32 %v5722, %v5925
        %v6144 = vsub.f32 %v5723, %v5929
        %v6145 = vsub.f32 %v5724, %v5933
        %v6146 = vsub.f32 %v5725, %v5921
        %v6147 = vsub.f32 %v5726, %v5925
        %v6148 = vsub.f32 %v5727, %v5929
        %v6149 = vsub.f32 %v5728, %v5933
        %v6150 = vsub.f32 %v5729, %v5921
        %v6151 = vsub.f32 %v5730, %v5925
        %v6152 = vsub.f32 %v5731, %v5929
        %v6153 = vsub.f32 %v5732, %v5933
        %v6154 = vsub.f32 %v5733, %v5921
        %v6155 = vsub.f32 %v5734, %v5925
        %v6156 = vsub.f32 %v5735, %v5929
        %v6157 = vsub.f32 %v5736, %v5933
        %v6158 = vsub.f32 %v5737, %v5921
        %v6159 = vsub.f32 %v5738, %v5925
        %v6160 = vsub.f32 %v5739, %v5929
        %v6161 = vsub.f32 %v5740, %v5933
        %v6162 = vsub.f32 %v5741, %v5921
        %v6163 = vsub.f32 %v5742, %v5925
        %v6164 = vsub.f32 %v5743, %v5929
        %v6165 = vsub.f32 %v5744, %v5933
        %v6166 = vsub.f32 %v5745, %v5921
        %v6167 = vsub.f32 %v5746, %v5925
        %v6168 = vsub.f32 %v5747, %v5929
        %v6169 = vsub.f32 %v5748, %v5933
        %v6170 = vsub.f32 %v5749, %v5921
        %v6171 = vsub.f32 %v5750, %v5925
        %v6172 = vsub.f32 %v5751, %v5929
        %v6173 = vsub.f32 %v5752, %v5933
        %v6174 = vsub.f32 %v5753, %v5921
        %v6175 = vsub.f32 %v5754, %v5925
        %v6176 = vsub.f32 %v5755, %v5929
        %v6177 = vsub.f32 %v5756, %v5933
        %v6178 = vsub.f32 %v5757, %v5921
        %v6179 = vsub.f32 %v5758, %v5925
        %v6180 = vsub.f32 %v5759, %v5929
        %v6181 = vsub.f32 %v5760, %v5933
        %v6182 = vsub.f32 %v5761, %v5921
        %v6183 = vsub.f32 %v5762, %v5925
        %v6184 = vsub.f32 %v5763, %v5929
        %v6185 = vsub.f32 %v5764, %v5933
        %v6186 = vsub.f32 %v5765, %v5921
        %v6187 = vsub.f32 %v5766, %v5925
        %v6188 = vsub.f32 %v5767, %v5929
        %v6189 = vsub.f32 %v5768, %v5933
        %v6190 = vsub.f32 %v5769, %v5921
        %v6191 = vsub.f32 %v5770, %v5925
        %v6192 = vsub.f32 %v5771, %v5929
        %v6193 = vsub.f32 %v5772, %v5933
        %v6194 = vsub.f32 %v5773, %v5921
        %v6195 = vsub.f32 %v5774, %v5925
        %v6196 = vsub.f32 %v5775, %v5929
        %v6197 = vsub.f32 %v5776, %v5933
        %v6198 = vsub.f32 %v5777, %v5921
        %v6199 = vsub.f32 %v5778, %v5925
        %v6200 = vsub.f32 %v5779, %v5929
        %v6201 = vsub.f32 %v5780, %v5933
        %v6202 = vsub.f32 %v5781, %v5921
        %v6203 = vsub.f32 %v5782, %v5925
        %v6204 = vsub.f32 %v5783, %v5929
        %v6205 = vsub.f32 %v5784, %v5933
        %v6206 = vsub.f32 %v5785, %v5921
        %v6207 = vsub.f32 %v5786, %v5925
        %v6208 = vsub.f32 %v5787, %v5929
        %v6209 = vsub.f32 %v5788, %v5933
        %v6210 = vsub.f32 %v5789, %v5921
        %v6211 = vsub.f32 %v5790, %v5925
        %v6212 = vsub.f32 %v5791, %v5929
        %v6213 = vsub.f32 %v5792, %v5933
        %v6214 = vsub.f32 %v5793, %v5921
        %v6215 = vsub.f32 %v5794, %v5925
        %v6216 = vsub.f32 %v5795, %v5929
        %v6217 = vsub.f32 %v5796, %v5933
        %v6218 = vsub.f32 %v5797, %v5921
        %v6219 = vsub.f32 %v5798, %v5925
        %v6220 = vsub.f32 %v5799, %v5929
        %v6221 = vsub.f32 %v5800, %v5933
        %v6222 = vsub.f32 %v5801, %v5921
        %v6223 = vsub.f32 %v5802, %v5925
        %v6224 = vsub.f32 %v5803, %v5929
        %v6225 = vsub.f32 %v5804, %v5933
        %v6226 = vsub.f32 %v5805, %v5921
        %v6227 = vsub.f32 %v5806, %v5925
        %v6228 = vsub.f32 %v5807, %v5929
        %v6229 = vsub.f32 %v5808, %v5933
        %v6230 = vsub.f32 %v5809, %v5921
        %v6231 = vsub.f32 %v5810, %v5925
        %v6232 = vsub.f32 %v5811, %v5929
        %v6233 = vsub.f32 %v5812, %v5933
        %v6234 = vsub.f32 %v5813, %v5921
        %v6235 = vsub.f32 %v5814, %v5925
        %v6236 = vsub.f32 %v5815, %v5929
        %v6237 = vsub.f32 %v5816, %v5933
        %v6238 = vsub.f32 %v5817, %v5921
        %v6239 = vsub.f32 %v5818, %v5925
        %v6240 = vsub.f32 %v5819, %v5929
        %v6241 = vsub.f32 %v5820, %v5933
        %v6242 = vsub.f32 %v5821, %v5921
        %v6243 = vsub.f32 %v5822, %v5925
        %v6244 = vsub.f32 %v5823, %v5929
        %v6245 = vsub.f32 %v5824, %v5933
        %v6246 = vsub.f32 %v5825, %v5921
        %v6247 = vsub.f32 %v5826, %v5925
        %v6248 = vsub.f32 %v5827, %v5929
        %v6249 = vsub.f32 %v5828, %v5933
        %v6250 = vsub.f32 %v5829, %v5921
        %v6251 = vsub.f32 %v5830, %v5925
        %v6252 = vsub.f32 %v5831, %v5929
        %v6253 = vsub.f32 %v5832, %v5933
        %v6254 = vsub.f32 %v5833, %v5921
        %v6255 = vsub.f32 %v5834, %v5925
        %v6256 = vsub.f32 %v5835, %v5929
        %v6257 = vsub.f32 %v5836, %v5933
        %v6258 = vsub.f32 %v5837, %v5921
        %v6259 = vsub.f32 %v5838, %v5925
        %v6260 = vsub.f32 %v5839, %v5929
        %v6261 = vsub.f32 %v5840, %v5933
        %v6262 = vsub.f32 %v5841, %v5921
        %v6263 = vsub.f32 %v5842, %v5925
        %v6264 = vsub.f32 %v5843, %v5929
        %v6265 = vsub.f32 %v5844, %v5933
        %v6266 = vsub.f32 %v5845, %v5921
        %v6267 = vsub.f32 %v5846, %v5925
        %v6268 = vsub.f32 %v5847, %v5929
        %v6269 = vsub.f32 %v5848, %v5933
        %v6270 = vsub.f32 %v5849, %v5921
        %v6271 = vsub.f32 %v5850, %v5925
        %v6272 = vsub.f32 %v5851, %v5929
        %v6273 = vsub.f32 %v5852, %v5933
        %v6274 = vsub.f32 %v5853, %v5921
        %v6275 = vsub.f32 %v5854, %v5925
        %v6276 = vsub.f32 %v5855, %v5929
        %v6277 = vsub.f32 %v5856, %v5933
        %v6278 = vsub.f32 %v5857, %v5921
        %v6279 = vsub.f32 %v5858, %v5925
        %v6280 = vsub.f32 %v5859, %v5929
        %v6281 = vsub.f32 %v5860, %v5933
        %v6282 = vsub.f32 %v5861, %v5921
        %v6283 = vsub.f32 %v5862, %v5925
        %v6284 = vsub.f32 %v5863, %v5929
        %v6285 = vsub.f32 %v5864, %v5933
        %v6286 = vsub.f32 %v5865, %v5921
        %v6287 = vsub.f32 %v5866, %v5925
        %v6288 = vsub.f32 %v5867, %v5929
        %v6289 = vsub.f32 %v5868, %v5933
        %v6290 = vsub.f32 %v5869, %v5921
        %v6291 = vsub.f32 %v5870, %v5925
        %v6292 = vsub.f32 %v5871, %v5929
        %v6293 = vsub.f32 %v5872, %v5933
        %v6294 = vsub.f32 %v5873, %v5921
        %v6295 = vsub.f32 %v5874, %v5925
        %v6296 = vsub.f32 %v5875, %v5929
        %v6297 = vsub.f32 %v5876, %v5933
        %v6298 = vsub.f32 %v5877, %v5921
        %v6299 = vsub.f32 %v5878, %v5925
        %v6300 = vsub.f32 %v5879, %v5929
        %v6301 = vsub.f32 %v5880, %v5933
        %v6302 = vsub.f32 %v5881, %v5921
        %v6303 = vsub.f32 %v5882, %v5925
        %v6304 = vsub.f32 %v5883, %v5929
        %v6305 = vsub.f32 %v5884, %v5933
        %v6306 = vsub.f32 %v5885, %v5921
        %v6307 = vsub.f32 %v5886, %v5925
        %v6308 = vsub.f32 %v5887, %v5929
        %v6309 = vsub.f32 %v5888, %v5933
        %v6310 = vsub.f32 %v5889, %v5921
        %v6311 = vsub.f32 %v5890, %v5925
        %v6312 = vsub.f32 %v5891, %v5929
        %v6313 = vsub.f32 %v5892, %v5933
        %v6314 = vsub.f32 %v5893, %v5921
        %v6315 = vsub.f32 %v5894, %v5925
        %v6316 = vsub.f32 %v5895, %v5929
        %v6317 = vsub.f32 %v5896, %v5933
        %v6318 = vsub.f32 %v5897, %v5921
        %v6319 = vsub.f32 %v5898, %v5925
        %v6320 = vsub.f32 %v5899, %v5929
        %v6321 = vsub.f32 %v5900, %v5933
        %v6322 = vsub.f32 %v5901, %v5921
        %v6323 = vsub.f32 %v5902, %v5925
        %v6324 = vsub.f32 %v5903, %v5929
        %v6325 = vsub.f32 %v5904, %v5933
        %v6326 = vsub.f32 %v5905, %v5921
        %v6327 = vsub.f32 %v5906, %v5925
        %v6328 = vsub.f32 %v5907, %v5929
        %v6329 = vsub.f32 %v5908, %v5933
        %v6330 = vsub.f32 %v5909, %v5921
        %v6331 = vsub.f32 %v5910, %v5925
        %v6332 = vsub.f32 %v5911, %v5929
        %v6333 = vsub.f32 %v5912, %v5933
        %v6334 = vsub.f32 %v5913, %v5921
        %v6335 = vsub.f32 %v5914, %v5925
        %v6336 = vsub.f32 %v5915, %v5929
        %v6337 = vsub.f32 %v5916, %v5933
        %v6338 = vsub.f32 %v2544, %v3895
        %v6339 = vmul.f32 %v6338, 1.442695
        %v6340 = vpow.pop %v6339
        %v6341 = vmul.f32 %v5938, 1.442695
        %v6342 = vpow.pop %v6341
        %v6343 = vmul.f32 %v5939, 1.442695
        %v6344 = vpow.pop %v6343
        %v6345 = vmul.f32 %v5940, 1.442695
        %v6346 = vpow.pop %v6345
        %v6347 = vmul.f32 %v5941, 1.442695
        %v6348 = vpow.pop %v6347
        %v6349 = vmul.f32 %v5942, 1.442695
        %v6350 = vpow.pop %v6349
        %v6351 = vmul.f32 %v5943, 1.442695
        %v6352 = vpow.pop %v6351
        %v6353 = vmul.f32 %v5944, 1.442695
        %v6354 = vpow.pop %v6353
        %v6355 = vmul.f32 %v5945, 1.442695
        %v6356 = vpow.pop %v6355
        %v6357 = vmul.f32 %v5946, 1.442695
        %v6358 = vpow.pop %v6357
        %v6359 = vmul.f32 %v5947, 1.442695
        %v6360 = vpow.pop %v6359
        %v6361 = vmul.f32 %v5948, 1.442695
        %v6362 = vpow.pop %v6361
        %v6363 = vmul.f32 %v5949, 1.442695
        %v6364 = vpow.pop %v6363
        %v6365 = vmul.f32 %v5950, 1.442695
        %v6366 = vpow.pop %v6365
        %v6367 = vmul.f32 %v5951, 1.442695
        %v6368 = vpow.pop %v6367
        %v6369 = vmul.f32 %v5952, 1.442695
        %v6370 = vpow.pop %v6369
        %v6371 = vmul.f32 %v5953, 1.442695
        %v6372 = vpow.pop %v6371
        %v6373 = vmul.f32 %v5954, 1.442695
        %v6374 = vpow.pop %v6373
        %v6375 = vmul.f32 %v5955, 1.442695
        %v6376 = vpow.pop %v6375
        %v6377 = vmul.f32 %v5956, 1.442695
        %v6378 = vpow.pop %v6377
        %v6379 = vmul.f32 %v5957, 1.442695
        %v6380 = vpow.pop %v6379
        %v6381 = vmul.f32 %v5958, 1.442695
        %v6382 = vpow.pop %v6381
        %v6383 = vmul.f32 %v5959, 1.442695
        %v6384 = vpow.pop %v6383
        %v6385 = vmul.f32 %v5960, 1.442695
        %v6386 = vpow.pop %v6385
        %v6387 = vmul.f32 %v5961, 1.442695
        %v6388 = vpow.pop %v6387
        %v6389 = vmul.f32 %v5962, 1.442695
        %v6390 = vpow.pop %v6389
        %v6391 = vmul.f32 %v5963, 1.442695
        %v6392 = vpow.pop %v6391
        %v6393 = vmul.f32 %v5964, 1.442695
        %v6394 = vpow.pop %v6393
        %v6395 = vmul.f32 %v5965, 1.442695
        %v6396 = vpow.pop %v6395
        %v6397 = vmul.f32 %v5966, 1.442695
        %v6398 = vpow.pop %v6397
        %v6399 = vmul.f32 %v5967, 1.442695
        %v6400 = vpow.pop %v6399
        %v6401 = vmul.f32 %v5968, 1.442695
        %v6402 = vpow.pop %v6401
        %v6403 = vmul.f32 %v5969, 1.442695
        %v6404 = vpow.pop %v6403
        %v6405 = vmul.f32 %v5970, 1.442695
        %v6406 = vpow.pop %v6405
        %v6407 = vmul.f32 %v5971, 1.442695
        %v6408 = vpow.pop %v6407
        %v6409 = vmul.f32 %v5972, 1.442695
        %v6410 = vpow.pop %v6409
        %v6411 = vmul.f32 %v5973, 1.442695
        %v6412 = vpow.pop %v6411
        %v6413 = vmul.f32 %v5974, 1.442695
        %v6414 = vpow.pop %v6413
        %v6415 = vmul.f32 %v5975, 1.442695
        %v6416 = vpow.pop %v6415
        %v6417 = vmul.f32 %v5976, 1.442695
        %v6418 = vpow.pop %v6417
        %v6419 = vmul.f32 %v5977, 1.442695
        %v6420 = vpow.pop %v6419
        %v6421 = vmul.f32 %v5978, 1.442695
        %v6422 = vpow.pop %v6421
        %v6423 = vmul.f32 %v5979, 1.442695
        %v6424 = vpow.pop %v6423
        %v6425 = vmul.f32 %v5980, 1.442695
        %v6426 = vpow.pop %v6425
        %v6427 = vmul.f32 %v5981, 1.442695
        %v6428 = vpow.pop %v6427
        %v6429 = vmul.f32 %v5982, 1.442695
        %v6430 = vpow.pop %v6429
        %v6431 = vmul.f32 %v5983, 1.442695
        %v6432 = vpow.pop %v6431
        %v6433 = vmul.f32 %v5984, 1.442695
        %v6434 = vpow.pop %v6433
        %v6435 = vmul.f32 %v5985, 1.442695
        %v6436 = vpow.pop %v6435
        %v6437 = vmul.f32 %v5986, 1.442695
        %v6438 = vpow.pop %v6437
        %v6439 = vmul.f32 %v5987, 1.442695
        %v6440 = vpow.pop %v6439
        %v6441 = vmul.f32 %v5988, 1.442695
        %v6442 = vpow.pop %v6441
        %v6443 = vmul.f32 %v5989, 1.442695
        %v6444 = vpow.pop %v6443
        %v6445 = vmul.f32 %v5990, 1.442695
        %v6446 = vpow.pop %v6445
        %v6447 = vmul.f32 %v5991, 1.442695
        %v6448 = vpow.pop %v6447
        %v6449 = vmul.f32 %v5992, 1.442695
        %v6450 = vpow.pop %v6449
        %v6451 = vmul.f32 %v5993, 1.442695
        %v6452 = vpow.pop %v6451
        %v6453 = vmul.f32 %v5994, 1.442695
        %v6454 = vpow.pop %v6453
        %v6455 = vmul.f32 %v5995, 1.442695
        %v6456 = vpow.pop %v6455
        %v6457 = vmul.f32 %v5996, 1.442695
        %v6458 = vpow.pop %v6457
        %v6459 = vmul.f32 %v5997, 1.442695
        %v6460 = vpow.pop %v6459
        %v6461 = vmul.f32 %v5998, 1.442695
        %v6462 = vpow.pop %v6461
        %v6463 = vmul.f32 %v5999, 1.442695
        %v6464 = vpow.pop %v6463
        %v6465 = vmul.f32 %v6000, 1.442695
        %v6466 = vpow.pop %v6465
        %v6467 = vmul.f32 %v6001, 1.442695
        %v6468 = vpow.pop %v6467
        %v6469 = vmul.f32 %v6002, 1.442695
        %v6470 = vpow.pop %v6469
        %v6471 = vmul.f32 %v6003, 1.442695
        %v6472 = vpow.pop %v6471
        %v6473 = vmul.f32 %v6004, 1.442695
        %v6474 = vpow.pop %v6473
        %v6475 = vmul.f32 %v6005, 1.442695
        %v6476 = vpow.pop %v6475
        %v6477 = vmul.f32 %v6006, 1.442695
        %v6478 = vpow.pop %v6477
        %v6479 = vmul.f32 %v6007, 1.442695
        %v6480 = vpow.pop %v6479
        %v6481 = vmul.f32 %v6008, 1.442695
        %v6482 = vpow.pop %v6481
        %v6483 = vmul.f32 %v6009, 1.442695
        %v6484 = vpow.pop %v6483
        %v6485 = vmul.f32 %v6010, 1.442695
        %v6486 = vpow.pop %v6485
        %v6487 = vmul.f32 %v6011, 1.442695
        %v6488 = vpow.pop %v6487
        %v6489 = vmul.f32 %v6012, 1.442695
        %v6490 = vpow.pop %v6489
        %v6491 = vmul.f32 %v6013, 1.442695
        %v6492 = vpow.pop %v6491
        %v6493 = vmul.f32 %v6014, 1.442695
        %v6494 = vpow.pop %v6493
        %v6495 = vmul.f32 %v6015, 1.442695
        %v6496 = vpow.pop %v6495
        %v6497 = vmul.f32 %v6016, 1.442695
        %v6498 = vpow.pop %v6497
        %v6499 = vmul.f32 %v6017, 1.442695
        %v6500 = vpow.pop %v6499
        %v6501 = vmul.f32 %v6018, 1.442695
        %v6502 = vpow.pop %v6501
        %v6503 = vmul.f32 %v6019, 1.442695
        %v6504 = vpow.pop %v6503
        %v6505 = vmul.f32 %v6020, 1.442695
        %v6506 = vpow.pop %v6505
        %v6507 = vmul.f32 %v6021, 1.442695
        %v6508 = vpow.pop %v6507
        %v6509 = vmul.f32 %v6022, 1.442695
        %v6510 = vpow.pop %v6509
        %v6511 = vmul.f32 %v6023, 1.442695
        %v6512 = vpow.pop %v6511
        %v6513 = vmul.f32 %v6024, 1.442695
        %v6514 = vpow.pop %v6513
        %v6515 = vmul.f32 %v6025, 1.442695
        %v6516 = vpow.pop %v6515
        %v6517 = vmul.f32 %v6026, 1.442695
        %v6518 = vpow.pop %v6517
        %v6519 = vmul.f32 %v6027, 1.442695
        %v6520 = vpow.pop %v6519
        %v6521 = vmul.f32 %v6028, 1.442695
        %v6522 = vpow.pop %v6521
        %v6523 = vmul.f32 %v6029, 1.442695
        %v6524 = vpow.pop %v6523
        %v6525 = vmul.f32 %v6030, 1.442695
        %v6526 = vpow.pop %v6525
        %v6527 = vmul.f32 %v6031, 1.442695
        %v6528 = vpow.pop %v6527
        %v6529 = vmul.f32 %v6032, 1.442695
        %v6530 = vpow.pop %v6529
        %v6531 = vmul.f32 %v6033, 1.442695
        %v6532 = vpow.pop %v6531
        %v6533 = vmul.f32 %v6034, 1.442695
        %v6534 = vpow.pop %v6533
        %v6535 = vmul.f32 %v6035, 1.442695
        %v6536 = vpow.pop %v6535
        %v6537 = vmul.f32 %v6036, 1.442695
        %v6538 = vpow.pop %v6537
        %v6539 = vmul.f32 %v6037, 1.442695
        %v6540 = vpow.pop %v6539
        %v6541 = vmul.f32 %v6038, 1.442695
        %v6542 = vpow.pop %v6541
        %v6543 = vmul.f32 %v6039, 1.442695
        %v6544 = vpow.pop %v6543
        %v6545 = vmul.f32 %v6040, 1.442695
        %v6546 = vpow.pop %v6545
        %v6547 = vmul.f32 %v6041, 1.442695
        %v6548 = vpow.pop %v6547
        %v6549 = vmul.f32 %v6042, 1.442695
        %v6550 = vpow.pop %v6549
        %v6551 = vmul.f32 %v6043, 1.442695
        %v6552 = vpow.pop %v6551
        %v6553 = vmul.f32 %v6044, 1.442695
        %v6554 = vpow.pop %v6553
        %v6555 = vmul.f32 %v6045, 1.442695
        %v6556 = vpow.pop %v6555
        %v6557 = vmul.f32 %v6046, 1.442695
        %v6558 = vpow.pop %v6557
        %v6559 = vmul.f32 %v6047, 1.442695
        %v6560 = vpow.pop %v6559
        %v6561 = vmul.f32 %v6048, 1.442695
        %v6562 = vpow.pop %v6561
        %v6563 = vmul.f32 %v6049, 1.442695
        %v6564 = vpow.pop %v6563
        %v6565 = vmul.f32 %v6050, 1.442695
        %v6566 = vpow.pop %v6565
        %v6567 = vmul.f32 %v6051, 1.442695
        %v6568 = vpow.pop %v6567
        %v6569 = vmul.f32 %v6052, 1.442695
        %v6570 = vpow.pop %v6569
        %v6571 = vmul.f32 %v6053, 1.442695
        %v6572 = vpow.pop %v6571
        %v6573 = vmul.f32 %v6054, 1.442695
        %v6574 = vpow.pop %v6573
        %v6575 = vmul.f32 %v6055, 1.442695
        %v6576 = vpow.pop %v6575
        %v6577 = vmul.f32 %v6056, 1.442695
        %v6578 = vpow.pop %v6577
        %v6579 = vmul.f32 %v6057, 1.442695
        %v6580 = vpow.pop %v6579
        %v6581 = vmul.f32 %v6058, 1.442695
        %v6582 = vpow.pop %v6581
        %v6583 = vmul.f32 %v6059, 1.442695
        %v6584 = vpow.pop %v6583
        %v6585 = vmul.f32 %v6060, 1.442695
        %v6586 = vpow.pop %v6585
        %v6587 = vmul.f32 %v6061, 1.442695
        %v6588 = vpow.pop %v6587
        %v6589 = vmul.f32 %v6062, 1.442695
        %v6590 = vpow.pop %v6589
        %v6591 = vmul.f32 %v6063, 1.442695
        %v6592 = vpow.pop %v6591
        %v6593 = vmul.f32 %v6064, 1.442695
        %v6594 = vpow.pop %v6593
        %v6595 = vmul.f32 %v6065, 1.442695
        %v6596 = vpow.pop %v6595
        %v6597 = vmul.f32 %v6066, 1.442695
        %v6598 = vpow.pop %v6597
        %v6599 = vmul.f32 %v6067, 1.442695
        %v6600 = vpow.pop %v6599
        %v6601 = vmul.f32 %v6068, 1.442695
        %v6602 = vpow.pop %v6601
        %v6603 = vmul.f32 %v6069, 1.442695
        %v6604 = vpow.pop %v6603
        %v6605 = vmul.f32 %v6070, 1.442695
        %v6606 = vpow.pop %v6605
        %v6607 = vmul.f32 %v6071, 1.442695
        %v6608 = vpow.pop %v6607
        %v6609 = vmul.f32 %v6072, 1.442695
        %v6610 = vpow.pop %v6609
        %v6611 = vmul.f32 %v6073, 1.442695
        %v6612 = vpow.pop %v6611
        %v6613 = vmul.f32 %v6074, 1.442695
        %v6614 = vpow.pop %v6613
        %v6615 = vmul.f32 %v6075, 1.442695
        %v6616 = vpow.pop %v6615
        %v6617 = vmul.f32 %v6076, 1.442695
        %v6618 = vpow.pop %v6617
        %v6619 = vmul.f32 %v6077, 1.442695
        %v6620 = vpow.pop %v6619
        %v6621 = vmul.f32 %v6078, 1.442695
        %v6622 = vpow.pop %v6621
        %v6623 = vmul.f32 %v6079, 1.442695
        %v6624 = vpow.pop %v6623
        %v6625 = vmul.f32 %v6080, 1.442695
        %v6626 = vpow.pop %v6625
        %v6627 = vmul.f32 %v6081, 1.442695
        %v6628 = vpow.pop %v6627
        %v6629 = vmul.f32 %v6082, 1.442695
        %v6630 = vpow.pop %v6629
        %v6631 = vmul.f32 %v6083, 1.442695
        %v6632 = vpow.pop %v6631
        %v6633 = vmul.f32 %v6084, 1.442695
        %v6634 = vpow.pop %v6633
        %v6635 = vmul.f32 %v6085, 1.442695
        %v6636 = vpow.pop %v6635
        %v6637 = vmul.f32 %v6086, 1.442695
        %v6638 = vpow.pop %v6637
        %v6639 = vmul.f32 %v6087, 1.442695
        %v6640 = vpow.pop %v6639
        %v6641 = vmul.f32 %v6088, 1.442695
        %v6642 = vpow.pop %v6641
        %v6643 = vmul.f32 %v6089, 1.442695
        %v6644 = vpow.pop %v6643
        %v6645 = vmul.f32 %v6090, 1.442695
        %v6646 = vpow.pop %v6645
        %v6647 = vmul.f32 %v6091, 1.442695
        %v6648 = vpow.pop %v6647
        %v6649 = vmul.f32 %v6092, 1.442695
        %v6650 = vpow.pop %v6649
        %v6651 = vmul.f32 %v6093, 1.442695
        %v6652 = vpow.pop %v6651
        %v6653 = vmul.f32 %v6094, 1.442695
        %v6654 = vpow.pop %v6653
        %v6655 = vmul.f32 %v6095, 1.442695
        %v6656 = vpow.pop %v6655
        %v6657 = vmul.f32 %v6096, 1.442695
        %v6658 = vpow.pop %v6657
        %v6659 = vmul.f32 %v6097, 1.442695
        %v6660 = vpow.pop %v6659
        %v6661 = vmul.f32 %v6098, 1.442695
        %v6662 = vpow.pop %v6661
        %v6663 = vmul.f32 %v6099, 1.442695
        %v6664 = vpow.pop %v6663
        %v6665 = vmul.f32 %v6100, 1.442695
        %v6666 = vpow.pop %v6665
        %v6667 = vmul.f32 %v6101, 1.442695
        %v6668 = vpow.pop %v6667
        %v6669 = vmul.f32 %v6102, 1.442695
        %v6670 = vpow.pop %v6669
        %v6671 = vmul.f32 %v6103, 1.442695
        %v6672 = vpow.pop %v6671
        %v6673 = vmul.f32 %v6104, 1.442695
        %v6674 = vpow.pop %v6673
        %v6675 = vmul.f32 %v6105, 1.442695
        %v6676 = vpow.pop %v6675
        %v6677 = vmul.f32 %v6106, 1.442695
        %v6678 = vpow.pop %v6677
        %v6679 = vmul.f32 %v6107, 1.442695
        %v6680 = vpow.pop %v6679
        %v6681 = vmul.f32 %v6108, 1.442695
        %v6682 = vpow.pop %v6681
        %v6683 = vmul.f32 %v6109, 1.442695
        %v6684 = vpow.pop %v6683
        %v6685 = vmul.f32 %v6110, 1.442695
        %v6686 = vpow.pop %v6685
        %v6687 = vmul.f32 %v6111, 1.442695
        %v6688 = vpow.pop %v6687
        %v6689 = vmul.f32 %v6112, 1.442695
        %v6690 = vpow.pop %v6689
        %v6691 = vmul.f32 %v6113, 1.442695
        %v6692 = vpow.pop %v6691
        %v6693 = vmul.f32 %v6114, 1.442695
        %v6694 = vpow.pop %v6693
        %v6695 = vmul.f32 %v6115, 1.442695
        %v6696 = vpow.pop %v6695
        %v6697 = vmul.f32 %v6116, 1.442695
        %v6698 = vpow.pop %v6697
        %v6699 = vmul.f32 %v6117, 1.442695
        %v6700 = vpow.pop %v6699
        %v6701 = vmul.f32 %v6118, 1.442695
        %v6702 = vpow.pop %v6701
        %v6703 = vmul.f32 %v6119, 1.442695
        %v6704 = vpow.pop %v6703
        %v6705 = vmul.f32 %v6120, 1.442695
        %v6706 = vpow.pop %v6705
        %v6707 = vmul.f32 %v6121, 1.442695
        %v6708 = vpow.pop %v6707
        %v6709 = vmul.f32 %v6122, 1.442695
        %v6710 = vpow.pop %v6709
        %v6711 = vmul.f32 %v6123, 1.442695
        %v6712 = vpow.pop %v6711
        %v6713 = vmul.f32 %v6124, 1.442695
        %v6714 = vpow.pop %v6713
        %v6715 = vmul.f32 %v6125, 1.442695
        %v6716 = vpow.pop %v6715
        %v6717 = vmul.f32 %v6126, 1.442695
        %v6718 = vpow.pop %v6717
        %v6719 = vmul.f32 %v6127, 1.442695
        %v6720 = vpow.pop %v6719
        %v6721 = vmul.f32 %v6128, 1.442695
        %v6722 = vpow.pop %v6721
        %v6723 = vmul.f32 %v6129, 1.442695
        %v6724 = vpow.pop %v6723
        %v6725 = vmul.f32 %v6130, 1.442695
        %v6726 = vpow.pop %v6725
        %v6727 = vmul.f32 %v6131, 1.442695
        %v6728 = vpow.pop %v6727
        %v6729 = vmul.f32 %v6132, 1.442695
        %v6730 = vpow.pop %v6729
        %v6731 = vmul.f32 %v6133, 1.442695
        %v6732 = vpow.pop %v6731
        %v6733 = vmul.f32 %v6134, 1.442695
        %v6734 = vpow.pop %v6733
        %v6735 = vmul.f32 %v6135, 1.442695
        %v6736 = vpow.pop %v6735
        %v6737 = vmul.f32 %v6136, 1.442695
        %v6738 = vpow.pop %v6737
        %v6739 = vmul.f32 %v6137, 1.442695
        %v6740 = vpow.pop %v6739
        %v6741 = vmul.f32 %v6138, 1.442695
        %v6742 = vpow.pop %v6741
        %v6743 = vmul.f32 %v6139, 1.442695
        %v6744 = vpow.pop %v6743
        %v6745 = vmul.f32 %v6140, 1.442695
        %v6746 = vpow.pop %v6745
        %v6747 = vmul.f32 %v6141, 1.442695
        %v6748 = vpow.pop %v6747
        %v6749 = vmul.f32 %v6142, 1.442695
        %v6750 = vpow.pop %v6749
        %v6751 = vmul.f32 %v6143, 1.442695
        %v6752 = vpow.pop %v6751
        %v6753 = vmul.f32 %v6144, 1.442695
        %v6754 = vpow.pop %v6753
        %v6755 = vmul.f32 %v6145, 1.442695
        %v6756 = vpow.pop %v6755
        %v6757 = vmul.f32 %v6146, 1.442695
        %v6758 = vpow.pop %v6757
        %v6759 = vmul.f32 %v6147, 1.442695
        %v6760 = vpow.pop %v6759
        %v6761 = vmul.f32 %v6148, 1.442695
        %v6762 = vpow.pop %v6761
        %v6763 = vmul.f32 %v6149, 1.442695
        %v6764 = vpow.pop %v6763
        %v6765 = vmul.f32 %v6150, 1.442695
        %v6766 = vpow.pop %v6765
        %v6767 = vmul.f32 %v6151, 1.442695
        %v6768 = vpow.pop %v6767
        %v6769 = vmul.f32 %v6152, 1.442695
        %v6770 = vpow.pop %v6769
        %v6771 = vmul.f32 %v6153, 1.442695
        %v6772 = vpow.pop %v6771
        %v6773 = vmul.f32 %v6154, 1.442695
        %v6774 = vpow.pop %v6773
        %v6775 = vmul.f32 %v6155, 1.442695
        %v6776 = vpow.pop %v6775
        %v6777 = vmul.f32 %v6156, 1.442695
        %v6778 = vpow.pop %v6777
        %v6779 = vmul.f32 %v6157, 1.442695
        %v6780 = vpow.pop %v6779
        %v6781 = vmul.f32 %v6158, 1.442695
        %v6782 = vpow.pop %v6781
        %v6783 = vmul.f32 %v6159, 1.442695
        %v6784 = vpow.pop %v6783
        %v6785 = vmul.f32 %v6160, 1.442695
        %v6786 = vpow.pop %v6785
        %v6787 = vmul.f32 %v6161, 1.442695
        %v6788 = vpow.pop %v6787
        %v6789 = vmul.f32 %v6162, 1.442695
        %v6790 = vpow.pop %v6789
        %v6791 = vmul.f32 %v6163, 1.442695
        %v6792 = vpow.pop %v6791
        %v6793 = vmul.f32 %v6164, 1.442695
        %v6794 = vpow.pop %v6793
        %v6795 = vmul.f32 %v6165, 1.442695
        %v6796 = vpow.pop %v6795
        %v6797 = vmul.f32 %v6166, 1.442695
        %v6798 = vpow.pop %v6797
        %v6799 = vmul.f32 %v6167, 1.442695
        %v6800 = vpow.pop %v6799
        %v6801 = vmul.f32 %v6168, 1.442695
        %v6802 = vpow.pop %v6801
        %v6803 = vmul.f32 %v6169, 1.442695
        %v6804 = vpow.pop %v6803
        %v6805 = vmul.f32 %v6170, 1.442695
        %v6806 = vpow.pop %v6805
        %v6807 = vmul.f32 %v6171, 1.442695
        %v6808 = vpow.pop %v6807
        %v6809 = vmul.f32 %v6172, 1.442695
        %v6810 = vpow.pop %v6809
        %v6811 = vmul.f32 %v6173, 1.442695
        %v6812 = vpow.pop %v6811
        %v6813 = vmul.f32 %v6174, 1.442695
        %v6814 = vpow.pop %v6813
        %v6815 = vmul.f32 %v6175, 1.442695
        %v6816 = vpow.pop %v6815
        %v6817 = vmul.f32 %v6176, 1.442695
        %v6818 = vpow.pop %v6817
        %v6819 = vmul.f32 %v6177, 1.442695
        %v6820 = vpow.pop %v6819
        %v6821 = vmul.f32 %v6178, 1.442695
        %v6822 = vpow.pop %v6821
        %v6823 = vmul.f32 %v6179, 1.442695
        %v6824 = vpow.pop %v6823
        %v6825 = vmul.f32 %v6180, 1.442695
        %v6826 = vpow.pop %v6825
        %v6827 = vmul.f32 %v6181, 1.442695
        %v6828 = vpow.pop %v6827
        %v6829 = vmul.f32 %v6182, 1.442695
        %v6830 = vpow.pop %v6829
        %v6831 = vmul.f32 %v6183, 1.442695
        %v6832 = vpow.pop %v6831
        %v6833 = vmul.f32 %v6184, 1.442695
        %v6834 = vpow.pop %v6833
        %v6835 = vmul.f32 %v6185, 1.442695
        %v6836 = vpow.pop %v6835
        %v6837 = vmul.f32 %v6186, 1.442695
        %v6838 = vpow.pop %v6837
        %v6839 = vmul.f32 %v6187, 1.442695
        %v6840 = vpow.pop %v6839
        %v6841 = vmul.f32 %v6188, 1.442695
        %v6842 = vpow.pop %v6841
        %v6843 = vmul.f32 %v6189, 1.442695
        %v6844 = vpow.pop %v6843
        %v6845 = vmul.f32 %v6190, 1.442695
        %v6846 = vpow.pop %v6845
        %v6847 = vmul.f32 %v6191, 1.442695
        %v6848 = vpow.pop %v6847
        %v6849 = vmul.f32 %v6192, 1.442695
        %v6850 = vpow.pop %v6849
        %v6851 = vmul.f32 %v6193, 1.442695
        %v6852 = vpow.pop %v6851
        %v6853 = vmul.f32 %v6194, 1.442695
        %v6854 = vpow.pop %v6853
        %v6855 = vmul.f32 %v6195, 1.442695
        %v6856 = vpow.pop %v6855
        %v6857 = vmul.f32 %v6196, 1.442695
        %v6858 = vpow.pop %v6857
        %v6859 = vmul.f32 %v6197, 1.442695
        %v6860 = vpow.pop %v6859
        %v6861 = vmul.f32 %v6198, 1.442695
        %v6862 = vpow.pop %v6861
        %v6863 = vmul.f32 %v6199, 1.442695
        %v6864 = vpow.pop %v6863
        %v6865 = vmul.f32 %v6200, 1.442695
        %v6866 = vpow.pop %v6865
        %v6867 = vmul.f32 %v6201, 1.442695
        %v6868 = vpow.pop %v6867
        %v6869 = vmul.f32 %v6202, 1.442695
        %v6870 = vpow.pop %v6869
        %v6871 = vmul.f32 %v6203, 1.442695
        %v6872 = vpow.pop %v6871
        %v6873 = vmul.f32 %v6204, 1.442695
        %v6874 = vpow.pop %v6873
        %v6875 = vmul.f32 %v6205, 1.442695
        %v6876 = vpow.pop %v6875
        %v6877 = vmul.f32 %v6206, 1.442695
        %v6878 = vpow.pop %v6877
        %v6879 = vmul.f32 %v6207, 1.442695
        %v6880 = vpow.pop %v6879
        %v6881 = vmul.f32 %v6208, 1.442695
        %v6882 = vpow.pop %v6881
        %v6883 = vmul.f32 %v6209, 1.442695
        %v6884 = vpow.pop %v6883
        %v6885 = vmul.f32 %v6210, 1.442695
        %v6886 = vpow.pop %v6885
        %v6887 = vmul.f32 %v6211, 1.442695
        %v6888 = vpow.pop %v6887
        %v6889 = vmul.f32 %v6212, 1.442695
        %v6890 = vpow.pop %v6889
        %v6891 = vmul.f32 %v6213, 1.442695
        %v6892 = vpow.pop %v6891
        %v6893 = vmul.f32 %v6214, 1.442695
        %v6894 = vpow.pop %v6893
        %v6895 = vmul.f32 %v6215, 1.442695
        %v6896 = vpow.pop %v6895
        %v6897 = vmul.f32 %v6216, 1.442695
        %v6898 = vpow.pop %v6897
        %v6899 = vmul.f32 %v6217, 1.442695
        %v6900 = vpow.pop %v6899
        %v6901 = vmul.f32 %v6218, 1.442695
        %v6902 = vpow.pop %v6901
        %v6903 = vmul.f32 %v6219, 1.442695
        %v6904 = vpow.pop %v6903
        %v6905 = vmul.f32 %v6220, 1.442695
        %v6906 = vpow.pop %v6905
        %v6907 = vmul.f32 %v6221, 1.442695
        %v6908 = vpow.pop %v6907
        %v6909 = vmul.f32 %v6222, 1.442695
        %v6910 = vpow.pop %v6909
        %v6911 = vmul.f32 %v6223, 1.442695
        %v6912 = vpow.pop %v6911
        %v6913 = vmul.f32 %v6224, 1.442695
        %v6914 = vpow.pop %v6913
        %v6915 = vmul.f32 %v6225, 1.442695
        %v6916 = vpow.pop %v6915
        %v6917 = vmul.f32 %v6226, 1.442695
        %v6918 = vpow.pop %v6917
        %v6919 = vmul.f32 %v6227, 1.442695
        %v6920 = vpow.pop %v6919
        %v6921 = vmul.f32 %v6228, 1.442695
        %v6922 = vpow.pop %v6921
        %v6923 = vmul.f32 %v6229, 1.442695
        %v6924 = vpow.pop %v6923
        %v6925 = vmul.f32 %v6230, 1.442695
        %v6926 = vpow.pop %v6925
        %v6927 = vmul.f32 %v6231, 1.442695
        %v6928 = vpow.pop %v6927
        %v6929 = vmul.f32 %v6232, 1.442695
        %v6930 = vpow.pop %v6929
        %v6931 = vmul.f32 %v6233, 1.442695
        %v6932 = vpow.pop %v6931
        %v6933 = vmul.f32 %v6234, 1.442695
        %v6934 = vpow.pop %v6933
        %v6935 = vmul.f32 %v6235, 1.442695
        %v6936 = vpow.pop %v6935
        %v6937 = vmul.f32 %v6236, 1.442695
        %v6938 = vpow.pop %v6937
        %v6939 = vmul.f32 %v6237, 1.442695
        %v6940 = vpow.pop %v6939
        %v6941 = vmul.f32 %v6238, 1.442695
        %v6942 = vpow.pop %v6941
        %v6943 = vmul.f32 %v6239, 1.442695
        %v6944 = vpow.pop %v6943
        %v6945 = vmul.f32 %v6240, 1.442695
        %v6946 = vpow.pop %v6945
        %v6947 = vmul.f32 %v6241, 1.442695
        %v6948 = vpow.pop %v6947
        %v6949 = vmul.f32 %v6242, 1.442695
        %v6950 = vpow.pop %v6949
        %v6951 = vmul.f32 %v6243, 1.442695
        %v6952 = vpow.pop %v6951
        %v6953 = vmul.f32 %v6244, 1.442695
        %v6954 = vpow.pop %v6953
        %v6955 = vmul.f32 %v6245, 1.442695
        %v6956 = vpow.pop %v6955
        %v6957 = vmul.f32 %v6246, 1.442695
        %v6958 = vpow.pop %v6957
        %v6959 = vmul.f32 %v6247, 1.442695
        %v6960 = vpow.pop %v6959
        %v6961 = vmul.f32 %v6248, 1.442695
        %v6962 = vpow.pop %v6961
        %v6963 = vmul.f32 %v6249, 1.442695
        %v6964 = vpow.pop %v6963
        %v6965 = vmul.f32 %v6250, 1.442695
        %v6966 = vpow.pop %v6965
        %v6967 = vmul.f32 %v6251, 1.442695
        %v6968 = vpow.pop %v6967
        %v6969 = vmul.f32 %v6252, 1.442695
        %v6970 = vpow.pop %v6969
        %v6971 = vmul.f32 %v6253, 1.442695
        %v6972 = vpow.pop %v6971
        %v6973 = vmul.f32 %v6254, 1.442695
        %v6974 = vpow.pop %v6973
        %v6975 = vmul.f32 %v6255, 1.442695
        %v6976 = vpow.pop %v6975
        %v6977 = vmul.f32 %v6256, 1.442695
        %v6978 = vpow.pop %v6977
        %v6979 = vmul.f32 %v6257, 1.442695
        %v6980 = vpow.pop %v6979
        %v6981 = vmul.f32 %v6258, 1.442695
        %v6982 = vpow.pop %v6981
        %v6983 = vmul.f32 %v6259, 1.442695
        %v6984 = vpow.pop %v6983
        %v6985 = vmul.f32 %v6260, 1.442695
        %v6986 = vpow.pop %v6985
        %v6987 = vmul.f32 %v6261, 1.442695
        %v6988 = vpow.pop %v6987
        %v6989 = vmul.f32 %v6262, 1.442695
        %v6990 = vpow.pop %v6989
        %v6991 = vmul.f32 %v6263, 1.442695
        %v6992 = vpow.pop %v6991
        %v6993 = vmul.f32 %v6264, 1.442695
        %v6994 = vpow.pop %v6993
        %v6995 = vmul.f32 %v6265, 1.442695
        %v6996 = vpow.pop %v6995
        %v6997 = vmul.f32 %v6266, 1.442695
        %v6998 = vpow.pop %v6997
        %v6999 = vmul.f32 %v6267, 1.442695
        %v7000 = vpow.pop %v6999
        %v7001 = vmul.f32 %v6268, 1.442695
        %v7002 = vpow.pop %v7001
        %v7003 = vmul.f32 %v6269, 1.442695
        %v7004 = vpow.pop %v7003
        %v7005 = vmul.f32 %v6270, 1.442695
        %v7006 = vpow.pop %v7005
        %v7007 = vmul.f32 %v6271, 1.442695
        %v7008 = vpow.pop %v7007
        %v7009 = vmul.f32 %v6272, 1.442695
        %v7010 = vpow.pop %v7009
        %v7011 = vmul.f32 %v6273, 1.442695
        %v7012 = vpow.pop %v7011
        %v7013 = vmul.f32 %v6274, 1.442695
        %v7014 = vpow.pop %v7013
        %v7015 = vmul.f32 %v6275, 1.442695
        %v7016 = vpow.pop %v7015
        %v7017 = vmul.f32 %v6276, 1.442695
        %v7018 = vpow.pop %v7017
        %v7019 = vmul.f32 %v6277, 1.442695
        %v7020 = vpow.pop %v7019
        %v7021 = vmul.f32 %v6278, 1.442695
        %v7022 = vpow.pop %v7021
        %v7023 = vmul.f32 %v6279, 1.442695
        %v7024 = vpow.pop %v7023
        %v7025 = vmul.f32 %v6280, 1.442695
        %v7026 = vpow.pop %v7025
        %v7027 = vmul.f32 %v6281, 1.442695
        %v7028 = vpow.pop %v7027
        %v7029 = vmul.f32 %v6282, 1.442695
        %v7030 = vpow.pop %v7029
        %v7031 = vmul.f32 %v6283, 1.442695
        %v7032 = vpow.pop %v7031
        %v7033 = vmul.f32 %v6284, 1.442695
        %v7034 = vpow.pop %v7033
        %v7035 = vmul.f32 %v6285, 1.442695
        %v7036 = vpow.pop %v7035
        %v7037 = vmul.f32 %v6286, 1.442695
        %v7038 = vpow.pop %v7037
        %v7039 = vmul.f32 %v6287, 1.442695
        %v7040 = vpow.pop %v7039
        %v7041 = vmul.f32 %v6288, 1.442695
        %v7042 = vpow.pop %v7041
        %v7043 = vmul.f32 %v6289, 1.442695
        %v7044 = vpow.pop %v7043
        %v7045 = vmul.f32 %v6290, 1.442695
        %v7046 = vpow.pop %v7045
        %v7047 = vmul.f32 %v6291, 1.442695
        %v7048 = vpow.pop %v7047
        %v7049 = vmul.f32 %v6292, 1.442695
        %v7050 = vpow.pop %v7049
        %v7051 = vmul.f32 %v6293, 1.442695
        %v7052 = vpow.pop %v7051
        %v7053 = vmul.f32 %v6294, 1.442695
        %v7054 = vpow.pop %v7053
        %v7055 = vmul.f32 %v6295, 1.442695
        %v7056 = vpow.pop %v7055
        %v7057 = vmul.f32 %v6296, 1.442695
        %v7058 = vpow.pop %v7057
        %v7059 = vmul.f32 %v6297, 1.442695
        %v7060 = vpow.pop %v7059
        %v7061 = vmul.f32 %v6298, 1.442695
        %v7062 = vpow.pop %v7061
        %v7063 = vmul.f32 %v6299, 1.442695
        %v7064 = vpow.pop %v7063
        %v7065 = vmul.f32 %v6300, 1.442695
        %v7066 = vpow.pop %v7065
        %v7067 = vmul.f32 %v6301, 1.442695
        %v7068 = vpow.pop %v7067
        %v7069 = vmul.f32 %v6302, 1.442695
        %v7070 = vpow.pop %v7069
        %v7071 = vmul.f32 %v6303, 1.442695
        %v7072 = vpow.pop %v7071
        %v7073 = vmul.f32 %v6304, 1.442695
        %v7074 = vpow.pop %v7073
        %v7075 = vmul.f32 %v6305, 1.442695
        %v7076 = vpow.pop %v7075
        %v7077 = vmul.f32 %v6306, 1.442695
        %v7078 = vpow.pop %v7077
        %v7079 = vmul.f32 %v6307, 1.442695
        %v7080 = vpow.pop %v7079
        %v7081 = vmul.f32 %v6308, 1.442695
        %v7082 = vpow.pop %v7081
        %v7083 = vmul.f32 %v6309, 1.442695
        %v7084 = vpow.pop %v7083
        %v7085 = vmul.f32 %v6310, 1.442695
        %v7086 = vpow.pop %v7085
        %v7087 = vmul.f32 %v6311, 1.442695
        %v7088 = vpow.pop %v7087
        %v7089 = vmul.f32 %v6312, 1.442695
        %v7090 = vpow.pop %v7089
        %v7091 = vmul.f32 %v6313, 1.442695
        %v7092 = vpow.pop %v7091
        %v7093 = vmul.f32 %v6314, 1.442695
        %v7094 = vpow.pop %v7093
        %v7095 = vmul.f32 %v6315, 1.442695
        %v7096 = vpow.pop %v7095
        %v7097 = vmul.f32 %v6316, 1.442695
        %v7098 = vpow.pop %v7097
        %v7099 = vmul.f32 %v6317, 1.442695
        %v7100 = vpow.pop %v7099
        %v7101 = vmul.f32 %v6318, 1.442695
        %v7102 = vpow.pop %v7101
        %v7103 = vmul.f32 %v6319, 1.442695
        %v7104 = vpow.pop %v7103
        %v7105 = vmul.f32 %v6320, 1.442695
        %v7106 = vpow.pop %v7105
        %v7107 = vmul.f32 %v6321, 1.442695
        %v7108 = vpow.pop %v7107
        %v7109 = vmul.f32 %v6322, 1.442695
        %v7110 = vpow.pop %v7109
        %v7111 = vmul.f32 %v6323, 1.442695
        %v7112 = vpow.pop %v7111
        %v7113 = vmul.f32 %v6324, 1.442695
        %v7114 = vpow.pop %v7113
        %v7115 = vmul.f32 %v6325, 1.442695
        %v7116 = vpow.pop %v7115
        %v7117 = vmul.f32 %v6326, 1.442695
        %v7118 = vpow.pop %v7117
        %v7119 = vmul.f32 %v6327, 1.442695
        %v7120 = vpow.pop %v7119
        %v7121 = vmul.f32 %v6328, 1.442695
        %v7122 = vpow.pop %v7121
        %v7123 = vmul.f32 %v6329, 1.442695
        %v7124 = vpow.pop %v7123
        %v7125 = vmul.f32 %v6330, 1.442695
        %v7126 = vpow.pop %v7125
        %v7127 = vmul.f32 %v6331, 1.442695
        %v7128 = vpow.pop %v7127
        %v7129 = vmul.f32 %v6332, 1.442695
        %v7130 = vpow.pop %v7129
        %v7131 = vmul.f32 %v6333, 1.442695
        %v7132 = vpow.pop %v7131
        %v7133 = vmul.f32 %v6334, 1.442695
        %v7134 = vpow.pop %v7133
        %v7135 = vmul.f32 %v6335, 1.442695
        %v7136 = vpow.pop %v7135
        %v7137 = vmul.f32 %v6336, 1.442695
        %v7138 = vpow.pop %v7137
        %v7139 = vmul.f32 %v6337, 1.442695
        %v7140 = vpow.pop %v7139
        %v7141 = vadd.f32 %v6342, %v6350
        %v7142 = vadd.f32 %v7141, %v6358
        %v7143 = vadd.f32 %v7142, %v6366
        %v7144 = vadd.f32 %v7143, %v6374
        %v7145 = vadd.f32 %v7144, %v6382
        %v7146 = vadd.f32 %v7145, %v6390
        %v7147 = vadd.f32 %v7146, %v6398
        %v7148 = vadd.f32 %v7147, %v6406
        %v7149 = vadd.f32 %v7148, %v6414
        %v7150 = vadd.f32 %v7149, %v6422
        %v7151 = vadd.f32 %v7150, %v6430
        %v7152 = vadd.f32 %v7151, %v6438
        %v7153 = vadd.f32 %v7152, %v6446
        %v7154 = vadd.f32 %v7153, %v6454
        %v7155 = vadd.f32 %v7154, %v6462
        %v7156 = vadd.f32 %v7155, %v6470
        %v7157 = vadd.f32 %v7156, %v6478
        %v7158 = vadd.f32 %v7157, %v6486
        %v7159 = vadd.f32 %v7158, %v6494
        %v7160 = vadd.f32 %v7159, %v6502
        %v7161 = vadd.f32 %v7160, %v6510
        %v7162 = vadd.f32 %v7161, %v6518
        %v7163 = vadd.f32 %v7162, %v6526
        %v7164 = vadd.f32 %v7163, %v6534
        %v7165 = vadd.f32 %v7164, %v6542
        %v7166 = vadd.f32 %v7165, %v6550
        %v7167 = vadd.f32 %v7166, %v6558
        %v7168 = vadd.f32 %v7167, %v6566
        %v7169 = vadd.f32 %v7168, %v6574
        %v7170 = vadd.f32 %v7169, %v6582
        %v7171 = vadd.f32 %v7170, %v6590
        %v7172 = vadd.f32 %v7171, %v6598
        %v7173 = vadd.f32 %v7172, %v6606
        %v7174 = vadd.f32 %v7173, %v6614
        %v7175 = vadd.f32 %v7174, %v6622
        %v7176 = vadd.f32 %v7175, %v6630
        %v7177 = vadd.f32 %v7176, %v6638
        %v7178 = vadd.f32 %v7177, %v6646
        %v7179 = vadd.f32 %v7178, %v6654
        %v7180 = vadd.f32 %v7179, %v6662
        %v7181 = vadd.f32 %v7180, %v6670
        %v7182 = vadd.f32 %v7181, %v6678
        %v7183 = vadd.f32 %v7182, %v6686
        %v7184 = vadd.f32 %v7183, %v6694
        %v7185 = vadd.f32 %v7184, %v6702
        %v7186 = vadd.f32 %v7185, %v6710
        %v7187 = vadd.f32 %v7186, %v6718
        %v7188 = vadd.f32 %v7187, %v6726
        %v7189 = vadd.f32 %v7188, %v6734
        %v7190 = vadd.f32 %v7189, %v6742
        %v7191 = vadd.f32 %v7190, %v6750
        %v7192 = vadd.f32 %v7191, %v6758
        %v7193 = vadd.f32 %v7192, %v6766
        %v7194 = vadd.f32 %v7193, %v6774
        %v7195 = vadd.f32 %v7194, %v6782
        %v7196 = vadd.f32 %v7195, %v6790
        %v7197 = vadd.f32 %v7196, %v6798
        %v7198 = vadd.f32 %v7197, %v6806
        %v7199 = vadd.f32 %v7198, %v6814
        %v7200 = vadd.f32 %v7199, %v6822
        %v7201 = vadd.f32 %v7200, %v6830
        %v7202 = vadd.f32 %v7201, %v6838
        %v7203 = vadd.f32 %v7202, %v6846
        %v7204 = vadd.f32 %v7203, %v6854
        %v7205 = vadd.f32 %v7204, %v6862
        %v7206 = vadd.f32 %v7205, %v6870
        %v7207 = vadd.f32 %v7206, %v6878
        %v7208 = vadd.f32 %v7207, %v6886
        %v7209 = vadd.f32 %v7208, %v6894
        %v7210 = vadd.f32 %v7209, %v6902
        %v7211 = vadd.f32 %v7210, %v6910
        %v7212 = vadd.f32 %v7211, %v6918
        %v7213 = vadd.f32 %v7212, %v6926
        %v7214 = vadd.f32 %v7213, %v6934
        %v7215 = vadd.f32 %v7214, %v6942
        %v7216 = vadd.f32 %v7215, %v6950
        %v7217 = vadd.f32 %v7216, %v6958
        %v7218 = vadd.f32 %v7217, %v6966
        %v7219 = vadd.f32 %v7218, %v6974
        %v7220 = vadd.f32 %v7219, %v6982
        %v7221 = vadd.f32 %v7220, %v6990
        %v7222 = vadd.f32 %v7221, %v6998
        %v7223 = vadd.f32 %v7222, %v7006
        %v7224 = vadd.f32 %v7223, %v7014
        %v7225 = vadd.f32 %v7224, %v7022
        %v7226 = vadd.f32 %v7225, %v7030
        %v7227 = vadd.f32 %v7226, %v7038
        %v7228 = vadd.f32 %v7227, %v7046
        %v7229 = vadd.f32 %v7228, %v7054
        %v7230 = vadd.f32 %v7229, %v7062
        %v7231 = vadd.f32 %v7230, %v7070
        %v7232 = vadd.f32 %v7231, %v7078
        %v7233 = vadd.f32 %v7232, %v7086
        %v7234 = vadd.f32 %v7233, %v7094
        %v7235 = vadd.f32 %v7234, %v7102
        %v7236 = vadd.f32 %v7235, %v7110
        %v7237 = vadd.f32 %v7236, %v7118
        %v7238 = vadd.f32 %v7237, %v7126
        %v7239 = vadd.f32 %v7238, %v7134
        %v7240 = vrot.slane %v7239, 4
        %v7241 = vadd.f32 %v7239, %v7240
        %v7242 = vrot.slane %v7241, 2
        %v7243 = vadd.f32 %v7241, %v7242
        %v7244 = vrot.slane %v7243, 1
        %v7245 = vadd.f32 %v7243, %v7244
        %v7246 = vadd.f32 %v6344, %v6352
        %v7247 = vadd.f32 %v7246, %v6360
        %v7248 = vadd.f32 %v7247, %v6368
        %v7249 = vadd.f32 %v7248, %v6376
        %v7250 = vadd.f32 %v7249, %v6384
        %v7251 = vadd.f32 %v7250, %v6392
        %v7252 = vadd.f32 %v7251, %v6400
        %v7253 = vadd.f32 %v7252, %v6408
        %v7254 = vadd.f32 %v7253, %v6416
        %v7255 = vadd.f32 %v7254, %v6424
        %v7256 = vadd.f32 %v7255, %v6432
        %v7257 = vadd.f32 %v7256, %v6440
        %v7258 = vadd.f32 %v7257, %v6448
        %v7259 = vadd.f32 %v7258, %v6456
        %v7260 = vadd.f32 %v7259, %v6464
        %v7261 = vadd.f32 %v7260, %v6472
        %v7262 = vadd.f32 %v7261, %v6480
        %v7263 = vadd.f32 %v7262, %v6488
        %v7264 = vadd.f32 %v7263, %v6496
        %v7265 = vadd.f32 %v7264, %v6504
        %v7266 = vadd.f32 %v7265, %v6512
        %v7267 = vadd.f32 %v7266, %v6520
        %v7268 = vadd.f32 %v7267, %v6528
        %v7269 = vadd.f32 %v7268, %v6536
        %v7270 = vadd.f32 %v7269, %v6544
        %v7271 = vadd.f32 %v7270, %v6552
        %v7272 = vadd.f32 %v7271, %v6560
        %v7273 = vadd.f32 %v7272, %v6568
        %v7274 = vadd.f32 %v7273, %v6576
        %v7275 = vadd.f32 %v7274, %v6584
        %v7276 = vadd.f32 %v7275, %v6592
        %v7277 = vadd.f32 %v7276, %v6600
        %v7278 = vadd.f32 %v7277, %v6608
        %v7279 = vadd.f32 %v7278, %v6616
        %v7280 = vadd.f32 %v7279, %v6624
        %v7281 = vadd.f32 %v7280, %v6632
        %v7282 = vadd.f32 %v7281, %v6640
        %v7283 = vadd.f32 %v7282, %v6648
        %v7284 = vadd.f32 %v7283, %v6656
        %v7285 = vadd.f32 %v7284, %v6664
        %v7286 = vadd.f32 %v7285, %v6672
        %v7287 = vadd.f32 %v7286, %v6680
        %v7288 = vadd.f32 %v7287, %v6688
        %v7289 = vadd.f32 %v7288, %v6696
        %v7290 = vadd.f32 %v7289, %v6704
        %v7291 = vadd.f32 %v7290, %v6712
        %v7292 = vadd.f32 %v7291, %v6720
        %v7293 = vadd.f32 %v7292, %v6728
        %v7294 = vadd.f32 %v7293, %v6736
        %v7295 = vadd.f32 %v7294, %v6744
        %v7296 = vadd.f32 %v7295, %v6752
        %v7297 = vadd.f32 %v7296, %v6760
        %v7298 = vadd.f32 %v7297, %v6768
        %v7299 = vadd.f32 %v7298, %v6776
        %v7300 = vadd.f32 %v7299, %v6784
        %v7301 = vadd.f32 %v7300, %v6792
        %v7302 = vadd.f32 %v7301, %v6800
        %v7303 = vadd.f32 %v7302, %v6808
        %v7304 = vadd.f32 %v7303, %v6816
        %v7305 = vadd.f32 %v7304, %v6824
        %v7306 = vadd.f32 %v7305, %v6832
        %v7307 = vadd.f32 %v7306, %v6840
        %v7308 = vadd.f32 %v7307, %v6848
        %v7309 = vadd.f32 %v7308, %v6856
        %v7310 = vadd.f32 %v7309, %v6864
        %v7311 = vadd.f32 %v7310, %v6872
        %v7312 = vadd.f32 %v7311, %v6880
        %v7313 = vadd.f32 %v7312, %v6888
        %v7314 = vadd.f32 %v7313, %v6896
        %v7315 = vadd.f32 %v7314, %v6904
        %v7316 = vadd.f32 %v7315, %v6912
        %v7317 = vadd.f32 %v7316, %v6920
        %v7318 = vadd.f32 %v7317, %v6928
        %v7319 = vadd.f32 %v7318, %v6936
        %v7320 = vadd.f32 %v7319, %v6944
        %v7321 = vadd.f32 %v7320, %v6952
        %v7322 = vadd.f32 %v7321, %v6960
        %v7323 = vadd.f32 %v7322, %v6968
        %v7324 = vadd.f32 %v7323, %v6976
        %v7325 = vadd.f32 %v7324, %v6984
        %v7326 = vadd.f32 %v7325, %v6992
        %v7327 = vadd.f32 %v7326, %v7000
        %v7328 = vadd.f32 %v7327, %v7008
        %v7329 = vadd.f32 %v7328, %v7016
        %v7330 = vadd.f32 %v7329, %v7024
        %v7331 = vadd.f32 %v7330, %v7032
        %v7332 = vadd.f32 %v7331, %v7040
        %v7333 = vadd.f32 %v7332, %v7048
        %v7334 = vadd.f32 %v7333, %v7056
        %v7335 = vadd.f32 %v7334, %v7064
        %v7336 = vadd.f32 %v7335, %v7072
        %v7337 = vadd.f32 %v7336, %v7080
        %v7338 = vadd.f32 %v7337, %v7088
        %v7339 = vadd.f32 %v7338, %v7096
        %v7340 = vadd.f32 %v7339, %v7104
        %v7341 = vadd.f32 %v7340, %v7112
        %v7342 = vadd.f32 %v7341, %v7120
        %v7343 = vadd.f32 %v7342, %v7128
        %v7344 = vadd.f32 %v7343, %v7136
        %v7345 = vrot.slane %v7344, 4
        %v7346 = vadd.f32 %v7344, %v7345
        %v7347 = vrot.slane %v7346, 2
        %v7348 = vadd.f32 %v7346, %v7347
        %v7349 = vrot.slane %v7348, 1
        %v7350 = vadd.f32 %v7348, %v7349
        %v7351 = vadd.f32 %v6346, %v6354
        %v7352 = vadd.f32 %v7351, %v6362
        %v7353 = vadd.f32 %v7352, %v6370
        %v7354 = vadd.f32 %v7353, %v6378
        %v7355 = vadd.f32 %v7354, %v6386
        %v7356 = vadd.f32 %v7355, %v6394
        %v7357 = vadd.f32 %v7356, %v6402
        %v7358 = vadd.f32 %v7357, %v6410
        %v7359 = vadd.f32 %v7358, %v6418
        %v7360 = vadd.f32 %v7359, %v6426
        %v7361 = vadd.f32 %v7360, %v6434
        %v7362 = vadd.f32 %v7361, %v6442
        %v7363 = vadd.f32 %v7362, %v6450
        %v7364 = vadd.f32 %v7363, %v6458
        %v7365 = vadd.f32 %v7364, %v6466
        %v7366 = vadd.f32 %v7365, %v6474
        %v7367 = vadd.f32 %v7366, %v6482
        %v7368 = vadd.f32 %v7367, %v6490
        %v7369 = vadd.f32 %v7368, %v6498
        %v7370 = vadd.f32 %v7369, %v6506
        %v7371 = vadd.f32 %v7370, %v6514
        %v7372 = vadd.f32 %v7371, %v6522
        %v7373 = vadd.f32 %v7372, %v6530
        %v7374 = vadd.f32 %v7373, %v6538
        %v7375 = vadd.f32 %v7374, %v6546
        %v7376 = vadd.f32 %v7375, %v6554
        %v7377 = vadd.f32 %v7376, %v6562
        %v7378 = vadd.f32 %v7377, %v6570
        %v7379 = vadd.f32 %v7378, %v6578
        %v7380 = vadd.f32 %v7379, %v6586
        %v7381 = vadd.f32 %v7380, %v6594
        %v7382 = vadd.f32 %v7381, %v6602
        %v7383 = vadd.f32 %v7382, %v6610
        %v7384 = vadd.f32 %v7383, %v6618
        %v7385 = vadd.f32 %v7384, %v6626
        %v7386 = vadd.f32 %v7385, %v6634
        %v7387 = vadd.f32 %v7386, %v6642
        %v7388 = vadd.f32 %v7387, %v6650
        %v7389 = vadd.f32 %v7388, %v6658
        %v7390 = vadd.f32 %v7389, %v6666
        %v7391 = vadd.f32 %v7390, %v6674
        %v7392 = vadd.f32 %v7391, %v6682
        %v7393 = vadd.f32 %v7392, %v6690
        %v7394 = vadd.f32 %v7393, %v6698
        %v7395 = vadd.f32 %v7394, %v6706
        %v7396 = vadd.f32 %v7395, %v6714
        %v7397 = vadd.f32 %v7396, %v6722
        %v7398 = vadd.f32 %v7397, %v6730
        %v7399 = vadd.f32 %v7398, %v6738
        %v7400 = vadd.f32 %v7399, %v6746
        %v7401 = vadd.f32 %v7400, %v6754
        %v7402 = vadd.f32 %v7401, %v6762
        %v7403 = vadd.f32 %v7402, %v6770
        %v7404 = vadd.f32 %v7403, %v6778
        %v7405 = vadd.f32 %v7404, %v6786
        %v7406 = vadd.f32 %v7405, %v6794
        %v7407 = vadd.f32 %v7406, %v6802
        %v7408 = vadd.f32 %v7407, %v6810
        %v7409 = vadd.f32 %v7408, %v6818
        %v7410 = vadd.f32 %v7409, %v6826
        %v7411 = vadd.f32 %v7410, %v6834
        %v7412 = vadd.f32 %v7411, %v6842
        %v7413 = vadd.f32 %v7412, %v6850
        %v7414 = vadd.f32 %v7413, %v6858
        %v7415 = vadd.f32 %v7414, %v6866
        %v7416 = vadd.f32 %v7415, %v6874
        %v7417 = vadd.f32 %v7416, %v6882
        %v7418 = vadd.f32 %v7417, %v6890
        %v7419 = vadd.f32 %v7418, %v6898
        %v7420 = vadd.f32 %v7419, %v6906
        %v7421 = vadd.f32 %v7420, %v6914
        %v7422 = vadd.f32 %v7421, %v6922
        %v7423 = vadd.f32 %v7422, %v6930
        %v7424 = vadd.f32 %v7423, %v6938
        %v7425 = vadd.f32 %v7424, %v6946
        %v7426 = vadd.f32 %v7425, %v6954
        %v7427 = vadd.f32 %v7426, %v6962
        %v7428 = vadd.f32 %v7427, %v6970
        %v7429 = vadd.f32 %v7428, %v6978
        %v7430 = vadd.f32 %v7429, %v6986
        %v7431 = vadd.f32 %v7430, %v6994
        %v7432 = vadd.f32 %v7431, %v7002
        %v7433 = vadd.f32 %v7432, %v7010
        %v7434 = vadd.f32 %v7433, %v7018
        %v7435 = vadd.f32 %v7434, %v7026
        %v7436 = vadd.f32 %v7435, %v7034
        %v7437 = vadd.f32 %v7436, %v7042
        %v7438 = vadd.f32 %v7437, %v7050
        %v7439 = vadd.f32 %v7438, %v7058
        %v7440 = vadd.f32 %v7439, %v7066
        %v7441 = vadd.f32 %v7440, %v7074
        %v7442 = vadd.f32 %v7441, %v7082
        %v7443 = vadd.f32 %v7442, %v7090
        %v7444 = vadd.f32 %v7443, %v7098
        %v7445 = vadd.f32 %v7444, %v7106
        %v7446 = vadd.f32 %v7445, %v7114
        %v7447 = vadd.f32 %v7446, %v7122
        %v7448 = vadd.f32 %v7447, %v7130
        %v7449 = vadd.f32 %v7448, %v7138
        %v7450 = vrot.slane %v7449, 4
        %v7451 = vadd.f32 %v7449, %v7450
        %v7452 = vrot.slane %v7451, 2
        %v7453 = vadd.f32 %v7451, %v7452
        %v7454 = vrot.slane %v7453, 1
        %v7455 = vadd.f32 %v7453, %v7454
        %v7456 = vadd.f32 %v6348, %v6356
        %v7457 = vadd.f32 %v7456, %v6364
        %v7458 = vadd.f32 %v7457, %v6372
        %v7459 = vadd.f32 %v7458, %v6380
        %v7460 = vadd.f32 %v7459, %v6388
        %v7461 = vadd.f32 %v7460, %v6396
        %v7462 = vadd.f32 %v7461, %v6404
        %v7463 = vadd.f32 %v7462, %v6412
        %v7464 = vadd.f32 %v7463, %v6420
        %v7465 = vadd.f32 %v7464, %v6428
        %v7466 = vadd.f32 %v7465, %v6436
        %v7467 = vadd.f32 %v7466, %v6444
        %v7468 = vadd.f32 %v7467, %v6452
        %v7469 = vadd.f32 %v7468, %v6460
        %v7470 = vadd.f32 %v7469, %v6468
        %v7471 = vadd.f32 %v7470, %v6476
        %v7472 = vadd.f32 %v7471, %v6484
        %v7473 = vadd.f32 %v7472, %v6492
        %v7474 = vadd.f32 %v7473, %v6500
        %v7475 = vadd.f32 %v7474, %v6508
        %v7476 = vadd.f32 %v7475, %v6516
        %v7477 = vadd.f32 %v7476, %v6524
        %v7478 = vadd.f32 %v7477, %v6532
        %v7479 = vadd.f32 %v7478, %v6540
        %v7480 = vadd.f32 %v7479, %v6548
        %v7481 = vadd.f32 %v7480, %v6556
        %v7482 = vadd.f32 %v7481, %v6564
        %v7483 = vadd.f32 %v7482, %v6572
        %v7484 = vadd.f32 %v7483, %v6580
        %v7485 = vadd.f32 %v7484, %v6588
        %v7486 = vadd.f32 %v7485, %v6596
        %v7487 = vadd.f32 %v7486, %v6604
        %v7488 = vadd.f32 %v7487, %v6612
        %v7489 = vadd.f32 %v7488, %v6620
        %v7490 = vadd.f32 %v7489, %v6628
        %v7491 = vadd.f32 %v7490, %v6636
        %v7492 = vadd.f32 %v7491, %v6644
        %v7493 = vadd.f32 %v7492, %v6652
        %v7494 = vadd.f32 %v7493, %v6660
        %v7495 = vadd.f32 %v7494, %v6668
        %v7496 = vadd.f32 %v7495, %v6676
        %v7497 = vadd.f32 %v7496, %v6684
        %v7498 = vadd.f32 %v7497, %v6692
        %v7499 = vadd.f32 %v7498, %v6700
        %v7500 = vadd.f32 %v7499, %v6708
        %v7501 = vadd.f32 %v7500, %v6716
        %v7502 = vadd.f32 %v7501, %v6724
        %v7503 = vadd.f32 %v7502, %v6732
        %v7504 = vadd.f32 %v7503, %v6740
        %v7505 = vadd.f32 %v7504, %v6748
        %v7506 = vadd.f32 %v7505, %v6756
        %v7507 = vadd.f32 %v7506, %v6764
        %v7508 = vadd.f32 %v7507, %v6772
        %v7509 = vadd.f32 %v7508, %v6780
        %v7510 = vadd.f32 %v7509, %v6788
        %v7511 = vadd.f32 %v7510, %v6796
        %v7512 = vadd.f32 %v7511, %v6804
        %v7513 = vadd.f32 %v7512, %v6812
        %v7514 = vadd.f32 %v7513, %v6820
        %v7515 = vadd.f32 %v7514, %v6828
        %v7516 = vadd.f32 %v7515, %v6836
        %v7517 = vadd.f32 %v7516, %v6844
        %v7518 = vadd.f32 %v7517, %v6852
        %v7519 = vadd.f32 %v7518, %v6860
        %v7520 = vadd.f32 %v7519, %v6868
        %v7521 = vadd.f32 %v7520, %v6876
        %v7522 = vadd.f32 %v7521, %v6884
        %v7523 = vadd.f32 %v7522, %v6892
        %v7524 = vadd.f32 %v7523, %v6900
        %v7525 = vadd.f32 %v7524, %v6908
        %v7526 = vadd.f32 %v7525, %v6916
        %v7527 = vadd.f32 %v7526, %v6924
        %v7528 = vadd.f32 %v7527, %v6932
        %v7529 = vadd.f32 %v7528, %v6940
        %v7530 = vadd.f32 %v7529, %v6948
        %v7531 = vadd.f32 %v7530, %v6956
        %v7532 = vadd.f32 %v7531, %v6964
        %v7533 = vadd.f32 %v7532, %v6972
        %v7534 = vadd.f32 %v7533, %v6980
        %v7535 = vadd.f32 %v7534, %v6988
        %v7536 = vadd.f32 %v7535, %v6996
        %v7537 = vadd.f32 %v7536, %v7004
        %v7538 = vadd.f32 %v7537, %v7012
        %v7539 = vadd.f32 %v7538, %v7020
        %v7540 = vadd.f32 %v7539, %v7028
        %v7541 = vadd.f32 %v7540, %v7036
        %v7542 = vadd.f32 %v7541, %v7044
        %v7543 = vadd.f32 %v7542, %v7052
        %v7544 = vadd.f32 %v7543, %v7060
        %v7545 = vadd.f32 %v7544, %v7068
        %v7546 = vadd.f32 %v7545, %v7076
        %v7547 = vadd.f32 %v7546, %v7084
        %v7548 = vadd.f32 %v7547, %v7092
        %v7549 = vadd.f32 %v7548, %v7100
        %v7550 = vadd.f32 %v7549, %v7108
        %v7551 = vadd.f32 %v7550, %v7116
        %v7552 = vadd.f32 %v7551, %v7124
        %v7553 = vadd.f32 %v7552, %v7132
        %v7554 = vadd.f32 %v7553, %v7140
        %v7555 = vrot.slane %v7554, 4
        %v7556 = vadd.f32 %v7554, %v7555
        %v7557 = vrot.slane %v7556, 2
        %v7558 = vadd.f32 %v7556, %v7557
        %v7559 = vrot.slane %v7558, 1
        %v7560 = vadd.f32 %v7558, %v7559
        %v7565 = vcombine.low %v7245, %v7350
        %v7566 = vcombine.low %v7455, %v7560
        %v7568 = vunpack.c.l.s4 1966171168
        %v7569 = vunpack.c.0.s8 %v7568
        %v7570 = vlaneseq
        %v7571 = vshrl.u32 %v7570, 7
        %v7572 = vsub.s32 %v7569, %v7571
        %v7573 = vrot.slane %v7565, %v7572
        %v7575 = vunpack.c.l.s4 1966171168
        %v7576 = vunpack.c.0.s8 %v7575
        %v7577 = vlaneseq
        %v7578 = vshrl.u32 %v7577, 7
        %v7579 = vsub.s32 %v7576, %v7578
        %v7580 = vrot.slane %v7566, %v7579
        %v7581 = vcombine.low %v7573, %v7580
        %v7583 = vunpack.c.l.s4 1966171168
        %v7584 = vunpack.c.0.s8 %v7583
        %v7585 = vlaneseq
        %v7586 = vshrl.u32 %v7585, 7
        %v7587 = vsub.s32 %v7584, %v7586
        %v7588 = vrot.slane %v7581, %v7587
        %v7590 = vadd.f32 %v6340, %v7588
        %v7591 = vadd.f32 %v7590, 1e-08
        %v7592 = vrcp.pop %v7591
        %v7593 = vmul.f32 %v6340, %v7592
        %v7594 = vld [vmem:[%s424] sm:$0xf]
        %vm7595 = vcmp.gt.f32.partialorder %v7594, 0.1
        %v7596 = vld [vmem:[%s419] sm:$0xf]
        %vm7597 = vcmp.lt.f32.partialorder %v7596, %v7594
        %vm7598 = vmand %vm7595, %vm7597
        %v7599 = vsel %vm7598, 1, 0
        %v7600 = vcvt.s32.f32 %v7599
        %v7601 = vadd.f32 %v7593, 1e-08
        %v7602 = vlog2.pop %v7601
        %v7603 = vmul.f32 %v7602, 0.6931472
        %v7604 = vsub.f32 0.0, %v7603
        %v7605 = vmul.f32 %v7604, %v7600
        %v7606 = vlaneseq
        %vm7607 = vcmp.ge.s32.totalorder %v7606, 0
        %vm7608 = vcmp.lt.s32.totalorder %v7606, 512
        %vm7609 = vmand %vm7607, %vm7608
        %7610 = vst.msk [vmem:[%s397] sm:$0xf] %vm7609, %v7605
        %7611 = vst.msk [vmem:[%s404] sm:$0xf] %vm7609, %v7600
        %s7612 = sand.u32 %s206, 1
        %s7613 = scalar_lea.sflag [#allocation4], %s7612
        %s7614 = sand.u32 %s206, 1
        %s7615 = smul.addr %s7614, 4
        %s7616 = scalar_lea.vmem [#allocation3], %s7615
        %s7617 = sand.u32 %s232, 1
        %s7618 = scalar_lea.sflag [#allocation6], %s7617
        %s7619 = sand.u32 %s232, 1
        %s7620 = smul.addr %s7619, 4
        %s7621 = scalar_lea.vmem [#allocation5], %s7620
        // Predicated region
        $region72: #{tpu_custom_call.1} parent=66 // pred_check
          %p7622 = pneg %p216
        $region73: #{tpu_custom_call.1} parent=66 // pred_check_branch
          %7624 = sbr.rel (%p7622) target = $region75
        $region74: #{tpu_custom_call.1} parent=66 // pred_region
          %s7625 = smul.u32 4, %s26
          %s7627 = ssub.s32 64, 64
          %7628 = vsyncadd %s7613, %s7627
          %s7629 = smul.addr %s7625, 16
          %s7630 = scalar_lea.hbm %s7, %s7629
          %s7632 = sshll.u32 %s7616, 4
          %s7633 = int_to_ptr.vmem [resolvable:$true] %s7632
          %7635 = dma.vmem_to_hbm [thread:$0]  %s7633, 64, %s7630, %s7613
        $region75: #{tpu_custom_call.1} parent=66 // pred_fallthru
          _
        // Predicated region
        $region76: #{tpu_custom_call.1} parent=66 // pred_check
          %p7636 = pneg %p242
        $region77: #{tpu_custom_call.1} parent=66 // pred_check_branch
          %7638 = sbr.rel (%p7636) target = $region79
        $region78: #{tpu_custom_call.1} parent=66 // pred_region
          %s7639 = smul.u32 4, %s26
          %s7641 = ssub.s32 64, 64
          %7642 = vsyncadd %s7618, %s7641
          %s7643 = smul.addr %s7639, 16
          %s7644 = scalar_lea.hbm %s8, %s7643
          %s7646 = sshll.u32 %s7621, 4
          %s7647 = int_to_ptr.vmem [resolvable:$true] %s7646
          %7649 = dma.vmem_to_hbm [thread:$0]  %s7647, 64, %s7644, %s7618
        $region79: #{tpu_custom_call.1} parent=66 // pred_fallthru
          _
      $region67: #{tpu_custom_call.1} parent=5 // pred_fallthru
        _
      %p7650 = scmp.le.s32.totalorder 2, %s21
      // Predicated region
      $region80: #{tpu_custom_call.1} parent=5 // pred_check
        %p7651 = pneg %p7650
      $region81: #{tpu_custom_call.1} parent=5 // pred_check_branch
        %7653 = sbr.rel (%p7651) target = $region83
      $region82: #{tpu_custom_call.1} parent=5 // pred_region
        %s7654 = ssub.s32 %s21, 2
        // Predicated region
        $region84: #{tpu_custom_call.1} parent=82 // pred_check
          %p7655 = pneg %p222
        $region85: #{tpu_custom_call.1} parent=82 // pred_check_branch
          %7657 = sbr.rel (%p7655) target = $region87
        $region86: #{tpu_custom_call.1} parent=82 // pred_region
          %s7658 = sand.u32 %s207, 1
          %s7659 = scalar_lea.sflag [#allocation4], %s7658
          %s7660 = sand.u32 %s207, 1
          %s7661 = smul.addr %s7660, 4
          %s7662 = scalar_lea.vmem [#allocation3], %s7661
          %7663 = dma.done %s7659, 64
        $region87: #{tpu_custom_call.1} parent=82 // pred_fallthru
          _
        // Predicated region
        $region88: #{tpu_custom_call.1} parent=82 // pred_check
          %p7664 = pneg %p248
        $region89: #{tpu_custom_call.1} parent=82 // pred_check_branch
          %7666 = sbr.rel (%p7664) target = $region91
        $region90: #{tpu_custom_call.1} parent=82 // pred_region
          %s7667 = sand.u32 %s233, 1
          %s7668 = scalar_lea.sflag [#allocation6], %s7667
          %s7669 = sand.u32 %s233, 1
          %s7670 = smul.addr %s7669, 4
          %s7671 = scalar_lea.vmem [#allocation5], %s7670
          %7672 = dma.done %s7668, 64
        $region91: #{tpu_custom_call.1} parent=82 // pred_fallthru
          _
      $region83: #{tpu_custom_call.1} parent=5 // pred_fallthru
        _
    $region6: #{tpu_custom_call.1} parent=1 // loop_footer
      %s25 = sadd.s32 1, %s21
    $region7: #{tpu_custom_call.1} parent=1 // loop_footer_branch
      %20 = sbr.rel target = $region3
    $region8: #{tpu_custom_call.1} parent=1 // loop_exit
      _
    %7673 = vsyncpa [#allocation4], 1
    %s7674 = scalar_lea.sflag [#allocation4], 1
    %7675 = vsyncpa %s7674, 1
    %7676 = vsyncpa [#allocation6], 1
    %s7677 = scalar_lea.sflag [#allocation6], 1
    %7678 = vsyncpa %s7677, 1

</llo_original>
